<compile_context>
chip_gen: v7x
topology: tpu7x:2x2x1
jax: 0.10.0
libtpu: 0.0.40
codegen_flags: <defaults>
</compile_context>

<pallas_src>
import functools

import jax
import jax.numpy as jnp
from jax.experimental import pallas as pl
from jax.experimental.pallas import tpu as pltpu

C = 128                                    # padded channel width (TPU lanes)
KTAPS = 16                                 # 9 conv taps, padded to sublane multiple
_TAPS = tuple((dy, dx) for dy in range(3) for dx in range(3))


# ---------------------------------------------------------------------------
# Fused whole-model kernel (one grid step = one image)
# ---------------------------------------------------------------------------

def _autoencoder_kernel(x1_ref, w1_ref, w2_ref, w4_ref, w5_ref, b_ref,
                        o_ref, p2_ref, p4_ref, p5_ref, *, H, W):
    f32 = jnp.float32
    H2, W2 = H // 2, W // 2

    # ---- helpers (fully unrolled; everything stays in VMEM) ----------------
    def zero_border(dst_ref, h, w):
        """Zero only the 1-px halo of a (h+2, w+2, C) padded scratch buffer."""
        dst_ref[0:1, :, :] = jnp.zeros((1, w + 2, C), f32)
        dst_ref[h + 1:h + 2, :, :] = jnp.zeros((1, w + 2, C), f32)
        dst_ref[1:h + 1, 0:1, :] = jnp.zeros((h, 1, C), f32)
        dst_ref[1:h + 1, w + 1:w + 2, :] = jnp.zeros((h, 1, C), f32)

    def conv3x3_mxu_relu(src_ref, w_ref, b_row, h, w):
        """3x3 conv as 9 shifted-view bf16 matmuls over padded (h+2,w+2,C)."""
        acc = jnp.zeros((h * w, C), f32)
        for k, (dy, dx) in enumerate(_TAPS):
            xs = src_ref[dy:dy + h, dx:dx + w, :].reshape(h * w, C)
            acc = acc + jnp.dot(xs.astype(jnp.bfloat16), w_ref[k],
                                preferred_element_type=f32)
        return jnp.maximum(acc + b_row, 0.0)

    def maxpool_into(dst_ref, a, h, w):
        """2x2 max-pool of a ((h*w, C) raster slab) into dst's interior."""
        zero_border(dst_ref, h // 2, w // 2)
        a3 = a.reshape(h, w, C)
        for y in range(h // 2):
            rmax = jnp.maximum(a3[2 * y], a3[2 * y + 1])              # (w, C)
            dst_ref[1 + y, 1:1 + w // 2, :] = jnp.max(
                rmax.reshape(w // 2, 2, C), axis=1)                   # (w//2, C)

    def pool_upsample_into(dst_ref, a, h, w):
        """2x2 max-pool followed by nearest 2x upsample (stays h x w)."""
        zero_border(dst_ref, h, w)
        a3 = a.reshape(h, w, C)
        for y in range(h // 2):
            rmax = jnp.maximum(a3[2 * y], a3[2 * y + 1])              # (w, C)
            pr = jnp.max(rmax.reshape(w // 2, 2, C), axis=1)          # (w//2, C)
            row = jnp.broadcast_to(pr[:, None, :],
                                   (w // 2, 2, C)).reshape(w, C)      # dup cols
            dst_ref[1 + 2 * y:3 + 2 * y, 1:1 + w, :] = jnp.broadcast_to(
                row[None], (2, w, C))                                 # dup rows

    def upsample_into(dst_ref, a, h, w):
        """Nearest 2x upsample of ((h*w, C)) into dst interior (2h x 2w)."""
        zero_border(dst_ref, 2 * h, 2 * w)
        a3 = a.reshape(h, w, C)
        for y in range(h):
            row = jnp.broadcast_to(a3[y][:, None, :],
                                   (w, 2, C)).reshape(2 * w, C)       # dup cols
            dst_ref[1 + 2 * y:3 + 2 * y, 1:1 + 2 * w, :] = jnp.broadcast_to(
                row[None], (2, 2 * w, C))                             # dup rows

    # ---- conv1 (1 -> 16) + ReLU: one f32 MXU matmul over padded taps -------
    a1 = jnp.maximum(
        jnp.dot(x1_ref[0], w1_ref[...], preferred_element_type=f32)
        + b_ref[0:1, :], 0.0)                                         # (HW, C)

    # ---- 2x2 max-pool -> padded conv2 input --------------------------------
    maxpool_into(p2_ref, a1, H, W)

    # ---- conv2 (16 -> 4) + ReLU, then pool + upsample -> conv4 input -------
    a2 = conv3x3_mxu_relu(p2_ref, w2_ref, b_ref[1:2, :], H2, W2)
    pool_upsample_into(p4_ref, a2, H2, W2)

    # ---- conv4 (4 -> 16) + ReLU, then upsample -> conv5 input --------------
    a4 = conv3x3_mxu_relu(p4_ref, w4_ref, b_ref[2:3, :], H2, W2)
    upsample_into(p5_ref, a4, H2, W2)

    # ---- conv5 (16 -> 1) + sigmoid: multiply + lane-reduce over channels ---
    acc5 = jnp.zeros((H, W), f32)
    for k, (dy, dx) in enumerate(_TAPS):
        xs = p5_ref[dy:dy + H, dx:dx + W, :]                  # (H, W, C)
        acc5 = acc5 + jnp.sum(xs * w5_ref[k], axis=-1)        # (H, W)
    o_ref[0] = jax.nn.sigmoid(acc5 + b_ref[3:4, 0:1])


# ---------------------------------------------------------------------------
# Wrapper: parameter repacking (XLA, one-off, tiny) + pallas_call
# ---------------------------------------------------------------------------

def _prep_params(params):
    """Repack PyTorch-layout conv params into the kernel's padded layouts."""
    def taps_mat(w, cin, cout):            # (Cout,Cin,3,3) -> (9, C, C) bf16
        t = jnp.transpose(w, (2, 3, 1, 0)).reshape(9, cin, cout)
        t = jnp.pad(t, ((0, 0), (0, C - cin), (0, C - cout)))
        return t.astype(jnp.bfloat16)

    w1 = jnp.transpose(params["w1"], (2, 3, 1, 0)).reshape(9, 16)
    w1 = jnp.pad(w1, ((0, KTAPS - 9), (0, C - 16))).astype(jnp.float32)   # (16,C)

    w2 = taps_mat(params["w2"], 16, 4)
    w4 = taps_mat(params["w4"], 4, 16)

    w5 = jnp.transpose(params["w5"], (2, 3, 1, 0)).reshape(9, 1, 16)
    w5 = jnp.pad(w5, ((0, 0), (0, 0), (0, C - 16))).astype(jnp.float32)   # (9,1,C)

    pad = lambda v: jnp.pad(v, (0, C - v.shape[0]))
    b = jnp.stack([pad(params["b1"]), pad(params["b2"]),
                   pad(params["b4"]), pad(params["b5"])])      # (4, C)
    return w1, w2, w4, w5, b


def conv_autoencoder_forward(x_nchw, params):
    N, cin, H, W = x_nchw.shape
    assert cin == 1 and H % 4 == 0 and W % 4 == 0
    H2, W2 = H // 2, W // 2

    # conv1 has Cin=1, so its "im2col" is just the 9 shifted copies of the
    # (tiny) padded input image, lane-padded to 16 taps: (N, H*W, 16) ~16 KB/img.
    x = x_nchw[:, 0].astype(jnp.float32)
    xp = jnp.pad(x, ((0, 0), (1, 1), (1, 1)))
    x1 = jnp.concatenate(
        [xp[:, dy:dy + H, dx:dx + W].reshape(N, H * W, 1) for dy, dx in _TAPS],
        axis=-1)
    x1 = jnp.pad(x1, ((0, 0), (0, 0), (0, KTAPS - 9)))

    w1, w2, w4, w5, b = _prep_params(params)

    out = pl.pallas_call(
        functools.partial(_autoencoder_kernel, H=H, W=W),
        out_shape=jax.ShapeDtypeStruct((N, H, W), jnp.float32),
        grid_spec=pltpu.PrefetchScalarGridSpec(
            num_scalar_prefetch=0,
            grid=(N,),
            in_specs=[
                pl.BlockSpec((1, H * W, KTAPS), lambda i: (i, 0, 0)),  # patches
                pl.BlockSpec((KTAPS, C), lambda i: (0, 0)),            # w1
                pl.BlockSpec((9, C, C), lambda i: (0, 0, 0)),          # w2
                pl.BlockSpec((9, C, C), lambda i: (0, 0, 0)),          # w4
                pl.BlockSpec((9, 1, C), lambda i: (0, 0, 0)),          # w5
                pl.BlockSpec((4, C), lambda i: (0, 0)),                # biases
            ],
            out_specs=pl.BlockSpec((1, H, W), lambda i: (i, 0, 0)),
            scratch_shapes=[
                pltpu.VMEM((H2 + 2, W2 + 2, C), jnp.float32),   # conv2 input
                pltpu.VMEM((H2 + 2, W2 + 2, C), jnp.float32),   # conv4 input
                pltpu.VMEM((H + 2, W + 2, C), jnp.float32),     # conv5 input
            ]),
        compiler_params=pltpu.CompilerParams(
            dimension_semantics=("parallel",)),
    )(x1, w1, w2, w4, w5, b)
    return out[:, None, :, :]                                   # NHW -> NCHW


# ---------------------------------------------------------------------------
# Params + pure-JAX reference (correctness check only)
# ---------------------------------------------------------------------------

def init_params(key):
    """Deterministic PyTorch-style (uniform +-1/sqrt(fan_in)) init."""
    def conv_init(k, cout, cin):
        kw, kb = jax.random.split(k)
        bound = 1.0 / (cin * 9) ** 0.5
        w = jax.random.uniform(kw, (cout, cin, 3, 3), jnp.float32, -bound, bound)
        b = jax.random.uniform(kb, (cout,), jnp.float32, -bound, bound)
        return w, b

    k1, k2, k4, k5 = jax.random.split(key, 4)
    w1, b1 = conv_init(k1, 16, 1)
    w2, b2 = conv_init(k2, 4, 16)
    w4, b4 = conv_init(k4, 16, 4)
    w5, b5 = conv_init(k5, 1, 16)
    return dict(w1=w1, b1=b1, w2=w2, b2=b2, w4=w4, b4=b4, w5=w5, b5=b5)


def _reference_forward(x_nchw, params):
    def conv(x, w, b):
        y = jax.lax.conv_general_dilated(
            x, w, window_strides=(1, 1), padding="SAME",
            dimension_numbers=("NCHW", "OIHW", "NCHW"))
        return y + b[None, :, None, None]

    def pool(x):
        return jax.lax.reduce_window(x, -jnp.inf, jax.lax.max,
                                     (1, 1, 2, 2), (1, 1, 2, 2), "VALID")

    def up(x):
        return jnp.repeat(jnp.repeat(x, 2, axis=2), 2, axis=3)

    x = jax.nn.relu(conv(x_nchw, params["w1"], params["b1"]))
    x = pool(x)
    x = jax.nn.relu(conv(x, params["w2"], params["b2"]))
    x = pool(x)
    x = up(x)
    x = jax.nn.relu(conv(x, params["w4"], params["b4"]))
    x = up(x)
    x = jax.nn.sigmoid(conv(x, params["w5"], params["b5"]))
    return x


if __name__ == "__main__":
    key = jax.random.PRNGKey(0)
    kx, kp = jax.random.split(key)
    x = jax.random.normal(kx, (2, 1, 16, 16), jnp.float32)   # NCHW like PyTorch
    params = init_params(kp)

    out = jax.block_until_ready(jax.jit(conv_autoencoder_forward)(x, params))
    assert out.shape == (2, 1, 16, 16), out.shape

    ref = _reference_forward(x, params)
    err = float(jnp.max(jnp.abs(out - ref)))
    assert err < 1e-2, f"max abs err {err}"   # bf16 MXU inputs, f32 accumulation

    print("KERNEL_OK")
</pallas_src>

<mosaic_0001>
module attributes {stable_mosaic.version = 11 : i64} {
  func.func @_autoencoder_kernel(%arg0: i32, %arg1: memref<1x256x16xf32, #tpu.memory_space<vmem>>, %arg2: memref<16x128xf32, #tpu.memory_space<vmem>>, %arg3: memref<9x128x128xbf16, #tpu.memory_space<vmem>>, %arg4: memref<9x128x128xbf16, #tpu.memory_space<vmem>>, %arg5: memref<9x1x128xf32, #tpu.memory_space<vmem>>, %arg6: memref<4x128xf32, #tpu.memory_space<vmem>>, %arg7: memref<1x16x16xf32, #tpu.memory_space<vmem>>, %arg8: memref<10x10x128xf32, #tpu.memory_space<vmem>>, %arg9: memref<10x10x128xf32, #tpu.memory_space<vmem>>, %arg10: memref<18x18x128xf32, #tpu.memory_space<vmem>>) attributes {dimension_semantics = [#tpu.dimension_semantics<parallel>], iteration_bounds = array<i64: 2>, scalar_prefetch = 0 : i64, scratch_operands = 3 : i64, tpu.core_type = #tpu.core_type<tc>, window_params = [{transform_indices = @transform_0, window_bounds = array<i64: 1, 256, 16>}, {pipeline_mode = #tpu.pipeline_mode<synchronous>, transform_indices = @transform_1, window_bounds = array<i64: 16, 128>}, {pipeline_mode = #tpu.pipeline_mode<synchronous>, transform_indices = @transform_2, window_bounds = array<i64: 9, 128, 128>}, {pipeline_mode = #tpu.pipeline_mode<synchronous>, transform_indices = @transform_3, window_bounds = array<i64: 9, 128, 128>}, {pipeline_mode = #tpu.pipeline_mode<synchronous>, transform_indices = @transform_4, window_bounds = array<i64: 9, 1, 128>}, {pipeline_mode = #tpu.pipeline_mode<synchronous>, transform_indices = @transform_5, window_bounds = array<i64: 4, 128>}, {transform_indices = @transform_6, window_bounds = array<i64: 1, 16, 16>}]} {
    %c0 = arith.constant 0 : index
    %c0_0 = arith.constant 0 : index
    %c0_1 = arith.constant 0 : index
    %0 = vector.load %arg1[%c0, %c0_0, %c0_1] : memref<1x256x16xf32, #tpu.memory_space<vmem>>, vector<1x256x16xf32>
    %1 = vector.shape_cast %0 : vector<1x256x16xf32> to vector<256x16xf32>
    %c0_2 = arith.constant 0 : index
    %c0_3 = arith.constant 0 : index
    %2 = vector.load %arg2[%c0_2, %c0_3] : memref<16x128xf32, #tpu.memory_space<vmem>>, vector<16x128xf32>
    %cst = arith.constant dense<0.000000e+00> : vector<256x128xf32>
    %3 = tpu.matmul %1, %2, %cst {dimension_numbers = #tpu.dot_dimension_numbers<[1], [0], [0], [1], [0, 0, 1, 1], [], []>} : vector<256x16xf32>, vector<16x128xf32>, vector<256x128xf32> -> vector<256x128xf32>
    %c0_4 = arith.constant 0 : index
    %c0_5 = arith.constant 0 : index
    %4 = vector.load %arg6[%c0_4, %c0_5] : memref<4x128xf32, #tpu.memory_space<vmem>>, vector<1x128xf32>
    %5 = vector.broadcast %4 : vector<1x128xf32> to vector<256x128xf32>
    %6 = arith.addf %3, %5 : vector<256x128xf32>
    %cst_6 = arith.constant 0.000000e+00 : f32
    %7 = vector.broadcast %cst_6 : f32 to vector<256x128xf32>
    %8 = arith.maximumf %6, %7 : vector<256x128xf32>
    %cst_7 = arith.constant 0.000000e+00 : f32
    %9 = vector.broadcast %cst_7 : f32 to vector<1x10x128xf32>
    %c0_8 = arith.constant 0 : index
    %c0_9 = arith.constant 0 : index
    %c0_10 = arith.constant 0 : index
    %10 = vector.load %arg8[%c0_8, %c0_9, %c0_10] : memref<10x10x128xf32, #tpu.memory_space<vmem>>, vector<1x10x128xf32>
    tpu.vector_store %arg8[%c0_8, %c0_9, %c0_10], %9 {strides = array<i32>} : memref<10x10x128xf32, #tpu.memory_space<vmem>>, vector<1x10x128xf32>,
    %cst_11 = arith.constant 0.000000e+00 : f32
    %11 = vector.broadcast %cst_11 : f32 to vector<1x10x128xf32>
    %c9 = arith.constant 9 : index
    %c0_12 = arith.constant 0 : index
    %c0_13 = arith.constant 0 : index
    %12 = vector.load %arg8[%c9, %c0_12, %c0_13] : memref<10x10x128xf32, #tpu.memory_space<vmem>>, vector<1x10x128xf32>
    tpu.vector_store %arg8[%c9, %c0_12, %c0_13], %11 {strides = array<i32>} : memref<10x10x128xf32, #tpu.memory_space<vmem>>, vector<1x10x128xf32>,
    %cst_14 = arith.constant 0.000000e+00 : f32
    %13 = vector.broadcast %cst_14 : f32 to vector<8x1x128xf32>
    %c1 = arith.constant 1 : index
    %c0_15 = arith.constant 0 : index
    %c0_16 = arith.constant 0 : index
    %14 = vector.load %arg8[%c1, %c0_15, %c0_16] : memref<10x10x128xf32, #tpu.memory_space<vmem>>, vector<8x1x128xf32>
    tpu.vector_store %arg8[%c1, %c0_15, %c0_16], %13 {strides = array<i32>} : memref<10x10x128xf32, #tpu.memory_space<vmem>>, vector<8x1x128xf32>,
    %cst_17 = arith.constant 0.000000e+00 : f32
    %15 = vector.broadcast %cst_17 : f32 to vector<8x1x128xf32>
    %c1_18 = arith.constant 1 : index
    %c9_19 = arith.constant 9 : index
    %c0_20 = arith.constant 0 : index
    %16 = vector.load %arg8[%c1_18, %c9_19, %c0_20] : memref<10x10x128xf32, #tpu.memory_space<vmem>>, vector<8x1x128xf32>
    tpu.vector_store %arg8[%c1_18, %c9_19, %c0_20], %15 {strides = array<i32>} : memref<10x10x128xf32, #tpu.memory_space<vmem>>, vector<8x1x128xf32>,
    %17 = vector.shape_cast %8 : vector<256x128xf32> to vector<16x16x128xf32>
    %18 = vector.extract_strided_slice %17 {offsets = [0, 0, 0], sizes = [1, 16, 128], strides = [1, 1, 1]} : vector<16x16x128xf32> to vector<1x16x128xf32>
    %19 = vector.shape_cast %18 : vector<1x16x128xf32> to vector<16x128xf32>
    %20 = vector.extract_strided_slice %17 {offsets = [1, 0, 0], sizes = [1, 16, 128], strides = [1, 1, 1]} : vector<16x16x128xf32> to vector<1x16x128xf32>
    %21 = vector.shape_cast %20 : vector<1x16x128xf32> to vector<16x128xf32>
    %22 = arith.maximumf %19, %21 : vector<16x128xf32>
    %23 = vector.shape_cast %22 : vector<16x128xf32> to vector<8x2x128xf32>
    %cst_21 = arith.constant dense<0xFF800000> : vector<8x128xf32>
    %24 = vector.multi_reduction <maximumf>, %23, %cst_21 [1] : vector<8x2x128xf32> to vector<8x128xf32>
    %c1_22 = arith.constant 1 : index
    %c1_23 = arith.constant 1 : index
    %c0_24 = arith.constant 0 : index
    %25 = vector.load %arg8[%c1_22, %c1_23, %c0_24] : memref<10x10x128xf32, #tpu.memory_space<vmem>>, vector<1x8x128xf32>
    %26 = vector.shape_cast %25 : vector<1x8x128xf32> to vector<8x128xf32>
    %27 = vector.shape_cast %24 : vector<8x128xf32> to vector<1x8x128xf32>
    tpu.vector_store %arg8[%c1_22, %c1_23, %c0_24], %27 {strides = array<i32>} : memref<10x10x128xf32, #tpu.memory_space<vmem>>, vector<1x8x128xf32>,
    %28 = vector.extract_strided_slice %17 {offsets = [2, 0, 0], sizes = [1, 16, 128], strides = [1, 1, 1]} : vector<16x16x128xf32> to vector<1x16x128xf32>
    %29 = vector.shape_cast %28 : vector<1x16x128xf32> to vector<16x128xf32>
    %30 = vector.extract_strided_slice %17 {offsets = [3, 0, 0], sizes = [1, 16, 128], strides = [1, 1, 1]} : vector<16x16x128xf32> to vector<1x16x128xf32>
    %31 = vector.shape_cast %30 : vector<1x16x128xf32> to vector<16x128xf32>
    %32 = arith.maximumf %29, %31 : vector<16x128xf32>
    %33 = vector.shape_cast %32 : vector<16x128xf32> to vector<8x2x128xf32>
    %cst_25 = arith.constant dense<0xFF800000> : vector<8x128xf32>
    %34 = vector.multi_reduction <maximumf>, %33, %cst_25 [1] : vector<8x2x128xf32> to vector<8x128xf32>
    %c2 = arith.constant 2 : index
    %c1_26 = arith.constant 1 : index
    %c0_27 = arith.constant 0 : index
    %35 = vector.load %arg8[%c2, %c1_26, %c0_27] : memref<10x10x128xf32, #tpu.memory_space<vmem>>, vector<1x8x128xf32>
    %36 = vector.shape_cast %35 : vector<1x8x128xf32> to vector<8x128xf32>
    %37 = vector.shape_cast %34 : vector<8x128xf32> to vector<1x8x128xf32>
    tpu.vector_store %arg8[%c2, %c1_26, %c0_27], %37 {strides = array<i32>} : memref<10x10x128xf32, #tpu.memory_space<vmem>>, vector<1x8x128xf32>,
    %38 = vector.extract_strided_slice %17 {offsets = [4, 0, 0], sizes = [1, 16, 128], strides = [1, 1, 1]} : vector<16x16x128xf32> to vector<1x16x128xf32>
    %39 = vector.shape_cast %38 : vector<1x16x128xf32> to vector<16x128xf32>
    %40 = vector.extract_strided_slice %17 {offsets = [5, 0, 0], sizes = [1, 16, 128], strides = [1, 1, 1]} : vector<16x16x128xf32> to vector<1x16x128xf32>
    %41 = vector.shape_cast %40 : vector<1x16x128xf32> to vector<16x128xf32>
    %42 = arith.maximumf %39, %41 : vector<16x128xf32>
    %43 = vector.shape_cast %42 : vector<16x128xf32> to vector<8x2x128xf32>
    %cst_28 = arith.constant dense<0xFF800000> : vector<8x128xf32>
    %44 = vector.multi_reduction <maximumf>, %43, %cst_28 [1] : vector<8x2x128xf32> to vector<8x128xf32>
    %c3 = arith.constant 3 : index
    %c1_29 = arith.constant 1 : index
    %c0_30 = arith.constant 0 : index
    %45 = vector.load %arg8[%c3, %c1_29, %c0_30] : memref<10x10x128xf32, #tpu.memory_space<vmem>>, vector<1x8x128xf32>
    %46 = vector.shape_cast %45 : vector<1x8x128xf32> to vector<8x128xf32>
    %47 = vector.shape_cast %44 : vector<8x128xf32> to vector<1x8x128xf32>
    tpu.vector_store %arg8[%c3, %c1_29, %c0_30], %47 {strides = array<i32>} : memref<10x10x128xf32, #tpu.memory_space<vmem>>, vector<1x8x128xf32>,
    %48 = vector.extract_strided_slice %17 {offsets = [6, 0, 0], sizes = [1, 16, 128], strides = [1, 1, 1]} : vector<16x16x128xf32> to vector<1x16x128xf32>
    %49 = vector.shape_cast %48 : vector<1x16x128xf32> to vector<16x128xf32>
    %50 = vector.extract_strided_slice %17 {offsets = [7, 0, 0], sizes = [1, 16, 128], strides = [1, 1, 1]} : vector<16x16x128xf32> to vector<1x16x128xf32>
    %51 = vector.shape_cast %50 : vector<1x16x128xf32> to vector<16x128xf32>
    %52 = arith.maximumf %49, %51 : vector<16x128xf32>
    %53 = vector.shape_cast %52 : vector<16x128xf32> to vector<8x2x128xf32>
    %cst_31 = arith.constant dense<0xFF800000> : vector<8x128xf32>
    %54 = vector.multi_reduction <maximumf>, %53, %cst_31 [1] : vector<8x2x128xf32> to vector<8x128xf32>
    %c4 = arith.constant 4 : index
    %c1_32 = arith.constant 1 : index
    %c0_33 = arith.constant 0 : index
    %55 = vector.load %arg8[%c4, %c1_32, %c0_33] : memref<10x10x128xf32, #tpu.memory_space<vmem>>, vector<1x8x128xf32>
    %56 = vector.shape_cast %55 : vector<1x8x128xf32> to vector<8x128xf32>
    %57 = vector.shape_cast %54 : vector<8x128xf32> to vector<1x8x128xf32>
    tpu.vector_store %arg8[%c4, %c1_32, %c0_33], %57 {strides = array<i32>} : memref<10x10x128xf32, #tpu.memory_space<vmem>>, vector<1x8x128xf32>,
    %58 = vector.extract_strided_slice %17 {offsets = [8, 0, 0], sizes = [1, 16, 128], strides = [1, 1, 1]} : vector<16x16x128xf32> to vector<1x16x128xf32>
    %59 = vector.shape_cast %58 : vector<1x16x128xf32> to vector<16x128xf32>
    %60 = vector.extract_strided_slice %17 {offsets = [9, 0, 0], sizes = [1, 16, 128], strides = [1, 1, 1]} : vector<16x16x128xf32> to vector<1x16x128xf32>
    %61 = vector.shape_cast %60 : vector<1x16x128xf32> to vector<16x128xf32>
    %62 = arith.maximumf %59, %61 : vector<16x128xf32>
    %63 = vector.shape_cast %62 : vector<16x128xf32> to vector<8x2x128xf32>
    %cst_34 = arith.constant dense<0xFF800000> : vector<8x128xf32>
    %64 = vector.multi_reduction <maximumf>, %63, %cst_34 [1] : vector<8x2x128xf32> to vector<8x128xf32>
    %c5 = arith.constant 5 : index
    %c1_35 = arith.constant 1 : index
    %c0_36 = arith.constant 0 : index
    %65 = vector.load %arg8[%c5, %c1_35, %c0_36] : memref<10x10x128xf32, #tpu.memory_space<vmem>>, vector<1x8x128xf32>
    %66 = vector.shape_cast %65 : vector<1x8x128xf32> to vector<8x128xf32>
    %67 = vector.shape_cast %64 : vector<8x128xf32> to vector<1x8x128xf32>
    tpu.vector_store %arg8[%c5, %c1_35, %c0_36], %67 {strides = array<i32>} : memref<10x10x128xf32, #tpu.memory_space<vmem>>, vector<1x8x128xf32>,
    %68 = vector.extract_strided_slice %17 {offsets = [10, 0, 0], sizes = [1, 16, 128], strides = [1, 1, 1]} : vector<16x16x128xf32> to vector<1x16x128xf32>
    %69 = vector.shape_cast %68 : vector<1x16x128xf32> to vector<16x128xf32>
    %70 = vector.extract_strided_slice %17 {offsets = [11, 0, 0], sizes = [1, 16, 128], strides = [1, 1, 1]} : vector<16x16x128xf32> to vector<1x16x128xf32>
    %71 = vector.shape_cast %70 : vector<1x16x128xf32> to vector<16x128xf32>
    %72 = arith.maximumf %69, %71 : vector<16x128xf32>
    %73 = vector.shape_cast %72 : vector<16x128xf32> to vector<8x2x128xf32>
    %cst_37 = arith.constant dense<0xFF800000> : vector<8x128xf32>
    %74 = vector.multi_reduction <maximumf>, %73, %cst_37 [1] : vector<8x2x128xf32> to vector<8x128xf32>
    %c6 = arith.constant 6 : index
    %c1_38 = arith.constant 1 : index
    %c0_39 = arith.constant 0 : index
    %75 = vector.load %arg8[%c6, %c1_38, %c0_39] : memref<10x10x128xf32, #tpu.memory_space<vmem>>, vector<1x8x128xf32>
    %76 = vector.shape_cast %75 : vector<1x8x128xf32> to vector<8x128xf32>
    %77 = vector.shape_cast %74 : vector<8x128xf32> to vector<1x8x128xf32>
    tpu.vector_store %arg8[%c6, %c1_38, %c0_39], %77 {strides = array<i32>} : memref<10x10x128xf32, #tpu.memory_space<vmem>>, vector<1x8x128xf32>,
    %78 = vector.extract_strided_slice %17 {offsets = [12, 0, 0], sizes = [1, 16, 128], strides = [1, 1, 1]} : vector<16x16x128xf32> to vector<1x16x128xf32>
    %79 = vector.shape_cast %78 : vector<1x16x128xf32> to vector<16x128xf32>
    %80 = vector.extract_strided_slice %17 {offsets = [13, 0, 0], sizes = [1, 16, 128], strides = [1, 1, 1]} : vector<16x16x128xf32> to vector<1x16x128xf32>
    %81 = vector.shape_cast %80 : vector<1x16x128xf32> to vector<16x128xf32>
    %82 = arith.maximumf %79, %81 : vector<16x128xf32>
    %83 = vector.shape_cast %82 : vector<16x128xf32> to vector<8x2x128xf32>
    %cst_40 = arith.constant dense<0xFF800000> : vector<8x128xf32>
    %84 = vector.multi_reduction <maximumf>, %83, %cst_40 [1] : vector<8x2x128xf32> to vector<8x128xf32>
    %c7 = arith.constant 7 : index
    %c1_41 = arith.constant 1 : index
    %c0_42 = arith.constant 0 : index
    %85 = vector.load %arg8[%c7, %c1_41, %c0_42] : memref<10x10x128xf32, #tpu.memory_space<vmem>>, vector<1x8x128xf32>
    %86 = vector.shape_cast %85 : vector<1x8x128xf32> to vector<8x128xf32>
    %87 = vector.shape_cast %84 : vector<8x128xf32> to vector<1x8x128xf32>
    tpu.vector_store %arg8[%c7, %c1_41, %c0_42], %87 {strides = array<i32>} : memref<10x10x128xf32, #tpu.memory_space<vmem>>, vector<1x8x128xf32>,
    %88 = vector.extract_strided_slice %17 {offsets = [14, 0, 0], sizes = [1, 16, 128], strides = [1, 1, 1]} : vector<16x16x128xf32> to vector<1x16x128xf32>
    %89 = vector.shape_cast %88 : vector<1x16x128xf32> to vector<16x128xf32>
    %90 = vector.extract_strided_slice %17 {offsets = [15, 0, 0], sizes = [1, 16, 128], strides = [1, 1, 1]} : vector<16x16x128xf32> to vector<1x16x128xf32>
    %91 = vector.shape_cast %90 : vector<1x16x128xf32> to vector<16x128xf32>
    %92 = arith.maximumf %89, %91 : vector<16x128xf32>
    %93 = vector.shape_cast %92 : vector<16x128xf32> to vector<8x2x128xf32>
    %cst_43 = arith.constant dense<0xFF800000> : vector<8x128xf32>
    %94 = vector.multi_reduction <maximumf>, %93, %cst_43 [1] : vector<8x2x128xf32> to vector<8x128xf32>
    %c8 = arith.constant 8 : index
    %c1_44 = arith.constant 1 : index
    %c0_45 = arith.constant 0 : index
    %95 = vector.load %arg8[%c8, %c1_44, %c0_45] : memref<10x10x128xf32, #tpu.memory_space<vmem>>, vector<1x8x128xf32>
    %96 = vector.shape_cast %95 : vector<1x8x128xf32> to vector<8x128xf32>
    %97 = vector.shape_cast %94 : vector<8x128xf32> to vector<1x8x128xf32>
    tpu.vector_store %arg8[%c8, %c1_44, %c0_45], %97 {strides = array<i32>} : memref<10x10x128xf32, #tpu.memory_space<vmem>>, vector<1x8x128xf32>,
    %c1_46 = arith.constant 1 : index
    %c0_47 = arith.constant 0 : index
    %98 = vector.load %arg6[%c1_46, %c0_47] : memref<4x128xf32, #tpu.memory_space<vmem>>, vector<1x128xf32>
    %cst_48 = arith.constant 0.000000e+00 : f32
    %99 = vector.broadcast %cst_48 : f32 to vector<64x128xf32>
    %c0_49 = arith.constant 0 : index
    %c0_50 = arith.constant 0 : index
    %c0_51 = arith.constant 0 : index
    %100 = vector.load %arg8[%c0_49, %c0_50, %c0_51] : memref<10x10x128xf32, #tpu.memory_space<vmem>>, vector<8x8x128xf32>
    %101 = vector.shape_cast %100 : vector<8x8x128xf32> to vector<64x128xf32>
    %102 = arith.truncf %101 : vector<64x128xf32> to vector<64x128xbf16>
    %c0_52 = arith.constant 0 : index
    %c0_53 = arith.constant 0 : index
    %c0_54 = arith.constant 0 : index
    %103 = vector.load %arg3[%c0_52, %c0_53, %c0_54] : memref<9x128x128xbf16, #tpu.memory_space<vmem>>, vector<1x128x128xbf16>
    %104 = vector.shape_cast %103 : vector<1x128x128xbf16> to vector<128x128xbf16>
    %cst_55 = arith.constant dense<0.000000e+00> : vector<64x128xf32>
    %105 = tpu.matmul %102, %104, %cst_55 {dimension_numbers = #tpu.dot_dimension_numbers<[1], [0], [0], [1], [0, 0, 1, 1], [], []>} : vector<64x128xbf16>, vector<128x128xbf16>, vector<64x128xf32> -> vector<64x128xf32>
    %106 = arith.addf %99, %105 : vector<64x128xf32>
    %c0_56 = arith.constant 0 : index
    %c1_57 = arith.constant 1 : index
    %c0_58 = arith.constant 0 : index
    %107 = vector.load %arg8[%c0_56, %c1_57, %c0_58] : memref<10x10x128xf32, #tpu.memory_space<vmem>>, vector<8x8x128xf32>
    %108 = vector.shape_cast %107 : vector<8x8x128xf32> to vector<64x128xf32>
    %109 = arith.truncf %108 : vector<64x128xf32> to vector<64x128xbf16>
    %c1_59 = arith.constant 1 : index
    %c0_60 = arith.constant 0 : index
    %c0_61 = arith.constant 0 : index
    %110 = vector.load %arg3[%c1_59, %c0_60, %c0_61] : memref<9x128x128xbf16, #tpu.memory_space<vmem>>, vector<1x128x128xbf16>
    %111 = vector.shape_cast %110 : vector<1x128x128xbf16> to vector<128x128xbf16>
    %cst_62 = arith.constant dense<0.000000e+00> : vector<64x128xf32>
    %112 = tpu.matmul %109, %111, %cst_62 {dimension_numbers = #tpu.dot_dimension_numbers<[1], [0], [0], [1], [0, 0, 1, 1], [], []>} : vector<64x128xbf16>, vector<128x128xbf16>, vector<64x128xf32> -> vector<64x128xf32>
    %113 = arith.addf %106, %112 : vector<64x128xf32>
    %c0_63 = arith.constant 0 : index
    %c2_64 = arith.constant 2 : index
    %c0_65 = arith.constant 0 : index
    %114 = vector.load %arg8[%c0_63, %c2_64, %c0_65] : memref<10x10x128xf32, #tpu.memory_space<vmem>>, vector<8x8x128xf32>
    %115 = vector.shape_cast %114 : vector<8x8x128xf32> to vector<64x128xf32>
    %116 = arith.truncf %115 : vector<64x128xf32> to vector<64x128xbf16>
    %c2_66 = arith.constant 2 : index
    %c0_67 = arith.constant 0 : index
    %c0_68 = arith.constant 0 : index
    %117 = vector.load %arg3[%c2_66, %c0_67, %c0_68] : memref<9x128x128xbf16, #tpu.memory_space<vmem>>, vector<1x128x128xbf16>
    %118 = vector.shape_cast %117 : vector<1x128x128xbf16> to vector<128x128xbf16>
    %cst_69 = arith.constant dense<0.000000e+00> : vector<64x128xf32>
    %119 = tpu.matmul %116, %118, %cst_69 {dimension_numbers = #tpu.dot_dimension_numbers<[1], [0], [0], [1], [0, 0, 1, 1], [], []>} : vector<64x128xbf16>, vector<128x128xbf16>, vector<64x128xf32> -> vector<64x128xf32>
    %120 = arith.addf %113, %119 : vector<64x128xf32>
    %c1_70 = arith.constant 1 : index
    %c0_71 = arith.constant 0 : index
    %c0_72 = arith.constant 0 : index
    %121 = vector.load %arg8[%c1_70, %c0_71, %c0_72] : memref<10x10x128xf32, #tpu.memory_space<vmem>>, vector<8x8x128xf32>
    %122 = vector.shape_cast %121 : vector<8x8x128xf32> to vector<64x128xf32>
    %123 = arith.truncf %122 : vector<64x128xf32> to vector<64x128xbf16>
    %c3_73 = arith.constant 3 : index
    %c0_74 = arith.constant 0 : index
    %c0_75 = arith.constant 0 : index
    %124 = vector.load %arg3[%c3_73, %c0_74, %c0_75] : memref<9x128x128xbf16, #tpu.memory_space<vmem>>, vector<1x128x128xbf16>
    %125 = vector.shape_cast %124 : vector<1x128x128xbf16> to vector<128x128xbf16>
    %cst_76 = arith.constant dense<0.000000e+00> : vector<64x128xf32>
    %126 = tpu.matmul %123, %125, %cst_76 {dimension_numbers = #tpu.dot_dimension_numbers<[1], [0], [0], [1], [0, 0, 1, 1], [], []>} : vector<64x128xbf16>, vector<128x128xbf16>, vector<64x128xf32> -> vector<64x128xf32>
    %127 = arith.addf %120, %126 : vector<64x128xf32>
    %c1_77 = arith.constant 1 : index
    %c1_78 = arith.constant 1 : index
    %c0_79 = arith.constant 0 : index
    %128 = vector.load %arg8[%c1_77, %c1_78, %c0_79] : memref<10x10x128xf32, #tpu.memory_space<vmem>>, vector<8x8x128xf32>
    %129 = vector.shape_cast %128 : vector<8x8x128xf32> to vector<64x128xf32>
    %130 = arith.truncf %129 : vector<64x128xf32> to vector<64x128xbf16>
    %c4_80 = arith.constant 4 : index
    %c0_81 = arith.constant 0 : index
    %c0_82 = arith.constant 0 : index
    %131 = vector.load %arg3[%c4_80, %c0_81, %c0_82] : memref<9x128x128xbf16, #tpu.memory_space<vmem>>, vector<1x128x128xbf16>
    %132 = vector.shape_cast %131 : vector<1x128x128xbf16> to vector<128x128xbf16>
    %cst_83 = arith.constant dense<0.000000e+00> : vector<64x128xf32>
    %133 = tpu.matmul %130, %132, %cst_83 {dimension_numbers = #tpu.dot_dimension_numbers<[1], [0], [0], [1], [0, 0, 1, 1], [], []>} : vector<64x128xbf16>, vector<128x128xbf16>, vector<64x128xf32> -> vector<64x128xf32>
    %134 = arith.addf %127, %133 : vector<64x128xf32>
    %c1_84 = arith.constant 1 : index
    %c2_85 = arith.constant 2 : index
    %c0_86 = arith.constant 0 : index
    %135 = vector.load %arg8[%c1_84, %c2_85, %c0_86] : memref<10x10x128xf32, #tpu.memory_space<vmem>>, vector<8x8x128xf32>
    %136 = vector.shape_cast %135 : vector<8x8x128xf32> to vector<64x128xf32>
    %137 = arith.truncf %136 : vector<64x128xf32> to vector<64x128xbf16>
    %c5_87 = arith.constant 5 : index
    %c0_88 = arith.constant 0 : index
    %c0_89 = arith.constant 0 : index
    %138 = vector.load %arg3[%c5_87, %c0_88, %c0_89] : memref<9x128x128xbf16, #tpu.memory_space<vmem>>, vector<1x128x128xbf16>
    %139 = vector.shape_cast %138 : vector<1x128x128xbf16> to vector<128x128xbf16>
    %cst_90 = arith.constant dense<0.000000e+00> : vector<64x128xf32>
    %140 = tpu.matmul %137, %139, %cst_90 {dimension_numbers = #tpu.dot_dimension_numbers<[1], [0], [0], [1], [0, 0, 1, 1], [], []>} : vector<64x128xbf16>, vector<128x128xbf16>, vector<64x128xf32> -> vector<64x128xf32>
    %141 = arith.addf %134, %140 : vector<64x128xf32>
    %c2_91 = arith.constant 2 : index
    %c0_92 = arith.constant 0 : index
    %c0_93 = arith.constant 0 : index
    %142 = vector.load %arg8[%c2_91, %c0_92, %c0_93] : memref<10x10x128xf32, #tpu.memory_space<vmem>>, vector<8x8x128xf32>
    %143 = vector.shape_cast %142 : vector<8x8x128xf32> to vector<64x128xf32>
    %144 = arith.truncf %143 : vector<64x128xf32> to vector<64x128xbf16>
    %c6_94 = arith.constant 6 : index
    %c0_95 = arith.constant 0 : index
    %c0_96 = arith.constant 0 : index
    %145 = vector.load %arg3[%c6_94, %c0_95, %c0_96] : memref<9x128x128xbf16, #tpu.memory_space<vmem>>, vector<1x128x128xbf16>
    %146 = vector.shape_cast %145 : vector<1x128x128xbf16> to vector<128x128xbf16>
    %cst_97 = arith.constant dense<0.000000e+00> : vector<64x128xf32>
    %147 = tpu.matmul %144, %146, %cst_97 {dimension_numbers = #tpu.dot_dimension_numbers<[1], [0], [0], [1], [0, 0, 1, 1], [], []>} : vector<64x128xbf16>, vector<128x128xbf16>, vector<64x128xf32> -> vector<64x128xf32>
    %148 = arith.addf %141, %147 : vector<64x128xf32>
    %c2_98 = arith.constant 2 : index
    %c1_99 = arith.constant 1 : index
    %c0_100 = arith.constant 0 : index
    %149 = vector.load %arg8[%c2_98, %c1_99, %c0_100] : memref<10x10x128xf32, #tpu.memory_space<vmem>>, vector<8x8x128xf32>
    %150 = vector.shape_cast %149 : vector<8x8x128xf32> to vector<64x128xf32>
    %151 = arith.truncf %150 : vector<64x128xf32> to vector<64x128xbf16>
    %c7_101 = arith.constant 7 : index
    %c0_102 = arith.constant 0 : index
    %c0_103 = arith.constant 0 : index
    %152 = vector.load %arg3[%c7_101, %c0_102, %c0_103] : memref<9x128x128xbf16, #tpu.memory_space<vmem>>, vector<1x128x128xbf16>
    %153 = vector.shape_cast %152 : vector<1x128x128xbf16> to vector<128x128xbf16>
    %cst_104 = arith.constant dense<0.000000e+00> : vector<64x128xf32>
    %154 = tpu.matmul %151, %153, %cst_104 {dimension_numbers = #tpu.dot_dimension_numbers<[1], [0], [0], [1], [0, 0, 1, 1], [], []>} : vector<64x128xbf16>, vector<128x128xbf16>, vector<64x128xf32> -> vector<64x128xf32>
    %155 = arith.addf %148, %154 : vector<64x128xf32>
    %c2_105 = arith.constant 2 : index
    %c2_106 = arith.constant 2 : index
    %c0_107 = arith.constant 0 : index
    %156 = vector.load %arg8[%c2_105, %c2_106, %c0_107] : memref<10x10x128xf32, #tpu.memory_space<vmem>>, vector<8x8x128xf32>
    %157 = vector.shape_cast %156 : vector<8x8x128xf32> to vector<64x128xf32>
    %158 = arith.truncf %157 : vector<64x128xf32> to vector<64x128xbf16>
    %c8_108 = arith.constant 8 : index
    %c0_109 = arith.constant 0 : index
    %c0_110 = arith.constant 0 : index
    %159 = vector.load %arg3[%c8_108, %c0_109, %c0_110] : memref<9x128x128xbf16, #tpu.memory_space<vmem>>, vector<1x128x128xbf16>
    %160 = vector.shape_cast %159 : vector<1x128x128xbf16> to vector<128x128xbf16>
    %cst_111 = arith.constant dense<0.000000e+00> : vector<64x128xf32>
    %161 = tpu.matmul %158, %160, %cst_111 {dimension_numbers = #tpu.dot_dimension_numbers<[1], [0], [0], [1], [0, 0, 1, 1], [], []>} : vector<64x128xbf16>, vector<128x128xbf16>, vector<64x128xf32> -> vector<64x128xf32>
    %162 = arith.addf %155, %161 : vector<64x128xf32>
    %163 = vector.broadcast %98 : vector<1x128xf32> to vector<64x128xf32>
    %164 = arith.addf %162, %163 : vector<64x128xf32>
    %cst_112 = arith.constant 0.000000e+00 : f32
    %165 = vector.broadcast %cst_112 : f32 to vector<64x128xf32>
    %166 = arith.maximumf %164, %165 : vector<64x128xf32>
    %cst_113 = arith.constant 0.000000e+00 : f32
    %167 = vector.broadcast %cst_113 : f32 to vector<1x10x128xf32>
    %c0_114 = arith.constant 0 : index
    %c0_115 = arith.constant 0 : index
    %c0_116 = arith.constant 0 : index
    %168 = vector.load %arg9[%c0_114, %c0_115, %c0_116] : memref<10x10x128xf32, #tpu.memory_space<vmem>>, vector<1x10x128xf32>
    tpu.vector_store %arg9[%c0_114, %c0_115, %c0_116], %167 {strides = array<i32>} : memref<10x10x128xf32, #tpu.memory_space<vmem>>, vector<1x10x128xf32>,
    %cst_117 = arith.constant 0.000000e+00 : f32
    %169 = vector.broadcast %cst_117 : f32 to vector<1x10x128xf32>
    %c9_118 = arith.constant 9 : index
    %c0_119 = arith.constant 0 : index
    %c0_120 = arith.constant 0 : index
    %170 = vector.load %arg9[%c9_118, %c0_119, %c0_120] : memref<10x10x128xf32, #tpu.memory_space<vmem>>, vector<1x10x128xf32>
    tpu.vector_store %arg9[%c9_118, %c0_119, %c0_120], %169 {strides = array<i32>} : memref<10x10x128xf32, #tpu.memory_space<vmem>>, vector<1x10x128xf32>,
    %cst_121 = arith.constant 0.000000e+00 : f32
    %171 = vector.broadcast %cst_121 : f32 to vector<8x1x128xf32>
    %c1_122 = arith.constant 1 : index
    %c0_123 = arith.constant 0 : index
    %c0_124 = arith.constant 0 : index
    %172 = vector.load %arg9[%c1_122, %c0_123, %c0_124] : memref<10x10x128xf32, #tpu.memory_space<vmem>>, vector<8x1x128xf32>
    tpu.vector_store %arg9[%c1_122, %c0_123, %c0_124], %171 {strides = array<i32>} : memref<10x10x128xf32, #tpu.memory_space<vmem>>, vector<8x1x128xf32>,
    %cst_125 = arith.constant 0.000000e+00 : f32
    %173 = vector.broadcast %cst_125 : f32 to vector<8x1x128xf32>
    %c1_126 = arith.constant 1 : index
    %c9_127 = arith.constant 9 : index
    %c0_128 = arith.constant 0 : index
    %174 = vector.load %arg9[%c1_126, %c9_127, %c0_128] : memref<10x10x128xf32, #tpu.memory_space<vmem>>, vector<8x1x128xf32>
    tpu.vector_store %arg9[%c1_126, %c9_127, %c0_128], %173 {strides = array<i32>} : memref<10x10x128xf32, #tpu.memory_space<vmem>>, vector<8x1x128xf32>,
    %175 = vector.shape_cast %166 : vector<64x128xf32> to vector<8x8x128xf32>
    %176 = vector.extract_strided_slice %175 {offsets = [0, 0, 0], sizes = [1, 8, 128], strides = [1, 1, 1]} : vector<8x8x128xf32> to vector<1x8x128xf32>
    %177 = vector.shape_cast %176 : vector<1x8x128xf32> to vector<8x128xf32>
    %178 = vector.extract_strided_slice %175 {offsets = [1, 0, 0], sizes = [1, 8, 128], strides = [1, 1, 1]} : vector<8x8x128xf32> to vector<1x8x128xf32>
    %179 = vector.shape_cast %178 : vector<1x8x128xf32> to vector<8x128xf32>
    %180 = arith.maximumf %177, %179 : vector<8x128xf32>
    %181 = vector.shape_cast %180 : vector<8x128xf32> to vector<4x2x128xf32>
    %cst_129 = arith.constant dense<0xFF800000> : vector<4x128xf32>
    %182 = vector.multi_reduction <maximumf>, %181, %cst_129 [1] : vector<4x2x128xf32> to vector<4x128xf32>
    %183 = vector.shape_cast %182 : vector<4x128xf32> to vector<4x1x128xf32>
    %184 = vector.shape_cast %183 : vector<4x1x128xf32> to vector<4x1x128xf32>
    %185 = vector.broadcast %184 : vector<4x1x128xf32> to vector<4x2x128xf32>
    %186 = vector.shape_cast %185 : vector<4x2x128xf32> to vector<8x128xf32>
    %187 = vector.shape_cast %186 : vector<8x128xf32> to vector<1x8x128xf32>
    %188 = vector.shape_cast %187 : vector<1x8x128xf32> to vector<1x8x128xf32>
    %189 = vector.broadcast %188 : vector<1x8x128xf32> to vector<2x8x128xf32>
    %c1_130 = arith.constant 1 : index
    %c1_131 = arith.constant 1 : index
    %c0_132 = arith.constant 0 : index
    %190 = vector.load %arg9[%c1_130, %c1_131, %c0_132] : memref<10x10x128xf32, #tpu.memory_space<vmem>>, vector<2x8x128xf32>
    tpu.vector_store %arg9[%c1_130, %c1_131, %c0_132], %189 {strides = array<i32>} : memref<10x10x128xf32, #tpu.memory_space<vmem>>, vector<2x8x128xf32>,
    %191 = vector.extract_strided_slice %175 {offsets = [2, 0, 0], sizes = [1, 8, 128], strides = [1, 1, 1]} : vector<8x8x128xf32> to vector<1x8x128xf32>
    %192 = vector.shape_cast %191 : vector<1x8x128xf32> to vector<8x128xf32>
    %193 = vector.extract_strided_slice %175 {offsets = [3, 0, 0], sizes = [1, 8, 128], strides = [1, 1, 1]} : vector<8x8x128xf32> to vector<1x8x128xf32>
    %194 = vector.shape_cast %193 : vector<1x8x128xf32> to vector<8x128xf32>
    %195 = arith.maximumf %192, %194 : vector<8x128xf32>
    %196 = vector.shape_cast %195 : vector<8x128xf32> to vector<4x2x128xf32>
    %cst_133 = arith.constant dense<0xFF800000> : vector<4x128xf32>
    %197 = vector.multi_reduction <maximumf>, %196, %cst_133 [1] : vector<4x2x128xf32> to vector<4x128xf32>
    %198 = vector.shape_cast %197 : vector<4x128xf32> to vector<4x1x128xf32>
    %199 = vector.shape_cast %198 : vector<4x1x128xf32> to vector<4x1x128xf32>
    %200 = vector.broadcast %199 : vector<4x1x128xf32> to vector<4x2x128xf32>
    %201 = vector.shape_cast %200 : vector<4x2x128xf32> to vector<8x128xf32>
    %202 = vector.shape_cast %201 : vector<8x128xf32> to vector<1x8x128xf32>
    %203 = vector.shape_cast %202 : vector<1x8x128xf32> to vector<1x8x128xf32>
    %204 = vector.broadcast %203 : vector<1x8x128xf32> to vector<2x8x128xf32>
    %c3_134 = arith.constant 3 : index
    %c1_135 = arith.constant 1 : index
    %c0_136 = arith.constant 0 : index
    %205 = vector.load %arg9[%c3_134, %c1_135, %c0_136] : memref<10x10x128xf32, #tpu.memory_space<vmem>>, vector<2x8x128xf32>
    tpu.vector_store %arg9[%c3_134, %c1_135, %c0_136], %204 {strides = array<i32>} : memref<10x10x128xf32, #tpu.memory_space<vmem>>, vector<2x8x128xf32>,
    %206 = vector.extract_strided_slice %175 {offsets = [4, 0, 0], sizes = [1, 8, 128], strides = [1, 1, 1]} : vector<8x8x128xf32> to vector<1x8x128xf32>
    %207 = vector.shape_cast %206 : vector<1x8x128xf32> to vector<8x128xf32>
    %208 = vector.extract_strided_slice %175 {offsets = [5, 0, 0], sizes = [1, 8, 128], strides = [1, 1, 1]} : vector<8x8x128xf32> to vector<1x8x128xf32>
    %209 = vector.shape_cast %208 : vector<1x8x128xf32> to vector<8x128xf32>
    %210 = arith.maximumf %207, %209 : vector<8x128xf32>
    %211 = vector.shape_cast %210 : vector<8x128xf32> to vector<4x2x128xf32>
    %cst_137 = arith.constant dense<0xFF800000> : vector<4x128xf32>
    %212 = vector.multi_reduction <maximumf>, %211, %cst_137 [1] : vector<4x2x128xf32> to vector<4x128xf32>
    %213 = vector.shape_cast %212 : vector<4x128xf32> to vector<4x1x128xf32>
    %214 = vector.shape_cast %213 : vector<4x1x128xf32> to vector<4x1x128xf32>
    %215 = vector.broadcast %214 : vector<4x1x128xf32> to vector<4x2x128xf32>
    %216 = vector.shape_cast %215 : vector<4x2x128xf32> to vector<8x128xf32>
    %217 = vector.shape_cast %216 : vector<8x128xf32> to vector<1x8x128xf32>
    %218 = vector.shape_cast %217 : vector<1x8x128xf32> to vector<1x8x128xf32>
    %219 = vector.broadcast %218 : vector<1x8x128xf32> to vector<2x8x128xf32>
    %c5_138 = arith.constant 5 : index
    %c1_139 = arith.constant 1 : index
    %c0_140 = arith.constant 0 : index
    %220 = vector.load %arg9[%c5_138, %c1_139, %c0_140] : memref<10x10x128xf32, #tpu.memory_space<vmem>>, vector<2x8x128xf32>
    tpu.vector_store %arg9[%c5_138, %c1_139, %c0_140], %219 {strides = array<i32>} : memref<10x10x128xf32, #tpu.memory_space<vmem>>, vector<2x8x128xf32>,
    %221 = vector.extract_strided_slice %175 {offsets = [6, 0, 0], sizes = [1, 8, 128], strides = [1, 1, 1]} : vector<8x8x128xf32> to vector<1x8x128xf32>
    %222 = vector.shape_cast %221 : vector<1x8x128xf32> to vector<8x128xf32>
    %223 = vector.extract_strided_slice %175 {offsets = [7, 0, 0], sizes = [1, 8, 128], strides = [1, 1, 1]} : vector<8x8x128xf32> to vector<1x8x128xf32>
    %224 = vector.shape_cast %223 : vector<1x8x128xf32> to vector<8x128xf32>
    %225 = arith.maximumf %222, %224 : vector<8x128xf32>
    %226 = vector.shape_cast %225 : vector<8x128xf32> to vector<4x2x128xf32>
    %cst_141 = arith.constant dense<0xFF800000> : vector<4x128xf32>
    %227 = vector.multi_reduction <maximumf>, %226, %cst_141 [1] : vector<4x2x128xf32> to vector<4x128xf32>
    %228 = vector.shape_cast %227 : vector<4x128xf32> to vector<4x1x128xf32>
    %229 = vector.shape_cast %228 : vector<4x1x128xf32> to vector<4x1x128xf32>
    %230 = vector.broadcast %229 : vector<4x1x128xf32> to vector<4x2x128xf32>
    %231 = vector.shape_cast %230 : vector<4x2x128xf32> to vector<8x128xf32>
    %232 = vector.shape_cast %231 : vector<8x128xf32> to vector<1x8x128xf32>
    %233 = vector.shape_cast %232 : vector<1x8x128xf32> to vector<1x8x128xf32>
    %234 = vector.broadcast %233 : vector<1x8x128xf32> to vector<2x8x128xf32>
    %c7_142 = arith.constant 7 : index
    %c1_143 = arith.constant 1 : index
    %c0_144 = arith.constant 0 : index
    %235 = vector.load %arg9[%c7_142, %c1_143, %c0_144] : memref<10x10x128xf32, #tpu.memory_space<vmem>>, vector<2x8x128xf32>
    tpu.vector_store %arg9[%c7_142, %c1_143, %c0_144], %234 {strides = array<i32>} : memref<10x10x128xf32, #tpu.memory_space<vmem>>, vector<2x8x128xf32>,
    %c2_145 = arith.constant 2 : index
    %c0_146 = arith.constant 0 : index
    %236 = vector.load %arg6[%c2_145, %c0_146] : memref<4x128xf32, #tpu.memory_space<vmem>>, vector<1x128xf32>
    %cst_147 = arith.constant 0.000000e+00 : f32
    %237 = vector.broadcast %cst_147 : f32 to vector<64x128xf32>
    %c0_148 = arith.constant 0 : index
    %c0_149 = arith.constant 0 : index
    %c0_150 = arith.constant 0 : index
    %238 = vector.load %arg9[%c0_148, %c0_149, %c0_150] : memref<10x10x128xf32, #tpu.memory_space<vmem>>, vector<8x8x128xf32>
    %239 = vector.shape_cast %238 : vector<8x8x128xf32> to vector<64x128xf32>
    %240 = arith.truncf %239 : vector<64x128xf32> to vector<64x128xbf16>
    %c0_151 = arith.constant 0 : index
    %c0_152 = arith.constant 0 : index
    %c0_153 = arith.constant 0 : index
    %241 = vector.load %arg4[%c0_151, %c0_152, %c0_153] : memref<9x128x128xbf16, #tpu.memory_space<vmem>>, vector<1x128x128xbf16>
    %242 = vector.shape_cast %241 : vector<1x128x128xbf16> to vector<128x128xbf16>
    %cst_154 = arith.constant dense<0.000000e+00> : vector<64x128xf32>
    %243 = tpu.matmul %240, %242, %cst_154 {dimension_numbers = #tpu.dot_dimension_numbers<[1], [0], [0], [1], [0, 0, 1, 1], [], []>} : vector<64x128xbf16>, vector<128x128xbf16>, vector<64x128xf32> -> vector<64x128xf32>
    %244 = arith.addf %237, %243 : vector<64x128xf32>
    %c0_155 = arith.constant 0 : index
    %c1_156 = arith.constant 1 : index
    %c0_157 = arith.constant 0 : index
    %245 = vector.load %arg9[%c0_155, %c1_156, %c0_157] : memref<10x10x128xf32, #tpu.memory_space<vmem>>, vector<8x8x128xf32>
    %246 = vector.shape_cast %245 : vector<8x8x128xf32> to vector<64x128xf32>
    %247 = arith.truncf %246 : vector<64x128xf32> to vector<64x128xbf16>
    %c1_158 = arith.constant 1 : index
    %c0_159 = arith.constant 0 : index
    %c0_160 = arith.constant 0 : index
    %248 = vector.load %arg4[%c1_158, %c0_159, %c0_160] : memref<9x128x128xbf16, #tpu.memory_space<vmem>>, vector<1x128x128xbf16>
    %249 = vector.shape_cast %248 : vector<1x128x128xbf16> to vector<128x128xbf16>
    %cst_161 = arith.constant dense<0.000000e+00> : vector<64x128xf32>
    %250 = tpu.matmul %247, %249, %cst_161 {dimension_numbers = #tpu.dot_dimension_numbers<[1], [0], [0], [1], [0, 0, 1, 1], [], []>} : vector<64x128xbf16>, vector<128x128xbf16>, vector<64x128xf32> -> vector<64x128xf32>
    %251 = arith.addf %244, %250 : vector<64x128xf32>
    %c0_162 = arith.constant 0 : index
    %c2_163 = arith.constant 2 : index
    %c0_164 = arith.constant 0 : index
    %252 = vector.load %arg9[%c0_162, %c2_163, %c0_164] : memref<10x10x128xf32, #tpu.memory_space<vmem>>, vector<8x8x128xf32>
    %253 = vector.shape_cast %252 : vector<8x8x128xf32> to vector<64x128xf32>
    %254 = arith.truncf %253 : vector<64x128xf32> to vector<64x128xbf16>
    %c2_165 = arith.constant 2 : index
    %c0_166 = arith.constant 0 : index
    %c0_167 = arith.constant 0 : index
    %255 = vector.load %arg4[%c2_165, %c0_166, %c0_167] : memref<9x128x128xbf16, #tpu.memory_space<vmem>>, vector<1x128x128xbf16>
    %256 = vector.shape_cast %255 : vector<1x128x128xbf16> to vector<128x128xbf16>
    %cst_168 = arith.constant dense<0.000000e+00> : vector<64x128xf32>
    %257 = tpu.matmul %254, %256, %cst_168 {dimension_numbers = #tpu.dot_dimension_numbers<[1], [0], [0], [1], [0, 0, 1, 1], [], []>} : vector<64x128xbf16>, vector<128x128xbf16>, vector<64x128xf32> -> vector<64x128xf32>
    %258 = arith.addf %251, %257 : vector<64x128xf32>
    %c1_169 = arith.constant 1 : index
    %c0_170 = arith.constant 0 : index
    %c0_171 = arith.constant 0 : index
    %259 = vector.load %arg9[%c1_169, %c0_170, %c0_171] : memref<10x10x128xf32, #tpu.memory_space<vmem>>, vector<8x8x128xf32>
    %260 = vector.shape_cast %259 : vector<8x8x128xf32> to vector<64x128xf32>
    %261 = arith.truncf %260 : vector<64x128xf32> to vector<64x128xbf16>
    %c3_172 = arith.constant 3 : index
    %c0_173 = arith.constant 0 : index
    %c0_174 = arith.constant 0 : index
    %262 = vector.load %arg4[%c3_172, %c0_173, %c0_174] : memref<9x128x128xbf16, #tpu.memory_space<vmem>>, vector<1x128x128xbf16>
    %263 = vector.shape_cast %262 : vector<1x128x128xbf16> to vector<128x128xbf16>
    %cst_175 = arith.constant dense<0.000000e+00> : vector<64x128xf32>
    %264 = tpu.matmul %261, %263, %cst_175 {dimension_numbers = #tpu.dot_dimension_numbers<[1], [0], [0], [1], [0, 0, 1, 1], [], []>} : vector<64x128xbf16>, vector<128x128xbf16>, vector<64x128xf32> -> vector<64x128xf32>
    %265 = arith.addf %258, %264 : vector<64x128xf32>
    %c1_176 = arith.constant 1 : index
    %c1_177 = arith.constant 1 : index
    %c0_178 = arith.constant 0 : index
    %266 = vector.load %arg9[%c1_176, %c1_177, %c0_178] : memref<10x10x128xf32, #tpu.memory_space<vmem>>, vector<8x8x128xf32>
    %267 = vector.shape_cast %266 : vector<8x8x128xf32> to vector<64x128xf32>
    %268 = arith.truncf %267 : vector<64x128xf32> to vector<64x128xbf16>
    %c4_179 = arith.constant 4 : index
    %c0_180 = arith.constant 0 : index
    %c0_181 = arith.constant 0 : index
    %269 = vector.load %arg4[%c4_179, %c0_180, %c0_181] : memref<9x128x128xbf16, #tpu.memory_space<vmem>>, vector<1x128x128xbf16>
    %270 = vector.shape_cast %269 : vector<1x128x128xbf16> to vector<128x128xbf16>
    %cst_182 = arith.constant dense<0.000000e+00> : vector<64x128xf32>
    %271 = tpu.matmul %268, %270, %cst_182 {dimension_numbers = #tpu.dot_dimension_numbers<[1], [0], [0], [1], [0, 0, 1, 1], [], []>} : vector<64x128xbf16>, vector<128x128xbf16>, vector<64x128xf32> -> vector<64x128xf32>
    %272 = arith.addf %265, %271 : vector<64x128xf32>
    %c1_183 = arith.constant 1 : index
    %c2_184 = arith.constant 2 : index
    %c0_185 = arith.constant 0 : index
    %273 = vector.load %arg9[%c1_183, %c2_184, %c0_185] : memref<10x10x128xf32, #tpu.memory_space<vmem>>, vector<8x8x128xf32>
    %274 = vector.shape_cast %273 : vector<8x8x128xf32> to vector<64x128xf32>
    %275 = arith.truncf %274 : vector<64x128xf32> to vector<64x128xbf16>
    %c5_186 = arith.constant 5 : index
    %c0_187 = arith.constant 0 : index
    %c0_188 = arith.constant 0 : index
    %276 = vector.load %arg4[%c5_186, %c0_187, %c0_188] : memref<9x128x128xbf16, #tpu.memory_space<vmem>>, vector<1x128x128xbf16>
    %277 = vector.shape_cast %276 : vector<1x128x128xbf16> to vector<128x128xbf16>
    %cst_189 = arith.constant dense<0.000000e+00> : vector<64x128xf32>
    %278 = tpu.matmul %275, %277, %cst_189 {dimension_numbers = #tpu.dot_dimension_numbers<[1], [0], [0], [1], [0, 0, 1, 1], [], []>} : vector<64x128xbf16>, vector<128x128xbf16>, vector<64x128xf32> -> vector<64x128xf32>
    %279 = arith.addf %272, %278 : vector<64x128xf32>
    %c2_190 = arith.constant 2 : index
    %c0_191 = arith.constant 0 : index
    %c0_192 = arith.constant 0 : index
    %280 = vector.load %arg9[%c2_190, %c0_191, %c0_192] : memref<10x10x128xf32, #tpu.memory_space<vmem>>, vector<8x8x128xf32>
    %281 = vector.shape_cast %280 : vector<8x8x128xf32> to vector<64x128xf32>
    %282 = arith.truncf %281 : vector<64x128xf32> to vector<64x128xbf16>
    %c6_193 = arith.constant 6 : index
    %c0_194 = arith.constant 0 : index
    %c0_195 = arith.constant 0 : index
    %283 = vector.load %arg4[%c6_193, %c0_194, %c0_195] : memref<9x128x128xbf16, #tpu.memory_space<vmem>>, vector<1x128x128xbf16>
    %284 = vector.shape_cast %283 : vector<1x128x128xbf16> to vector<128x128xbf16>
    %cst_196 = arith.constant dense<0.000000e+00> : vector<64x128xf32>
    %285 = tpu.matmul %282, %284, %cst_196 {dimension_numbers = #tpu.dot_dimension_numbers<[1], [0], [0], [1], [0, 0, 1, 1], [], []>} : vector<64x128xbf16>, vector<128x128xbf16>, vector<64x128xf32> -> vector<64x128xf32>
    %286 = arith.addf %279, %285 : vector<64x128xf32>
    %c2_197 = arith.constant 2 : index
    %c1_198 = arith.constant 1 : index
    %c0_199 = arith.constant 0 : index
    %287 = vector.load %arg9[%c2_197, %c1_198, %c0_199] : memref<10x10x128xf32, #tpu.memory_space<vmem>>, vector<8x8x128xf32>
    %288 = vector.shape_cast %287 : vector<8x8x128xf32> to vector<64x128xf32>
    %289 = arith.truncf %288 : vector<64x128xf32> to vector<64x128xbf16>
    %c7_200 = arith.constant 7 : index
    %c0_201 = arith.constant 0 : index
    %c0_202 = arith.constant 0 : index
    %290 = vector.load %arg4[%c7_200, %c0_201, %c0_202] : memref<9x128x128xbf16, #tpu.memory_space<vmem>>, vector<1x128x128xbf16>
    %291 = vector.shape_cast %290 : vector<1x128x128xbf16> to vector<128x128xbf16>
    %cst_203 = arith.constant dense<0.000000e+00> : vector<64x128xf32>
    %292 = tpu.matmul %289, %291, %cst_203 {dimension_numbers = #tpu.dot_dimension_numbers<[1], [0], [0], [1], [0, 0, 1, 1], [], []>} : vector<64x128xbf16>, vector<128x128xbf16>, vector<64x128xf32> -> vector<64x128xf32>
    %293 = arith.addf %286, %292 : vector<64x128xf32>
    %c2_204 = arith.constant 2 : index
    %c2_205 = arith.constant 2 : index
    %c0_206 = arith.constant 0 : index
    %294 = vector.load %arg9[%c2_204, %c2_205, %c0_206] : memref<10x10x128xf32, #tpu.memory_space<vmem>>, vector<8x8x128xf32>
    %295 = vector.shape_cast %294 : vector<8x8x128xf32> to vector<64x128xf32>
    %296 = arith.truncf %295 : vector<64x128xf32> to vector<64x128xbf16>
    %c8_207 = arith.constant 8 : index
    %c0_208 = arith.constant 0 : index
    %c0_209 = arith.constant 0 : index
    %297 = vector.load %arg4[%c8_207, %c0_208, %c0_209] : memref<9x128x128xbf16, #tpu.memory_space<vmem>>, vector<1x128x128xbf16>
    %298 = vector.shape_cast %297 : vector<1x128x128xbf16> to vector<128x128xbf16>
    %cst_210 = arith.constant dense<0.000000e+00> : vector<64x128xf32>
    %299 = tpu.matmul %296, %298, %cst_210 {dimension_numbers = #tpu.dot_dimension_numbers<[1], [0], [0], [1], [0, 0, 1, 1], [], []>} : vector<64x128xbf16>, vector<128x128xbf16>, vector<64x128xf32> -> vector<64x128xf32>
    %300 = arith.addf %293, %299 : vector<64x128xf32>
    %301 = vector.broadcast %236 : vector<1x128xf32> to vector<64x128xf32>
    %302 = arith.addf %300, %301 : vector<64x128xf32>
    %cst_211 = arith.constant 0.000000e+00 : f32
    %303 = vector.broadcast %cst_211 : f32 to vector<64x128xf32>
    %304 = arith.maximumf %302, %303 : vector<64x128xf32>
    %cst_212 = arith.constant 0.000000e+00 : f32
    %305 = vector.broadcast %cst_212 : f32 to vector<1x18x128xf32>
    %c0_213 = arith.constant 0 : index
    %c0_214 = arith.constant 0 : index
    %c0_215 = arith.constant 0 : index
    %306 = vector.load %arg10[%c0_213, %c0_214, %c0_215] : memref<18x18x128xf32, #tpu.memory_space<vmem>>, vector<1x18x128xf32>
    tpu.vector_store %arg10[%c0_213, %c0_214, %c0_215], %305 {strides = array<i32>} : memref<18x18x128xf32, #tpu.memory_space<vmem>>, vector<1x18x128xf32>,
    %cst_216 = arith.constant 0.000000e+00 : f32
    %307 = vector.broadcast %cst_216 : f32 to vector<1x18x128xf32>
    %c17 = arith.constant 17 : index
    %c0_217 = arith.constant 0 : index
    %c0_218 = arith.constant 0 : index
    %308 = vector.load %arg10[%c17, %c0_217, %c0_218] : memref<18x18x128xf32, #tpu.memory_space<vmem>>, vector<1x18x128xf32>
    tpu.vector_store %arg10[%c17, %c0_217, %c0_218], %307 {strides = array<i32>} : memref<18x18x128xf32, #tpu.memory_space<vmem>>, vector<1x18x128xf32>,
    %cst_219 = arith.constant 0.000000e+00 : f32
    %309 = vector.broadcast %cst_219 : f32 to vector<16x1x128xf32>
    %c1_220 = arith.constant 1 : index
    %c0_221 = arith.constant 0 : index
    %c0_222 = arith.constant 0 : index
    %310 = vector.load %arg10[%c1_220, %c0_221, %c0_222] : memref<18x18x128xf32, #tpu.memory_space<vmem>>, vector<16x1x128xf32>
    tpu.vector_store %arg10[%c1_220, %c0_221, %c0_222], %309 {strides = array<i32>} : memref<18x18x128xf32, #tpu.memory_space<vmem>>, vector<16x1x128xf32>,
    %cst_223 = arith.constant 0.000000e+00 : f32
    %311 = vector.broadcast %cst_223 : f32 to vector<16x1x128xf32>
    %c1_224 = arith.constant 1 : index
    %c17_225 = arith.constant 17 : index
    %c0_226 = arith.constant 0 : index
    %312 = vector.load %arg10[%c1_224, %c17_225, %c0_226] : memref<18x18x128xf32, #tpu.memory_space<vmem>>, vector<16x1x128xf32>
    tpu.vector_store %arg10[%c1_224, %c17_225, %c0_226], %311 {strides = array<i32>} : memref<18x18x128xf32, #tpu.memory_space<vmem>>, vector<16x1x128xf32>,
    %313 = vector.shape_cast %304 : vector<64x128xf32> to vector<8x8x128xf32>
    %314 = vector.extract_strided_slice %313 {offsets = [0, 0, 0], sizes = [1, 8, 128], strides = [1, 1, 1]} : vector<8x8x128xf32> to vector<1x8x128xf32>
    %315 = vector.shape_cast %314 : vector<1x8x128xf32> to vector<8x128xf32>
    %316 = vector.shape_cast %315 : vector<8x128xf32> to vector<8x1x128xf32>
    %317 = vector.shape_cast %316 : vector<8x1x128xf32> to vector<8x1x128xf32>
    %318 = vector.broadcast %317 : vector<8x1x128xf32> to vector<8x2x128xf32>
    %319 = vector.shape_cast %318 : vector<8x2x128xf32> to vector<16x128xf32>
    %320 = vector.shape_cast %319 : vector<16x128xf32> to vector<1x16x128xf32>
    %321 = vector.shape_cast %320 : vector<1x16x128xf32> to vector<1x16x128xf32>
    %322 = vector.broadcast %321 : vector<1x16x128xf32> to vector<2x16x128xf32>
    %c1_227 = arith.constant 1 : index
    %c1_228 = arith.constant 1 : index
    %c0_229 = arith.constant 0 : index
    %323 = vector.load %arg10[%c1_227, %c1_228, %c0_229] : memref<18x18x128xf32, #tpu.memory_space<vmem>>, vector<2x16x128xf32>
    tpu.vector_store %arg10[%c1_227, %c1_228, %c0_229], %322 {strides = array<i32>} : memref<18x18x128xf32, #tpu.memory_space<vmem>>, vector<2x16x128xf32>,
    %324 = vector.extract_strided_slice %313 {offsets = [1, 0, 0], sizes = [1, 8, 128], strides = [1, 1, 1]} : vector<8x8x128xf32> to vector<1x8x128xf32>
    %325 = vector.shape_cast %324 : vector<1x8x128xf32> to vector<8x128xf32>
    %326 = vector.shape_cast %325 : vector<8x128xf32> to vector<8x1x128xf32>
    %327 = vector.shape_cast %326 : vector<8x1x128xf32> to vector<8x1x128xf32>
    %328 = vector.broadcast %327 : vector<8x1x128xf32> to vector<8x2x128xf32>
    %329 = vector.shape_cast %328 : vector<8x2x128xf32> to vector<16x128xf32>
    %330 = vector.shape_cast %329 : vector<16x128xf32> to vector<1x16x128xf32>
    %331 = vector.shape_cast %330 : vector<1x16x128xf32> to vector<1x16x128xf32>
    %332 = vector.broadcast %331 : vector<1x16x128xf32> to vector<2x16x128xf32>
    %c3_230 = arith.constant 3 : index
    %c1_231 = arith.constant 1 : index
    %c0_232 = arith.constant 0 : index
    %333 = vector.load %arg10[%c3_230, %c1_231, %c0_232] : memref<18x18x128xf32, #tpu.memory_space<vmem>>, vector<2x16x128xf32>
    tpu.vector_store %arg10[%c3_230, %c1_231, %c0_232], %332 {strides = array<i32>} : memref<18x18x128xf32, #tpu.memory_space<vmem>>, vector<2x16x128xf32>,
    %334 = vector.extract_strided_slice %313 {offsets = [2, 0, 0], sizes = [1, 8, 128], strides = [1, 1, 1]} : vector<8x8x128xf32> to vector<1x8x128xf32>
    %335 = vector.shape_cast %334 : vector<1x8x128xf32> to vector<8x128xf32>
    %336 = vector.shape_cast %335 : vector<8x128xf32> to vector<8x1x128xf32>
    %337 = vector.shape_cast %336 : vector<8x1x128xf32> to vector<8x1x128xf32>
    %338 = vector.broadcast %337 : vector<8x1x128xf32> to vector<8x2x128xf32>
    %339 = vector.shape_cast %338 : vector<8x2x128xf32> to vector<16x128xf32>
    %340 = vector.shape_cast %339 : vector<16x128xf32> to vector<1x16x128xf32>
    %341 = vector.shape_cast %340 : vector<1x16x128xf32> to vector<1x16x128xf32>
    %342 = vector.broadcast %341 : vector<1x16x128xf32> to vector<2x16x128xf32>
    %c5_233 = arith.constant 5 : index
    %c1_234 = arith.constant 1 : index
    %c0_235 = arith.constant 0 : index
    %343 = vector.load %arg10[%c5_233, %c1_234, %c0_235] : memref<18x18x128xf32, #tpu.memory_space<vmem>>, vector<2x16x128xf32>
    tpu.vector_store %arg10[%c5_233, %c1_234, %c0_235], %342 {strides = array<i32>} : memref<18x18x128xf32, #tpu.memory_space<vmem>>, vector<2x16x128xf32>,
    %344 = vector.extract_strided_slice %313 {offsets = [3, 0, 0], sizes = [1, 8, 128], strides = [1, 1, 1]} : vector<8x8x128xf32> to vector<1x8x128xf32>
    %345 = vector.shape_cast %344 : vector<1x8x128xf32> to vector<8x128xf32>
    %346 = vector.shape_cast %345 : vector<8x128xf32> to vector<8x1x128xf32>
    %347 = vector.shape_cast %346 : vector<8x1x128xf32> to vector<8x1x128xf32>
    %348 = vector.broadcast %347 : vector<8x1x128xf32> to vector<8x2x128xf32>
    %349 = vector.shape_cast %348 : vector<8x2x128xf32> to vector<16x128xf32>
    %350 = vector.shape_cast %349 : vector<16x128xf32> to vector<1x16x128xf32>
    %351 = vector.shape_cast %350 : vector<1x16x128xf32> to vector<1x16x128xf32>
    %352 = vector.broadcast %351 : vector<1x16x128xf32> to vector<2x16x128xf32>
    %c7_236 = arith.constant 7 : index
    %c1_237 = arith.constant 1 : index
    %c0_238 = arith.constant 0 : index
    %353 = vector.load %arg10[%c7_236, %c1_237, %c0_238] : memref<18x18x128xf32, #tpu.memory_space<vmem>>, vector<2x16x128xf32>
    tpu.vector_store %arg10[%c7_236, %c1_237, %c0_238], %352 {strides = array<i32>} : memref<18x18x128xf32, #tpu.memory_space<vmem>>, vector<2x16x128xf32>,
    %354 = vector.extract_strided_slice %313 {offsets = [4, 0, 0], sizes = [1, 8, 128], strides = [1, 1, 1]} : vector<8x8x128xf32> to vector<1x8x128xf32>
    %355 = vector.shape_cast %354 : vector<1x8x128xf32> to vector<8x128xf32>
    %356 = vector.shape_cast %355 : vector<8x128xf32> to vector<8x1x128xf32>
    %357 = vector.shape_cast %356 : vector<8x1x128xf32> to vector<8x1x128xf32>
    %358 = vector.broadcast %357 : vector<8x1x128xf32> to vector<8x2x128xf32>
    %359 = vector.shape_cast %358 : vector<8x2x128xf32> to vector<16x128xf32>
    %360 = vector.shape_cast %359 : vector<16x128xf32> to vector<1x16x128xf32>
    %361 = vector.shape_cast %360 : vector<1x16x128xf32> to vector<1x16x128xf32>
    %362 = vector.broadcast %361 : vector<1x16x128xf32> to vector<2x16x128xf32>
    %c9_239 = arith.constant 9 : index
    %c1_240 = arith.constant 1 : index
    %c0_241 = arith.constant 0 : index
    %363 = vector.load %arg10[%c9_239, %c1_240, %c0_241] : memref<18x18x128xf32, #tpu.memory_space<vmem>>, vector<2x16x128xf32>
    tpu.vector_store %arg10[%c9_239, %c1_240, %c0_241], %362 {strides = array<i32>} : memref<18x18x128xf32, #tpu.memory_space<vmem>>, vector<2x16x128xf32>,
    %364 = vector.extract_strided_slice %313 {offsets = [5, 0, 0], sizes = [1, 8, 128], strides = [1, 1, 1]} : vector<8x8x128xf32> to vector<1x8x128xf32>
    %365 = vector.shape_cast %364 : vector<1x8x128xf32> to vector<8x128xf32>
    %366 = vector.shape_cast %365 : vector<8x128xf32> to vector<8x1x128xf32>
    %367 = vector.shape_cast %366 : vector<8x1x128xf32> to vector<8x1x128xf32>
    %368 = vector.broadcast %367 : vector<8x1x128xf32> to vector<8x2x128xf32>
    %369 = vector.shape_cast %368 : vector<8x2x128xf32> to vector<16x128xf32>
    %370 = vector.shape_cast %369 : vector<16x128xf32> to vector<1x16x128xf32>
    %371 = vector.shape_cast %370 : vector<1x16x128xf32> to vector<1x16x128xf32>
    %372 = vector.broadcast %371 : vector<1x16x128xf32> to vector<2x16x128xf32>
    %c11 = arith.constant 11 : index
    %c1_242 = arith.constant 1 : index
    %c0_243 = arith.constant 0 : index
    %373 = vector.load %arg10[%c11, %c1_242, %c0_243] : memref<18x18x128xf32, #tpu.memory_space<vmem>>, vector<2x16x128xf32>
    tpu.vector_store %arg10[%c11, %c1_242, %c0_243], %372 {strides = array<i32>} : memref<18x18x128xf32, #tpu.memory_space<vmem>>, vector<2x16x128xf32>,
    %374 = vector.extract_strided_slice %313 {offsets = [6, 0, 0], sizes = [1, 8, 128], strides = [1, 1, 1]} : vector<8x8x128xf32> to vector<1x8x128xf32>
    %375 = vector.shape_cast %374 : vector<1x8x128xf32> to vector<8x128xf32>
    %376 = vector.shape_cast %375 : vector<8x128xf32> to vector<8x1x128xf32>
    %377 = vector.shape_cast %376 : vector<8x1x128xf32> to vector<8x1x128xf32>
    %378 = vector.broadcast %377 : vector<8x1x128xf32> to vector<8x2x128xf32>
    %379 = vector.shape_cast %378 : vector<8x2x128xf32> to vector<16x128xf32>
    %380 = vector.shape_cast %379 : vector<16x128xf32> to vector<1x16x128xf32>
    %381 = vector.shape_cast %380 : vector<1x16x128xf32> to vector<1x16x128xf32>
    %382 = vector.broadcast %381 : vector<1x16x128xf32> to vector<2x16x128xf32>
    %c13 = arith.constant 13 : index
    %c1_244 = arith.constant 1 : index
    %c0_245 = arith.constant 0 : index
    %383 = vector.load %arg10[%c13, %c1_244, %c0_245] : memref<18x18x128xf32, #tpu.memory_space<vmem>>, vector<2x16x128xf32>
    tpu.vector_store %arg10[%c13, %c1_244, %c0_245], %382 {strides = array<i32>} : memref<18x18x128xf32, #tpu.memory_space<vmem>>, vector<2x16x128xf32>,
    %384 = vector.extract_strided_slice %313 {offsets = [7, 0, 0], sizes = [1, 8, 128], strides = [1, 1, 1]} : vector<8x8x128xf32> to vector<1x8x128xf32>
    %385 = vector.shape_cast %384 : vector<1x8x128xf32> to vector<8x128xf32>
    %386 = vector.shape_cast %385 : vector<8x128xf32> to vector<8x1x128xf32>
    %387 = vector.shape_cast %386 : vector<8x1x128xf32> to vector<8x1x128xf32>
    %388 = vector.broadcast %387 : vector<8x1x128xf32> to vector<8x2x128xf32>
    %389 = vector.shape_cast %388 : vector<8x2x128xf32> to vector<16x128xf32>
    %390 = vector.shape_cast %389 : vector<16x128xf32> to vector<1x16x128xf32>
    %391 = vector.shape_cast %390 : vector<1x16x128xf32> to vector<1x16x128xf32>
    %392 = vector.broadcast %391 : vector<1x16x128xf32> to vector<2x16x128xf32>
    %c15 = arith.constant 15 : index
    %c1_246 = arith.constant 1 : index
    %c0_247 = arith.constant 0 : index
    %393 = vector.load %arg10[%c15, %c1_246, %c0_247] : memref<18x18x128xf32, #tpu.memory_space<vmem>>, vector<2x16x128xf32>
    tpu.vector_store %arg10[%c15, %c1_246, %c0_247], %392 {strides = array<i32>} : memref<18x18x128xf32, #tpu.memory_space<vmem>>, vector<2x16x128xf32>,
    %cst_248 = arith.constant 0.000000e+00 : f32
    %394 = vector.broadcast %cst_248 : f32 to vector<16x16xf32>
    %c0_249 = arith.constant 0 : index
    %c0_250 = arith.constant 0 : index
    %c0_251 = arith.constant 0 : index
    %395 = vector.load %arg10[%c0_249, %c0_250, %c0_251] : memref<18x18x128xf32, #tpu.memory_space<vmem>>, vector<16x16x128xf32>
    %c0_252 = arith.constant 0 : index
    %c0_253 = arith.constant 0 : index
    %c0_254 = arith.constant 0 : index
    %396 = vector.load %arg5[%c0_252, %c0_253, %c0_254] : memref<9x1x128xf32, #tpu.memory_space<vmem>>, vector<1x1x128xf32>
    %397 = vector.shape_cast %396 : vector<1x1x128xf32> to vector<1x128xf32>
    %398 = vector.shape_cast %397 : vector<1x128xf32> to vector<1x1x128xf32>
    %399 = vector.broadcast %398 : vector<1x1x128xf32> to vector<16x16x128xf32>
    %400 = arith.mulf %395, %399 : vector<16x16x128xf32>
    %cst_255 = arith.constant dense<0.000000e+00> : vector<16x16xf32>
    %401 = vector.multi_reduction <add>, %400, %cst_255 [2] : vector<16x16x128xf32> to vector<16x16xf32>
    %402 = arith.addf %394, %401 : vector<16x16xf32>
    %c0_256 = arith.constant 0 : index
    %c1_257 = arith.constant 1 : index
    %c0_258 = arith.constant 0 : index
    %403 = vector.load %arg10[%c0_256, %c1_257, %c0_258] : memref<18x18x128xf32, #tpu.memory_space<vmem>>, vector<16x16x128xf32>
    %c1_259 = arith.constant 1 : index
    %c0_260 = arith.constant 0 : index
    %c0_261 = arith.constant 0 : index
    %404 = vector.load %arg5[%c1_259, %c0_260, %c0_261] : memref<9x1x128xf32, #tpu.memory_space<vmem>>, vector<1x1x128xf32>
    %405 = vector.shape_cast %404 : vector<1x1x128xf32> to vector<1x128xf32>
    %406 = vector.shape_cast %405 : vector<1x128xf32> to vector<1x1x128xf32>
    %407 = vector.broadcast %406 : vector<1x1x128xf32> to vector<16x16x128xf32>
    %408 = arith.mulf %403, %407 : vector<16x16x128xf32>
    %cst_262 = arith.constant dense<0.000000e+00> : vector<16x16xf32>
    %409 = vector.multi_reduction <add>, %408, %cst_262 [2] : vector<16x16x128xf32> to vector<16x16xf32>
    %410 = arith.addf %402, %409 : vector<16x16xf32>
    %c0_263 = arith.constant 0 : index
    %c2_264 = arith.constant 2 : index
    %c0_265 = arith.constant 0 : index
    %411 = vector.load %arg10[%c0_263, %c2_264, %c0_265] : memref<18x18x128xf32, #tpu.memory_space<vmem>>, vector<16x16x128xf32>
    %c2_266 = arith.constant 2 : index
    %c0_267 = arith.constant 0 : index
    %c0_268 = arith.constant 0 : index
    %412 = vector.load %arg5[%c2_266, %c0_267, %c0_268] : memref<9x1x128xf32, #tpu.memory_space<vmem>>, vector<1x1x128xf32>
    %413 = vector.shape_cast %412 : vector<1x1x128xf32> to vector<1x128xf32>
    %414 = vector.shape_cast %413 : vector<1x128xf32> to vector<1x1x128xf32>
    %415 = vector.broadcast %414 : vector<1x1x128xf32> to vector<16x16x128xf32>
    %416 = arith.mulf %411, %415 : vector<16x16x128xf32>
    %cst_269 = arith.constant dense<0.000000e+00> : vector<16x16xf32>
    %417 = vector.multi_reduction <add>, %416, %cst_269 [2] : vector<16x16x128xf32> to vector<16x16xf32>
    %418 = arith.addf %410, %417 : vector<16x16xf32>
    %c1_270 = arith.constant 1 : index
    %c0_271 = arith.constant 0 : index
    %c0_272 = arith.constant 0 : index
    %419 = vector.load %arg10[%c1_270, %c0_271, %c0_272] : memref<18x18x128xf32, #tpu.memory_space<vmem>>, vector<16x16x128xf32>
    %c3_273 = arith.constant 3 : index
    %c0_274 = arith.constant 0 : index
    %c0_275 = arith.constant 0 : index
    %420 = vector.load %arg5[%c3_273, %c0_274, %c0_275] : memref<9x1x128xf32, #tpu.memory_space<vmem>>, vector<1x1x128xf32>
    %421 = vector.shape_cast %420 : vector<1x1x128xf32> to vector<1x128xf32>
    %422 = vector.shape_cast %421 : vector<1x128xf32> to vector<1x1x128xf32>
    %423 = vector.broadcast %422 : vector<1x1x128xf32> to vector<16x16x128xf32>
    %424 = arith.mulf %419, %423 : vector<16x16x128xf32>
    %cst_276 = arith.constant dense<0.000000e+00> : vector<16x16xf32>
    %425 = vector.multi_reduction <add>, %424, %cst_276 [2] : vector<16x16x128xf32> to vector<16x16xf32>
    %426 = arith.addf %418, %425 : vector<16x16xf32>
    %c1_277 = arith.constant 1 : index
    %c1_278 = arith.constant 1 : index
    %c0_279 = arith.constant 0 : index
    %427 = vector.load %arg10[%c1_277, %c1_278, %c0_279] : memref<18x18x128xf32, #tpu.memory_space<vmem>>, vector<16x16x128xf32>
    %c4_280 = arith.constant 4 : index
    %c0_281 = arith.constant 0 : index
    %c0_282 = arith.constant 0 : index
    %428 = vector.load %arg5[%c4_280, %c0_281, %c0_282] : memref<9x1x128xf32, #tpu.memory_space<vmem>>, vector<1x1x128xf32>
    %429 = vector.shape_cast %428 : vector<1x1x128xf32> to vector<1x128xf32>
    %430 = vector.shape_cast %429 : vector<1x128xf32> to vector<1x1x128xf32>
    %431 = vector.broadcast %430 : vector<1x1x128xf32> to vector<16x16x128xf32>
    %432 = arith.mulf %427, %431 : vector<16x16x128xf32>
    %cst_283 = arith.constant dense<0.000000e+00> : vector<16x16xf32>
    %433 = vector.multi_reduction <add>, %432, %cst_283 [2] : vector<16x16x128xf32> to vector<16x16xf32>
    %434 = arith.addf %426, %433 : vector<16x16xf32>
    %c1_284 = arith.constant 1 : index
    %c2_285 = arith.constant 2 : index
    %c0_286 = arith.constant 0 : index
    %435 = vector.load %arg10[%c1_284, %c2_285, %c0_286] : memref<18x18x128xf32, #tpu.memory_space<vmem>>, vector<16x16x128xf32>
    %c5_287 = arith.constant 5 : index
    %c0_288 = arith.constant 0 : index
    %c0_289 = arith.constant 0 : index
    %436 = vector.load %arg5[%c5_287, %c0_288, %c0_289] : memref<9x1x128xf32, #tpu.memory_space<vmem>>, vector<1x1x128xf32>
    %437 = vector.shape_cast %436 : vector<1x1x128xf32> to vector<1x128xf32>
    %438 = vector.shape_cast %437 : vector<1x128xf32> to vector<1x1x128xf32>
    %439 = vector.broadcast %438 : vector<1x1x128xf32> to vector<16x16x128xf32>
    %440 = arith.mulf %435, %439 : vector<16x16x128xf32>
    %cst_290 = arith.constant dense<0.000000e+00> : vector<16x16xf32>
    %441 = vector.multi_reduction <add>, %440, %cst_290 [2] : vector<16x16x128xf32> to vector<16x16xf32>
    %442 = arith.addf %434, %441 : vector<16x16xf32>
    %c2_291 = arith.constant 2 : index
    %c0_292 = arith.constant 0 : index
    %c0_293 = arith.constant 0 : index
    %443 = vector.load %arg10[%c2_291, %c0_292, %c0_293] : memref<18x18x128xf32, #tpu.memory_space<vmem>>, vector<16x16x128xf32>
    %c6_294 = arith.constant 6 : index
    %c0_295 = arith.constant 0 : index
    %c0_296 = arith.constant 0 : index
    %444 = vector.load %arg5[%c6_294, %c0_295, %c0_296] : memref<9x1x128xf32, #tpu.memory_space<vmem>>, vector<1x1x128xf32>
    %445 = vector.shape_cast %444 : vector<1x1x128xf32> to vector<1x128xf32>
    %446 = vector.shape_cast %445 : vector<1x128xf32> to vector<1x1x128xf32>
    %447 = vector.broadcast %446 : vector<1x1x128xf32> to vector<16x16x128xf32>
    %448 = arith.mulf %443, %447 : vector<16x16x128xf32>
    %cst_297 = arith.constant dense<0.000000e+00> : vector<16x16xf32>
    %449 = vector.multi_reduction <add>, %448, %cst_297 [2] : vector<16x16x128xf32> to vector<16x16xf32>
    %450 = arith.addf %442, %449 : vector<16x16xf32>
    %c2_298 = arith.constant 2 : index
    %c1_299 = arith.constant 1 : index
    %c0_300 = arith.constant 0 : index
    %451 = vector.load %arg10[%c2_298, %c1_299, %c0_300] : memref<18x18x128xf32, #tpu.memory_space<vmem>>, vector<16x16x128xf32>
    %c7_301 = arith.constant 7 : index
    %c0_302 = arith.constant 0 : index
    %c0_303 = arith.constant 0 : index
    %452 = vector.load %arg5[%c7_301, %c0_302, %c0_303] : memref<9x1x128xf32, #tpu.memory_space<vmem>>, vector<1x1x128xf32>
    %453 = vector.shape_cast %452 : vector<1x1x128xf32> to vector<1x128xf32>
    %454 = vector.shape_cast %453 : vector<1x128xf32> to vector<1x1x128xf32>
    %455 = vector.broadcast %454 : vector<1x1x128xf32> to vector<16x16x128xf32>
    %456 = arith.mulf %451, %455 : vector<16x16x128xf32>
    %cst_304 = arith.constant dense<0.000000e+00> : vector<16x16xf32>
    %457 = vector.multi_reduction <add>, %456, %cst_304 [2] : vector<16x16x128xf32> to vector<16x16xf32>
    %458 = arith.addf %450, %457 : vector<16x16xf32>
    %c2_305 = arith.constant 2 : index
    %c2_306 = arith.constant 2 : index
    %c0_307 = arith.constant 0 : index
    %459 = vector.load %arg10[%c2_305, %c2_306, %c0_307] : memref<18x18x128xf32, #tpu.memory_space<vmem>>, vector<16x16x128xf32>
    %c8_308 = arith.constant 8 : index
    %c0_309 = arith.constant 0 : index
    %c0_310 = arith.constant 0 : index
    %460 = vector.load %arg5[%c8_308, %c0_309, %c0_310] : memref<9x1x128xf32, #tpu.memory_space<vmem>>, vector<1x1x128xf32>
    %461 = vector.shape_cast %460 : vector<1x1x128xf32> to vector<1x128xf32>
    %462 = vector.shape_cast %461 : vector<1x128xf32> to vector<1x1x128xf32>
    %463 = vector.broadcast %462 : vector<1x1x128xf32> to vector<16x16x128xf32>
    %464 = arith.mulf %459, %463 : vector<16x16x128xf32>
    %cst_311 = arith.constant dense<0.000000e+00> : vector<16x16xf32>
    %465 = vector.multi_reduction <add>, %464, %cst_311 [2] : vector<16x16x128xf32> to vector<16x16xf32>
    %466 = arith.addf %458, %465 : vector<16x16xf32>
    %c3_312 = arith.constant 3 : index
    %c0_313 = arith.constant 0 : index
    %467 = vector.load %arg6[%c3_312, %c0_313] : memref<4x128xf32, #tpu.memory_space<vmem>>, vector<1x1xf32>
    %468 = vector.broadcast %467 : vector<1x1xf32> to vector<16x16xf32>
    %469 = arith.addf %466, %468 : vector<16x16xf32>
    %470 = arith.negf %469 : vector<16x16xf32>
    %471 = math.exp %470 : vector<16x16xf32>
    %cst_314 = arith.constant 1.000000e+00 : f32
    %472 = vector.broadcast %cst_314 : f32 to vector<16x16xf32>
    %473 = arith.addf %472, %471 : vector<16x16xf32>
    %474 = arith.divf %472, %473 : vector<16x16xf32>
    %c0_315 = arith.constant 0 : index
    %c0_316 = arith.constant 0 : index
    %c0_317 = arith.constant 0 : index
    %475 = vector.load %arg7[%c0_315, %c0_316, %c0_317] : memref<1x16x16xf32, #tpu.memory_space<vmem>>, vector<1x16x16xf32>
    %476 = vector.shape_cast %475 : vector<1x16x16xf32> to vector<16x16xf32>
    %477 = vector.shape_cast %474 : vector<16x16xf32> to vector<1x16x16xf32>
    tpu.vector_store %arg7[%c0_315, %c0_316, %c0_317], %477 {strides = array<i32>} : memref<1x16x16xf32, #tpu.memory_space<vmem>>, vector<1x16x16xf32>,
    return
  }
  func.func @transform_0(%arg0: i32) -> (i32, i32, i32) {
    %c0_i32 = arith.constant 0 : i32
    %c0_i32_0 = arith.constant 0 : i32
    %c0_i32_1 = arith.constant 0 : i32
    return %arg0, %c0_i32, %c0_i32_0 : i32, i32, i32
  }
  func.func @transform_1(%arg0: i32) -> (i32, i32) {
    %c0_i32 = arith.constant 0 : i32
    %c0_i32_0 = arith.constant 0 : i32
    %c0_i32_1 = arith.constant 0 : i32
    return %c0_i32, %c0_i32_0 : i32, i32
  }
  func.func @transform_2(%arg0: i32) -> (i32, i32, i32) {
    %c0_i32 = arith.constant 0 : i32
    %c0_i32_0 = arith.constant 0 : i32
    %c0_i32_1 = arith.constant 0 : i32
    %c0_i32_2 = arith.constant 0 : i32
    return %c0_i32, %c0_i32_0, %c0_i32_1 : i32, i32, i32
  }
  func.func @transform_3(%arg0: i32) -> (i32, i32, i32) {
    %c0_i32 = arith.constant 0 : i32
    %c0_i32_0 = arith.constant 0 : i32
    %c0_i32_1 = arith.constant 0 : i32
    %c0_i32_2 = arith.constant 0 : i32
    return %c0_i32, %c0_i32_0, %c0_i32_1 : i32, i32, i32
  }
  func.func @transform_4(%arg0: i32) -> (i32, i32, i32) {
    %c0_i32 = arith.constant 0 : i32
    %c0_i32_0 = arith.constant 0 : i32
    %c0_i32_1 = arith.constant 0 : i32
    %c0_i32_2 = arith.constant 0 : i32
    return %c0_i32, %c0_i32_0, %c0_i32_1 : i32, i32, i32
  }
  func.func @transform_5(%arg0: i32) -> (i32, i32) {
    %c0_i32 = arith.constant 0 : i32
    %c0_i32_0 = arith.constant 0 : i32
    %c0_i32_1 = arith.constant 0 : i32
    return %c0_i32, %c0_i32_0 : i32, i32
  }
  func.func @transform_6(%arg0: i32) -> (i32, i32, i32) {
    %c0_i32 = arith.constant 0 : i32
    %c0_i32_0 = arith.constant 0 : i32
    %c0_i32_1 = arith.constant 0 : i32
    return %arg0, %c0_i32, %c0_i32_0 : i32, i32, i32
  }
}

</mosaic_0001>

<llo_original>
// kernel: conv_autoencoder_forward.1
$region0: #{conv_autoencoder_forward.1}
  #allocation0 [shape = 'u32[]', space=smem, size = 0x4, offset = 0x4, fixed_abs, tag = 'smem constant byte address 0x4 - core index']
  #allocation1 [shape = 'u32[144,128]{1,0:T(1,128)}', space=vmem, size = 0x12000, scoped, tag = 'internal scratch']
  #allocation2 [shape = 'f32[10,10,128]{2,1,0:T(8,128)}', space=vmem, size = 0x14000, scoped, tag = 'scratch operand']
  #allocation3 [shape = 'f32[10,10,128]{2,1,0:T(8,128)}', space=vmem, size = 0x14000, scoped, tag = 'scratch operand']
  #allocation4 [shape = 'f32[18,18,128]{2,1,0:T(8,128)}', space=vmem, size = 0x36000, scoped, tag = 'scratch operand']
  %s0 = inlined_call_operand.vmem [shape: f32[2,256,16], index: 0, kind: input, shape index: {}]
  %s1 = inlined_call_operand.vmem [shape: f32[16,128], index: 1, kind: input, shape index: {}]
  %s2 = inlined_call_operand.vmem [shape: bf16[9,128,128], index: 2, kind: input, shape index: {}]
  %s3 = inlined_call_operand.vmem [shape: bf16[9,128,128], index: 3, kind: input, shape index: {}]
  %s4 = inlined_call_operand.vmem [shape: f32[9,1,128], index: 4, kind: input, shape index: {}]
  %s5 = inlined_call_operand.vmem [shape: f32[4,128], index: 5, kind: input, shape index: {}]
  %s6 = inlined_call_operand.hbm [shape: f32[2,16,16], index: 6, kind: output, shape index: {}]
  %s7 = sld [smem:[#allocation0]]
  $region57: #{conv_autoencoder_forward.1} parent=0
    _
  %s9 = ssub.s32 1, %s7
  %s10 = scalar_select 0, %s9, %s7
  $region1: #{conv_autoencoder_forward.1} parent=0
    #allocation5 [shape = 'u8[16384]{0}', space=vmem, size = 0x4000, scoped, tag = 'output window, operand 0']
    #allocation6 [shape = 's32[2]{0}', space=sflag, size = 0x8, scoped, tag = 'scoped memory for conv_autoencoder_forward.1']
    %11 = vsyncpa [#allocation6], 0
    %s12 = scalar_lea.sflag [#allocation6], 1
    %13 = vsyncpa %s12, 0
    loop: start=0, step=1, limit=4
    $region2: #{conv_autoencoder_forward.1} parent=1 // loop_pre_header
      _
    $region3: #{conv_autoencoder_forward.1} parent=1 // loop_header
      %s15 = sphi 0, %s19
      %p16 = scmp.ge.s32.totalorder %s15, 4
      %s25 = sphi 0, %s27
      %s28 = sphi 0, %s25
      %s29 = sphi 0, %s28
      %s45 = sphi 0, %s29
      %s49 = sphi 0, %s49
      %s51 = sphi 0, %s49
      %s52 = sphi 0, %s51
      %s66 = sphi 0, %s52
      %s70 = sphi 0, %s70
      %s72 = sphi 0, %s70
      %s73 = sphi 0, %s72
      %s87 = sphi 0, %s73
      %s91 = sphi 0, %s91
      %s93 = sphi 0, %s91
      %s94 = sphi 0, %s93
      %s108 = sphi 0, %s94
      %s112 = sphi 0, %s112
      %s114 = sphi 0, %s112
      %s115 = sphi 0, %s114
      %s129 = sphi 0, %s115
      %s133 = sphi 0, %s133
      %s135 = sphi 0, %s133
      %s136 = sphi 0, %s135
      %s150 = sphi 0, %s136
      %s156 = sphi 0, %s158
      %s159 = sphi 0, %s156
      %s160 = sphi 0, %s159
      %s176 = sphi 0, %s160
    $region4: #{conv_autoencoder_forward.1} parent=1 // loop_header_branch
      %18 = sbr.rel (%p16) target = $region8
    $region5: #{conv_autoencoder_forward.1} parent=1 // loop_body
      %s20 = ssub.s32 %s15, 1
      %s21 = ssub.s32 %s15, 2
      %s22 = sadd.s32 %s15, 1
      %s23 = ssub.s32 %s15, %s22
      %p24 = scmp.eq.s32.totalorder %s23, 0
      %s26 = sadd.s32 %s25, 1
      %s27 = scalar_select %p24, %s25, %s26
      %p30 = pneg %p24
      %p31 = scmp.eq.s32.totalorder %s15, 1
      %p32 = por %p30, %p31
      %p33 = scmp.ne.s32.totalorder %s25, %s28
      %p34 = scmp.eq.s32.totalorder %s15, 0
      %p35 = por %p33, %p34
      %p36 = scmp.ne.s32.totalorder %s25, %s28
      %p37 = scmp.eq.s32.totalorder %s20, 1
      %p38 = por %p36, %p37
      %p39 = scmp.ne.s32.totalorder %s28, %s29
      %p40 = scmp.eq.s32.totalorder %s20, 0
      %p41 = por %p39, %p40
      %p42 = scmp.ne.s32.totalorder %s28, %s29
      %p43 = scmp.eq.s32.totalorder %s21, 1
      %p44 = por %p42, %p43
      %p46 = scmp.ne.s32.totalorder %s29, %s45
      %p47 = scmp.eq.s32.totalorder %s21, 0
      %p48 = por %p46, %p47
      %s50 = sadd.s32 %s49, 1
      %p53 = scmp.eq.s32.totalorder %s15, 1
      %p54 = scmp.ne.s32.totalorder %s49, %s51
      %p55 = scmp.eq.s32.totalorder %s15, 0
      %p56 = por %p54, %p55
      %p57 = scmp.ne.s32.totalorder %s49, %s51
      %p58 = scmp.eq.s32.totalorder %s20, 1
      %p59 = por %p57, %p58
      %p60 = scmp.ne.s32.totalorder %s51, %s52
      %p61 = scmp.eq.s32.totalorder %s20, 0
      %p62 = por %p60, %p61
      %p63 = scmp.ne.s32.totalorder %s51, %s52
      %p64 = scmp.eq.s32.totalorder %s21, 1
      %p65 = por %p63, %p64
      %p67 = scmp.ne.s32.totalorder %s52, %s66
      %p68 = scmp.eq.s32.totalorder %s21, 0
      %p69 = por %p67, %p68
      %s71 = sadd.s32 %s70, 1
      %p74 = scmp.eq.s32.totalorder %s15, 1
      %p75 = scmp.ne.s32.totalorder %s70, %s72
      %p76 = scmp.eq.s32.totalorder %s15, 0
      %p77 = por %p75, %p76
      %p78 = scmp.ne.s32.totalorder %s70, %s72
      %p79 = scmp.eq.s32.totalorder %s20, 1
      %p80 = por %p78, %p79
      %p81 = scmp.ne.s32.totalorder %s72, %s73
      %p82 = scmp.eq.s32.totalorder %s20, 0
      %p83 = por %p81, %p82
      %p84 = scmp.ne.s32.totalorder %s72, %s73
      %p85 = scmp.eq.s32.totalorder %s21, 1
      %p86 = por %p84, %p85
      %p88 = scmp.ne.s32.totalorder %s73, %s87
      %p89 = scmp.eq.s32.totalorder %s21, 0
      %p90 = por %p88, %p89
      %s92 = sadd.s32 %s91, 1
      %p95 = scmp.eq.s32.totalorder %s15, 1
      %p96 = scmp.ne.s32.totalorder %s91, %s93
      %p97 = scmp.eq.s32.totalorder %s15, 0
      %p98 = por %p96, %p97
      %p99 = scmp.ne.s32.totalorder %s91, %s93
      %p100 = scmp.eq.s32.totalorder %s20, 1
      %p101 = por %p99, %p100
      %p102 = scmp.ne.s32.totalorder %s93, %s94
      %p103 = scmp.eq.s32.totalorder %s20, 0
      %p104 = por %p102, %p103
      %p105 = scmp.ne.s32.totalorder %s93, %s94
      %p106 = scmp.eq.s32.totalorder %s21, 1
      %p107 = por %p105, %p106
      %p109 = scmp.ne.s32.totalorder %s94, %s108
      %p110 = scmp.eq.s32.totalorder %s21, 0
      %p111 = por %p109, %p110
      %s113 = sadd.s32 %s112, 1
      %p116 = scmp.eq.s32.totalorder %s15, 1
      %p117 = scmp.ne.s32.totalorder %s112, %s114
      %p118 = scmp.eq.s32.totalorder %s15, 0
      %p119 = por %p117, %p118
      %p120 = scmp.ne.s32.totalorder %s112, %s114
      %p121 = scmp.eq.s32.totalorder %s20, 1
      %p122 = por %p120, %p121
      %p123 = scmp.ne.s32.totalorder %s114, %s115
      %p124 = scmp.eq.s32.totalorder %s20, 0
      %p125 = por %p123, %p124
      %p126 = scmp.ne.s32.totalorder %s114, %s115
      %p127 = scmp.eq.s32.totalorder %s21, 1
      %p128 = por %p126, %p127
      %p130 = scmp.ne.s32.totalorder %s115, %s129
      %p131 = scmp.eq.s32.totalorder %s21, 0
      %p132 = por %p130, %p131
      %s134 = sadd.s32 %s133, 1
      %p137 = scmp.eq.s32.totalorder %s15, 1
      %p138 = scmp.ne.s32.totalorder %s133, %s135
      %p139 = scmp.eq.s32.totalorder %s15, 0
      %p140 = por %p138, %p139
      %p141 = scmp.ne.s32.totalorder %s133, %s135
      %p142 = scmp.eq.s32.totalorder %s20, 1
      %p143 = por %p141, %p142
      %p144 = scmp.ne.s32.totalorder %s135, %s136
      %p145 = scmp.eq.s32.totalorder %s20, 0
      %p146 = por %p144, %p145
      %p147 = scmp.ne.s32.totalorder %s135, %s136
      %p148 = scmp.eq.s32.totalorder %s21, 1
      %p149 = por %p147, %p148
      %p151 = scmp.ne.s32.totalorder %s136, %s150
      %p152 = scmp.eq.s32.totalorder %s21, 0
      %p153 = por %p151, %p152
      %s154 = ssub.s32 %s15, %s22
      %p155 = scmp.eq.s32.totalorder %s154, 0
      %s157 = sadd.s32 %s156, 1
      %s158 = scalar_select %p155, %s156, %s157
      %p161 = pneg %p155
      %p162 = scmp.eq.s32.totalorder %s15, 1
      %p163 = por %p161, %p162
      %p164 = scmp.ne.s32.totalorder %s156, %s159
      %p165 = scmp.eq.s32.totalorder %s15, 0
      %p166 = por %p164, %p165
      %p167 = scmp.ne.s32.totalorder %s156, %s159
      %p168 = scmp.eq.s32.totalorder %s20, 1
      %p169 = por %p167, %p168
      %p170 = scmp.ne.s32.totalorder %s159, %s160
      %p171 = scmp.eq.s32.totalorder %s20, 0
      %p172 = por %p170, %p171
      %p173 = scmp.ne.s32.totalorder %s159, %s160
      %p174 = scmp.eq.s32.totalorder %s21, 1
      %p175 = por %p173, %p174
      %p177 = scmp.ne.s32.totalorder %s160, %s176
      %p178 = scmp.eq.s32.totalorder %s21, 0
      %p179 = por %p177, %p178
      %p180 = scmp.le.s32.totalorder 1, %s15
      %p181 = scmp.lt.s32.totalorder %s15, 3
      %p182 = pnand %p180, %p181
      %p183 = pneg %p182
      // Predicated region
      $region9: #{conv_autoencoder_forward.1} parent=5 // pred_check
        _
      $region10: #{conv_autoencoder_forward.1} parent=5 // pred_check_branch
        %185 = sbr.rel (%p182) target = $region12
      $region11: #{conv_autoencoder_forward.1} parent=5 // pred_region
        %s186 = ssub.s32 %s15, 1
        // Predicated region
        $region13: #{conv_autoencoder_forward.1} parent=11 // pred_check
          %p187 = pneg %p62
        $region14: #{conv_autoencoder_forward.1} parent=11 // pred_check_branch
          %189 = sbr.rel (%p187) target = $region16
        $region15: #{conv_autoencoder_forward.1} parent=11 // pred_region
          _
        $region16: #{conv_autoencoder_forward.1} parent=11 // pred_fallthru
          _
        // Predicated region
        $region17: #{conv_autoencoder_forward.1} parent=11 // pred_check
          %p190 = pneg %p83
        $region18: #{conv_autoencoder_forward.1} parent=11 // pred_check_branch
          %192 = sbr.rel (%p190) target = $region20
        $region19: #{conv_autoencoder_forward.1} parent=11 // pred_region
          _
        $region20: #{conv_autoencoder_forward.1} parent=11 // pred_fallthru
          _
        // Predicated region
        $region21: #{conv_autoencoder_forward.1} parent=11 // pred_check
          %p193 = pneg %p104
        $region22: #{conv_autoencoder_forward.1} parent=11 // pred_check_branch
          %195 = sbr.rel (%p193) target = $region24
        $region23: #{conv_autoencoder_forward.1} parent=11 // pred_region
          _
        $region24: #{conv_autoencoder_forward.1} parent=11 // pred_fallthru
          _
        // Predicated region
        $region25: #{conv_autoencoder_forward.1} parent=11 // pred_check
          %p196 = pneg %p125
        $region26: #{conv_autoencoder_forward.1} parent=11 // pred_check_branch
          %198 = sbr.rel (%p196) target = $region28
        $region27: #{conv_autoencoder_forward.1} parent=11 // pred_region
          _
        $region28: #{conv_autoencoder_forward.1} parent=11 // pred_fallthru
          _
        // Predicated region
        $region29: #{conv_autoencoder_forward.1} parent=11 // pred_check
          %p199 = pneg %p146
        $region30: #{conv_autoencoder_forward.1} parent=11 // pred_check_branch
          %201 = sbr.rel (%p199) target = $region32
        $region31: #{conv_autoencoder_forward.1} parent=11 // pred_region
          _
        $region32: #{conv_autoencoder_forward.1} parent=11 // pred_fallthru
          _
      $region12: #{conv_autoencoder_forward.1} parent=5 // pred_fallthru
        _
      %p202 = scmp.lt.s32.totalorder %s15, 2
      // Predicated region
      $region33: #{conv_autoencoder_forward.1} parent=5 // pred_check
        %p203 = pneg %p202
      $region34: #{conv_autoencoder_forward.1} parent=5 // pred_check_branch
        %205 = sbr.rel (%p203) target = $region36
      $region35: #{conv_autoencoder_forward.1} parent=5 // pred_region
        // Predicated region
        $region37: #{conv_autoencoder_forward.1} parent=35 // pred_check
          %p206 = pneg %p35
        $region38: #{conv_autoencoder_forward.1} parent=35 // pred_check_branch
          %208 = sbr.rel (%p206) target = $region40
        $region39: #{conv_autoencoder_forward.1} parent=35 // pred_region
          %p209 = scmp.lt.s32.totalorder %s15, 1
          %s210 = scalar_select %p209, %s15, 1
          %s211 = smul.addr %s210, 32
          %s212 = smul.addr %s211, 8
          %s213 = scalar_lea.vmem %s0, %s212
        $region40: #{conv_autoencoder_forward.1} parent=35 // pred_fallthru
          _
      $region36: #{conv_autoencoder_forward.1} parent=5 // pred_fallthru
        _
      %p214 = scmp.le.s32.totalorder 1, %s15
      %p215 = scmp.lt.s32.totalorder %s15, 3
      %p216 = pnand %p214, %p215
      %p217 = pneg %p216
      // Predicated region
      $region41: #{conv_autoencoder_forward.1} parent=5 // pred_check
        _
      $region42: #{conv_autoencoder_forward.1} parent=5 // pred_check_branch
        %219 = sbr.rel (%p216) target = $region44
      $region43: #{conv_autoencoder_forward.1} parent=5 // pred_region
        %s220 = ssub.s32 %s15, 1
        %p221 = scmp.lt.s32.totalorder %s20, 1
        %s222 = scalar_select %p221, %s20, 1
        %s223 = smul.addr %s222, 32
        %s224 = smul.addr %s223, 8
        %s225 = scalar_lea.vmem %s0, %s224
        %p226 = pneg %p41
        %p227 = pneg %p38
        %p228 = pneg %p62
        %p229 = pneg %p59
        %p230 = pneg %p83
        %p231 = pneg %p80
        %p232 = pneg %p104
        %p233 = pneg %p101
        %p234 = pneg %p125
        %p235 = pneg %p122
        %p236 = pneg %p146
        %p237 = pneg %p143
        %p238 = pneg %p172
        %p239 = pneg %p169
        %s240 = sand.u32 %s159, 1
        %s241 = scalar_lea.sflag [#allocation6], %s240
        %s242 = sand.u32 %s159, 1
        %s243 = smul.addr %s242, 16
        %s244 = scalar_lea.vmem [#allocation5], %s243
        %p245 = scmp.lt.s32.totalorder %s20, 1
        %s246 = scalar_select %p245, %s20, 1
        %s247 = smul.addr %s246, 32
        %s248 = smul.addr %s247, 8
        %s249 = scalar_lea.vmem %s0, %s248
        %v251 = vld [vmem:[%s249] sm:$0xff]
        %v252 = vld [vmem:[%s249 + $0x8] sm:$0xff]
        %v253 = vld [vmem:[%s249 + $0x10] sm:$0xff]
        %v254 = vld [vmem:[%s249 + $0x18] sm:$0xff]
        %v255 = vld [vmem:[%s249 + $0x20] sm:$0xff]
        %v256 = vld [vmem:[%s249 + $0x28] sm:$0xff]
        %v257 = vld [vmem:[%s249 + $0x30] sm:$0xff]
        %v258 = vld [vmem:[%s249 + $0x38] sm:$0xff]
        %v259 = vld [vmem:[%s249 + $0x40] sm:$0xff]
        %v260 = vld [vmem:[%s249 + $0x48] sm:$0xff]
        %v261 = vld [vmem:[%s249 + $0x50] sm:$0xff]
        %v262 = vld [vmem:[%s249 + $0x58] sm:$0xff]
        %v263 = vld [vmem:[%s249 + $0x60] sm:$0xff]
        %v264 = vld [vmem:[%s249 + $0x68] sm:$0xff]
        %v265 = vld [vmem:[%s249 + $0x70] sm:$0xff]
        %v266 = vld [vmem:[%s249 + $0x78] sm:$0xff]
        %v267 = vld [vmem:[%s249 + $0x80] sm:$0xff]
        %v268 = vld [vmem:[%s249 + $0x88] sm:$0xff]
        %v269 = vld [vmem:[%s249 + $0x90] sm:$0xff]
        %v270 = vld [vmem:[%s249 + $0x98] sm:$0xff]
        %v271 = vld [vmem:[%s249 + $0xa0] sm:$0xff]
        %v272 = vld [vmem:[%s249 + $0xa8] sm:$0xff]
        %v273 = vld [vmem:[%s249 + $0xb0] sm:$0xff]
        %v274 = vld [vmem:[%s249 + $0xb8] sm:$0xff]
        %v275 = vld [vmem:[%s249 + $0xc0] sm:$0xff]
        %v276 = vld [vmem:[%s249 + $0xc8] sm:$0xff]
        %v277 = vld [vmem:[%s249 + $0xd0] sm:$0xff]
        %v278 = vld [vmem:[%s249 + $0xd8] sm:$0xff]
        %v279 = vld [vmem:[%s249 + $0xe0] sm:$0xff]
        %v280 = vld [vmem:[%s249 + $0xe8] sm:$0xff]
        %v281 = vld [vmem:[%s249 + $0xf0] sm:$0xff]
        %v282 = vld [vmem:[%s249 + $0xf8] sm:$0xff]
        %v283 = vld [vmem:[%s1] sm:$0xff]
        %v284 = vld [vmem:[%s1 + $0x8] sm:$0xff]
        %v285 = vld [vmem:[%s5] sm:$0x1]
        %v286 = vlaneseq
        %v287 = vshrl.u32 %v286, 7
        %v288 = vsub.s32 0, %v287
        %v289 = vrot.slane %v285, %v288
        %vm290 = vcmask 130048
        %v292 = vsel %vm290, %v251, 0
        %v295 = vsel %vm290, %v252, 0
        %v298 = vsel %vm290, %v253, 0
        %v301 = vsel %vm290, %v254, 0
        %v304 = vsel %vm290, %v255, 0
        %v307 = vsel %vm290, %v256, 0
        %v310 = vsel %vm290, %v257, 0
        %v313 = vsel %vm290, %v258, 0
        %v316 = vsel %vm290, %v259, 0
        %v319 = vsel %vm290, %v260, 0
        %v322 = vsel %vm290, %v261, 0
        %v325 = vsel %vm290, %v262, 0
        %v328 = vsel %vm290, %v263, 0
        %v331 = vsel %vm290, %v264, 0
        %v334 = vsel %vm290, %v265, 0
        %v337 = vsel %vm290, %v266, 0
        %v340 = vsel %vm290, %v267, 0
        %v343 = vsel %vm290, %v268, 0
        %v346 = vsel %vm290, %v269, 0
        %v349 = vsel %vm290, %v270, 0
        %v352 = vsel %vm290, %v271, 0
        %v355 = vsel %vm290, %v272, 0
        %v358 = vsel %vm290, %v273, 0
        %v361 = vsel %vm290, %v274, 0
        %v364 = vsel %vm290, %v275, 0
        %v367 = vsel %vm290, %v276, 0
        %v370 = vsel %vm290, %v277, 0
        %v373 = vsel %vm290, %v278, 0
        %v376 = vsel %vm290, %v279, 0
        %v379 = vsel %vm290, %v280, 0
        %v382 = vsel %vm290, %v281, 0
        %v385 = vsel %vm290, %v282, 0
        %387 = vmatprep.subr.mxu0 0.0
        %388 = vmatpush1.msra.mxu0 %v283
        %389 = vmatprep.subr.mxu0 0.0
        %390 = vmatpush1.msra.mxu0 %v284
        %391 = vmatprep.subr.mxu0 0.0
        %392 = vmatpush1.msra.mxu0 0.0
        %393 = vmatprep.subr.mxu0 0.0
        %394 = vmatpush1.msra.mxu0 0.0
        %395 = vmatprep.subr.mxu0 0.0
        %396 = vmatpush1.msra.mxu0 0.0
        %397 = vmatprep.subr.mxu0 0.0
        %398 = vmatpush1.msra.mxu0 0.0
        %399 = vmatprep.subr.mxu0 0.0
        %400 = vmatpush1.msra.mxu0 0.0
        %401 = vmatprep.subr.mxu0 0.0
        %402 = vmatpush1.msra.mxu0 0.0
        %403 = vmatprep.subr.mxu0 0.0
        %404 = vmatpush1.msra.mxu0 0.0
        %405 = vmatprep.subr.mxu0 0.0
        %406 = vmatpush1.msra.mxu0 0.0
        %407 = vmatprep.subr.mxu0 0.0
        %408 = vmatpush1.msra.mxu0 0.0
        %409 = vmatprep.subr.mxu0 0.0
        %410 = vmatpush1.msra.mxu0 0.0
        %411 = vmatprep.subr.mxu0 0.0
        %412 = vmatpush1.msra.mxu0 0.0
        %413 = vmatprep.subr.mxu0 0.0
        %414 = vmatpush1.msra.mxu0 0.0
        %415 = vmatprep.subr.mxu0 0.0
        %416 = vmatpush1.msra.mxu0 0.0
        %417 = vmatprep.subr.mxu0 0.0
        %418 = vmatpush1.msra.mxu0 0.0
        %419 = vmatprep.subr.mxu0 0.0
        %420 = vmatpush1.msra.mxu0 0.0
        %421 = vmatprep.subr.mxu0 0.0
        %422 = vmatpush1.msra.mxu0 0.0
        %423 = vmatprep.subr.mxu0 0.0
        %424 = vmatpush1.msra.mxu0 0.0
        %425 = vmatprep.subr.mxu0 0.0
        %426 = vmatpush1.msra.mxu0 0.0
        %427 = vmatprep.subr.mxu0 0.0
        %428 = vmatpush1.msra.mxu0 0.0
        %429 = vmatprep.subr.mxu0 0.0
        %430 = vmatpush1.msra.mxu0 0.0
        %431 = vmatprep.subr.mxu0 0.0
        %432 = vmatpush1.msra.mxu0 0.0
        %433 = vmatprep.subr.mxu0 0.0
        %434 = vmatpush1.msra.mxu0 0.0
        %435 = vmatprep.subr.mxu0 0.0
        %436 = vmatpush1.msra.mxu0 0.0
        %437 = vmatprep.subr.mxu0 0.0
        %438 = vmatpush1.msra.mxu0 0.0
        %439 = vmatprep.subr.mxu0 0.0
        %440 = vmatpush1.msra.mxu0 0.0
        %441 = vmatprep.subr.mxu0 0.0
        %442 = vmatpush1.msra.mxu0 0.0
        %443 = vmatprep.subr.mxu0 0.0
        %444 = vmatpush1.msra.mxu0 0.0
        %445 = vmatprep.subr.mxu0 0.0
        %446 = vmatpush1.msra.mxu0 0.0
        %447 = vmatprep.subr.mxu0 0.0
        %448 = vmatpush1.msra.mxu0 0.0
        %449 = vmatprep.subr.mxu0 0.0
        %450 = vmatpush1.msra.mxu0 0.0
        %451 = vmatprep.mubr.f32.mxu0 0.0
        %452 = vmatmul.mubr.f32.gmra.mrb[0].mxu0 %v292
        %v453 = vpop.f32.mrb[0].mxu0
        %v454 = vadd.f32 %v289, %v453
        %v455 = vpop.f32.mrb[0].mxu0
        %456 = vmatprep.mubr.f32.mxu0 0.0
        %457 = vmatmul.mubr.f32.gmra.mrb[0].mxu0 %v295
        %v458 = vpop.f32.mrb[0].mxu0
        %v459 = vadd.f32 %v289, %v458
        %v460 = vpop.f32.mrb[0].mxu0
        %461 = vmatprep.mubr.f32.mxu0 0.0
        %462 = vmatmul.mubr.f32.gmra.mrb[0].mxu0 %v298
        %v463 = vpop.f32.mrb[0].mxu0
        %v464 = vadd.f32 %v289, %v463
        %v465 = vpop.f32.mrb[0].mxu0
        %466 = vmatprep.mubr.f32.mxu0 0.0
        %467 = vmatmul.mubr.f32.gmra.mrb[0].mxu0 %v301
        %v468 = vpop.f32.mrb[0].mxu0
        %v469 = vadd.f32 %v289, %v468
        %v470 = vpop.f32.mrb[0].mxu0
        %471 = vmatprep.mubr.f32.mxu0 0.0
        %472 = vmatmul.mubr.f32.gmra.mrb[0].mxu0 %v304
        %v473 = vpop.f32.mrb[0].mxu0
        %v474 = vadd.f32 %v289, %v473
        %v475 = vpop.f32.mrb[0].mxu0
        %476 = vmatprep.mubr.f32.mxu0 0.0
        %477 = vmatmul.mubr.f32.gmra.mrb[0].mxu0 %v307
        %v478 = vpop.f32.mrb[0].mxu0
        %v479 = vadd.f32 %v289, %v478
        %v480 = vpop.f32.mrb[0].mxu0
        %481 = vmatprep.mubr.f32.mxu0 0.0
        %482 = vmatmul.mubr.f32.gmra.mrb[0].mxu0 %v310
        %v483 = vpop.f32.mrb[0].mxu0
        %v484 = vadd.f32 %v289, %v483
        %v485 = vpop.f32.mrb[0].mxu0
        %486 = vmatprep.mubr.f32.mxu0 0.0
        %487 = vmatmul.mubr.f32.gmra.mrb[0].mxu0 %v313
        %v488 = vpop.f32.mrb[0].mxu0
        %v489 = vadd.f32 %v289, %v488
        %v490 = vpop.f32.mrb[0].mxu0
        %491 = vmatprep.mubr.f32.mxu0 0.0
        %492 = vmatmul.mubr.f32.gmra.mrb[0].mxu0 %v316
        %v493 = vpop.f32.mrb[0].mxu0
        %v494 = vadd.f32 %v289, %v493
        %v495 = vpop.f32.mrb[0].mxu0
        %496 = vmatprep.mubr.f32.mxu0 0.0
        %497 = vmatmul.mubr.f32.gmra.mrb[0].mxu0 %v319
        %v498 = vpop.f32.mrb[0].mxu0
        %v499 = vadd.f32 %v289, %v498
        %v500 = vpop.f32.mrb[0].mxu0
        %501 = vmatprep.mubr.f32.mxu0 0.0
        %502 = vmatmul.mubr.f32.gmra.mrb[0].mxu0 %v322
        %v503 = vpop.f32.mrb[0].mxu0
        %v504 = vadd.f32 %v289, %v503
        %v505 = vpop.f32.mrb[0].mxu0
        %506 = vmatprep.mubr.f32.mxu0 0.0
        %507 = vmatmul.mubr.f32.gmra.mrb[0].mxu0 %v325
        %v508 = vpop.f32.mrb[0].mxu0
        %v509 = vadd.f32 %v289, %v508
        %v510 = vpop.f32.mrb[0].mxu0
        %511 = vmatprep.mubr.f32.mxu0 0.0
        %512 = vmatmul.mubr.f32.gmra.mrb[0].mxu0 %v328
        %v513 = vpop.f32.mrb[0].mxu0
        %v514 = vadd.f32 %v289, %v513
        %v515 = vpop.f32.mrb[0].mxu0
        %516 = vmatprep.mubr.f32.mxu0 0.0
        %517 = vmatmul.mubr.f32.gmra.mrb[0].mxu0 %v331
        %v518 = vpop.f32.mrb[0].mxu0
        %v519 = vadd.f32 %v289, %v518
        %v520 = vpop.f32.mrb[0].mxu0
        %521 = vmatprep.mubr.f32.mxu0 0.0
        %522 = vmatmul.mubr.f32.gmra.mrb[0].mxu0 %v334
        %v523 = vpop.f32.mrb[0].mxu0
        %v524 = vadd.f32 %v289, %v523
        %v525 = vpop.f32.mrb[0].mxu0
        %526 = vmatprep.mubr.f32.mxu0 0.0
        %527 = vmatmul.mubr.f32.gmra.mrb[0].mxu0 %v337
        %v528 = vpop.f32.mrb[0].mxu0
        %v529 = vadd.f32 %v289, %v528
        %v530 = vpop.f32.mrb[0].mxu0
        %531 = vmatprep.mubr.f32.mxu0 0.0
        %532 = vmatmul.mubr.f32.gmra.mrb[0].mxu0 %v340
        %v533 = vpop.f32.mrb[0].mxu0
        %v534 = vadd.f32 %v289, %v533
        %v535 = vpop.f32.mrb[0].mxu0
        %536 = vmatprep.mubr.f32.mxu0 0.0
        %537 = vmatmul.mubr.f32.gmra.mrb[0].mxu0 %v343
        %v538 = vpop.f32.mrb[0].mxu0
        %v539 = vadd.f32 %v289, %v538
        %v540 = vpop.f32.mrb[0].mxu0
        %541 = vmatprep.mubr.f32.mxu0 0.0
        %542 = vmatmul.mubr.f32.gmra.mrb[0].mxu0 %v346
        %v543 = vpop.f32.mrb[0].mxu0
        %v544 = vadd.f32 %v289, %v543
        %v545 = vpop.f32.mrb[0].mxu0
        %546 = vmatprep.mubr.f32.mxu0 0.0
        %547 = vmatmul.mubr.f32.gmra.mrb[0].mxu0 %v349
        %v548 = vpop.f32.mrb[0].mxu0
        %v549 = vadd.f32 %v289, %v548
        %v550 = vpop.f32.mrb[0].mxu0
        %551 = vmatprep.mubr.f32.mxu0 0.0
        %552 = vmatmul.mubr.f32.gmra.mrb[0].mxu0 %v352
        %v553 = vpop.f32.mrb[0].mxu0
        %v554 = vadd.f32 %v289, %v553
        %v555 = vpop.f32.mrb[0].mxu0
        %556 = vmatprep.mubr.f32.mxu0 0.0
        %557 = vmatmul.mubr.f32.gmra.mrb[0].mxu0 %v355
        %v558 = vpop.f32.mrb[0].mxu0
        %v559 = vadd.f32 %v289, %v558
        %v560 = vpop.f32.mrb[0].mxu0
        %561 = vmatprep.mubr.f32.mxu0 0.0
        %562 = vmatmul.mubr.f32.gmra.mrb[0].mxu0 %v358
        %v563 = vpop.f32.mrb[0].mxu0
        %v564 = vadd.f32 %v289, %v563
        %v565 = vpop.f32.mrb[0].mxu0
        %566 = vmatprep.mubr.f32.mxu0 0.0
        %567 = vmatmul.mubr.f32.gmra.mrb[0].mxu0 %v361
        %v568 = vpop.f32.mrb[0].mxu0
        %v569 = vadd.f32 %v289, %v568
        %v570 = vpop.f32.mrb[0].mxu0
        %571 = vmatprep.mubr.f32.mxu0 0.0
        %572 = vmatmul.mubr.f32.gmra.mrb[0].mxu0 %v364
        %v573 = vpop.f32.mrb[0].mxu0
        %v574 = vadd.f32 %v289, %v573
        %v575 = vpop.f32.mrb[0].mxu0
        %576 = vmatprep.mubr.f32.mxu0 0.0
        %577 = vmatmul.mubr.f32.gmra.mrb[0].mxu0 %v367
        %v578 = vpop.f32.mrb[0].mxu0
        %v579 = vadd.f32 %v289, %v578
        %v580 = vpop.f32.mrb[0].mxu0
        %581 = vmatprep.mubr.f32.mxu0 0.0
        %582 = vmatmul.mubr.f32.gmra.mrb[0].mxu0 %v370
        %v583 = vpop.f32.mrb[0].mxu0
        %v584 = vadd.f32 %v289, %v583
        %v585 = vpop.f32.mrb[0].mxu0
        %586 = vmatprep.mubr.f32.mxu0 0.0
        %587 = vmatmul.mubr.f32.gmra.mrb[0].mxu0 %v373
        %v588 = vpop.f32.mrb[0].mxu0
        %v589 = vadd.f32 %v289, %v588
        %v590 = vpop.f32.mrb[0].mxu0
        %591 = vmatprep.mubr.f32.mxu0 0.0
        %592 = vmatmul.mubr.f32.gmra.mrb[0].mxu0 %v376
        %v593 = vpop.f32.mrb[0].mxu0
        %v594 = vadd.f32 %v289, %v593
        %v595 = vpop.f32.mrb[0].mxu0
        %596 = vmatprep.mubr.f32.mxu0 0.0
        %597 = vmatmul.mubr.f32.gmra.mrb[0].mxu0 %v379
        %v598 = vpop.f32.mrb[0].mxu0
        %v599 = vadd.f32 %v289, %v598
        %v600 = vpop.f32.mrb[0].mxu0
        %601 = vmatprep.mubr.f32.mxu0 0.0
        %602 = vmatmul.mubr.f32.gmra.mrb[0].mxu0 %v382
        %v603 = vpop.f32.mrb[0].mxu0
        %v604 = vadd.f32 %v289, %v603
        %v605 = vpop.f32.mrb[0].mxu0
        %606 = vmatprep.mubr.f32.mxu0 0.0
        %607 = vmatmul.mubr.f32.gmra.mrb[0].mxu0 %v385
        %v608 = vpop.f32.mrb[0].mxu0
        %v609 = vadd.f32 %v289, %v608
        %v610 = vpop.f32.mrb[0].mxu0
        %611 = vdwg.mxu0
        %v612 = vmax.f32 %v454, 0.0
        %v613 = vmax.f32 %v459, 0.0
        %v614 = vmax.f32 %v464, 0.0
        %v615 = vmax.f32 %v469, 0.0
        %v616 = vmax.f32 %v474, 0.0
        %v617 = vmax.f32 %v479, 0.0
        %v618 = vmax.f32 %v484, 0.0
        %v619 = vmax.f32 %v489, 0.0
        %v620 = vmax.f32 %v494, 0.0
        %v621 = vmax.f32 %v499, 0.0
        %v622 = vmax.f32 %v504, 0.0
        %v623 = vmax.f32 %v509, 0.0
        %v624 = vmax.f32 %v514, 0.0
        %v625 = vmax.f32 %v519, 0.0
        %v626 = vmax.f32 %v524, 0.0
        %v627 = vmax.f32 %v529, 0.0
        %v628 = vmax.f32 %v534, 0.0
        %v629 = vmax.f32 %v539, 0.0
        %v630 = vmax.f32 %v544, 0.0
        %v631 = vmax.f32 %v549, 0.0
        %v632 = vmax.f32 %v554, 0.0
        %v633 = vmax.f32 %v559, 0.0
        %v634 = vmax.f32 %v564, 0.0
        %v635 = vmax.f32 %v569, 0.0
        %v636 = vmax.f32 %v574, 0.0
        %v637 = vmax.f32 %v579, 0.0
        %v638 = vmax.f32 %v584, 0.0
        %v639 = vmax.f32 %v589, 0.0
        %v640 = vmax.f32 %v594, 0.0
        %v641 = vmax.f32 %v599, 0.0
        %v642 = vmax.f32 %v604, 0.0
        %v643 = vmax.f32 %v609, 0.0
        %644 = vst [vmem:[#allocation2] sm:$0xff] 0.0
        %645 = vst [vmem:[#allocation2 + $0x8] sm:$0x3] 0.0
        %s646 = scalar_lea.vmem [#allocation2], 144
        %647 = vst [vmem:[%s646] sm:$0xff] 0.0
        %648 = vst [vmem:[%s646 + $0x8] sm:$0x3] 0.0
        %s649 = scalar_lea.vmem [#allocation2], 16
        %650 = vst [vmem:[%s649] sm:$0x1] 0.0
        %651 = vst [vmem:[%s649 + $0x10] sm:$0x1] 0.0
        %652 = vst [vmem:[%s649 + $0x20] sm:$0x1] 0.0
        %653 = vst [vmem:[%s649 + $0x30] sm:$0x1] 0.0
        %654 = vst [vmem:[%s649 + $0x40] sm:$0x1] 0.0
        %655 = vst [vmem:[%s649 + $0x50] sm:$0x1] 0.0
        %656 = vst [vmem:[%s649 + $0x60] sm:$0x1] 0.0
        %657 = vst [vmem:[%s649 + $0x70] sm:$0x1] 0.0
        %658 = vst [vmem:[%s649 + $0x9] sm:$0x1] 0.0
        %659 = vst [vmem:[%s649 + $0x19] sm:$0x1] 0.0
        %660 = vst [vmem:[%s649 + $0x29] sm:$0x1] 0.0
        %661 = vst [vmem:[%s649 + $0x39] sm:$0x1] 0.0
        %662 = vst [vmem:[%s649 + $0x49] sm:$0x1] 0.0
        %663 = vst [vmem:[%s649 + $0x59] sm:$0x1] 0.0
        %664 = vst [vmem:[%s649 + $0x69] sm:$0x1] 0.0
        %665 = vst [vmem:[%s649 + $0x79] sm:$0x1] 0.0
        %v666 = vmax.f32 %v612, %v614
        %v667 = vmax.f32 %v613, %v615
        %v670 = vcombine.high %v666, %v666
        %v672 = vunpack.c.l.s4 1983009808
        %v673 = vunpack.c.0.s8 %v672
        %v674 = vlaneseq
        %v675 = vshrl.u32 %v674, 7
        %v676 = vsub.s32 %v673, %v675
        %v677 = vrot.slane %v666, %v676
        %v679 = vunpack.c.l.s4 1983009808
        %v680 = vunpack.c.0.s8 %v679
        %v681 = vlaneseq
        %v682 = vshrl.u32 %v681, 7
        %v683 = vsub.s32 %v680, %v682
        %v684 = vrot.slane %v670, %v683
        %v685 = vcombine.high %v677, %v677
        %v686 = vcombine.high %v684, %v684
        %v687 = vcombine.high %v667, %v667
        %v689 = vunpack.c.l.s4 1983009808
        %v690 = vunpack.c.0.s8 %v689
        %v691 = vlaneseq
        %v692 = vshrl.u32 %v691, 7
        %v693 = vsub.s32 %v690, %v692
        %v694 = vrot.slane %v667, %v693
        %v696 = vunpack.c.l.s4 1983009808
        %v697 = vunpack.c.0.s8 %v696
        %v698 = vlaneseq
        %v699 = vshrl.u32 %v698, 7
        %v700 = vsub.s32 %v697, %v699
        %v701 = vrot.slane %v687, %v700
        %v702 = vcombine.high %v694, %v694
        %v703 = vcombine.high %v701, %v701
        %vm712 = vcmask 1041408
        %v713 = vsel %vm712, %v677, -inf
        %v714 = vrot.slane %v713, 4
        %v715 = vmax.f32 %v713, %v714
        %v716 = vrot.slane %v715, 2
        %v717 = vmax.f32 %v715, %v716
        %v718 = vrot.slane %v717, 1
        %v719 = vmax.f32 %v717, %v718
        %v720 = vsel %vm712, %v685, -inf
        %v721 = vrot.slane %v720, 4
        %v722 = vmax.f32 %v720, %v721
        %v723 = vrot.slane %v722, 2
        %v724 = vmax.f32 %v722, %v723
        %v725 = vrot.slane %v724, 1
        %v726 = vmax.f32 %v724, %v725
        %v727 = vsel %vm712, %v684, -inf
        %v728 = vrot.slane %v727, 4
        %v729 = vmax.f32 %v727, %v728
        %v730 = vrot.slane %v729, 2
        %v731 = vmax.f32 %v729, %v730
        %v732 = vrot.slane %v731, 1
        %v733 = vmax.f32 %v731, %v732
        %v734 = vsel %vm712, %v686, -inf
        %v735 = vrot.slane %v734, 4
        %v736 = vmax.f32 %v734, %v735
        %v737 = vrot.slane %v736, 2
        %v738 = vmax.f32 %v736, %v737
        %v739 = vrot.slane %v738, 1
        %v740 = vmax.f32 %v738, %v739
        %v741 = vsel %vm712, %v694, -inf
        %v742 = vrot.slane %v741, 4
        %v743 = vmax.f32 %v741, %v742
        %v744 = vrot.slane %v743, 2
        %v745 = vmax.f32 %v743, %v744
        %v746 = vrot.slane %v745, 1
        %v747 = vmax.f32 %v745, %v746
        %v748 = vsel %vm712, %v702, -inf
        %v749 = vrot.slane %v748, 4
        %v750 = vmax.f32 %v748, %v749
        %v751 = vrot.slane %v750, 2
        %v752 = vmax.f32 %v750, %v751
        %v753 = vrot.slane %v752, 1
        %v754 = vmax.f32 %v752, %v753
        %v755 = vsel %vm712, %v701, -inf
        %v756 = vrot.slane %v755, 4
        %v757 = vmax.f32 %v755, %v756
        %v758 = vrot.slane %v757, 2
        %v759 = vmax.f32 %v757, %v758
        %v760 = vrot.slane %v759, 1
        %v761 = vmax.f32 %v759, %v760
        %v762 = vsel %vm712, %v703, -inf
        %v763 = vrot.slane %v762, 4
        %v764 = vmax.f32 %v762, %v763
        %v765 = vrot.slane %v764, 2
        %v766 = vmax.f32 %v764, %v765
        %v767 = vrot.slane %v766, 1
        %v768 = vmax.f32 %v766, %v767
        %vm777 = vcmask 1041409
        %v778 = vsel %vm777, %v726, %v719
        %vm779 = vcmask 1042434
        %v780 = vsel %vm779, %v733, %v778
        %vm781 = vcmask 1043459
        %v782 = vsel %vm781, %v740, %v780
        %vm783 = vcmask 1044484
        %v784 = vsel %vm783, %v747, %v782
        %vm785 = vcmask 1045509
        %v786 = vsel %vm785, %v754, %v784
        %vm787 = vcmask 1046534
        %v788 = vsel %vm787, %v761, %v786
        %vm789 = vcmask 1047559
        %v790 = vsel %vm789, %v768, %v788
        %792 = vst [vmem:[%s649 + $0x1] sm:$0xff] %v790
        %v793 = vmax.f32 %v616, %v618
        %v794 = vmax.f32 %v617, %v619
        %v797 = vcombine.high %v793, %v793
        %v799 = vunpack.c.l.s4 1983009808
        %v800 = vunpack.c.0.s8 %v799
        %v801 = vlaneseq
        %v802 = vshrl.u32 %v801, 7
        %v803 = vsub.s32 %v800, %v802
        %v804 = vrot.slane %v793, %v803
        %v806 = vunpack.c.l.s4 1983009808
        %v807 = vunpack.c.0.s8 %v806
        %v808 = vlaneseq
        %v809 = vshrl.u32 %v808, 7
        %v810 = vsub.s32 %v807, %v809
        %v811 = vrot.slane %v797, %v810
        %v812 = vcombine.high %v804, %v804
        %v813 = vcombine.high %v811, %v811
        %v814 = vcombine.high %v794, %v794
        %v816 = vunpack.c.l.s4 1983009808
        %v817 = vunpack.c.0.s8 %v816
        %v818 = vlaneseq
        %v819 = vshrl.u32 %v818, 7
        %v820 = vsub.s32 %v817, %v819
        %v821 = vrot.slane %v794, %v820
        %v823 = vunpack.c.l.s4 1983009808
        %v824 = vunpack.c.0.s8 %v823
        %v825 = vlaneseq
        %v826 = vshrl.u32 %v825, 7
        %v827 = vsub.s32 %v824, %v826
        %v828 = vrot.slane %v814, %v827
        %v829 = vcombine.high %v821, %v821
        %v830 = vcombine.high %v828, %v828
        %v839 = vsel %vm712, %v804, -inf
        %v840 = vrot.slane %v839, 4
        %v841 = vmax.f32 %v839, %v840
        %v842 = vrot.slane %v841, 2
        %v843 = vmax.f32 %v841, %v842
        %v844 = vrot.slane %v843, 1
        %v845 = vmax.f32 %v843, %v844
        %v846 = vsel %vm712, %v812, -inf
        %v847 = vrot.slane %v846, 4
        %v848 = vmax.f32 %v846, %v847
        %v849 = vrot.slane %v848, 2
        %v850 = vmax.f32 %v848, %v849
        %v851 = vrot.slane %v850, 1
        %v852 = vmax.f32 %v850, %v851
        %v853 = vsel %vm712, %v811, -inf
        %v854 = vrot.slane %v853, 4
        %v855 = vmax.f32 %v853, %v854
        %v856 = vrot.slane %v855, 2
        %v857 = vmax.f32 %v855, %v856
        %v858 = vrot.slane %v857, 1
        %v859 = vmax.f32 %v857, %v858
        %v860 = vsel %vm712, %v813, -inf
        %v861 = vrot.slane %v860, 4
        %v862 = vmax.f32 %v860, %v861
        %v863 = vrot.slane %v862, 2
        %v864 = vmax.f32 %v862, %v863
        %v865 = vrot.slane %v864, 1
        %v866 = vmax.f32 %v864, %v865
        %v867 = vsel %vm712, %v821, -inf
        %v868 = vrot.slane %v867, 4
        %v869 = vmax.f32 %v867, %v868
        %v870 = vrot.slane %v869, 2
        %v871 = vmax.f32 %v869, %v870
        %v872 = vrot.slane %v871, 1
        %v873 = vmax.f32 %v871, %v872
        %v874 = vsel %vm712, %v829, -inf
        %v875 = vrot.slane %v874, 4
        %v876 = vmax.f32 %v874, %v875
        %v877 = vrot.slane %v876, 2
        %v878 = vmax.f32 %v876, %v877
        %v879 = vrot.slane %v878, 1
        %v880 = vmax.f32 %v878, %v879
        %v881 = vsel %vm712, %v828, -inf
        %v882 = vrot.slane %v881, 4
        %v883 = vmax.f32 %v881, %v882
        %v884 = vrot.slane %v883, 2
        %v885 = vmax.f32 %v883, %v884
        %v886 = vrot.slane %v885, 1
        %v887 = vmax.f32 %v885, %v886
        %v888 = vsel %vm712, %v830, -inf
        %v889 = vrot.slane %v888, 4
        %v890 = vmax.f32 %v888, %v889
        %v891 = vrot.slane %v890, 2
        %v892 = vmax.f32 %v890, %v891
        %v893 = vrot.slane %v892, 1
        %v894 = vmax.f32 %v892, %v893
        %v903 = vsel %vm777, %v852, %v845
        %v904 = vsel %vm779, %v859, %v903
        %v905 = vsel %vm781, %v866, %v904
        %v906 = vsel %vm783, %v873, %v905
        %v907 = vsel %vm785, %v880, %v906
        %v908 = vsel %vm787, %v887, %v907
        %v909 = vsel %vm789, %v894, %v908
        %s911 = scalar_lea.vmem [#allocation2], 32
        %912 = vst [vmem:[%s911 + $0x1] sm:$0xff] %v909
        %v913 = vmax.f32 %v620, %v622
        %v914 = vmax.f32 %v621, %v623
        %v917 = vcombine.high %v913, %v913
        %v919 = vunpack.c.l.s4 1983009808
        %v920 = vunpack.c.0.s8 %v919
        %v921 = vlaneseq
        %v922 = vshrl.u32 %v921, 7
        %v923 = vsub.s32 %v920, %v922
        %v924 = vrot.slane %v913, %v923
        %v926 = vunpack.c.l.s4 1983009808
        %v927 = vunpack.c.0.s8 %v926
        %v928 = vlaneseq
        %v929 = vshrl.u32 %v928, 7
        %v930 = vsub.s32 %v927, %v929
        %v931 = vrot.slane %v917, %v930
        %v932 = vcombine.high %v924, %v924
        %v933 = vcombine.high %v931, %v931
        %v934 = vcombine.high %v914, %v914
        %v936 = vunpack.c.l.s4 1983009808
        %v937 = vunpack.c.0.s8 %v936
        %v938 = vlaneseq
        %v939 = vshrl.u32 %v938, 7
        %v940 = vsub.s32 %v937, %v939
        %v941 = vrot.slane %v914, %v940
        %v943 = vunpack.c.l.s4 1983009808
        %v944 = vunpack.c.0.s8 %v943
        %v945 = vlaneseq
        %v946 = vshrl.u32 %v945, 7
        %v947 = vsub.s32 %v944, %v946
        %v948 = vrot.slane %v934, %v947
        %v949 = vcombine.high %v941, %v941
        %v950 = vcombine.high %v948, %v948
        %v959 = vsel %vm712, %v924, -inf
        %v960 = vrot.slane %v959, 4
        %v961 = vmax.f32 %v959, %v960
        %v962 = vrot.slane %v961, 2
        %v963 = vmax.f32 %v961, %v962
        %v964 = vrot.slane %v963, 1
        %v965 = vmax.f32 %v963, %v964
        %v966 = vsel %vm712, %v932, -inf
        %v967 = vrot.slane %v966, 4
        %v968 = vmax.f32 %v966, %v967
        %v969 = vrot.slane %v968, 2
        %v970 = vmax.f32 %v968, %v969
        %v971 = vrot.slane %v970, 1
        %v972 = vmax.f32 %v970, %v971
        %v973 = vsel %vm712, %v931, -inf
        %v974 = vrot.slane %v973, 4
        %v975 = vmax.f32 %v973, %v974
        %v976 = vrot.slane %v975, 2
        %v977 = vmax.f32 %v975, %v976
        %v978 = vrot.slane %v977, 1
        %v979 = vmax.f32 %v977, %v978
        %v980 = vsel %vm712, %v933, -inf
        %v981 = vrot.slane %v980, 4
        %v982 = vmax.f32 %v980, %v981
        %v983 = vrot.slane %v982, 2
        %v984 = vmax.f32 %v982, %v983
        %v985 = vrot.slane %v984, 1
        %v986 = vmax.f32 %v984, %v985
        %v987 = vsel %vm712, %v941, -inf
        %v988 = vrot.slane %v987, 4
        %v989 = vmax.f32 %v987, %v988
        %v990 = vrot.slane %v989, 2
        %v991 = vmax.f32 %v989, %v990
        %v992 = vrot.slane %v991, 1
        %v993 = vmax.f32 %v991, %v992
        %v994 = vsel %vm712, %v949, -inf
        %v995 = vrot.slane %v994, 4
        %v996 = vmax.f32 %v994, %v995
        %v997 = vrot.slane %v996, 2
        %v998 = vmax.f32 %v996, %v997
        %v999 = vrot.slane %v998, 1
        %v1000 = vmax.f32 %v998, %v999
        %v1001 = vsel %vm712, %v948, -inf
        %v1002 = vrot.slane %v1001, 4
        %v1003 = vmax.f32 %v1001, %v1002
        %v1004 = vrot.slane %v1003, 2
        %v1005 = vmax.f32 %v1003, %v1004
        %v1006 = vrot.slane %v1005, 1
        %v1007 = vmax.f32 %v1005, %v1006
        %v1008 = vsel %vm712, %v950, -inf
        %v1009 = vrot.slane %v1008, 4
        %v1010 = vmax.f32 %v1008, %v1009
        %v1011 = vrot.slane %v1010, 2
        %v1012 = vmax.f32 %v1010, %v1011
        %v1013 = vrot.slane %v1012, 1
        %v1014 = vmax.f32 %v1012, %v1013
        %v1023 = vsel %vm777, %v972, %v965
        %v1024 = vsel %vm779, %v979, %v1023
        %v1025 = vsel %vm781, %v986, %v1024
        %v1026 = vsel %vm783, %v993, %v1025
        %v1027 = vsel %vm785, %v1000, %v1026
        %v1028 = vsel %vm787, %v1007, %v1027
        %v1029 = vsel %vm789, %v1014, %v1028
        %s1031 = scalar_lea.vmem [#allocation2], 48
        %1032 = vst [vmem:[%s1031 + $0x1] sm:$0xff] %v1029
        %v1033 = vmax.f32 %v624, %v626
        %v1034 = vmax.f32 %v625, %v627
        %v1037 = vcombine.high %v1033, %v1033
        %v1039 = vunpack.c.l.s4 1983009808
        %v1040 = vunpack.c.0.s8 %v1039
        %v1041 = vlaneseq
        %v1042 = vshrl.u32 %v1041, 7
        %v1043 = vsub.s32 %v1040, %v1042
        %v1044 = vrot.slane %v1033, %v1043
        %v1046 = vunpack.c.l.s4 1983009808
        %v1047 = vunpack.c.0.s8 %v1046
        %v1048 = vlaneseq
        %v1049 = vshrl.u32 %v1048, 7
        %v1050 = vsub.s32 %v1047, %v1049
        %v1051 = vrot.slane %v1037, %v1050
        %v1052 = vcombine.high %v1044, %v1044
        %v1053 = vcombine.high %v1051, %v1051
        %v1054 = vcombine.high %v1034, %v1034
        %v1056 = vunpack.c.l.s4 1983009808
        %v1057 = vunpack.c.0.s8 %v1056
        %v1058 = vlaneseq
        %v1059 = vshrl.u32 %v1058, 7
        %v1060 = vsub.s32 %v1057, %v1059
        %v1061 = vrot.slane %v1034, %v1060
        %v1063 = vunpack.c.l.s4 1983009808
        %v1064 = vunpack.c.0.s8 %v1063
        %v1065 = vlaneseq
        %v1066 = vshrl.u32 %v1065, 7
        %v1067 = vsub.s32 %v1064, %v1066
        %v1068 = vrot.slane %v1054, %v1067
        %v1069 = vcombine.high %v1061, %v1061
        %v1070 = vcombine.high %v1068, %v1068
        %v1079 = vsel %vm712, %v1044, -inf
        %v1080 = vrot.slane %v1079, 4
        %v1081 = vmax.f32 %v1079, %v1080
        %v1082 = vrot.slane %v1081, 2
        %v1083 = vmax.f32 %v1081, %v1082
        %v1084 = vrot.slane %v1083, 1
        %v1085 = vmax.f32 %v1083, %v1084
        %v1086 = vsel %vm712, %v1052, -inf
        %v1087 = vrot.slane %v1086, 4
        %v1088 = vmax.f32 %v1086, %v1087
        %v1089 = vrot.slane %v1088, 2
        %v1090 = vmax.f32 %v1088, %v1089
        %v1091 = vrot.slane %v1090, 1
        %v1092 = vmax.f32 %v1090, %v1091
        %v1093 = vsel %vm712, %v1051, -inf
        %v1094 = vrot.slane %v1093, 4
        %v1095 = vmax.f32 %v1093, %v1094
        %v1096 = vrot.slane %v1095, 2
        %v1097 = vmax.f32 %v1095, %v1096
        %v1098 = vrot.slane %v1097, 1
        %v1099 = vmax.f32 %v1097, %v1098
        %v1100 = vsel %vm712, %v1053, -inf
        %v1101 = vrot.slane %v1100, 4
        %v1102 = vmax.f32 %v1100, %v1101
        %v1103 = vrot.slane %v1102, 2
        %v1104 = vmax.f32 %v1102, %v1103
        %v1105 = vrot.slane %v1104, 1
        %v1106 = vmax.f32 %v1104, %v1105
        %v1107 = vsel %vm712, %v1061, -inf
        %v1108 = vrot.slane %v1107, 4
        %v1109 = vmax.f32 %v1107, %v1108
        %v1110 = vrot.slane %v1109, 2
        %v1111 = vmax.f32 %v1109, %v1110
        %v1112 = vrot.slane %v1111, 1
        %v1113 = vmax.f32 %v1111, %v1112
        %v1114 = vsel %vm712, %v1069, -inf
        %v1115 = vrot.slane %v1114, 4
        %v1116 = vmax.f32 %v1114, %v1115
        %v1117 = vrot.slane %v1116, 2
        %v1118 = vmax.f32 %v1116, %v1117
        %v1119 = vrot.slane %v1118, 1
        %v1120 = vmax.f32 %v1118, %v1119
        %v1121 = vsel %vm712, %v1068, -inf
        %v1122 = vrot.slane %v1121, 4
        %v1123 = vmax.f32 %v1121, %v1122
        %v1124 = vrot.slane %v1123, 2
        %v1125 = vmax.f32 %v1123, %v1124
        %v1126 = vrot.slane %v1125, 1
        %v1127 = vmax.f32 %v1125, %v1126
        %v1128 = vsel %vm712, %v1070, -inf
        %v1129 = vrot.slane %v1128, 4
        %v1130 = vmax.f32 %v1128, %v1129
        %v1131 = vrot.slane %v1130, 2
        %v1132 = vmax.f32 %v1130, %v1131
        %v1133 = vrot.slane %v1132, 1
        %v1134 = vmax.f32 %v1132, %v1133
        %v1143 = vsel %vm777, %v1092, %v1085
        %v1144 = vsel %vm779, %v1099, %v1143
        %v1145 = vsel %vm781, %v1106, %v1144
        %v1146 = vsel %vm783, %v1113, %v1145
        %v1147 = vsel %vm785, %v1120, %v1146
        %v1148 = vsel %vm787, %v1127, %v1147
        %v1149 = vsel %vm789, %v1134, %v1148
        %s1151 = scalar_lea.vmem [#allocation2], 64
        %1152 = vst [vmem:[%s1151 + $0x1] sm:$0xff] %v1149
        %v1153 = vmax.f32 %v628, %v630
        %v1154 = vmax.f32 %v629, %v631
        %v1157 = vcombine.high %v1153, %v1153
        %v1159 = vunpack.c.l.s4 1983009808
        %v1160 = vunpack.c.0.s8 %v1159
        %v1161 = vlaneseq
        %v1162 = vshrl.u32 %v1161, 7
        %v1163 = vsub.s32 %v1160, %v1162
        %v1164 = vrot.slane %v1153, %v1163
        %v1166 = vunpack.c.l.s4 1983009808
        %v1167 = vunpack.c.0.s8 %v1166
        %v1168 = vlaneseq
        %v1169 = vshrl.u32 %v1168, 7
        %v1170 = vsub.s32 %v1167, %v1169
        %v1171 = vrot.slane %v1157, %v1170
        %v1172 = vcombine.high %v1164, %v1164
        %v1173 = vcombine.high %v1171, %v1171
        %v1174 = vcombine.high %v1154, %v1154
        %v1176 = vunpack.c.l.s4 1983009808
        %v1177 = vunpack.c.0.s8 %v1176
        %v1178 = vlaneseq
        %v1179 = vshrl.u32 %v1178, 7
        %v1180 = vsub.s32 %v1177, %v1179
        %v1181 = vrot.slane %v1154, %v1180
        %v1183 = vunpack.c.l.s4 1983009808
        %v1184 = vunpack.c.0.s8 %v1183
        %v1185 = vlaneseq
        %v1186 = vshrl.u32 %v1185, 7
        %v1187 = vsub.s32 %v1184, %v1186
        %v1188 = vrot.slane %v1174, %v1187
        %v1189 = vcombine.high %v1181, %v1181
        %v1190 = vcombine.high %v1188, %v1188
        %v1199 = vsel %vm712, %v1164, -inf
        %v1200 = vrot.slane %v1199, 4
        %v1201 = vmax.f32 %v1199, %v1200
        %v1202 = vrot.slane %v1201, 2
        %v1203 = vmax.f32 %v1201, %v1202
        %v1204 = vrot.slane %v1203, 1
        %v1205 = vmax.f32 %v1203, %v1204
        %v1206 = vsel %vm712, %v1172, -inf
        %v1207 = vrot.slane %v1206, 4
        %v1208 = vmax.f32 %v1206, %v1207
        %v1209 = vrot.slane %v1208, 2
        %v1210 = vmax.f32 %v1208, %v1209
        %v1211 = vrot.slane %v1210, 1
        %v1212 = vmax.f32 %v1210, %v1211
        %v1213 = vsel %vm712, %v1171, -inf
        %v1214 = vrot.slane %v1213, 4
        %v1215 = vmax.f32 %v1213, %v1214
        %v1216 = vrot.slane %v1215, 2
        %v1217 = vmax.f32 %v1215, %v1216
        %v1218 = vrot.slane %v1217, 1
        %v1219 = vmax.f32 %v1217, %v1218
        %v1220 = vsel %vm712, %v1173, -inf
        %v1221 = vrot.slane %v1220, 4
        %v1222 = vmax.f32 %v1220, %v1221
        %v1223 = vrot.slane %v1222, 2
        %v1224 = vmax.f32 %v1222, %v1223
        %v1225 = vrot.slane %v1224, 1
        %v1226 = vmax.f32 %v1224, %v1225
        %v1227 = vsel %vm712, %v1181, -inf
        %v1228 = vrot.slane %v1227, 4
        %v1229 = vmax.f32 %v1227, %v1228
        %v1230 = vrot.slane %v1229, 2
        %v1231 = vmax.f32 %v1229, %v1230
        %v1232 = vrot.slane %v1231, 1
        %v1233 = vmax.f32 %v1231, %v1232
        %v1234 = vsel %vm712, %v1189, -inf
        %v1235 = vrot.slane %v1234, 4
        %v1236 = vmax.f32 %v1234, %v1235
        %v1237 = vrot.slane %v1236, 2
        %v1238 = vmax.f32 %v1236, %v1237
        %v1239 = vrot.slane %v1238, 1
        %v1240 = vmax.f32 %v1238, %v1239
        %v1241 = vsel %vm712, %v1188, -inf
        %v1242 = vrot.slane %v1241, 4
        %v1243 = vmax.f32 %v1241, %v1242
        %v1244 = vrot.slane %v1243, 2
        %v1245 = vmax.f32 %v1243, %v1244
        %v1246 = vrot.slane %v1245, 1
        %v1247 = vmax.f32 %v1245, %v1246
        %v1248 = vsel %vm712, %v1190, -inf
        %v1249 = vrot.slane %v1248, 4
        %v1250 = vmax.f32 %v1248, %v1249
        %v1251 = vrot.slane %v1250, 2
        %v1252 = vmax.f32 %v1250, %v1251
        %v1253 = vrot.slane %v1252, 1
        %v1254 = vmax.f32 %v1252, %v1253
        %v1263 = vsel %vm777, %v1212, %v1205
        %v1264 = vsel %vm779, %v1219, %v1263
        %v1265 = vsel %vm781, %v1226, %v1264
        %v1266 = vsel %vm783, %v1233, %v1265
        %v1267 = vsel %vm785, %v1240, %v1266
        %v1268 = vsel %vm787, %v1247, %v1267
        %v1269 = vsel %vm789, %v1254, %v1268
        %s1271 = scalar_lea.vmem [#allocation2], 80
        %1272 = vst [vmem:[%s1271 + $0x1] sm:$0xff] %v1269
        %v1273 = vmax.f32 %v632, %v634
        %v1274 = vmax.f32 %v633, %v635
        %v1277 = vcombine.high %v1273, %v1273
        %v1279 = vunpack.c.l.s4 1983009808
        %v1280 = vunpack.c.0.s8 %v1279
        %v1281 = vlaneseq
        %v1282 = vshrl.u32 %v1281, 7
        %v1283 = vsub.s32 %v1280, %v1282
        %v1284 = vrot.slane %v1273, %v1283
        %v1286 = vunpack.c.l.s4 1983009808
        %v1287 = vunpack.c.0.s8 %v1286
        %v1288 = vlaneseq
        %v1289 = vshrl.u32 %v1288, 7
        %v1290 = vsub.s32 %v1287, %v1289
        %v1291 = vrot.slane %v1277, %v1290
        %v1292 = vcombine.high %v1284, %v1284
        %v1293 = vcombine.high %v1291, %v1291
        %v1294 = vcombine.high %v1274, %v1274
        %v1296 = vunpack.c.l.s4 1983009808
        %v1297 = vunpack.c.0.s8 %v1296
        %v1298 = vlaneseq
        %v1299 = vshrl.u32 %v1298, 7
        %v1300 = vsub.s32 %v1297, %v1299
        %v1301 = vrot.slane %v1274, %v1300
        %v1303 = vunpack.c.l.s4 1983009808
        %v1304 = vunpack.c.0.s8 %v1303
        %v1305 = vlaneseq
        %v1306 = vshrl.u32 %v1305, 7
        %v1307 = vsub.s32 %v1304, %v1306
        %v1308 = vrot.slane %v1294, %v1307
        %v1309 = vcombine.high %v1301, %v1301
        %v1310 = vcombine.high %v1308, %v1308
        %v1319 = vsel %vm712, %v1284, -inf
        %v1320 = vrot.slane %v1319, 4
        %v1321 = vmax.f32 %v1319, %v1320
        %v1322 = vrot.slane %v1321, 2
        %v1323 = vmax.f32 %v1321, %v1322
        %v1324 = vrot.slane %v1323, 1
        %v1325 = vmax.f32 %v1323, %v1324
        %v1326 = vsel %vm712, %v1292, -inf
        %v1327 = vrot.slane %v1326, 4
        %v1328 = vmax.f32 %v1326, %v1327
        %v1329 = vrot.slane %v1328, 2
        %v1330 = vmax.f32 %v1328, %v1329
        %v1331 = vrot.slane %v1330, 1
        %v1332 = vmax.f32 %v1330, %v1331
        %v1333 = vsel %vm712, %v1291, -inf
        %v1334 = vrot.slane %v1333, 4
        %v1335 = vmax.f32 %v1333, %v1334
        %v1336 = vrot.slane %v1335, 2
        %v1337 = vmax.f32 %v1335, %v1336
        %v1338 = vrot.slane %v1337, 1
        %v1339 = vmax.f32 %v1337, %v1338
        %v1340 = vsel %vm712, %v1293, -inf
        %v1341 = vrot.slane %v1340, 4
        %v1342 = vmax.f32 %v1340, %v1341
        %v1343 = vrot.slane %v1342, 2
        %v1344 = vmax.f32 %v1342, %v1343
        %v1345 = vrot.slane %v1344, 1
        %v1346 = vmax.f32 %v1344, %v1345
        %v1347 = vsel %vm712, %v1301, -inf
        %v1348 = vrot.slane %v1347, 4
        %v1349 = vmax.f32 %v1347, %v1348
        %v1350 = vrot.slane %v1349, 2
        %v1351 = vmax.f32 %v1349, %v1350
        %v1352 = vrot.slane %v1351, 1
        %v1353 = vmax.f32 %v1351, %v1352
        %v1354 = vsel %vm712, %v1309, -inf
        %v1355 = vrot.slane %v1354, 4
        %v1356 = vmax.f32 %v1354, %v1355
        %v1357 = vrot.slane %v1356, 2
        %v1358 = vmax.f32 %v1356, %v1357
        %v1359 = vrot.slane %v1358, 1
        %v1360 = vmax.f32 %v1358, %v1359
        %v1361 = vsel %vm712, %v1308, -inf
        %v1362 = vrot.slane %v1361, 4
        %v1363 = vmax.f32 %v1361, %v1362
        %v1364 = vrot.slane %v1363, 2
        %v1365 = vmax.f32 %v1363, %v1364
        %v1366 = vrot.slane %v1365, 1
        %v1367 = vmax.f32 %v1365, %v1366
        %v1368 = vsel %vm712, %v1310, -inf
        %v1369 = vrot.slane %v1368, 4
        %v1370 = vmax.f32 %v1368, %v1369
        %v1371 = vrot.slane %v1370, 2
        %v1372 = vmax.f32 %v1370, %v1371
        %v1373 = vrot.slane %v1372, 1
        %v1374 = vmax.f32 %v1372, %v1373
        %v1383 = vsel %vm777, %v1332, %v1325
        %v1384 = vsel %vm779, %v1339, %v1383
        %v1385 = vsel %vm781, %v1346, %v1384
        %v1386 = vsel %vm783, %v1353, %v1385
        %v1387 = vsel %vm785, %v1360, %v1386
        %v1388 = vsel %vm787, %v1367, %v1387
        %v1389 = vsel %vm789, %v1374, %v1388
        %s1391 = scalar_lea.vmem [#allocation2], 96
        %1392 = vst [vmem:[%s1391 + $0x1] sm:$0xff] %v1389
        %v1393 = vmax.f32 %v636, %v638
        %v1394 = vmax.f32 %v637, %v639
        %v1397 = vcombine.high %v1393, %v1393
        %v1399 = vunpack.c.l.s4 1983009808
        %v1400 = vunpack.c.0.s8 %v1399
        %v1401 = vlaneseq
        %v1402 = vshrl.u32 %v1401, 7
        %v1403 = vsub.s32 %v1400, %v1402
        %v1404 = vrot.slane %v1393, %v1403
        %v1406 = vunpack.c.l.s4 1983009808
        %v1407 = vunpack.c.0.s8 %v1406
        %v1408 = vlaneseq
        %v1409 = vshrl.u32 %v1408, 7
        %v1410 = vsub.s32 %v1407, %v1409
        %v1411 = vrot.slane %v1397, %v1410
        %v1412 = vcombine.high %v1404, %v1404
        %v1413 = vcombine.high %v1411, %v1411
        %v1414 = vcombine.high %v1394, %v1394
        %v1416 = vunpack.c.l.s4 1983009808
        %v1417 = vunpack.c.0.s8 %v1416
        %v1418 = vlaneseq
        %v1419 = vshrl.u32 %v1418, 7
        %v1420 = vsub.s32 %v1417, %v1419
        %v1421 = vrot.slane %v1394, %v1420
        %v1423 = vunpack.c.l.s4 1983009808
        %v1424 = vunpack.c.0.s8 %v1423
        %v1425 = vlaneseq
        %v1426 = vshrl.u32 %v1425, 7
        %v1427 = vsub.s32 %v1424, %v1426
        %v1428 = vrot.slane %v1414, %v1427
        %v1429 = vcombine.high %v1421, %v1421
        %v1430 = vcombine.high %v1428, %v1428
        %v1439 = vsel %vm712, %v1404, -inf
        %v1440 = vrot.slane %v1439, 4
        %v1441 = vmax.f32 %v1439, %v1440
        %v1442 = vrot.slane %v1441, 2
        %v1443 = vmax.f32 %v1441, %v1442
        %v1444 = vrot.slane %v1443, 1
        %v1445 = vmax.f32 %v1443, %v1444
        %v1446 = vsel %vm712, %v1412, -inf
        %v1447 = vrot.slane %v1446, 4
        %v1448 = vmax.f32 %v1446, %v1447
        %v1449 = vrot.slane %v1448, 2
        %v1450 = vmax.f32 %v1448, %v1449
        %v1451 = vrot.slane %v1450, 1
        %v1452 = vmax.f32 %v1450, %v1451
        %v1453 = vsel %vm712, %v1411, -inf
        %v1454 = vrot.slane %v1453, 4
        %v1455 = vmax.f32 %v1453, %v1454
        %v1456 = vrot.slane %v1455, 2
        %v1457 = vmax.f32 %v1455, %v1456
        %v1458 = vrot.slane %v1457, 1
        %v1459 = vmax.f32 %v1457, %v1458
        %v1460 = vsel %vm712, %v1413, -inf
        %v1461 = vrot.slane %v1460, 4
        %v1462 = vmax.f32 %v1460, %v1461
        %v1463 = vrot.slane %v1462, 2
        %v1464 = vmax.f32 %v1462, %v1463
        %v1465 = vrot.slane %v1464, 1
        %v1466 = vmax.f32 %v1464, %v1465
        %v1467 = vsel %vm712, %v1421, -inf
        %v1468 = vrot.slane %v1467, 4
        %v1469 = vmax.f32 %v1467, %v1468
        %v1470 = vrot.slane %v1469, 2
        %v1471 = vmax.f32 %v1469, %v1470
        %v1472 = vrot.slane %v1471, 1
        %v1473 = vmax.f32 %v1471, %v1472
        %v1474 = vsel %vm712, %v1429, -inf
        %v1475 = vrot.slane %v1474, 4
        %v1476 = vmax.f32 %v1474, %v1475
        %v1477 = vrot.slane %v1476, 2
        %v1478 = vmax.f32 %v1476, %v1477
        %v1479 = vrot.slane %v1478, 1
        %v1480 = vmax.f32 %v1478, %v1479
        %v1481 = vsel %vm712, %v1428, -inf
        %v1482 = vrot.slane %v1481, 4
        %v1483 = vmax.f32 %v1481, %v1482
        %v1484 = vrot.slane %v1483, 2
        %v1485 = vmax.f32 %v1483, %v1484
        %v1486 = vrot.slane %v1485, 1
        %v1487 = vmax.f32 %v1485, %v1486
        %v1488 = vsel %vm712, %v1430, -inf
        %v1489 = vrot.slane %v1488, 4
        %v1490 = vmax.f32 %v1488, %v1489
        %v1491 = vrot.slane %v1490, 2
        %v1492 = vmax.f32 %v1490, %v1491
        %v1493 = vrot.slane %v1492, 1
        %v1494 = vmax.f32 %v1492, %v1493
        %v1503 = vsel %vm777, %v1452, %v1445
        %v1504 = vsel %vm779, %v1459, %v1503
        %v1505 = vsel %vm781, %v1466, %v1504
        %v1506 = vsel %vm783, %v1473, %v1505
        %v1507 = vsel %vm785, %v1480, %v1506
        %v1508 = vsel %vm787, %v1487, %v1507
        %v1509 = vsel %vm789, %v1494, %v1508
        %s1511 = scalar_lea.vmem [#allocation2], 112
        %1512 = vst [vmem:[%s1511 + $0x1] sm:$0xff] %v1509
        %v1513 = vmax.f32 %v640, %v642
        %v1514 = vmax.f32 %v641, %v643
        %v1517 = vcombine.high %v1513, %v1513
        %v1519 = vunpack.c.l.s4 1983009808
        %v1520 = vunpack.c.0.s8 %v1519
        %v1521 = vlaneseq
        %v1522 = vshrl.u32 %v1521, 7
        %v1523 = vsub.s32 %v1520, %v1522
        %v1524 = vrot.slane %v1513, %v1523
        %v1526 = vunpack.c.l.s4 1983009808
        %v1527 = vunpack.c.0.s8 %v1526
        %v1528 = vlaneseq
        %v1529 = vshrl.u32 %v1528, 7
        %v1530 = vsub.s32 %v1527, %v1529
        %v1531 = vrot.slane %v1517, %v1530
        %v1532 = vcombine.high %v1524, %v1524
        %v1533 = vcombine.high %v1531, %v1531
        %v1534 = vcombine.high %v1514, %v1514
        %v1536 = vunpack.c.l.s4 1983009808
        %v1537 = vunpack.c.0.s8 %v1536
        %v1538 = vlaneseq
        %v1539 = vshrl.u32 %v1538, 7
        %v1540 = vsub.s32 %v1537, %v1539
        %v1541 = vrot.slane %v1514, %v1540
        %v1543 = vunpack.c.l.s4 1983009808
        %v1544 = vunpack.c.0.s8 %v1543
        %v1545 = vlaneseq
        %v1546 = vshrl.u32 %v1545, 7
        %v1547 = vsub.s32 %v1544, %v1546
        %v1548 = vrot.slane %v1534, %v1547
        %v1549 = vcombine.high %v1541, %v1541
        %v1550 = vcombine.high %v1548, %v1548
        %v1559 = vsel %vm712, %v1524, -inf
        %v1560 = vrot.slane %v1559, 4
        %v1561 = vmax.f32 %v1559, %v1560
        %v1562 = vrot.slane %v1561, 2
        %v1563 = vmax.f32 %v1561, %v1562
        %v1564 = vrot.slane %v1563, 1
        %v1565 = vmax.f32 %v1563, %v1564
        %v1566 = vsel %vm712, %v1532, -inf
        %v1567 = vrot.slane %v1566, 4
        %v1568 = vmax.f32 %v1566, %v1567
        %v1569 = vrot.slane %v1568, 2
        %v1570 = vmax.f32 %v1568, %v1569
        %v1571 = vrot.slane %v1570, 1
        %v1572 = vmax.f32 %v1570, %v1571
        %v1573 = vsel %vm712, %v1531, -inf
        %v1574 = vrot.slane %v1573, 4
        %v1575 = vmax.f32 %v1573, %v1574
        %v1576 = vrot.slane %v1575, 2
        %v1577 = vmax.f32 %v1575, %v1576
        %v1578 = vrot.slane %v1577, 1
        %v1579 = vmax.f32 %v1577, %v1578
        %v1580 = vsel %vm712, %v1533, -inf
        %v1581 = vrot.slane %v1580, 4
        %v1582 = vmax.f32 %v1580, %v1581
        %v1583 = vrot.slane %v1582, 2
        %v1584 = vmax.f32 %v1582, %v1583
        %v1585 = vrot.slane %v1584, 1
        %v1586 = vmax.f32 %v1584, %v1585
        %v1587 = vsel %vm712, %v1541, -inf
        %v1588 = vrot.slane %v1587, 4
        %v1589 = vmax.f32 %v1587, %v1588
        %v1590 = vrot.slane %v1589, 2
        %v1591 = vmax.f32 %v1589, %v1590
        %v1592 = vrot.slane %v1591, 1
        %v1593 = vmax.f32 %v1591, %v1592
        %v1594 = vsel %vm712, %v1549, -inf
        %v1595 = vrot.slane %v1594, 4
        %v1596 = vmax.f32 %v1594, %v1595
        %v1597 = vrot.slane %v1596, 2
        %v1598 = vmax.f32 %v1596, %v1597
        %v1599 = vrot.slane %v1598, 1
        %v1600 = vmax.f32 %v1598, %v1599
        %v1601 = vsel %vm712, %v1548, -inf
        %v1602 = vrot.slane %v1601, 4
        %v1603 = vmax.f32 %v1601, %v1602
        %v1604 = vrot.slane %v1603, 2
        %v1605 = vmax.f32 %v1603, %v1604
        %v1606 = vrot.slane %v1605, 1
        %v1607 = vmax.f32 %v1605, %v1606
        %v1608 = vsel %vm712, %v1550, -inf
        %v1609 = vrot.slane %v1608, 4
        %v1610 = vmax.f32 %v1608, %v1609
        %v1611 = vrot.slane %v1610, 2
        %v1612 = vmax.f32 %v1610, %v1611
        %v1613 = vrot.slane %v1612, 1
        %v1614 = vmax.f32 %v1612, %v1613
        %v1623 = vsel %vm777, %v1572, %v1565
        %v1624 = vsel %vm779, %v1579, %v1623
        %v1625 = vsel %vm781, %v1586, %v1624
        %v1626 = vsel %vm783, %v1593, %v1625
        %v1627 = vsel %vm785, %v1600, %v1626
        %v1628 = vsel %vm787, %v1607, %v1627
        %v1629 = vsel %vm789, %v1614, %v1628
        %s1631 = scalar_lea.vmem [#allocation2], 128
        %1632 = vst [vmem:[%s1631 + $0x1] sm:$0xff] %v1629
        %v1633 = vld [vmem:[%s5 + $0x1] sm:$0x1]
        %v1634 = vld [vmem:[#allocation2] sm:$0xff]
        %v1635 = vld [vmem:[#allocation2 + $0x10] sm:$0xff]
        %v1636 = vld [vmem:[#allocation2 + $0x20] sm:$0xff]
        %v1637 = vld [vmem:[#allocation2 + $0x30] sm:$0xff]
        %v1638 = vld [vmem:[#allocation2 + $0x40] sm:$0xff]
        %v1639 = vld [vmem:[#allocation2 + $0x50] sm:$0xff]
        %v1640 = vld [vmem:[#allocation2 + $0x60] sm:$0xff]
        %v1641 = vld [vmem:[#allocation2 + $0x70] sm:$0xff]
        %v1642 = vpack.c.bf16 %v1635, %v1634
        %v1643 = vpack.c.bf16 %v1637, %v1636
        %v1644 = vpack.c.bf16 %v1639, %v1638
        %v1645 = vpack.c.bf16 %v1641, %v1640
        %v1646 = vld [vmem:[%s2] sm:$0xf]
        %v1647 = vld [vmem:[%s2 + $0x4] sm:$0xf]
        %v1648 = vld [vmem:[%s2 + $0x8] sm:$0xf]
        %v1649 = vld [vmem:[%s2 + $0xc] sm:$0xf]
        %v1650 = vld [vmem:[%s2 + $0x10] sm:$0xf]
        %v1651 = vld [vmem:[%s2 + $0x14] sm:$0xf]
        %v1652 = vld [vmem:[%s2 + $0x18] sm:$0xf]
        %v1653 = vld [vmem:[%s2 + $0x1c] sm:$0xf]
        %v1654 = vld [vmem:[%s2 + $0x20] sm:$0xf]
        %v1655 = vld [vmem:[%s2 + $0x24] sm:$0xf]
        %v1656 = vld [vmem:[%s2 + $0x28] sm:$0xf]
        %v1657 = vld [vmem:[%s2 + $0x2c] sm:$0xf]
        %v1658 = vld [vmem:[%s2 + $0x30] sm:$0xf]
        %v1659 = vld [vmem:[%s2 + $0x34] sm:$0xf]
        %v1660 = vld [vmem:[%s2 + $0x38] sm:$0xf]
        %v1661 = vld [vmem:[%s2 + $0x3c] sm:$0xf]
        %v1662 = vld [vmem:[#allocation2 + $0x1] sm:$0xff]
        %v1663 = vld [vmem:[#allocation2 + $0x11] sm:$0xff]
        %v1664 = vld [vmem:[#allocation2 + $0x21] sm:$0xff]
        %v1665 = vld [vmem:[#allocation2 + $0x31] sm:$0xff]
        %v1666 = vld [vmem:[#allocation2 + $0x41] sm:$0xff]
        %v1667 = vld [vmem:[#allocation2 + $0x51] sm:$0xff]
        %v1668 = vld [vmem:[#allocation2 + $0x61] sm:$0xff]
        %v1669 = vld [vmem:[#allocation2 + $0x71] sm:$0xff]
        %v1670 = vpack.c.bf16 %v1663, %v1662
        %v1671 = vpack.c.bf16 %v1665, %v1664
        %v1672 = vpack.c.bf16 %v1667, %v1666
        %v1673 = vpack.c.bf16 %v1669, %v1668
        %s1674 = scalar_lea.vmem %s2, 64
        %v1675 = vld [vmem:[%s1674] sm:$0xf]
        %v1676 = vld [vmem:[%s1674 + $0x4] sm:$0xf]
        %v1677 = vld [vmem:[%s1674 + $0x8] sm:$0xf]
        %v1678 = vld [vmem:[%s1674 + $0xc] sm:$0xf]
        %v1679 = vld [vmem:[%s1674 + $0x10] sm:$0xf]
        %v1680 = vld [vmem:[%s1674 + $0x14] sm:$0xf]
        %v1681 = vld [vmem:[%s1674 + $0x18] sm:$0xf]
        %v1682 = vld [vmem:[%s1674 + $0x1c] sm:$0xf]
        %v1683 = vld [vmem:[%s1674 + $0x20] sm:$0xf]
        %v1684 = vld [vmem:[%s1674 + $0x24] sm:$0xf]
        %v1685 = vld [vmem:[%s1674 + $0x28] sm:$0xf]
        %v1686 = vld [vmem:[%s1674 + $0x2c] sm:$0xf]
        %v1687 = vld [vmem:[%s1674 + $0x30] sm:$0xf]
        %v1688 = vld [vmem:[%s1674 + $0x34] sm:$0xf]
        %v1689 = vld [vmem:[%s1674 + $0x38] sm:$0xf]
        %v1690 = vld [vmem:[%s1674 + $0x3c] sm:$0xf]
        %v1707 = vunpack.c.l.b16 %v1675
        %v1708 = vunpack.c.l.b16 %v1676
        %v1709 = vunpack.c.l.b16 %v1677
        %v1710 = vunpack.c.l.b16 %v1678
        %v1711 = vunpack.c.l.b16 %v1679
        %v1712 = vunpack.c.l.b16 %v1680
        %v1713 = vunpack.c.l.b16 %v1681
        %v1714 = vunpack.c.l.b16 %v1682
        %v1715 = vunpack.c.l.b16 %v1683
        %v1716 = vunpack.c.l.b16 %v1684
        %v1717 = vunpack.c.l.b16 %v1685
        %v1718 = vunpack.c.l.b16 %v1686
        %v1719 = vunpack.c.l.b16 %v1687
        %v1720 = vunpack.c.l.b16 %v1688
        %v1721 = vunpack.c.l.b16 %v1689
        %v1722 = vunpack.c.l.b16 %v1690
        %v1723 = vpack.c.b16 %v1708, %v1707
        %v1724 = vpack.c.b16 %v1710, %v1709
        %v1725 = vpack.c.b16 %v1712, %v1711
        %v1726 = vpack.c.b16 %v1714, %v1713
        %v1727 = vpack.c.b16 %v1716, %v1715
        %v1728 = vpack.c.b16 %v1718, %v1717
        %v1729 = vpack.c.b16 %v1720, %v1719
        %v1730 = vpack.c.b16 %v1722, %v1721
        %1739 = vmatprep.subr.bf16.mxu0 0
        %1740 = vmatpush1.bf16.msra.mxu0 %v1723
        %1741 = vmatprep.subr.bf16.mxu0 0
        %1742 = vmatpush1.bf16.msra.mxu0 %v1724
        %1743 = vmatprep.subr.bf16.mxu0 0
        %1744 = vmatpush1.bf16.msra.mxu0 %v1725
        %1745 = vmatprep.subr.bf16.mxu0 0
        %1746 = vmatpush1.bf16.msra.mxu0 %v1726
        %1747 = vmatprep.subr.bf16.mxu0 0
        %1748 = vmatpush1.bf16.msra.mxu0 %v1727
        %1749 = vmatprep.subr.bf16.mxu0 0
        %1750 = vmatpush1.bf16.msra.mxu0 %v1728
        %1751 = vmatprep.subr.bf16.mxu0 0
        %1752 = vmatpush1.bf16.msra.mxu0 %v1729
        %1753 = vmatprep.subr.bf16.mxu0 0
        %1754 = vmatpush1.bf16.msra.mxu0 %v1730
        %1755 = vmatprep.subr.bf16.mxu0 0
        %1756 = vmatpush1.bf16.msra.mxu0 0
        %1757 = vmatprep.subr.bf16.mxu0 0
        %1758 = vmatpush1.bf16.msra.mxu0 0
        %1759 = vmatprep.subr.bf16.mxu0 0
        %1760 = vmatpush1.bf16.msra.mxu0 0
        %1761 = vmatprep.subr.bf16.mxu0 0
        %1762 = vmatpush1.bf16.msra.mxu0 0
        %1763 = vmatprep.subr.bf16.mxu0 0
        %1764 = vmatpush1.bf16.msra.mxu0 0
        %1765 = vmatprep.subr.bf16.mxu0 0
        %1766 = vmatpush1.bf16.msra.mxu0 0
        %1767 = vmatprep.subr.bf16.mxu0 0
        %1768 = vmatpush1.bf16.msra.mxu0 0
        %1769 = vmatprep.subr.bf16.mxu0 0
        %1770 = vmatpush1.bf16.msra.mxu0 0
        %1771 = vmatprep.mubr.bf16.mxu0 0
        %1772 = vmatmul.mubr.bf16.gmra.mrb[0].mxu0 %v1670
        %v1773 = vpop.f32.mrb[0].mxu0
        %v1774 = vadd.f32 0.0, %v1773
        %v1775 = vpop.f32.mrb[0].mxu0
        %v1776 = vpop.f32.mrb[0].mxu0
        %v1777 = vadd.f32 0.0, %v1776
        %v1778 = vpop.f32.mrb[0].mxu0
        %1779 = vmatprep.mubr.bf16.mxu0 0
        %1780 = vmatmul.mubr.bf16.gmra.mrb[0].mxu0 %v1671
        %v1781 = vpop.f32.mrb[0].mxu0
        %v1782 = vadd.f32 0.0, %v1781
        %v1783 = vpop.f32.mrb[0].mxu0
        %v1784 = vpop.f32.mrb[0].mxu0
        %v1785 = vadd.f32 0.0, %v1784
        %v1786 = vpop.f32.mrb[0].mxu0
        %1787 = vmatprep.mubr.bf16.mxu0 0
        %1788 = vmatmul.mubr.bf16.gmra.mrb[0].mxu0 %v1672
        %v1789 = vpop.f32.mrb[0].mxu0
        %v1790 = vadd.f32 0.0, %v1789
        %v1791 = vpop.f32.mrb[0].mxu0
        %v1792 = vpop.f32.mrb[0].mxu0
        %v1793 = vadd.f32 0.0, %v1792
        %v1794 = vpop.f32.mrb[0].mxu0
        %1795 = vmatprep.mubr.bf16.mxu0 0
        %1796 = vmatmul.mubr.bf16.gmra.mrb[0].mxu0 %v1673
        %v1797 = vpop.f32.mrb[0].mxu0
        %v1798 = vadd.f32 0.0, %v1797
        %v1799 = vpop.f32.mrb[0].mxu0
        %v1800 = vpop.f32.mrb[0].mxu0
        %v1801 = vadd.f32 0.0, %v1800
        %v1802 = vpop.f32.mrb[0].mxu0
        %1803 = vdwg.mxu0
        %v1820 = vunpack.c.l.b16 %v1646
        %v1821 = vunpack.c.l.b16 %v1647
        %v1822 = vunpack.c.l.b16 %v1648
        %v1823 = vunpack.c.l.b16 %v1649
        %v1824 = vunpack.c.l.b16 %v1650
        %v1825 = vunpack.c.l.b16 %v1651
        %v1826 = vunpack.c.l.b16 %v1652
        %v1827 = vunpack.c.l.b16 %v1653
        %v1828 = vunpack.c.l.b16 %v1654
        %v1829 = vunpack.c.l.b16 %v1655
        %v1830 = vunpack.c.l.b16 %v1656
        %v1831 = vunpack.c.l.b16 %v1657
        %v1832 = vunpack.c.l.b16 %v1658
        %v1833 = vunpack.c.l.b16 %v1659
        %v1834 = vunpack.c.l.b16 %v1660
        %v1835 = vunpack.c.l.b16 %v1661
        %v1836 = vpack.c.b16 %v1821, %v1820
        %v1837 = vpack.c.b16 %v1823, %v1822
        %v1838 = vpack.c.b16 %v1825, %v1824
        %v1839 = vpack.c.b16 %v1827, %v1826
        %v1840 = vpack.c.b16 %v1829, %v1828
        %v1841 = vpack.c.b16 %v1831, %v1830
        %v1842 = vpack.c.b16 %v1833, %v1832
        %v1843 = vpack.c.b16 %v1835, %v1834
        %1852 = vmatprep.subr.bf16.mxu0 0
        %1853 = vmatpush1.bf16.msra.mxu0 %v1836
        %1854 = vmatprep.subr.bf16.mxu0 0
        %1855 = vmatpush1.bf16.msra.mxu0 %v1837
        %1856 = vmatprep.subr.bf16.mxu0 0
        %1857 = vmatpush1.bf16.msra.mxu0 %v1838
        %1858 = vmatprep.subr.bf16.mxu0 0
        %1859 = vmatpush1.bf16.msra.mxu0 %v1839
        %1860 = vmatprep.subr.bf16.mxu0 0
        %1861 = vmatpush1.bf16.msra.mxu0 %v1840
        %1862 = vmatprep.subr.bf16.mxu0 0
        %1863 = vmatpush1.bf16.msra.mxu0 %v1841
        %1864 = vmatprep.subr.bf16.mxu0 0
        %1865 = vmatpush1.bf16.msra.mxu0 %v1842
        %1866 = vmatprep.subr.bf16.mxu0 0
        %1867 = vmatpush1.bf16.msra.mxu0 %v1843
        %1868 = vmatprep.subr.bf16.mxu0 0
        %1869 = vmatpush1.bf16.msra.mxu0 0
        %1870 = vmatprep.subr.bf16.mxu0 0
        %1871 = vmatpush1.bf16.msra.mxu0 0
        %1872 = vmatprep.subr.bf16.mxu0 0
        %1873 = vmatpush1.bf16.msra.mxu0 0
        %1874 = vmatprep.subr.bf16.mxu0 0
        %1875 = vmatpush1.bf16.msra.mxu0 0
        %1876 = vmatprep.subr.bf16.mxu0 0
        %1877 = vmatpush1.bf16.msra.mxu0 0
        %1878 = vmatprep.subr.bf16.mxu0 0
        %1879 = vmatpush1.bf16.msra.mxu0 0
        %1880 = vmatprep.subr.bf16.mxu0 0
        %1881 = vmatpush1.bf16.msra.mxu0 0
        %1882 = vmatprep.subr.bf16.mxu0 0
        %1883 = vmatpush1.bf16.msra.mxu0 0
        %1884 = vmatprep.mubr.bf16.mxu0 0
        %1885 = vmatmul.mubr.bf16.gmra.mrb[0].mxu0 %v1642
        %v1886 = vpop.f32.mrb[0].mxu0
        %v1887 = vadd.f32 %v1774, %v1886
        %v1888 = vpop.f32.mrb[0].mxu0
        %v1889 = vpop.f32.mrb[0].mxu0
        %v1890 = vadd.f32 %v1777, %v1889
        %v1891 = vpop.f32.mrb[0].mxu0
        %1892 = vmatprep.mubr.bf16.mxu0 0
        %1893 = vmatmul.mubr.bf16.gmra.mrb[0].mxu0 %v1643
        %v1894 = vpop.f32.mrb[0].mxu0
        %v1895 = vadd.f32 %v1782, %v1894
        %v1896 = vpop.f32.mrb[0].mxu0
        %v1897 = vpop.f32.mrb[0].mxu0
        %v1898 = vadd.f32 %v1785, %v1897
        %v1899 = vpop.f32.mrb[0].mxu0
        %1900 = vmatprep.mubr.bf16.mxu0 0
        %1901 = vmatmul.mubr.bf16.gmra.mrb[0].mxu0 %v1644
        %v1902 = vpop.f32.mrb[0].mxu0
        %v1903 = vadd.f32 %v1790, %v1902
        %v1904 = vpop.f32.mrb[0].mxu0
        %v1905 = vpop.f32.mrb[0].mxu0
        %v1906 = vadd.f32 %v1793, %v1905
        %v1907 = vpop.f32.mrb[0].mxu0
        %1908 = vmatprep.mubr.bf16.mxu0 0
        %1909 = vmatmul.mubr.bf16.gmra.mrb[0].mxu0 %v1645
        %v1910 = vpop.f32.mrb[0].mxu0
        %v1911 = vadd.f32 %v1798, %v1910
        %v1912 = vpop.f32.mrb[0].mxu0
        %v1913 = vpop.f32.mrb[0].mxu0
        %v1914 = vadd.f32 %v1801, %v1913
        %v1915 = vpop.f32.mrb[0].mxu0
        %1916 = vdwg.mxu0
        %v1917 = vld [vmem:[#allocation2 + $0x2] sm:$0xff]
        %v1918 = vld [vmem:[#allocation2 + $0x12] sm:$0xff]
        %v1919 = vld [vmem:[#allocation2 + $0x22] sm:$0xff]
        %v1920 = vld [vmem:[#allocation2 + $0x32] sm:$0xff]
        %v1921 = vld [vmem:[#allocation2 + $0x42] sm:$0xff]
        %v1922 = vld [vmem:[#allocation2 + $0x52] sm:$0xff]
        %v1923 = vld [vmem:[#allocation2 + $0x62] sm:$0xff]
        %v1924 = vld [vmem:[#allocation2 + $0x72] sm:$0xff]
        %v1925 = vpack.c.bf16 %v1918, %v1917
        %v1926 = vpack.c.bf16 %v1920, %v1919
        %v1927 = vpack.c.bf16 %v1922, %v1921
        %v1928 = vpack.c.bf16 %v1924, %v1923
        %s1929 = scalar_lea.vmem %s2, 128
        %v1930 = vld [vmem:[%s1929] sm:$0xf]
        %v1931 = vld [vmem:[%s1929 + $0x4] sm:$0xf]
        %v1932 = vld [vmem:[%s1929 + $0x8] sm:$0xf]
        %v1933 = vld [vmem:[%s1929 + $0xc] sm:$0xf]
        %v1934 = vld [vmem:[%s1929 + $0x10] sm:$0xf]
        %v1935 = vld [vmem:[%s1929 + $0x14] sm:$0xf]
        %v1936 = vld [vmem:[%s1929 + $0x18] sm:$0xf]
        %v1937 = vld [vmem:[%s1929 + $0x1c] sm:$0xf]
        %v1938 = vld [vmem:[%s1929 + $0x20] sm:$0xf]
        %v1939 = vld [vmem:[%s1929 + $0x24] sm:$0xf]
        %v1940 = vld [vmem:[%s1929 + $0x28] sm:$0xf]
        %v1941 = vld [vmem:[%s1929 + $0x2c] sm:$0xf]
        %v1942 = vld [vmem:[%s1929 + $0x30] sm:$0xf]
        %v1943 = vld [vmem:[%s1929 + $0x34] sm:$0xf]
        %v1944 = vld [vmem:[%s1929 + $0x38] sm:$0xf]
        %v1945 = vld [vmem:[%s1929 + $0x3c] sm:$0xf]
        %v1962 = vunpack.c.l.b16 %v1930
        %v1963 = vunpack.c.l.b16 %v1931
        %v1964 = vunpack.c.l.b16 %v1932
        %v1965 = vunpack.c.l.b16 %v1933
        %v1966 = vunpack.c.l.b16 %v1934
        %v1967 = vunpack.c.l.b16 %v1935
        %v1968 = vunpack.c.l.b16 %v1936
        %v1969 = vunpack.c.l.b16 %v1937
        %v1970 = vunpack.c.l.b16 %v1938
        %v1971 = vunpack.c.l.b16 %v1939
        %v1972 = vunpack.c.l.b16 %v1940
        %v1973 = vunpack.c.l.b16 %v1941
        %v1974 = vunpack.c.l.b16 %v1942
        %v1975 = vunpack.c.l.b16 %v1943
        %v1976 = vunpack.c.l.b16 %v1944
        %v1977 = vunpack.c.l.b16 %v1945
        %v1978 = vpack.c.b16 %v1963, %v1962
        %v1979 = vpack.c.b16 %v1965, %v1964
        %v1980 = vpack.c.b16 %v1967, %v1966
        %v1981 = vpack.c.b16 %v1969, %v1968
        %v1982 = vpack.c.b16 %v1971, %v1970
        %v1983 = vpack.c.b16 %v1973, %v1972
        %v1984 = vpack.c.b16 %v1975, %v1974
        %v1985 = vpack.c.b16 %v1977, %v1976
        %1994 = vmatprep.subr.bf16.mxu0 0
        %1995 = vmatpush1.bf16.msra.mxu0 %v1978
        %1996 = vmatprep.subr.bf16.mxu0 0
        %1997 = vmatpush1.bf16.msra.mxu0 %v1979
        %1998 = vmatprep.subr.bf16.mxu0 0
        %1999 = vmatpush1.bf16.msra.mxu0 %v1980
        %2000 = vmatprep.subr.bf16.mxu0 0
        %2001 = vmatpush1.bf16.msra.mxu0 %v1981
        %2002 = vmatprep.subr.bf16.mxu0 0
        %2003 = vmatpush1.bf16.msra.mxu0 %v1982
        %2004 = vmatprep.subr.bf16.mxu0 0
        %2005 = vmatpush1.bf16.msra.mxu0 %v1983
        %2006 = vmatprep.subr.bf16.mxu0 0
        %2007 = vmatpush1.bf16.msra.mxu0 %v1984
        %2008 = vmatprep.subr.bf16.mxu0 0
        %2009 = vmatpush1.bf16.msra.mxu0 %v1985
        %2010 = vmatprep.subr.bf16.mxu0 0
        %2011 = vmatpush1.bf16.msra.mxu0 0
        %2012 = vmatprep.subr.bf16.mxu0 0
        %2013 = vmatpush1.bf16.msra.mxu0 0
        %2014 = vmatprep.subr.bf16.mxu0 0
        %2015 = vmatpush1.bf16.msra.mxu0 0
        %2016 = vmatprep.subr.bf16.mxu0 0
        %2017 = vmatpush1.bf16.msra.mxu0 0
        %2018 = vmatprep.subr.bf16.mxu0 0
        %2019 = vmatpush1.bf16.msra.mxu0 0
        %2020 = vmatprep.subr.bf16.mxu0 0
        %2021 = vmatpush1.bf16.msra.mxu0 0
        %2022 = vmatprep.subr.bf16.mxu0 0
        %2023 = vmatpush1.bf16.msra.mxu0 0
        %2024 = vmatprep.subr.bf16.mxu0 0
        %2025 = vmatpush1.bf16.msra.mxu0 0
        %2026 = vmatprep.mubr.bf16.mxu0 0
        %2027 = vmatmul.mubr.bf16.gmra.mrb[0].mxu0 %v1925
        %v2028 = vpop.f32.mrb[0].mxu0
        %v2029 = vadd.f32 0.0, %v2028
        %v2030 = vpop.f32.mrb[0].mxu0
        %v2031 = vpop.f32.mrb[0].mxu0
        %v2032 = vadd.f32 0.0, %v2031
        %v2033 = vpop.f32.mrb[0].mxu0
        %2034 = vmatprep.mubr.bf16.mxu0 0
        %2035 = vmatmul.mubr.bf16.gmra.mrb[0].mxu0 %v1926
        %v2036 = vpop.f32.mrb[0].mxu0
        %v2037 = vadd.f32 0.0, %v2036
        %v2038 = vpop.f32.mrb[0].mxu0
        %v2039 = vpop.f32.mrb[0].mxu0
        %v2040 = vadd.f32 0.0, %v2039
        %v2041 = vpop.f32.mrb[0].mxu0
        %2042 = vmatprep.mubr.bf16.mxu0 0
        %2043 = vmatmul.mubr.bf16.gmra.mrb[0].mxu0 %v1927
        %v2044 = vpop.f32.mrb[0].mxu0
        %v2045 = vadd.f32 0.0, %v2044
        %v2046 = vpop.f32.mrb[0].mxu0
        %v2047 = vpop.f32.mrb[0].mxu0
        %v2048 = vadd.f32 0.0, %v2047
        %v2049 = vpop.f32.mrb[0].mxu0
        %2050 = vmatprep.mubr.bf16.mxu0 0
        %2051 = vmatmul.mubr.bf16.gmra.mrb[0].mxu0 %v1928
        %v2052 = vpop.f32.mrb[0].mxu0
        %v2053 = vadd.f32 0.0, %v2052
        %v2054 = vpop.f32.mrb[0].mxu0
        %v2055 = vpop.f32.mrb[0].mxu0
        %v2056 = vadd.f32 0.0, %v2055
        %v2057 = vpop.f32.mrb[0].mxu0
        %2058 = vdwg.mxu0
        %v2059 = vadd.f32 %v1887, %v2029
        %v2060 = vadd.f32 %v1890, %v2032
        %v2061 = vadd.f32 %v1895, %v2037
        %v2062 = vadd.f32 %v1898, %v2040
        %v2063 = vadd.f32 %v1903, %v2045
        %v2064 = vadd.f32 %v1906, %v2048
        %v2065 = vadd.f32 %v1911, %v2053
        %v2066 = vadd.f32 %v1914, %v2056
        %v2067 = vld [vmem:[%s649] sm:$0xff]
        %v2068 = vld [vmem:[%s649 + $0x10] sm:$0xff]
        %v2069 = vld [vmem:[%s649 + $0x20] sm:$0xff]
        %v2070 = vld [vmem:[%s649 + $0x30] sm:$0xff]
        %v2071 = vld [vmem:[%s649 + $0x40] sm:$0xff]
        %v2072 = vld [vmem:[%s649 + $0x50] sm:$0xff]
        %v2073 = vld [vmem:[%s649 + $0x60] sm:$0xff]
        %v2074 = vld [vmem:[%s649 + $0x70] sm:$0xff]
        %v2075 = vpack.c.bf16 %v2068, %v2067
        %v2076 = vpack.c.bf16 %v2070, %v2069
        %v2077 = vpack.c.bf16 %v2072, %v2071
        %v2078 = vpack.c.bf16 %v2074, %v2073
        %s2079 = scalar_lea.vmem %s2, 192
        %v2080 = vld [vmem:[%s2079] sm:$0xf]
        %v2081 = vld [vmem:[%s2079 + $0x4] sm:$0xf]
        %v2082 = vld [vmem:[%s2079 + $0x8] sm:$0xf]
        %v2083 = vld [vmem:[%s2079 + $0xc] sm:$0xf]
        %v2084 = vld [vmem:[%s2079 + $0x10] sm:$0xf]
        %v2085 = vld [vmem:[%s2079 + $0x14] sm:$0xf]
        %v2086 = vld [vmem:[%s2079 + $0x18] sm:$0xf]
        %v2087 = vld [vmem:[%s2079 + $0x1c] sm:$0xf]
        %v2088 = vld [vmem:[%s2079 + $0x20] sm:$0xf]
        %v2089 = vld [vmem:[%s2079 + $0x24] sm:$0xf]
        %v2090 = vld [vmem:[%s2079 + $0x28] sm:$0xf]
        %v2091 = vld [vmem:[%s2079 + $0x2c] sm:$0xf]
        %v2092 = vld [vmem:[%s2079 + $0x30] sm:$0xf]
        %v2093 = vld [vmem:[%s2079 + $0x34] sm:$0xf]
        %v2094 = vld [vmem:[%s2079 + $0x38] sm:$0xf]
        %v2095 = vld [vmem:[%s2079 + $0x3c] sm:$0xf]
        %v2112 = vunpack.c.l.b16 %v2080
        %v2113 = vunpack.c.l.b16 %v2081
        %v2114 = vunpack.c.l.b16 %v2082
        %v2115 = vunpack.c.l.b16 %v2083
        %v2116 = vunpack.c.l.b16 %v2084
        %v2117 = vunpack.c.l.b16 %v2085
        %v2118 = vunpack.c.l.b16 %v2086
        %v2119 = vunpack.c.l.b16 %v2087
        %v2120 = vunpack.c.l.b16 %v2088
        %v2121 = vunpack.c.l.b16 %v2089
        %v2122 = vunpack.c.l.b16 %v2090
        %v2123 = vunpack.c.l.b16 %v2091
        %v2124 = vunpack.c.l.b16 %v2092
        %v2125 = vunpack.c.l.b16 %v2093
        %v2126 = vunpack.c.l.b16 %v2094
        %v2127 = vunpack.c.l.b16 %v2095
        %v2128 = vpack.c.b16 %v2113, %v2112
        %v2129 = vpack.c.b16 %v2115, %v2114
        %v2130 = vpack.c.b16 %v2117, %v2116
        %v2131 = vpack.c.b16 %v2119, %v2118
        %v2132 = vpack.c.b16 %v2121, %v2120
        %v2133 = vpack.c.b16 %v2123, %v2122
        %v2134 = vpack.c.b16 %v2125, %v2124
        %v2135 = vpack.c.b16 %v2127, %v2126
        %2144 = vmatprep.subr.bf16.mxu0 0
        %2145 = vmatpush1.bf16.msra.mxu0 %v2128
        %2146 = vmatprep.subr.bf16.mxu0 0
        %2147 = vmatpush1.bf16.msra.mxu0 %v2129
        %2148 = vmatprep.subr.bf16.mxu0 0
        %2149 = vmatpush1.bf16.msra.mxu0 %v2130
        %2150 = vmatprep.subr.bf16.mxu0 0
        %2151 = vmatpush1.bf16.msra.mxu0 %v2131
        %2152 = vmatprep.subr.bf16.mxu0 0
        %2153 = vmatpush1.bf16.msra.mxu0 %v2132
        %2154 = vmatprep.subr.bf16.mxu0 0
        %2155 = vmatpush1.bf16.msra.mxu0 %v2133
        %2156 = vmatprep.subr.bf16.mxu0 0
        %2157 = vmatpush1.bf16.msra.mxu0 %v2134
        %2158 = vmatprep.subr.bf16.mxu0 0
        %2159 = vmatpush1.bf16.msra.mxu0 %v2135
        %2160 = vmatprep.subr.bf16.mxu0 0
        %2161 = vmatpush1.bf16.msra.mxu0 0
        %2162 = vmatprep.subr.bf16.mxu0 0
        %2163 = vmatpush1.bf16.msra.mxu0 0
        %2164 = vmatprep.subr.bf16.mxu0 0
        %2165 = vmatpush1.bf16.msra.mxu0 0
        %2166 = vmatprep.subr.bf16.mxu0 0
        %2167 = vmatpush1.bf16.msra.mxu0 0
        %2168 = vmatprep.subr.bf16.mxu0 0
        %2169 = vmatpush1.bf16.msra.mxu0 0
        %2170 = vmatprep.subr.bf16.mxu0 0
        %2171 = vmatpush1.bf16.msra.mxu0 0
        %2172 = vmatprep.subr.bf16.mxu0 0
        %2173 = vmatpush1.bf16.msra.mxu0 0
        %2174 = vmatprep.subr.bf16.mxu0 0
        %2175 = vmatpush1.bf16.msra.mxu0 0
        %2176 = vmatprep.mubr.bf16.mxu0 0
        %2177 = vmatmul.mubr.bf16.gmra.mrb[0].mxu0 %v2075
        %v2178 = vpop.f32.mrb[0].mxu0
        %v2179 = vadd.f32 0.0, %v2178
        %v2180 = vpop.f32.mrb[0].mxu0
        %v2181 = vpop.f32.mrb[0].mxu0
        %v2182 = vadd.f32 0.0, %v2181
        %v2183 = vpop.f32.mrb[0].mxu0
        %2184 = vmatprep.mubr.bf16.mxu0 0
        %2185 = vmatmul.mubr.bf16.gmra.mrb[0].mxu0 %v2076
        %v2186 = vpop.f32.mrb[0].mxu0
        %v2187 = vadd.f32 0.0, %v2186
        %v2188 = vpop.f32.mrb[0].mxu0
        %v2189 = vpop.f32.mrb[0].mxu0
        %v2190 = vadd.f32 0.0, %v2189
        %v2191 = vpop.f32.mrb[0].mxu0
        %2192 = vmatprep.mubr.bf16.mxu0 0
        %2193 = vmatmul.mubr.bf16.gmra.mrb[0].mxu0 %v2077
        %v2194 = vpop.f32.mrb[0].mxu0
        %v2195 = vadd.f32 0.0, %v2194
        %v2196 = vpop.f32.mrb[0].mxu0
        %v2197 = vpop.f32.mrb[0].mxu0
        %v2198 = vadd.f32 0.0, %v2197
        %v2199 = vpop.f32.mrb[0].mxu0
        %2200 = vmatprep.mubr.bf16.mxu0 0
        %2201 = vmatmul.mubr.bf16.gmra.mrb[0].mxu0 %v2078
        %v2202 = vpop.f32.mrb[0].mxu0
        %v2203 = vadd.f32 0.0, %v2202
        %v2204 = vpop.f32.mrb[0].mxu0
        %v2205 = vpop.f32.mrb[0].mxu0
        %v2206 = vadd.f32 0.0, %v2205
        %v2207 = vpop.f32.mrb[0].mxu0
        %2208 = vdwg.mxu0
        %v2209 = vadd.f32 %v2059, %v2179
        %v2210 = vadd.f32 %v2060, %v2182
        %v2211 = vadd.f32 %v2061, %v2187
        %v2212 = vadd.f32 %v2062, %v2190
        %v2213 = vadd.f32 %v2063, %v2195
        %v2214 = vadd.f32 %v2064, %v2198
        %v2215 = vadd.f32 %v2065, %v2203
        %v2216 = vadd.f32 %v2066, %v2206
        %v2217 = vld [vmem:[%s649 + $0x1] sm:$0xff]
        %v2218 = vld [vmem:[%s649 + $0x11] sm:$0xff]
        %v2219 = vld [vmem:[%s649 + $0x21] sm:$0xff]
        %v2220 = vld [vmem:[%s649 + $0x31] sm:$0xff]
        %v2221 = vld [vmem:[%s649 + $0x41] sm:$0xff]
        %v2222 = vld [vmem:[%s649 + $0x51] sm:$0xff]
        %v2223 = vld [vmem:[%s649 + $0x61] sm:$0xff]
        %v2224 = vld [vmem:[%s649 + $0x71] sm:$0xff]
        %v2225 = vpack.c.bf16 %v2218, %v2217
        %v2226 = vpack.c.bf16 %v2220, %v2219
        %v2227 = vpack.c.bf16 %v2222, %v2221
        %v2228 = vpack.c.bf16 %v2224, %v2223
        %s2229 = scalar_lea.vmem %s2, 256
        %v2230 = vld [vmem:[%s2229] sm:$0xf]
        %v2231 = vld [vmem:[%s2229 + $0x4] sm:$0xf]
        %v2232 = vld [vmem:[%s2229 + $0x8] sm:$0xf]
        %v2233 = vld [vmem:[%s2229 + $0xc] sm:$0xf]
        %v2234 = vld [vmem:[%s2229 + $0x10] sm:$0xf]
        %v2235 = vld [vmem:[%s2229 + $0x14] sm:$0xf]
        %v2236 = vld [vmem:[%s2229 + $0x18] sm:$0xf]
        %v2237 = vld [vmem:[%s2229 + $0x1c] sm:$0xf]
        %v2238 = vld [vmem:[%s2229 + $0x20] sm:$0xf]
        %v2239 = vld [vmem:[%s2229 + $0x24] sm:$0xf]
        %v2240 = vld [vmem:[%s2229 + $0x28] sm:$0xf]
        %v2241 = vld [vmem:[%s2229 + $0x2c] sm:$0xf]
        %v2242 = vld [vmem:[%s2229 + $0x30] sm:$0xf]
        %v2243 = vld [vmem:[%s2229 + $0x34] sm:$0xf]
        %v2244 = vld [vmem:[%s2229 + $0x38] sm:$0xf]
        %v2245 = vld [vmem:[%s2229 + $0x3c] sm:$0xf]
        %v2262 = vunpack.c.l.b16 %v2230
        %v2263 = vunpack.c.l.b16 %v2231
        %v2264 = vunpack.c.l.b16 %v2232
        %v2265 = vunpack.c.l.b16 %v2233
        %v2266 = vunpack.c.l.b16 %v2234
        %v2267 = vunpack.c.l.b16 %v2235
        %v2268 = vunpack.c.l.b16 %v2236
        %v2269 = vunpack.c.l.b16 %v2237
        %v2270 = vunpack.c.l.b16 %v2238
        %v2271 = vunpack.c.l.b16 %v2239
        %v2272 = vunpack.c.l.b16 %v2240
        %v2273 = vunpack.c.l.b16 %v2241
        %v2274 = vunpack.c.l.b16 %v2242
        %v2275 = vunpack.c.l.b16 %v2243
        %v2276 = vunpack.c.l.b16 %v2244
        %v2277 = vunpack.c.l.b16 %v2245
        %v2278 = vpack.c.b16 %v2263, %v2262
        %v2279 = vpack.c.b16 %v2265, %v2264
        %v2280 = vpack.c.b16 %v2267, %v2266
        %v2281 = vpack.c.b16 %v2269, %v2268
        %v2282 = vpack.c.b16 %v2271, %v2270
        %v2283 = vpack.c.b16 %v2273, %v2272
        %v2284 = vpack.c.b16 %v2275, %v2274
        %v2285 = vpack.c.b16 %v2277, %v2276
        %2294 = vmatprep.subr.bf16.mxu0 0
        %2295 = vmatpush1.bf16.msra.mxu0 %v2278
        %2296 = vmatprep.subr.bf16.mxu0 0
        %2297 = vmatpush1.bf16.msra.mxu0 %v2279
        %2298 = vmatprep.subr.bf16.mxu0 0
        %2299 = vmatpush1.bf16.msra.mxu0 %v2280
        %2300 = vmatprep.subr.bf16.mxu0 0
        %2301 = vmatpush1.bf16.msra.mxu0 %v2281
        %2302 = vmatprep.subr.bf16.mxu0 0
        %2303 = vmatpush1.bf16.msra.mxu0 %v2282
        %2304 = vmatprep.subr.bf16.mxu0 0
        %2305 = vmatpush1.bf16.msra.mxu0 %v2283
        %2306 = vmatprep.subr.bf16.mxu0 0
        %2307 = vmatpush1.bf16.msra.mxu0 %v2284
        %2308 = vmatprep.subr.bf16.mxu0 0
        %2309 = vmatpush1.bf16.msra.mxu0 %v2285
        %2310 = vmatprep.subr.bf16.mxu0 0
        %2311 = vmatpush1.bf16.msra.mxu0 0
        %2312 = vmatprep.subr.bf16.mxu0 0
        %2313 = vmatpush1.bf16.msra.mxu0 0
        %2314 = vmatprep.subr.bf16.mxu0 0
        %2315 = vmatpush1.bf16.msra.mxu0 0
        %2316 = vmatprep.subr.bf16.mxu0 0
        %2317 = vmatpush1.bf16.msra.mxu0 0
        %2318 = vmatprep.subr.bf16.mxu0 0
        %2319 = vmatpush1.bf16.msra.mxu0 0
        %2320 = vmatprep.subr.bf16.mxu0 0
        %2321 = vmatpush1.bf16.msra.mxu0 0
        %2322 = vmatprep.subr.bf16.mxu0 0
        %2323 = vmatpush1.bf16.msra.mxu0 0
        %2324 = vmatprep.subr.bf16.mxu0 0
        %2325 = vmatpush1.bf16.msra.mxu0 0
        %2326 = vmatprep.mubr.bf16.mxu0 0
        %2327 = vmatmul.mubr.bf16.gmra.mrb[0].mxu0 %v2225
        %v2328 = vpop.f32.mrb[0].mxu0
        %v2329 = vadd.f32 0.0, %v2328
        %v2330 = vpop.f32.mrb[0].mxu0
        %v2331 = vpop.f32.mrb[0].mxu0
        %v2332 = vadd.f32 0.0, %v2331
        %v2333 = vpop.f32.mrb[0].mxu0
        %2334 = vmatprep.mubr.bf16.mxu0 0
        %2335 = vmatmul.mubr.bf16.gmra.mrb[0].mxu0 %v2226
        %v2336 = vpop.f32.mrb[0].mxu0
        %v2337 = vadd.f32 0.0, %v2336
        %v2338 = vpop.f32.mrb[0].mxu0
        %v2339 = vpop.f32.mrb[0].mxu0
        %v2340 = vadd.f32 0.0, %v2339
        %v2341 = vpop.f32.mrb[0].mxu0
        %2342 = vmatprep.mubr.bf16.mxu0 0
        %2343 = vmatmul.mubr.bf16.gmra.mrb[0].mxu0 %v2227
        %v2344 = vpop.f32.mrb[0].mxu0
        %v2345 = vadd.f32 0.0, %v2344
        %v2346 = vpop.f32.mrb[0].mxu0
        %v2347 = vpop.f32.mrb[0].mxu0
        %v2348 = vadd.f32 0.0, %v2347
        %v2349 = vpop.f32.mrb[0].mxu0
        %2350 = vmatprep.mubr.bf16.mxu0 0
        %2351 = vmatmul.mubr.bf16.gmra.mrb[0].mxu0 %v2228
        %v2352 = vpop.f32.mrb[0].mxu0
        %v2353 = vadd.f32 0.0, %v2352
        %v2354 = vpop.f32.mrb[0].mxu0
        %v2355 = vpop.f32.mrb[0].mxu0
        %v2356 = vadd.f32 0.0, %v2355
        %v2357 = vpop.f32.mrb[0].mxu0
        %2358 = vdwg.mxu0
        %v2359 = vadd.f32 %v2209, %v2329
        %v2360 = vadd.f32 %v2210, %v2332
        %v2361 = vadd.f32 %v2211, %v2337
        %v2362 = vadd.f32 %v2212, %v2340
        %v2363 = vadd.f32 %v2213, %v2345
        %v2364 = vadd.f32 %v2214, %v2348
        %v2365 = vadd.f32 %v2215, %v2353
        %v2366 = vadd.f32 %v2216, %v2356
        %v2367 = vld [vmem:[%s649 + $0x2] sm:$0xff]
        %v2368 = vld [vmem:[%s649 + $0x12] sm:$0xff]
        %v2369 = vld [vmem:[%s649 + $0x22] sm:$0xff]
        %v2370 = vld [vmem:[%s649 + $0x32] sm:$0xff]
        %v2371 = vld [vmem:[%s649 + $0x42] sm:$0xff]
        %v2372 = vld [vmem:[%s649 + $0x52] sm:$0xff]
        %v2373 = vld [vmem:[%s649 + $0x62] sm:$0xff]
        %v2374 = vld [vmem:[%s649 + $0x72] sm:$0xff]
        %v2375 = vpack.c.bf16 %v2368, %v2367
        %v2376 = vpack.c.bf16 %v2370, %v2369
        %v2377 = vpack.c.bf16 %v2372, %v2371
        %v2378 = vpack.c.bf16 %v2374, %v2373
        %s2379 = scalar_lea.vmem %s2, 320
        %v2380 = vld [vmem:[%s2379] sm:$0xf]
        %v2381 = vld [vmem:[%s2379 + $0x4] sm:$0xf]
        %v2382 = vld [vmem:[%s2379 + $0x8] sm:$0xf]
        %v2383 = vld [vmem:[%s2379 + $0xc] sm:$0xf]
        %v2384 = vld [vmem:[%s2379 + $0x10] sm:$0xf]
        %v2385 = vld [vmem:[%s2379 + $0x14] sm:$0xf]
        %v2386 = vld [vmem:[%s2379 + $0x18] sm:$0xf]
        %v2387 = vld [vmem:[%s2379 + $0x1c] sm:$0xf]
        %v2388 = vld [vmem:[%s2379 + $0x20] sm:$0xf]
        %v2389 = vld [vmem:[%s2379 + $0x24] sm:$0xf]
        %v2390 = vld [vmem:[%s2379 + $0x28] sm:$0xf]
        %v2391 = vld [vmem:[%s2379 + $0x2c] sm:$0xf]
        %v2392 = vld [vmem:[%s2379 + $0x30] sm:$0xf]
        %v2393 = vld [vmem:[%s2379 + $0x34] sm:$0xf]
        %v2394 = vld [vmem:[%s2379 + $0x38] sm:$0xf]
        %v2395 = vld [vmem:[%s2379 + $0x3c] sm:$0xf]
        %v2412 = vunpack.c.l.b16 %v2380
        %v2413 = vunpack.c.l.b16 %v2381
        %v2414 = vunpack.c.l.b16 %v2382
        %v2415 = vunpack.c.l.b16 %v2383
        %v2416 = vunpack.c.l.b16 %v2384
        %v2417 = vunpack.c.l.b16 %v2385
        %v2418 = vunpack.c.l.b16 %v2386
        %v2419 = vunpack.c.l.b16 %v2387
        %v2420 = vunpack.c.l.b16 %v2388
        %v2421 = vunpack.c.l.b16 %v2389
        %v2422 = vunpack.c.l.b16 %v2390
        %v2423 = vunpack.c.l.b16 %v2391
        %v2424 = vunpack.c.l.b16 %v2392
        %v2425 = vunpack.c.l.b16 %v2393
        %v2426 = vunpack.c.l.b16 %v2394
        %v2427 = vunpack.c.l.b16 %v2395
        %v2428 = vpack.c.b16 %v2413, %v2412
        %v2429 = vpack.c.b16 %v2415, %v2414
        %v2430 = vpack.c.b16 %v2417, %v2416
        %v2431 = vpack.c.b16 %v2419, %v2418
        %v2432 = vpack.c.b16 %v2421, %v2420
        %v2433 = vpack.c.b16 %v2423, %v2422
        %v2434 = vpack.c.b16 %v2425, %v2424
        %v2435 = vpack.c.b16 %v2427, %v2426
        %2444 = vmatprep.subr.bf16.mxu0 0
        %2445 = vmatpush1.bf16.msra.mxu0 %v2428
        %2446 = vmatprep.subr.bf16.mxu0 0
        %2447 = vmatpush1.bf16.msra.mxu0 %v2429
        %2448 = vmatprep.subr.bf16.mxu0 0
        %2449 = vmatpush1.bf16.msra.mxu0 %v2430
        %2450 = vmatprep.subr.bf16.mxu0 0
        %2451 = vmatpush1.bf16.msra.mxu0 %v2431
        %2452 = vmatprep.subr.bf16.mxu0 0
        %2453 = vmatpush1.bf16.msra.mxu0 %v2432
        %2454 = vmatprep.subr.bf16.mxu0 0
        %2455 = vmatpush1.bf16.msra.mxu0 %v2433
        %2456 = vmatprep.subr.bf16.mxu0 0
        %2457 = vmatpush1.bf16.msra.mxu0 %v2434
        %2458 = vmatprep.subr.bf16.mxu0 0
        %2459 = vmatpush1.bf16.msra.mxu0 %v2435
        %2460 = vmatprep.subr.bf16.mxu0 0
        %2461 = vmatpush1.bf16.msra.mxu0 0
        %2462 = vmatprep.subr.bf16.mxu0 0
        %2463 = vmatpush1.bf16.msra.mxu0 0
        %2464 = vmatprep.subr.bf16.mxu0 0
        %2465 = vmatpush1.bf16.msra.mxu0 0
        %2466 = vmatprep.subr.bf16.mxu0 0
        %2467 = vmatpush1.bf16.msra.mxu0 0
        %2468 = vmatprep.subr.bf16.mxu0 0
        %2469 = vmatpush1.bf16.msra.mxu0 0
        %2470 = vmatprep.subr.bf16.mxu0 0
        %2471 = vmatpush1.bf16.msra.mxu0 0
        %2472 = vmatprep.subr.bf16.mxu0 0
        %2473 = vmatpush1.bf16.msra.mxu0 0
        %2474 = vmatprep.subr.bf16.mxu0 0
        %2475 = vmatpush1.bf16.msra.mxu0 0
        %2476 = vmatprep.mubr.bf16.mxu0 0
        %2477 = vmatmul.mubr.bf16.gmra.mrb[0].mxu0 %v2375
        %v2478 = vpop.f32.mrb[0].mxu0
        %v2479 = vadd.f32 0.0, %v2478
        %v2480 = vpop.f32.mrb[0].mxu0
        %v2481 = vpop.f32.mrb[0].mxu0
        %v2482 = vadd.f32 0.0, %v2481
        %v2483 = vpop.f32.mrb[0].mxu0
        %2484 = vmatprep.mubr.bf16.mxu0 0
        %2485 = vmatmul.mubr.bf16.gmra.mrb[0].mxu0 %v2376
        %v2486 = vpop.f32.mrb[0].mxu0
        %v2487 = vadd.f32 0.0, %v2486
        %v2488 = vpop.f32.mrb[0].mxu0
        %v2489 = vpop.f32.mrb[0].mxu0
        %v2490 = vadd.f32 0.0, %v2489
        %v2491 = vpop.f32.mrb[0].mxu0
        %2492 = vmatprep.mubr.bf16.mxu0 0
        %2493 = vmatmul.mubr.bf16.gmra.mrb[0].mxu0 %v2377
        %v2494 = vpop.f32.mrb[0].mxu0
        %v2495 = vadd.f32 0.0, %v2494
        %v2496 = vpop.f32.mrb[0].mxu0
        %v2497 = vpop.f32.mrb[0].mxu0
        %v2498 = vadd.f32 0.0, %v2497
        %v2499 = vpop.f32.mrb[0].mxu0
        %2500 = vmatprep.mubr.bf16.mxu0 0
        %2501 = vmatmul.mubr.bf16.gmra.mrb[0].mxu0 %v2378
        %v2502 = vpop.f32.mrb[0].mxu0
        %v2503 = vadd.f32 0.0, %v2502
        %v2504 = vpop.f32.mrb[0].mxu0
        %v2505 = vpop.f32.mrb[0].mxu0
        %v2506 = vadd.f32 0.0, %v2505
        %v2507 = vpop.f32.mrb[0].mxu0
        %2508 = vdwg.mxu0
        %v2509 = vadd.f32 %v2359, %v2479
        %v2510 = vadd.f32 %v2360, %v2482
        %v2511 = vadd.f32 %v2361, %v2487
        %v2512 = vadd.f32 %v2362, %v2490
        %v2513 = vadd.f32 %v2363, %v2495
        %v2514 = vadd.f32 %v2364, %v2498
        %v2515 = vadd.f32 %v2365, %v2503
        %v2516 = vadd.f32 %v2366, %v2506
        %v2517 = vld [vmem:[%s911] sm:$0xff]
        %v2518 = vld [vmem:[%s911 + $0x10] sm:$0xff]
        %v2519 = vld [vmem:[%s911 + $0x20] sm:$0xff]
        %v2520 = vld [vmem:[%s911 + $0x30] sm:$0xff]
        %v2521 = vld [vmem:[%s911 + $0x40] sm:$0xff]
        %v2522 = vld [vmem:[%s911 + $0x50] sm:$0xff]
        %v2523 = vld [vmem:[%s911 + $0x60] sm:$0xff]
        %v2524 = vld [vmem:[%s911 + $0x70] sm:$0xff]
        %v2525 = vpack.c.bf16 %v2518, %v2517
        %v2526 = vpack.c.bf16 %v2520, %v2519
        %v2527 = vpack.c.bf16 %v2522, %v2521
        %v2528 = vpack.c.bf16 %v2524, %v2523
        %s2529 = scalar_lea.vmem %s2, 384
        %v2530 = vld [vmem:[%s2529] sm:$0xf]
        %v2531 = vld [vmem:[%s2529 + $0x4] sm:$0xf]
        %v2532 = vld [vmem:[%s2529 + $0x8] sm:$0xf]
        %v2533 = vld [vmem:[%s2529 + $0xc] sm:$0xf]
        %v2534 = vld [vmem:[%s2529 + $0x10] sm:$0xf]
        %v2535 = vld [vmem:[%s2529 + $0x14] sm:$0xf]
        %v2536 = vld [vmem:[%s2529 + $0x18] sm:$0xf]
        %v2537 = vld [vmem:[%s2529 + $0x1c] sm:$0xf]
        %v2538 = vld [vmem:[%s2529 + $0x20] sm:$0xf]
        %v2539 = vld [vmem:[%s2529 + $0x24] sm:$0xf]
        %v2540 = vld [vmem:[%s2529 + $0x28] sm:$0xf]
        %v2541 = vld [vmem:[%s2529 + $0x2c] sm:$0xf]
        %v2542 = vld [vmem:[%s2529 + $0x30] sm:$0xf]
        %v2543 = vld [vmem:[%s2529 + $0x34] sm:$0xf]
        %v2544 = vld [vmem:[%s2529 + $0x38] sm:$0xf]
        %v2545 = vld [vmem:[%s2529 + $0x3c] sm:$0xf]
        %v2562 = vunpack.c.l.b16 %v2530
        %v2563 = vunpack.c.l.b16 %v2531
        %v2564 = vunpack.c.l.b16 %v2532
        %v2565 = vunpack.c.l.b16 %v2533
        %v2566 = vunpack.c.l.b16 %v2534
        %v2567 = vunpack.c.l.b16 %v2535
        %v2568 = vunpack.c.l.b16 %v2536
        %v2569 = vunpack.c.l.b16 %v2537
        %v2570 = vunpack.c.l.b16 %v2538
        %v2571 = vunpack.c.l.b16 %v2539
        %v2572 = vunpack.c.l.b16 %v2540
        %v2573 = vunpack.c.l.b16 %v2541
        %v2574 = vunpack.c.l.b16 %v2542
        %v2575 = vunpack.c.l.b16 %v2543
        %v2576 = vunpack.c.l.b16 %v2544
        %v2577 = vunpack.c.l.b16 %v2545
        %v2578 = vpack.c.b16 %v2563, %v2562
        %v2579 = vpack.c.b16 %v2565, %v2564
        %v2580 = vpack.c.b16 %v2567, %v2566
        %v2581 = vpack.c.b16 %v2569, %v2568
        %v2582 = vpack.c.b16 %v2571, %v2570
        %v2583 = vpack.c.b16 %v2573, %v2572
        %v2584 = vpack.c.b16 %v2575, %v2574
        %v2585 = vpack.c.b16 %v2577, %v2576
        %2594 = vmatprep.subr.bf16.mxu0 0
        %2595 = vmatpush1.bf16.msra.mxu0 %v2578
        %2596 = vmatprep.subr.bf16.mxu0 0
        %2597 = vmatpush1.bf16.msra.mxu0 %v2579
        %2598 = vmatprep.subr.bf16.mxu0 0
        %2599 = vmatpush1.bf16.msra.mxu0 %v2580
        %2600 = vmatprep.subr.bf16.mxu0 0
        %2601 = vmatpush1.bf16.msra.mxu0 %v2581
        %2602 = vmatprep.subr.bf16.mxu0 0
        %2603 = vmatpush1.bf16.msra.mxu0 %v2582
        %2604 = vmatprep.subr.bf16.mxu0 0
        %2605 = vmatpush1.bf16.msra.mxu0 %v2583
        %2606 = vmatprep.subr.bf16.mxu0 0
        %2607 = vmatpush1.bf16.msra.mxu0 %v2584
        %2608 = vmatprep.subr.bf16.mxu0 0
        %2609 = vmatpush1.bf16.msra.mxu0 %v2585
        %2610 = vmatprep.subr.bf16.mxu0 0
        %2611 = vmatpush1.bf16.msra.mxu0 0
        %2612 = vmatprep.subr.bf16.mxu0 0
        %2613 = vmatpush1.bf16.msra.mxu0 0
        %2614 = vmatprep.subr.bf16.mxu0 0
        %2615 = vmatpush1.bf16.msra.mxu0 0
        %2616 = vmatprep.subr.bf16.mxu0 0
        %2617 = vmatpush1.bf16.msra.mxu0 0
        %2618 = vmatprep.subr.bf16.mxu0 0
        %2619 = vmatpush1.bf16.msra.mxu0 0
        %2620 = vmatprep.subr.bf16.mxu0 0
        %2621 = vmatpush1.bf16.msra.mxu0 0
        %2622 = vmatprep.subr.bf16.mxu0 0
        %2623 = vmatpush1.bf16.msra.mxu0 0
        %2624 = vmatprep.subr.bf16.mxu0 0
        %2625 = vmatpush1.bf16.msra.mxu0 0
        %2626 = vmatprep.mubr.bf16.mxu0 0
        %2627 = vmatmul.mubr.bf16.gmra.mrb[0].mxu0 %v2525
        %v2628 = vpop.f32.mrb[0].mxu0
        %v2629 = vadd.f32 0.0, %v2628
        %v2630 = vpop.f32.mrb[0].mxu0
        %v2631 = vpop.f32.mrb[0].mxu0
        %v2632 = vadd.f32 0.0, %v2631
        %v2633 = vpop.f32.mrb[0].mxu0
        %2634 = vmatprep.mubr.bf16.mxu0 0
        %2635 = vmatmul.mubr.bf16.gmra.mrb[0].mxu0 %v2526
        %v2636 = vpop.f32.mrb[0].mxu0
        %v2637 = vadd.f32 0.0, %v2636
        %v2638 = vpop.f32.mrb[0].mxu0
        %v2639 = vpop.f32.mrb[0].mxu0
        %v2640 = vadd.f32 0.0, %v2639
        %v2641 = vpop.f32.mrb[0].mxu0
        %2642 = vmatprep.mubr.bf16.mxu0 0
        %2643 = vmatmul.mubr.bf16.gmra.mrb[0].mxu0 %v2527
        %v2644 = vpop.f32.mrb[0].mxu0
        %v2645 = vadd.f32 0.0, %v2644
        %v2646 = vpop.f32.mrb[0].mxu0
        %v2647 = vpop.f32.mrb[0].mxu0
        %v2648 = vadd.f32 0.0, %v2647
        %v2649 = vpop.f32.mrb[0].mxu0
        %2650 = vmatprep.mubr.bf16.mxu0 0
        %2651 = vmatmul.mubr.bf16.gmra.mrb[0].mxu0 %v2528
        %v2652 = vpop.f32.mrb[0].mxu0
        %v2653 = vadd.f32 0.0, %v2652
        %v2654 = vpop.f32.mrb[0].mxu0
        %v2655 = vpop.f32.mrb[0].mxu0
        %v2656 = vadd.f32 0.0, %v2655
        %v2657 = vpop.f32.mrb[0].mxu0
        %2658 = vdwg.mxu0
        %v2659 = vadd.f32 %v2509, %v2629
        %v2660 = vadd.f32 %v2510, %v2632
        %v2661 = vadd.f32 %v2511, %v2637
        %v2662 = vadd.f32 %v2512, %v2640
        %v2663 = vadd.f32 %v2513, %v2645
        %v2664 = vadd.f32 %v2514, %v2648
        %v2665 = vadd.f32 %v2515, %v2653
        %v2666 = vadd.f32 %v2516, %v2656
        %v2667 = vld [vmem:[%s911 + $0x1] sm:$0xff]
        %v2668 = vld [vmem:[%s911 + $0x11] sm:$0xff]
        %v2669 = vld [vmem:[%s911 + $0x21] sm:$0xff]
        %v2670 = vld [vmem:[%s911 + $0x31] sm:$0xff]
        %v2671 = vld [vmem:[%s911 + $0x41] sm:$0xff]
        %v2672 = vld [vmem:[%s911 + $0x51] sm:$0xff]
        %v2673 = vld [vmem:[%s911 + $0x61] sm:$0xff]
        %v2674 = vld [vmem:[%s911 + $0x71] sm:$0xff]
        %v2675 = vpack.c.bf16 %v2668, %v2667
        %v2676 = vpack.c.bf16 %v2670, %v2669
        %v2677 = vpack.c.bf16 %v2672, %v2671
        %v2678 = vpack.c.bf16 %v2674, %v2673
        %s2679 = scalar_lea.vmem %s2, 448
        %v2680 = vld [vmem:[%s2679] sm:$0xf]
        %v2681 = vld [vmem:[%s2679 + $0x4] sm:$0xf]
        %v2682 = vld [vmem:[%s2679 + $0x8] sm:$0xf]
        %v2683 = vld [vmem:[%s2679 + $0xc] sm:$0xf]
        %v2684 = vld [vmem:[%s2679 + $0x10] sm:$0xf]
        %v2685 = vld [vmem:[%s2679 + $0x14] sm:$0xf]
        %v2686 = vld [vmem:[%s2679 + $0x18] sm:$0xf]
        %v2687 = vld [vmem:[%s2679 + $0x1c] sm:$0xf]
        %v2688 = vld [vmem:[%s2679 + $0x20] sm:$0xf]
        %v2689 = vld [vmem:[%s2679 + $0x24] sm:$0xf]
        %v2690 = vld [vmem:[%s2679 + $0x28] sm:$0xf]
        %v2691 = vld [vmem:[%s2679 + $0x2c] sm:$0xf]
        %v2692 = vld [vmem:[%s2679 + $0x30] sm:$0xf]
        %v2693 = vld [vmem:[%s2679 + $0x34] sm:$0xf]
        %v2694 = vld [vmem:[%s2679 + $0x38] sm:$0xf]
        %v2695 = vld [vmem:[%s2679 + $0x3c] sm:$0xf]
        %v2712 = vunpack.c.l.b16 %v2680
        %v2713 = vunpack.c.l.b16 %v2681
        %v2714 = vunpack.c.l.b16 %v2682
        %v2715 = vunpack.c.l.b16 %v2683
        %v2716 = vunpack.c.l.b16 %v2684
        %v2717 = vunpack.c.l.b16 %v2685
        %v2718 = vunpack.c.l.b16 %v2686
        %v2719 = vunpack.c.l.b16 %v2687
        %v2720 = vunpack.c.l.b16 %v2688
        %v2721 = vunpack.c.l.b16 %v2689
        %v2722 = vunpack.c.l.b16 %v2690
        %v2723 = vunpack.c.l.b16 %v2691
        %v2724 = vunpack.c.l.b16 %v2692
        %v2725 = vunpack.c.l.b16 %v2693
        %v2726 = vunpack.c.l.b16 %v2694
        %v2727 = vunpack.c.l.b16 %v2695
        %v2728 = vpack.c.b16 %v2713, %v2712
        %v2729 = vpack.c.b16 %v2715, %v2714
        %v2730 = vpack.c.b16 %v2717, %v2716
        %v2731 = vpack.c.b16 %v2719, %v2718
        %v2732 = vpack.c.b16 %v2721, %v2720
        %v2733 = vpack.c.b16 %v2723, %v2722
        %v2734 = vpack.c.b16 %v2725, %v2724
        %v2735 = vpack.c.b16 %v2727, %v2726
        %2744 = vmatprep.subr.bf16.mxu0 0
        %2745 = vmatpush1.bf16.msra.mxu0 %v2728
        %2746 = vmatprep.subr.bf16.mxu0 0
        %2747 = vmatpush1.bf16.msra.mxu0 %v2729
        %2748 = vmatprep.subr.bf16.mxu0 0
        %2749 = vmatpush1.bf16.msra.mxu0 %v2730
        %2750 = vmatprep.subr.bf16.mxu0 0
        %2751 = vmatpush1.bf16.msra.mxu0 %v2731
        %2752 = vmatprep.subr.bf16.mxu0 0
        %2753 = vmatpush1.bf16.msra.mxu0 %v2732
        %2754 = vmatprep.subr.bf16.mxu0 0
        %2755 = vmatpush1.bf16.msra.mxu0 %v2733
        %2756 = vmatprep.subr.bf16.mxu0 0
        %2757 = vmatpush1.bf16.msra.mxu0 %v2734
        %2758 = vmatprep.subr.bf16.mxu0 0
        %2759 = vmatpush1.bf16.msra.mxu0 %v2735
        %2760 = vmatprep.subr.bf16.mxu0 0
        %2761 = vmatpush1.bf16.msra.mxu0 0
        %2762 = vmatprep.subr.bf16.mxu0 0
        %2763 = vmatpush1.bf16.msra.mxu0 0
        %2764 = vmatprep.subr.bf16.mxu0 0
        %2765 = vmatpush1.bf16.msra.mxu0 0
        %2766 = vmatprep.subr.bf16.mxu0 0
        %2767 = vmatpush1.bf16.msra.mxu0 0
        %2768 = vmatprep.subr.bf16.mxu0 0
        %2769 = vmatpush1.bf16.msra.mxu0 0
        %2770 = vmatprep.subr.bf16.mxu0 0
        %2771 = vmatpush1.bf16.msra.mxu0 0
        %2772 = vmatprep.subr.bf16.mxu0 0
        %2773 = vmatpush1.bf16.msra.mxu0 0
        %2774 = vmatprep.subr.bf16.mxu0 0
        %2775 = vmatpush1.bf16.msra.mxu0 0
        %2776 = vmatprep.mubr.bf16.mxu0 0
        %2777 = vmatmul.mubr.bf16.gmra.mrb[0].mxu0 %v2675
        %v2778 = vpop.f32.mrb[0].mxu0
        %v2779 = vadd.f32 0.0, %v2778
        %v2780 = vpop.f32.mrb[0].mxu0
        %v2781 = vpop.f32.mrb[0].mxu0
        %v2782 = vadd.f32 0.0, %v2781
        %v2783 = vpop.f32.mrb[0].mxu0
        %2784 = vmatprep.mubr.bf16.mxu0 0
        %2785 = vmatmul.mubr.bf16.gmra.mrb[0].mxu0 %v2676
        %v2786 = vpop.f32.mrb[0].mxu0
        %v2787 = vadd.f32 0.0, %v2786
        %v2788 = vpop.f32.mrb[0].mxu0
        %v2789 = vpop.f32.mrb[0].mxu0
        %v2790 = vadd.f32 0.0, %v2789
        %v2791 = vpop.f32.mrb[0].mxu0
        %2792 = vmatprep.mubr.bf16.mxu0 0
        %2793 = vmatmul.mubr.bf16.gmra.mrb[0].mxu0 %v2677
        %v2794 = vpop.f32.mrb[0].mxu0
        %v2795 = vadd.f32 0.0, %v2794
        %v2796 = vpop.f32.mrb[0].mxu0
        %v2797 = vpop.f32.mrb[0].mxu0
        %v2798 = vadd.f32 0.0, %v2797
        %v2799 = vpop.f32.mrb[0].mxu0
        %2800 = vmatprep.mubr.bf16.mxu0 0
        %2801 = vmatmul.mubr.bf16.gmra.mrb[0].mxu0 %v2678
        %v2802 = vpop.f32.mrb[0].mxu0
        %v2803 = vadd.f32 0.0, %v2802
        %v2804 = vpop.f32.mrb[0].mxu0
        %v2805 = vpop.f32.mrb[0].mxu0
        %v2806 = vadd.f32 0.0, %v2805
        %v2807 = vpop.f32.mrb[0].mxu0
        %2808 = vdwg.mxu0
        %v2809 = vadd.f32 %v2659, %v2779
        %v2810 = vadd.f32 %v2660, %v2782
        %v2811 = vadd.f32 %v2661, %v2787
        %v2812 = vadd.f32 %v2662, %v2790
        %v2813 = vadd.f32 %v2663, %v2795
        %v2814 = vadd.f32 %v2664, %v2798
        %v2815 = vadd.f32 %v2665, %v2803
        %v2816 = vadd.f32 %v2666, %v2806
        %v2817 = vld [vmem:[%s911 + $0x2] sm:$0xff]
        %v2818 = vld [vmem:[%s911 + $0x12] sm:$0xff]
        %v2819 = vld [vmem:[%s911 + $0x22] sm:$0xff]
        %v2820 = vld [vmem:[%s911 + $0x32] sm:$0xff]
        %v2821 = vld [vmem:[%s911 + $0x42] sm:$0xff]
        %v2822 = vld [vmem:[%s911 + $0x52] sm:$0xff]
        %v2823 = vld [vmem:[%s911 + $0x62] sm:$0xff]
        %v2824 = vld [vmem:[%s911 + $0x72] sm:$0xff]
        %v2825 = vpack.c.bf16 %v2818, %v2817
        %v2826 = vpack.c.bf16 %v2820, %v2819
        %v2827 = vpack.c.bf16 %v2822, %v2821
        %v2828 = vpack.c.bf16 %v2824, %v2823
        %s2829 = scalar_lea.vmem %s2, 512
        %v2830 = vld [vmem:[%s2829] sm:$0xf]
        %v2831 = vld [vmem:[%s2829 + $0x4] sm:$0xf]
        %v2832 = vld [vmem:[%s2829 + $0x8] sm:$0xf]
        %v2833 = vld [vmem:[%s2829 + $0xc] sm:$0xf]
        %v2834 = vld [vmem:[%s2829 + $0x10] sm:$0xf]
        %v2835 = vld [vmem:[%s2829 + $0x14] sm:$0xf]
        %v2836 = vld [vmem:[%s2829 + $0x18] sm:$0xf]
        %v2837 = vld [vmem:[%s2829 + $0x1c] sm:$0xf]
        %v2838 = vld [vmem:[%s2829 + $0x20] sm:$0xf]
        %v2839 = vld [vmem:[%s2829 + $0x24] sm:$0xf]
        %v2840 = vld [vmem:[%s2829 + $0x28] sm:$0xf]
        %v2841 = vld [vmem:[%s2829 + $0x2c] sm:$0xf]
        %v2842 = vld [vmem:[%s2829 + $0x30] sm:$0xf]
        %v2843 = vld [vmem:[%s2829 + $0x34] sm:$0xf]
        %v2844 = vld [vmem:[%s2829 + $0x38] sm:$0xf]
        %v2845 = vld [vmem:[%s2829 + $0x3c] sm:$0xf]
        %v2862 = vunpack.c.l.b16 %v2830
        %v2863 = vunpack.c.l.b16 %v2831
        %v2864 = vunpack.c.l.b16 %v2832
        %v2865 = vunpack.c.l.b16 %v2833
        %v2866 = vunpack.c.l.b16 %v2834
        %v2867 = vunpack.c.l.b16 %v2835
        %v2868 = vunpack.c.l.b16 %v2836
        %v2869 = vunpack.c.l.b16 %v2837
        %v2870 = vunpack.c.l.b16 %v2838
        %v2871 = vunpack.c.l.b16 %v2839
        %v2872 = vunpack.c.l.b16 %v2840
        %v2873 = vunpack.c.l.b16 %v2841
        %v2874 = vunpack.c.l.b16 %v2842
        %v2875 = vunpack.c.l.b16 %v2843
        %v2876 = vunpack.c.l.b16 %v2844
        %v2877 = vunpack.c.l.b16 %v2845
        %v2878 = vpack.c.b16 %v2863, %v2862
        %v2879 = vpack.c.b16 %v2865, %v2864
        %v2880 = vpack.c.b16 %v2867, %v2866
        %v2881 = vpack.c.b16 %v2869, %v2868
        %v2882 = vpack.c.b16 %v2871, %v2870
        %v2883 = vpack.c.b16 %v2873, %v2872
        %v2884 = vpack.c.b16 %v2875, %v2874
        %v2885 = vpack.c.b16 %v2877, %v2876
        %2894 = vmatprep.subr.bf16.mxu0 0
        %2895 = vmatpush1.bf16.msra.mxu0 %v2878
        %2896 = vmatprep.subr.bf16.mxu0 0
        %2897 = vmatpush1.bf16.msra.mxu0 %v2879
        %2898 = vmatprep.subr.bf16.mxu0 0
        %2899 = vmatpush1.bf16.msra.mxu0 %v2880
        %2900 = vmatprep.subr.bf16.mxu0 0
        %2901 = vmatpush1.bf16.msra.mxu0 %v2881
        %2902 = vmatprep.subr.bf16.mxu0 0
        %2903 = vmatpush1.bf16.msra.mxu0 %v2882
        %2904 = vmatprep.subr.bf16.mxu0 0
        %2905 = vmatpush1.bf16.msra.mxu0 %v2883
        %2906 = vmatprep.subr.bf16.mxu0 0
        %2907 = vmatpush1.bf16.msra.mxu0 %v2884
        %2908 = vmatprep.subr.bf16.mxu0 0
        %2909 = vmatpush1.bf16.msra.mxu0 %v2885
        %2910 = vmatprep.subr.bf16.mxu0 0
        %2911 = vmatpush1.bf16.msra.mxu0 0
        %2912 = vmatprep.subr.bf16.mxu0 0
        %2913 = vmatpush1.bf16.msra.mxu0 0
        %2914 = vmatprep.subr.bf16.mxu0 0
        %2915 = vmatpush1.bf16.msra.mxu0 0
        %2916 = vmatprep.subr.bf16.mxu0 0
        %2917 = vmatpush1.bf16.msra.mxu0 0
        %2918 = vmatprep.subr.bf16.mxu0 0
        %2919 = vmatpush1.bf16.msra.mxu0 0
        %2920 = vmatprep.subr.bf16.mxu0 0
        %2921 = vmatpush1.bf16.msra.mxu0 0
        %2922 = vmatprep.subr.bf16.mxu0 0
        %2923 = vmatpush1.bf16.msra.mxu0 0
        %2924 = vmatprep.subr.bf16.mxu0 0
        %2925 = vmatpush1.bf16.msra.mxu0 0
        %2926 = vmatprep.mubr.bf16.mxu0 0
        %2927 = vmatmul.mubr.bf16.gmra.mrb[0].mxu0 %v2825
        %v2928 = vpop.f32.mrb[0].mxu0
        %v2929 = vadd.f32 0.0, %v2928
        %v2930 = vpop.f32.mrb[0].mxu0
        %v2931 = vpop.f32.mrb[0].mxu0
        %v2932 = vadd.f32 0.0, %v2931
        %v2933 = vpop.f32.mrb[0].mxu0
        %2934 = vmatprep.mubr.bf16.mxu0 0
        %2935 = vmatmul.mubr.bf16.gmra.mrb[0].mxu0 %v2826
        %v2936 = vpop.f32.mrb[0].mxu0
        %v2937 = vadd.f32 0.0, %v2936
        %v2938 = vpop.f32.mrb[0].mxu0
        %v2939 = vpop.f32.mrb[0].mxu0
        %v2940 = vadd.f32 0.0, %v2939
        %v2941 = vpop.f32.mrb[0].mxu0
        %2942 = vmatprep.mubr.bf16.mxu0 0
        %2943 = vmatmul.mubr.bf16.gmra.mrb[0].mxu0 %v2827
        %v2944 = vpop.f32.mrb[0].mxu0
        %v2945 = vadd.f32 0.0, %v2944
        %v2946 = vpop.f32.mrb[0].mxu0
        %v2947 = vpop.f32.mrb[0].mxu0
        %v2948 = vadd.f32 0.0, %v2947
        %v2949 = vpop.f32.mrb[0].mxu0
        %2950 = vmatprep.mubr.bf16.mxu0 0
        %2951 = vmatmul.mubr.bf16.gmra.mrb[0].mxu0 %v2828
        %v2952 = vpop.f32.mrb[0].mxu0
        %v2953 = vadd.f32 0.0, %v2952
        %v2954 = vpop.f32.mrb[0].mxu0
        %v2955 = vpop.f32.mrb[0].mxu0
        %v2956 = vadd.f32 0.0, %v2955
        %v2957 = vpop.f32.mrb[0].mxu0
        %2958 = vdwg.mxu0
        %v2959 = vadd.f32 %v2809, %v2929
        %v2960 = vadd.f32 %v2810, %v2932
        %v2961 = vadd.f32 %v2811, %v2937
        %v2962 = vadd.f32 %v2812, %v2940
        %v2963 = vadd.f32 %v2813, %v2945
        %v2964 = vadd.f32 %v2814, %v2948
        %v2965 = vadd.f32 %v2815, %v2953
        %v2966 = vadd.f32 %v2816, %v2956
        %v2967 = vlaneseq
        %v2968 = vshrl.u32 %v2967, 7
        %v2969 = vsub.s32 0, %v2968
        %v2970 = vrot.slane %v1633, %v2969
        %v2971 = vadd.f32 %v2959, %v2970
        %v2972 = vadd.f32 %v2960, %v2970
        %v2973 = vadd.f32 %v2961, %v2970
        %v2974 = vadd.f32 %v2962, %v2970
        %v2975 = vadd.f32 %v2963, %v2970
        %v2976 = vadd.f32 %v2964, %v2970
        %v2977 = vadd.f32 %v2965, %v2970
        %v2978 = vadd.f32 %v2966, %v2970
        %v2979 = vmax.f32 %v2971, 0.0
        %v2980 = vmax.f32 %v2972, 0.0
        %v2981 = vmax.f32 %v2973, 0.0
        %v2982 = vmax.f32 %v2974, 0.0
        %v2983 = vmax.f32 %v2975, 0.0
        %v2984 = vmax.f32 %v2976, 0.0
        %v2985 = vmax.f32 %v2977, 0.0
        %v2986 = vmax.f32 %v2978, 0.0
        %2987 = vst [vmem:[#allocation3] sm:$0xff] 0.0
        %2988 = vst [vmem:[#allocation3 + $0x8] sm:$0x3] 0.0
        %s2989 = scalar_lea.vmem [#allocation3], 144
        %2990 = vst [vmem:[%s2989] sm:$0xff] 0.0
        %2991 = vst [vmem:[%s2989 + $0x8] sm:$0x3] 0.0
        %s2992 = scalar_lea.vmem [#allocation3], 16
        %2993 = vst [vmem:[%s2992] sm:$0x1] 0.0
        %2994 = vst [vmem:[%s2992 + $0x10] sm:$0x1] 0.0
        %2995 = vst [vmem:[%s2992 + $0x20] sm:$0x1] 0.0
        %2996 = vst [vmem:[%s2992 + $0x30] sm:$0x1] 0.0
        %2997 = vst [vmem:[%s2992 + $0x40] sm:$0x1] 0.0
        %2998 = vst [vmem:[%s2992 + $0x50] sm:$0x1] 0.0
        %2999 = vst [vmem:[%s2992 + $0x60] sm:$0x1] 0.0
        %3000 = vst [vmem:[%s2992 + $0x70] sm:$0x1] 0.0
        %3001 = vst [vmem:[%s2992 + $0x9] sm:$0x1] 0.0
        %3002 = vst [vmem:[%s2992 + $0x19] sm:$0x1] 0.0
        %3003 = vst [vmem:[%s2992 + $0x29] sm:$0x1] 0.0
        %3004 = vst [vmem:[%s2992 + $0x39] sm:$0x1] 0.0
        %3005 = vst [vmem:[%s2992 + $0x49] sm:$0x1] 0.0
        %3006 = vst [vmem:[%s2992 + $0x59] sm:$0x1] 0.0
        %3007 = vst [vmem:[%s2992 + $0x69] sm:$0x1] 0.0
        %3008 = vst [vmem:[%s2992 + $0x79] sm:$0x1] 0.0
        %v3009 = vmax.f32 %v2979, %v2980
        %v3011 = vcombine.high %v3009, %v3009
        %v3013 = vunpack.c.l.s4 1983009808
        %v3014 = vunpack.c.0.s8 %v3013
        %v3015 = vlaneseq
        %v3016 = vshrl.u32 %v3015, 7
        %v3017 = vsub.s32 %v3014, %v3016
        %v3018 = vrot.slane %v3009, %v3017
        %v3020 = vunpack.c.l.s4 1983009808
        %v3021 = vunpack.c.0.s8 %v3020
        %v3022 = vlaneseq
        %v3023 = vshrl.u32 %v3022, 7
        %v3024 = vsub.s32 %v3021, %v3023
        %v3025 = vrot.slane %v3011, %v3024
        %v3026 = vcombine.high %v3018, %v3018
        %v3027 = vcombine.high %v3025, %v3025
        %v3032 = vsel %vm712, %v3018, -inf
        %v3033 = vrot.slane %v3032, 4
        %v3034 = vmax.f32 %v3032, %v3033
        %v3035 = vrot.slane %v3034, 2
        %v3036 = vmax.f32 %v3034, %v3035
        %v3037 = vrot.slane %v3036, 1
        %v3038 = vmax.f32 %v3036, %v3037
        %v3039 = vsel %vm712, %v3026, -inf
        %v3040 = vrot.slane %v3039, 4
        %v3041 = vmax.f32 %v3039, %v3040
        %v3042 = vrot.slane %v3041, 2
        %v3043 = vmax.f32 %v3041, %v3042
        %v3044 = vrot.slane %v3043, 1
        %v3045 = vmax.f32 %v3043, %v3044
        %v3046 = vsel %vm712, %v3025, -inf
        %v3047 = vrot.slane %v3046, 4
        %v3048 = vmax.f32 %v3046, %v3047
        %v3049 = vrot.slane %v3048, 2
        %v3050 = vmax.f32 %v3048, %v3049
        %v3051 = vrot.slane %v3050, 1
        %v3052 = vmax.f32 %v3050, %v3051
        %v3053 = vsel %vm712, %v3027, -inf
        %v3054 = vrot.slane %v3053, 4
        %v3055 = vmax.f32 %v3053, %v3054
        %v3056 = vrot.slane %v3055, 2
        %v3057 = vmax.f32 %v3055, %v3056
        %v3058 = vrot.slane %v3057, 1
        %v3059 = vmax.f32 %v3057, %v3058
        %v3064 = vcombine.low %v3038, %v3045
        %v3065 = vcombine.low %v3052, %v3059
        %v3067 = vunpack.c.l.s4 1983009808
        %v3068 = vunpack.c.0.s8 %v3067
        %v3069 = vlaneseq
        %v3070 = vshrl.u32 %v3069, 7
        %v3071 = vsub.s32 %v3068, %v3070
        %v3072 = vrot.slane %v3064, %v3071
        %v3074 = vunpack.c.l.s4 1983009808
        %v3075 = vunpack.c.0.s8 %v3074
        %v3076 = vlaneseq
        %v3077 = vshrl.u32 %v3076, 7
        %v3078 = vsub.s32 %v3075, %v3077
        %v3079 = vrot.slane %v3065, %v3078
        %v3080 = vcombine.low %v3072, %v3079
        %3082 = vst [vmem:[%s2992 + $0x1] sm:$0xff] %v3080
        %3083 = vst [vmem:[%s2992 + $0x11] sm:$0xff] %v3080
        %v3084 = vmax.f32 %v2981, %v2982
        %v3086 = vcombine.high %v3084, %v3084
        %v3088 = vunpack.c.l.s4 1983009808
        %v3089 = vunpack.c.0.s8 %v3088
        %v3090 = vlaneseq
        %v3091 = vshrl.u32 %v3090, 7
        %v3092 = vsub.s32 %v3089, %v3091
        %v3093 = vrot.slane %v3084, %v3092
        %v3095 = vunpack.c.l.s4 1983009808
        %v3096 = vunpack.c.0.s8 %v3095
        %v3097 = vlaneseq
        %v3098 = vshrl.u32 %v3097, 7
        %v3099 = vsub.s32 %v3096, %v3098
        %v3100 = vrot.slane %v3086, %v3099
        %v3101 = vcombine.high %v3093, %v3093
        %v3102 = vcombine.high %v3100, %v3100
        %v3107 = vsel %vm712, %v3093, -inf
        %v3108 = vrot.slane %v3107, 4
        %v3109 = vmax.f32 %v3107, %v3108
        %v3110 = vrot.slane %v3109, 2
        %v3111 = vmax.f32 %v3109, %v3110
        %v3112 = vrot.slane %v3111, 1
        %v3113 = vmax.f32 %v3111, %v3112
        %v3114 = vsel %vm712, %v3101, -inf
        %v3115 = vrot.slane %v3114, 4
        %v3116 = vmax.f32 %v3114, %v3115
        %v3117 = vrot.slane %v3116, 2
        %v3118 = vmax.f32 %v3116, %v3117
        %v3119 = vrot.slane %v3118, 1
        %v3120 = vmax.f32 %v3118, %v3119
        %v3121 = vsel %vm712, %v3100, -inf
        %v3122 = vrot.slane %v3121, 4
        %v3123 = vmax.f32 %v3121, %v3122
        %v3124 = vrot.slane %v3123, 2
        %v3125 = vmax.f32 %v3123, %v3124
        %v3126 = vrot.slane %v3125, 1
        %v3127 = vmax.f32 %v3125, %v3126
        %v3128 = vsel %vm712, %v3102, -inf
        %v3129 = vrot.slane %v3128, 4
        %v3130 = vmax.f32 %v3128, %v3129
        %v3131 = vrot.slane %v3130, 2
        %v3132 = vmax.f32 %v3130, %v3131
        %v3133 = vrot.slane %v3132, 1
        %v3134 = vmax.f32 %v3132, %v3133
        %v3139 = vcombine.low %v3113, %v3120
        %v3140 = vcombine.low %v3127, %v3134
        %v3142 = vunpack.c.l.s4 1983009808
        %v3143 = vunpack.c.0.s8 %v3142
        %v3144 = vlaneseq
        %v3145 = vshrl.u32 %v3144, 7
        %v3146 = vsub.s32 %v3143, %v3145
        %v3147 = vrot.slane %v3139, %v3146
        %v3149 = vunpack.c.l.s4 1983009808
        %v3150 = vunpack.c.0.s8 %v3149
        %v3151 = vlaneseq
        %v3152 = vshrl.u32 %v3151, 7
        %v3153 = vsub.s32 %v3150, %v3152
        %v3154 = vrot.slane %v3140, %v3153
        %v3155 = vcombine.low %v3147, %v3154
        %s3157 = scalar_lea.vmem [#allocation3], 48
        %3158 = vst [vmem:[%s3157 + $0x1] sm:$0xff] %v3155
        %3159 = vst [vmem:[%s3157 + $0x11] sm:$0xff] %v3155
        %v3160 = vmax.f32 %v2983, %v2984
        %v3162 = vcombine.high %v3160, %v3160
        %v3164 = vunpack.c.l.s4 1983009808
        %v3165 = vunpack.c.0.s8 %v3164
        %v3166 = vlaneseq
        %v3167 = vshrl.u32 %v3166, 7
        %v3168 = vsub.s32 %v3165, %v3167
        %v3169 = vrot.slane %v3160, %v3168
        %v3171 = vunpack.c.l.s4 1983009808
        %v3172 = vunpack.c.0.s8 %v3171
        %v3173 = vlaneseq
        %v3174 = vshrl.u32 %v3173, 7
        %v3175 = vsub.s32 %v3172, %v3174
        %v3176 = vrot.slane %v3162, %v3175
        %v3177 = vcombine.high %v3169, %v3169
        %v3178 = vcombine.high %v3176, %v3176
        %v3183 = vsel %vm712, %v3169, -inf
        %v3184 = vrot.slane %v3183, 4
        %v3185 = vmax.f32 %v3183, %v3184
        %v3186 = vrot.slane %v3185, 2
        %v3187 = vmax.f32 %v3185, %v3186
        %v3188 = vrot.slane %v3187, 1
        %v3189 = vmax.f32 %v3187, %v3188
        %v3190 = vsel %vm712, %v3177, -inf
        %v3191 = vrot.slane %v3190, 4
        %v3192 = vmax.f32 %v3190, %v3191
        %v3193 = vrot.slane %v3192, 2
        %v3194 = vmax.f32 %v3192, %v3193
        %v3195 = vrot.slane %v3194, 1
        %v3196 = vmax.f32 %v3194, %v3195
        %v3197 = vsel %vm712, %v3176, -inf
        %v3198 = vrot.slane %v3197, 4
        %v3199 = vmax.f32 %v3197, %v3198
        %v3200 = vrot.slane %v3199, 2
        %v3201 = vmax.f32 %v3199, %v3200
        %v3202 = vrot.slane %v3201, 1
        %v3203 = vmax.f32 %v3201, %v3202
        %v3204 = vsel %vm712, %v3178, -inf
        %v3205 = vrot.slane %v3204, 4
        %v3206 = vmax.f32 %v3204, %v3205
        %v3207 = vrot.slane %v3206, 2
        %v3208 = vmax.f32 %v3206, %v3207
        %v3209 = vrot.slane %v3208, 1
        %v3210 = vmax.f32 %v3208, %v3209
        %v3215 = vcombine.low %v3189, %v3196
        %v3216 = vcombine.low %v3203, %v3210
        %v3218 = vunpack.c.l.s4 1983009808
        %v3219 = vunpack.c.0.s8 %v3218
        %v3220 = vlaneseq
        %v3221 = vshrl.u32 %v3220, 7
        %v3222 = vsub.s32 %v3219, %v3221
        %v3223 = vrot.slane %v3215, %v3222
        %v3225 = vunpack.c.l.s4 1983009808
        %v3226 = vunpack.c.0.s8 %v3225
        %v3227 = vlaneseq
        %v3228 = vshrl.u32 %v3227, 7
        %v3229 = vsub.s32 %v3226, %v3228
        %v3230 = vrot.slane %v3216, %v3229
        %v3231 = vcombine.low %v3223, %v3230
        %s3233 = scalar_lea.vmem [#allocation3], 80
        %3234 = vst [vmem:[%s3233 + $0x1] sm:$0xff] %v3231
        %3235 = vst [vmem:[%s3233 + $0x11] sm:$0xff] %v3231
        %v3236 = vmax.f32 %v2985, %v2986
        %v3238 = vcombine.high %v3236, %v3236
        %v3240 = vunpack.c.l.s4 1983009808
        %v3241 = vunpack.c.0.s8 %v3240
        %v3242 = vlaneseq
        %v3243 = vshrl.u32 %v3242, 7
        %v3244 = vsub.s32 %v3241, %v3243
        %v3245 = vrot.slane %v3236, %v3244
        %v3247 = vunpack.c.l.s4 1983009808
        %v3248 = vunpack.c.0.s8 %v3247
        %v3249 = vlaneseq
        %v3250 = vshrl.u32 %v3249, 7
        %v3251 = vsub.s32 %v3248, %v3250
        %v3252 = vrot.slane %v3238, %v3251
        %v3253 = vcombine.high %v3245, %v3245
        %v3254 = vcombine.high %v3252, %v3252
        %v3259 = vsel %vm712, %v3245, -inf
        %v3260 = vrot.slane %v3259, 4
        %v3261 = vmax.f32 %v3259, %v3260
        %v3262 = vrot.slane %v3261, 2
        %v3263 = vmax.f32 %v3261, %v3262
        %v3264 = vrot.slane %v3263, 1
        %v3265 = vmax.f32 %v3263, %v3264
        %v3266 = vsel %vm712, %v3253, -inf
        %v3267 = vrot.slane %v3266, 4
        %v3268 = vmax.f32 %v3266, %v3267
        %v3269 = vrot.slane %v3268, 2
        %v3270 = vmax.f32 %v3268, %v3269
        %v3271 = vrot.slane %v3270, 1
        %v3272 = vmax.f32 %v3270, %v3271
        %v3273 = vsel %vm712, %v3252, -inf
        %v3274 = vrot.slane %v3273, 4
        %v3275 = vmax.f32 %v3273, %v3274
        %v3276 = vrot.slane %v3275, 2
        %v3277 = vmax.f32 %v3275, %v3276
        %v3278 = vrot.slane %v3277, 1
        %v3279 = vmax.f32 %v3277, %v3278
        %v3280 = vsel %vm712, %v3254, -inf
        %v3281 = vrot.slane %v3280, 4
        %v3282 = vmax.f32 %v3280, %v3281
        %v3283 = vrot.slane %v3282, 2
        %v3284 = vmax.f32 %v3282, %v3283
        %v3285 = vrot.slane %v3284, 1
        %v3286 = vmax.f32 %v3284, %v3285
        %v3291 = vcombine.low %v3265, %v3272
        %v3292 = vcombine.low %v3279, %v3286
        %v3294 = vunpack.c.l.s4 1983009808
        %v3295 = vunpack.c.0.s8 %v3294
        %v3296 = vlaneseq
        %v3297 = vshrl.u32 %v3296, 7
        %v3298 = vsub.s32 %v3295, %v3297
        %v3299 = vrot.slane %v3291, %v3298
        %v3301 = vunpack.c.l.s4 1983009808
        %v3302 = vunpack.c.0.s8 %v3301
        %v3303 = vlaneseq
        %v3304 = vshrl.u32 %v3303, 7
        %v3305 = vsub.s32 %v3302, %v3304
        %v3306 = vrot.slane %v3292, %v3305
        %v3307 = vcombine.low %v3299, %v3306
        %s3309 = scalar_lea.vmem [#allocation3], 112
        %3310 = vst [vmem:[%s3309 + $0x1] sm:$0xff] %v3307
        %3311 = vst [vmem:[%s3309 + $0x11] sm:$0xff] %v3307
        %v3312 = vld [vmem:[%s5 + $0x2] sm:$0x1]
        %v3313 = vld [vmem:[#allocation3] sm:$0xff]
        %v3314 = vld [vmem:[#allocation3 + $0x10] sm:$0xff]
        %v3315 = vld [vmem:[#allocation3 + $0x20] sm:$0xff]
        %v3316 = vld [vmem:[#allocation3 + $0x30] sm:$0xff]
        %v3317 = vld [vmem:[#allocation3 + $0x40] sm:$0xff]
        %v3318 = vld [vmem:[#allocation3 + $0x50] sm:$0xff]
        %v3319 = vld [vmem:[#allocation3 + $0x60] sm:$0xff]
        %v3320 = vld [vmem:[#allocation3 + $0x70] sm:$0xff]
        %v3321 = vpack.c.bf16 %v3314, %v3313
        %v3322 = vpack.c.bf16 %v3316, %v3315
        %v3323 = vpack.c.bf16 %v3318, %v3317
        %v3324 = vpack.c.bf16 %v3320, %v3319
        %v3325 = vld [vmem:[%s3] sm:$0xf]
        %v3326 = vld [vmem:[%s3 + $0x4] sm:$0xf]
        %v3327 = vld [vmem:[%s3 + $0x8] sm:$0xf]
        %v3328 = vld [vmem:[%s3 + $0xc] sm:$0xf]
        %v3329 = vld [vmem:[%s3 + $0x10] sm:$0xf]
        %v3330 = vld [vmem:[%s3 + $0x14] sm:$0xf]
        %v3331 = vld [vmem:[%s3 + $0x18] sm:$0xf]
        %v3332 = vld [vmem:[%s3 + $0x1c] sm:$0xf]
        %v3333 = vld [vmem:[%s3 + $0x20] sm:$0xf]
        %v3334 = vld [vmem:[%s3 + $0x24] sm:$0xf]
        %v3335 = vld [vmem:[%s3 + $0x28] sm:$0xf]
        %v3336 = vld [vmem:[%s3 + $0x2c] sm:$0xf]
        %v3337 = vld [vmem:[%s3 + $0x30] sm:$0xf]
        %v3338 = vld [vmem:[%s3 + $0x34] sm:$0xf]
        %v3339 = vld [vmem:[%s3 + $0x38] sm:$0xf]
        %v3340 = vld [vmem:[%s3 + $0x3c] sm:$0xf]
        %v3341 = vld [vmem:[#allocation3 + $0x1] sm:$0xff]
        %v3342 = vld [vmem:[#allocation3 + $0x11] sm:$0xff]
        %v3343 = vld [vmem:[#allocation3 + $0x21] sm:$0xff]
        %v3344 = vld [vmem:[#allocation3 + $0x31] sm:$0xff]
        %v3345 = vld [vmem:[#allocation3 + $0x41] sm:$0xff]
        %v3346 = vld [vmem:[#allocation3 + $0x51] sm:$0xff]
        %v3347 = vld [vmem:[#allocation3 + $0x61] sm:$0xff]
        %v3348 = vld [vmem:[#allocation3 + $0x71] sm:$0xff]
        %v3349 = vpack.c.bf16 %v3342, %v3341
        %v3350 = vpack.c.bf16 %v3344, %v3343
        %v3351 = vpack.c.bf16 %v3346, %v3345
        %v3352 = vpack.c.bf16 %v3348, %v3347
        %s3353 = scalar_lea.vmem %s3, 64
        %v3354 = vld [vmem:[%s3353] sm:$0xf]
        %v3355 = vld [vmem:[%s3353 + $0x4] sm:$0xf]
        %v3356 = vld [vmem:[%s3353 + $0x8] sm:$0xf]
        %v3357 = vld [vmem:[%s3353 + $0xc] sm:$0xf]
        %v3358 = vld [vmem:[%s3353 + $0x10] sm:$0xf]
        %v3359 = vld [vmem:[%s3353 + $0x14] sm:$0xf]
        %v3360 = vld [vmem:[%s3353 + $0x18] sm:$0xf]
        %v3361 = vld [vmem:[%s3353 + $0x1c] sm:$0xf]
        %v3362 = vld [vmem:[%s3353 + $0x20] sm:$0xf]
        %v3363 = vld [vmem:[%s3353 + $0x24] sm:$0xf]
        %v3364 = vld [vmem:[%s3353 + $0x28] sm:$0xf]
        %v3365 = vld [vmem:[%s3353 + $0x2c] sm:$0xf]
        %v3366 = vld [vmem:[%s3353 + $0x30] sm:$0xf]
        %v3367 = vld [vmem:[%s3353 + $0x34] sm:$0xf]
        %v3368 = vld [vmem:[%s3353 + $0x38] sm:$0xf]
        %v3369 = vld [vmem:[%s3353 + $0x3c] sm:$0xf]
        %v3386 = vunpack.c.l.b16 %v3354
        %v3387 = vunpack.c.l.b16 %v3355
        %v3388 = vunpack.c.l.b16 %v3356
        %v3389 = vunpack.c.l.b16 %v3357
        %v3390 = vunpack.c.l.b16 %v3358
        %v3391 = vunpack.c.l.b16 %v3359
        %v3392 = vunpack.c.l.b16 %v3360
        %v3393 = vunpack.c.l.b16 %v3361
        %v3394 = vunpack.c.l.b16 %v3362
        %v3395 = vunpack.c.l.b16 %v3363
        %v3396 = vunpack.c.l.b16 %v3364
        %v3397 = vunpack.c.l.b16 %v3365
        %v3398 = vunpack.c.l.b16 %v3366
        %v3399 = vunpack.c.l.b16 %v3367
        %v3400 = vunpack.c.l.b16 %v3368
        %v3401 = vunpack.c.l.b16 %v3369
        %v3402 = vpack.c.b16 %v3387, %v3386
        %v3403 = vpack.c.b16 %v3389, %v3388
        %v3404 = vpack.c.b16 %v3391, %v3390
        %v3405 = vpack.c.b16 %v3393, %v3392
        %v3406 = vpack.c.b16 %v3395, %v3394
        %v3407 = vpack.c.b16 %v3397, %v3396
        %v3408 = vpack.c.b16 %v3399, %v3398
        %v3409 = vpack.c.b16 %v3401, %v3400
        %3418 = vmatprep.subr.bf16.mxu0 0
        %3419 = vmatpush1.bf16.msra.mxu0 %v3402
        %3420 = vmatprep.subr.bf16.mxu0 0
        %3421 = vmatpush1.bf16.msra.mxu0 %v3403
        %3422 = vmatprep.subr.bf16.mxu0 0
        %3423 = vmatpush1.bf16.msra.mxu0 %v3404
        %3424 = vmatprep.subr.bf16.mxu0 0
        %3425 = vmatpush1.bf16.msra.mxu0 %v3405
        %3426 = vmatprep.subr.bf16.mxu0 0
        %3427 = vmatpush1.bf16.msra.mxu0 %v3406
        %3428 = vmatprep.subr.bf16.mxu0 0
        %3429 = vmatpush1.bf16.msra.mxu0 %v3407
        %3430 = vmatprep.subr.bf16.mxu0 0
        %3431 = vmatpush1.bf16.msra.mxu0 %v3408
        %3432 = vmatprep.subr.bf16.mxu0 0
        %3433 = vmatpush1.bf16.msra.mxu0 %v3409
        %3434 = vmatprep.subr.bf16.mxu0 0
        %3435 = vmatpush1.bf16.msra.mxu0 0
        %3436 = vmatprep.subr.bf16.mxu0 0
        %3437 = vmatpush1.bf16.msra.mxu0 0
        %3438 = vmatprep.subr.bf16.mxu0 0
        %3439 = vmatpush1.bf16.msra.mxu0 0
        %3440 = vmatprep.subr.bf16.mxu0 0
        %3441 = vmatpush1.bf16.msra.mxu0 0
        %3442 = vmatprep.subr.bf16.mxu0 0
        %3443 = vmatpush1.bf16.msra.mxu0 0
        %3444 = vmatprep.subr.bf16.mxu0 0
        %3445 = vmatpush1.bf16.msra.mxu0 0
        %3446 = vmatprep.subr.bf16.mxu0 0
        %3447 = vmatpush1.bf16.msra.mxu0 0
        %3448 = vmatprep.subr.bf16.mxu0 0
        %3449 = vmatpush1.bf16.msra.mxu0 0
        %3450 = vmatprep.mubr.bf16.mxu0 0
        %3451 = vmatmul.mubr.bf16.gmra.mrb[0].mxu0 %v3349
        %v3452 = vpop.f32.mrb[0].mxu0
        %v3453 = vadd.f32 0.0, %v3452
        %v3454 = vpop.f32.mrb[0].mxu0
        %v3455 = vpop.f32.mrb[0].mxu0
        %v3456 = vadd.f32 0.0, %v3455
        %v3457 = vpop.f32.mrb[0].mxu0
        %3458 = vmatprep.mubr.bf16.mxu0 0
        %3459 = vmatmul.mubr.bf16.gmra.mrb[0].mxu0 %v3350
        %v3460 = vpop.f32.mrb[0].mxu0
        %v3461 = vadd.f32 0.0, %v3460
        %v3462 = vpop.f32.mrb[0].mxu0
        %v3463 = vpop.f32.mrb[0].mxu0
        %v3464 = vadd.f32 0.0, %v3463
        %v3465 = vpop.f32.mrb[0].mxu0
        %3466 = vmatprep.mubr.bf16.mxu0 0
        %3467 = vmatmul.mubr.bf16.gmra.mrb[0].mxu0 %v3351
        %v3468 = vpop.f32.mrb[0].mxu0
        %v3469 = vadd.f32 0.0, %v3468
        %v3470 = vpop.f32.mrb[0].mxu0
        %v3471 = vpop.f32.mrb[0].mxu0
        %v3472 = vadd.f32 0.0, %v3471
        %v3473 = vpop.f32.mrb[0].mxu0
        %3474 = vmatprep.mubr.bf16.mxu0 0
        %3475 = vmatmul.mubr.bf16.gmra.mrb[0].mxu0 %v3352
        %v3476 = vpop.f32.mrb[0].mxu0
        %v3477 = vadd.f32 0.0, %v3476
        %v3478 = vpop.f32.mrb[0].mxu0
        %v3479 = vpop.f32.mrb[0].mxu0
        %v3480 = vadd.f32 0.0, %v3479
        %v3481 = vpop.f32.mrb[0].mxu0
        %3482 = vdwg.mxu0
        %v3499 = vunpack.c.l.b16 %v3325
        %v3500 = vunpack.c.l.b16 %v3326
        %v3501 = vunpack.c.l.b16 %v3327
        %v3502 = vunpack.c.l.b16 %v3328
        %v3503 = vunpack.c.l.b16 %v3329
        %v3504 = vunpack.c.l.b16 %v3330
        %v3505 = vunpack.c.l.b16 %v3331
        %v3506 = vunpack.c.l.b16 %v3332
        %v3507 = vunpack.c.l.b16 %v3333
        %v3508 = vunpack.c.l.b16 %v3334
        %v3509 = vunpack.c.l.b16 %v3335
        %v3510 = vunpack.c.l.b16 %v3336
        %v3511 = vunpack.c.l.b16 %v3337
        %v3512 = vunpack.c.l.b16 %v3338
        %v3513 = vunpack.c.l.b16 %v3339
        %v3514 = vunpack.c.l.b16 %v3340
        %v3515 = vpack.c.b16 %v3500, %v3499
        %v3516 = vpack.c.b16 %v3502, %v3501
        %v3517 = vpack.c.b16 %v3504, %v3503
        %v3518 = vpack.c.b16 %v3506, %v3505
        %v3519 = vpack.c.b16 %v3508, %v3507
        %v3520 = vpack.c.b16 %v3510, %v3509
        %v3521 = vpack.c.b16 %v3512, %v3511
        %v3522 = vpack.c.b16 %v3514, %v3513
        %3531 = vmatprep.subr.bf16.mxu0 0
        %3532 = vmatpush1.bf16.msra.mxu0 %v3515
        %3533 = vmatprep.subr.bf16.mxu0 0
        %3534 = vmatpush1.bf16.msra.mxu0 %v3516
        %3535 = vmatprep.subr.bf16.mxu0 0
        %3536 = vmatpush1.bf16.msra.mxu0 %v3517
        %3537 = vmatprep.subr.bf16.mxu0 0
        %3538 = vmatpush1.bf16.msra.mxu0 %v3518
        %3539 = vmatprep.subr.bf16.mxu0 0
        %3540 = vmatpush1.bf16.msra.mxu0 %v3519
        %3541 = vmatprep.subr.bf16.mxu0 0
        %3542 = vmatpush1.bf16.msra.mxu0 %v3520
        %3543 = vmatprep.subr.bf16.mxu0 0
        %3544 = vmatpush1.bf16.msra.mxu0 %v3521
        %3545 = vmatprep.subr.bf16.mxu0 0
        %3546 = vmatpush1.bf16.msra.mxu0 %v3522
        %3547 = vmatprep.subr.bf16.mxu0 0
        %3548 = vmatpush1.bf16.msra.mxu0 0
        %3549 = vmatprep.subr.bf16.mxu0 0
        %3550 = vmatpush1.bf16.msra.mxu0 0
        %3551 = vmatprep.subr.bf16.mxu0 0
        %3552 = vmatpush1.bf16.msra.mxu0 0
        %3553 = vmatprep.subr.bf16.mxu0 0
        %3554 = vmatpush1.bf16.msra.mxu0 0
        %3555 = vmatprep.subr.bf16.mxu0 0
        %3556 = vmatpush1.bf16.msra.mxu0 0
        %3557 = vmatprep.subr.bf16.mxu0 0
        %3558 = vmatpush1.bf16.msra.mxu0 0
        %3559 = vmatprep.subr.bf16.mxu0 0
        %3560 = vmatpush1.bf16.msra.mxu0 0
        %3561 = vmatprep.subr.bf16.mxu0 0
        %3562 = vmatpush1.bf16.msra.mxu0 0
        %3563 = vmatprep.mubr.bf16.mxu0 0
        %3564 = vmatmul.mubr.bf16.gmra.mrb[0].mxu0 %v3321
        %v3565 = vpop.f32.mrb[0].mxu0
        %v3566 = vadd.f32 %v3453, %v3565
        %v3567 = vpop.f32.mrb[0].mxu0
        %v3568 = vpop.f32.mrb[0].mxu0
        %v3569 = vadd.f32 %v3456, %v3568
        %v3570 = vpop.f32.mrb[0].mxu0
        %3571 = vmatprep.mubr.bf16.mxu0 0
        %3572 = vmatmul.mubr.bf16.gmra.mrb[0].mxu0 %v3322
        %v3573 = vpop.f32.mrb[0].mxu0
        %v3574 = vadd.f32 %v3461, %v3573
        %v3575 = vpop.f32.mrb[0].mxu0
        %v3576 = vpop.f32.mrb[0].mxu0
        %v3577 = vadd.f32 %v3464, %v3576
        %v3578 = vpop.f32.mrb[0].mxu0
        %3579 = vmatprep.mubr.bf16.mxu0 0
        %3580 = vmatmul.mubr.bf16.gmra.mrb[0].mxu0 %v3323
        %v3581 = vpop.f32.mrb[0].mxu0
        %v3582 = vadd.f32 %v3469, %v3581
        %v3583 = vpop.f32.mrb[0].mxu0
        %v3584 = vpop.f32.mrb[0].mxu0
        %v3585 = vadd.f32 %v3472, %v3584
        %v3586 = vpop.f32.mrb[0].mxu0
        %3587 = vmatprep.mubr.bf16.mxu0 0
        %3588 = vmatmul.mubr.bf16.gmra.mrb[0].mxu0 %v3324
        %v3589 = vpop.f32.mrb[0].mxu0
        %v3590 = vadd.f32 %v3477, %v3589
        %v3591 = vpop.f32.mrb[0].mxu0
        %v3592 = vpop.f32.mrb[0].mxu0
        %v3593 = vadd.f32 %v3480, %v3592
        %v3594 = vpop.f32.mrb[0].mxu0
        %3595 = vdwg.mxu0
        %v3596 = vld [vmem:[#allocation3 + $0x2] sm:$0xff]
        %v3597 = vld [vmem:[#allocation3 + $0x12] sm:$0xff]
        %v3598 = vld [vmem:[#allocation3 + $0x22] sm:$0xff]
        %v3599 = vld [vmem:[#allocation3 + $0x32] sm:$0xff]
        %v3600 = vld [vmem:[#allocation3 + $0x42] sm:$0xff]
        %v3601 = vld [vmem:[#allocation3 + $0x52] sm:$0xff]
        %v3602 = vld [vmem:[#allocation3 + $0x62] sm:$0xff]
        %v3603 = vld [vmem:[#allocation3 + $0x72] sm:$0xff]
        %v3604 = vpack.c.bf16 %v3597, %v3596
        %v3605 = vpack.c.bf16 %v3599, %v3598
        %v3606 = vpack.c.bf16 %v3601, %v3600
        %v3607 = vpack.c.bf16 %v3603, %v3602
        %s3608 = scalar_lea.vmem %s3, 128
        %v3609 = vld [vmem:[%s3608] sm:$0xf]
        %v3610 = vld [vmem:[%s3608 + $0x4] sm:$0xf]
        %v3611 = vld [vmem:[%s3608 + $0x8] sm:$0xf]
        %v3612 = vld [vmem:[%s3608 + $0xc] sm:$0xf]
        %v3613 = vld [vmem:[%s3608 + $0x10] sm:$0xf]
        %v3614 = vld [vmem:[%s3608 + $0x14] sm:$0xf]
        %v3615 = vld [vmem:[%s3608 + $0x18] sm:$0xf]
        %v3616 = vld [vmem:[%s3608 + $0x1c] sm:$0xf]
        %v3617 = vld [vmem:[%s3608 + $0x20] sm:$0xf]
        %v3618 = vld [vmem:[%s3608 + $0x24] sm:$0xf]
        %v3619 = vld [vmem:[%s3608 + $0x28] sm:$0xf]
        %v3620 = vld [vmem:[%s3608 + $0x2c] sm:$0xf]
        %v3621 = vld [vmem:[%s3608 + $0x30] sm:$0xf]
        %v3622 = vld [vmem:[%s3608 + $0x34] sm:$0xf]
        %v3623 = vld [vmem:[%s3608 + $0x38] sm:$0xf]
        %v3624 = vld [vmem:[%s3608 + $0x3c] sm:$0xf]
        %v3641 = vunpack.c.l.b16 %v3609
        %v3642 = vunpack.c.l.b16 %v3610
        %v3643 = vunpack.c.l.b16 %v3611
        %v3644 = vunpack.c.l.b16 %v3612
        %v3645 = vunpack.c.l.b16 %v3613
        %v3646 = vunpack.c.l.b16 %v3614
        %v3647 = vunpack.c.l.b16 %v3615
        %v3648 = vunpack.c.l.b16 %v3616
        %v3649 = vunpack.c.l.b16 %v3617
        %v3650 = vunpack.c.l.b16 %v3618
        %v3651 = vunpack.c.l.b16 %v3619
        %v3652 = vunpack.c.l.b16 %v3620
        %v3653 = vunpack.c.l.b16 %v3621
        %v3654 = vunpack.c.l.b16 %v3622
        %v3655 = vunpack.c.l.b16 %v3623
        %v3656 = vunpack.c.l.b16 %v3624
        %v3657 = vpack.c.b16 %v3642, %v3641
        %v3658 = vpack.c.b16 %v3644, %v3643
        %v3659 = vpack.c.b16 %v3646, %v3645
        %v3660 = vpack.c.b16 %v3648, %v3647
        %v3661 = vpack.c.b16 %v3650, %v3649
        %v3662 = vpack.c.b16 %v3652, %v3651
        %v3663 = vpack.c.b16 %v3654, %v3653
        %v3664 = vpack.c.b16 %v3656, %v3655
        %3673 = vmatprep.subr.bf16.mxu0 0
        %3674 = vmatpush1.bf16.msra.mxu0 %v3657
        %3675 = vmatprep.subr.bf16.mxu0 0
        %3676 = vmatpush1.bf16.msra.mxu0 %v3658
        %3677 = vmatprep.subr.bf16.mxu0 0
        %3678 = vmatpush1.bf16.msra.mxu0 %v3659
        %3679 = vmatprep.subr.bf16.mxu0 0
        %3680 = vmatpush1.bf16.msra.mxu0 %v3660
        %3681 = vmatprep.subr.bf16.mxu0 0
        %3682 = vmatpush1.bf16.msra.mxu0 %v3661
        %3683 = vmatprep.subr.bf16.mxu0 0
        %3684 = vmatpush1.bf16.msra.mxu0 %v3662
        %3685 = vmatprep.subr.bf16.mxu0 0
        %3686 = vmatpush1.bf16.msra.mxu0 %v3663
        %3687 = vmatprep.subr.bf16.mxu0 0
        %3688 = vmatpush1.bf16.msra.mxu0 %v3664
        %3689 = vmatprep.subr.bf16.mxu0 0
        %3690 = vmatpush1.bf16.msra.mxu0 0
        %3691 = vmatprep.subr.bf16.mxu0 0
        %3692 = vmatpush1.bf16.msra.mxu0 0
        %3693 = vmatprep.subr.bf16.mxu0 0
        %3694 = vmatpush1.bf16.msra.mxu0 0
        %3695 = vmatprep.subr.bf16.mxu0 0
        %3696 = vmatpush1.bf16.msra.mxu0 0
        %3697 = vmatprep.subr.bf16.mxu0 0
        %3698 = vmatpush1.bf16.msra.mxu0 0
        %3699 = vmatprep.subr.bf16.mxu0 0
        %3700 = vmatpush1.bf16.msra.mxu0 0
        %3701 = vmatprep.subr.bf16.mxu0 0
        %3702 = vmatpush1.bf16.msra.mxu0 0
        %3703 = vmatprep.subr.bf16.mxu0 0
        %3704 = vmatpush1.bf16.msra.mxu0 0
        %3705 = vmatprep.mubr.bf16.mxu0 0
        %3706 = vmatmul.mubr.bf16.gmra.mrb[0].mxu0 %v3604
        %v3707 = vpop.f32.mrb[0].mxu0
        %v3708 = vadd.f32 0.0, %v3707
        %v3709 = vpop.f32.mrb[0].mxu0
        %v3710 = vpop.f32.mrb[0].mxu0
        %v3711 = vadd.f32 0.0, %v3710
        %v3712 = vpop.f32.mrb[0].mxu0
        %3713 = vmatprep.mubr.bf16.mxu0 0
        %3714 = vmatmul.mubr.bf16.gmra.mrb[0].mxu0 %v3605
        %v3715 = vpop.f32.mrb[0].mxu0
        %v3716 = vadd.f32 0.0, %v3715
        %v3717 = vpop.f32.mrb[0].mxu0
        %v3718 = vpop.f32.mrb[0].mxu0
        %v3719 = vadd.f32 0.0, %v3718
        %v3720 = vpop.f32.mrb[0].mxu0
        %3721 = vmatprep.mubr.bf16.mxu0 0
        %3722 = vmatmul.mubr.bf16.gmra.mrb[0].mxu0 %v3606
        %v3723 = vpop.f32.mrb[0].mxu0
        %v3724 = vadd.f32 0.0, %v3723
        %v3725 = vpop.f32.mrb[0].mxu0
        %v3726 = vpop.f32.mrb[0].mxu0
        %v3727 = vadd.f32 0.0, %v3726
        %v3728 = vpop.f32.mrb[0].mxu0
        %3729 = vmatprep.mubr.bf16.mxu0 0
        %3730 = vmatmul.mubr.bf16.gmra.mrb[0].mxu0 %v3607
        %v3731 = vpop.f32.mrb[0].mxu0
        %v3732 = vadd.f32 0.0, %v3731
        %v3733 = vpop.f32.mrb[0].mxu0
        %v3734 = vpop.f32.mrb[0].mxu0
        %v3735 = vadd.f32 0.0, %v3734
        %v3736 = vpop.f32.mrb[0].mxu0
        %3737 = vdwg.mxu0
        %v3738 = vadd.f32 %v3566, %v3708
        %v3739 = vadd.f32 %v3569, %v3711
        %v3740 = vadd.f32 %v3574, %v3716
        %v3741 = vadd.f32 %v3577, %v3719
        %v3742 = vadd.f32 %v3582, %v3724
        %v3743 = vadd.f32 %v3585, %v3727
        %v3744 = vadd.f32 %v3590, %v3732
        %v3745 = vadd.f32 %v3593, %v3735
        %v3746 = vld [vmem:[%s2992] sm:$0xff]
        %v3747 = vld [vmem:[%s2992 + $0x10] sm:$0xff]
        %v3748 = vld [vmem:[%s2992 + $0x20] sm:$0xff]
        %v3749 = vld [vmem:[%s2992 + $0x30] sm:$0xff]
        %v3750 = vld [vmem:[%s2992 + $0x40] sm:$0xff]
        %v3751 = vld [vmem:[%s2992 + $0x50] sm:$0xff]
        %v3752 = vld [vmem:[%s2992 + $0x60] sm:$0xff]
        %v3753 = vld [vmem:[%s2992 + $0x70] sm:$0xff]
        %v3754 = vpack.c.bf16 %v3747, %v3746
        %v3755 = vpack.c.bf16 %v3749, %v3748
        %v3756 = vpack.c.bf16 %v3751, %v3750
        %v3757 = vpack.c.bf16 %v3753, %v3752
        %s3758 = scalar_lea.vmem %s3, 192
        %v3759 = vld [vmem:[%s3758] sm:$0xf]
        %v3760 = vld [vmem:[%s3758 + $0x4] sm:$0xf]
        %v3761 = vld [vmem:[%s3758 + $0x8] sm:$0xf]
        %v3762 = vld [vmem:[%s3758 + $0xc] sm:$0xf]
        %v3763 = vld [vmem:[%s3758 + $0x10] sm:$0xf]
        %v3764 = vld [vmem:[%s3758 + $0x14] sm:$0xf]
        %v3765 = vld [vmem:[%s3758 + $0x18] sm:$0xf]
        %v3766 = vld [vmem:[%s3758 + $0x1c] sm:$0xf]
        %v3767 = vld [vmem:[%s3758 + $0x20] sm:$0xf]
        %v3768 = vld [vmem:[%s3758 + $0x24] sm:$0xf]
        %v3769 = vld [vmem:[%s3758 + $0x28] sm:$0xf]
        %v3770 = vld [vmem:[%s3758 + $0x2c] sm:$0xf]
        %v3771 = vld [vmem:[%s3758 + $0x30] sm:$0xf]
        %v3772 = vld [vmem:[%s3758 + $0x34] sm:$0xf]
        %v3773 = vld [vmem:[%s3758 + $0x38] sm:$0xf]
        %v3774 = vld [vmem:[%s3758 + $0x3c] sm:$0xf]
        %v3791 = vunpack.c.l.b16 %v3759
        %v3792 = vunpack.c.l.b16 %v3760
        %v3793 = vunpack.c.l.b16 %v3761
        %v3794 = vunpack.c.l.b16 %v3762
        %v3795 = vunpack.c.l.b16 %v3763
        %v3796 = vunpack.c.l.b16 %v3764
        %v3797 = vunpack.c.l.b16 %v3765
        %v3798 = vunpack.c.l.b16 %v3766
        %v3799 = vunpack.c.l.b16 %v3767
        %v3800 = vunpack.c.l.b16 %v3768
        %v3801 = vunpack.c.l.b16 %v3769
        %v3802 = vunpack.c.l.b16 %v3770
        %v3803 = vunpack.c.l.b16 %v3771
        %v3804 = vunpack.c.l.b16 %v3772
        %v3805 = vunpack.c.l.b16 %v3773
        %v3806 = vunpack.c.l.b16 %v3774
        %v3807 = vpack.c.b16 %v3792, %v3791
        %v3808 = vpack.c.b16 %v3794, %v3793
        %v3809 = vpack.c.b16 %v3796, %v3795
        %v3810 = vpack.c.b16 %v3798, %v3797
        %v3811 = vpack.c.b16 %v3800, %v3799
        %v3812 = vpack.c.b16 %v3802, %v3801
        %v3813 = vpack.c.b16 %v3804, %v3803
        %v3814 = vpack.c.b16 %v3806, %v3805
        %3823 = vmatprep.subr.bf16.mxu0 0
        %3824 = vmatpush1.bf16.msra.mxu0 %v3807
        %3825 = vmatprep.subr.bf16.mxu0 0
        %3826 = vmatpush1.bf16.msra.mxu0 %v3808
        %3827 = vmatprep.subr.bf16.mxu0 0
        %3828 = vmatpush1.bf16.msra.mxu0 %v3809
        %3829 = vmatprep.subr.bf16.mxu0 0
        %3830 = vmatpush1.bf16.msra.mxu0 %v3810
        %3831 = vmatprep.subr.bf16.mxu0 0
        %3832 = vmatpush1.bf16.msra.mxu0 %v3811
        %3833 = vmatprep.subr.bf16.mxu0 0
        %3834 = vmatpush1.bf16.msra.mxu0 %v3812
        %3835 = vmatprep.subr.bf16.mxu0 0
        %3836 = vmatpush1.bf16.msra.mxu0 %v3813
        %3837 = vmatprep.subr.bf16.mxu0 0
        %3838 = vmatpush1.bf16.msra.mxu0 %v3814
        %3839 = vmatprep.subr.bf16.mxu0 0
        %3840 = vmatpush1.bf16.msra.mxu0 0
        %3841 = vmatprep.subr.bf16.mxu0 0
        %3842 = vmatpush1.bf16.msra.mxu0 0
        %3843 = vmatprep.subr.bf16.mxu0 0
        %3844 = vmatpush1.bf16.msra.mxu0 0
        %3845 = vmatprep.subr.bf16.mxu0 0
        %3846 = vmatpush1.bf16.msra.mxu0 0
        %3847 = vmatprep.subr.bf16.mxu0 0
        %3848 = vmatpush1.bf16.msra.mxu0 0
        %3849 = vmatprep.subr.bf16.mxu0 0
        %3850 = vmatpush1.bf16.msra.mxu0 0
        %3851 = vmatprep.subr.bf16.mxu0 0
        %3852 = vmatpush1.bf16.msra.mxu0 0
        %3853 = vmatprep.subr.bf16.mxu0 0
        %3854 = vmatpush1.bf16.msra.mxu0 0
        %3855 = vmatprep.mubr.bf16.mxu0 0
        %3856 = vmatmul.mubr.bf16.gmra.mrb[0].mxu0 %v3754
        %v3857 = vpop.f32.mrb[0].mxu0
        %v3858 = vadd.f32 0.0, %v3857
        %v3859 = vpop.f32.mrb[0].mxu0
        %v3860 = vpop.f32.mrb[0].mxu0
        %v3861 = vadd.f32 0.0, %v3860
        %v3862 = vpop.f32.mrb[0].mxu0
        %3863 = vmatprep.mubr.bf16.mxu0 0
        %3864 = vmatmul.mubr.bf16.gmra.mrb[0].mxu0 %v3755
        %v3865 = vpop.f32.mrb[0].mxu0
        %v3866 = vadd.f32 0.0, %v3865
        %v3867 = vpop.f32.mrb[0].mxu0
        %v3868 = vpop.f32.mrb[0].mxu0
        %v3869 = vadd.f32 0.0, %v3868
        %v3870 = vpop.f32.mrb[0].mxu0
        %3871 = vmatprep.mubr.bf16.mxu0 0
        %3872 = vmatmul.mubr.bf16.gmra.mrb[0].mxu0 %v3756
        %v3873 = vpop.f32.mrb[0].mxu0
        %v3874 = vadd.f32 0.0, %v3873
        %v3875 = vpop.f32.mrb[0].mxu0
        %v3876 = vpop.f32.mrb[0].mxu0
        %v3877 = vadd.f32 0.0, %v3876
        %v3878 = vpop.f32.mrb[0].mxu0
        %3879 = vmatprep.mubr.bf16.mxu0 0
        %3880 = vmatmul.mubr.bf16.gmra.mrb[0].mxu0 %v3757
        %v3881 = vpop.f32.mrb[0].mxu0
        %v3882 = vadd.f32 0.0, %v3881
        %v3883 = vpop.f32.mrb[0].mxu0
        %v3884 = vpop.f32.mrb[0].mxu0
        %v3885 = vadd.f32 0.0, %v3884
        %v3886 = vpop.f32.mrb[0].mxu0
        %3887 = vdwg.mxu0
        %v3888 = vadd.f32 %v3738, %v3858
        %v3889 = vadd.f32 %v3739, %v3861
        %v3890 = vadd.f32 %v3740, %v3866
        %v3891 = vadd.f32 %v3741, %v3869
        %v3892 = vadd.f32 %v3742, %v3874
        %v3893 = vadd.f32 %v3743, %v3877
        %v3894 = vadd.f32 %v3744, %v3882
        %v3895 = vadd.f32 %v3745, %v3885
        %v3896 = vld [vmem:[%s2992 + $0x1] sm:$0xff]
        %v3897 = vld [vmem:[%s2992 + $0x11] sm:$0xff]
        %v3898 = vld [vmem:[%s2992 + $0x21] sm:$0xff]
        %v3899 = vld [vmem:[%s2992 + $0x31] sm:$0xff]
        %v3900 = vld [vmem:[%s2992 + $0x41] sm:$0xff]
        %v3901 = vld [vmem:[%s2992 + $0x51] sm:$0xff]
        %v3902 = vld [vmem:[%s2992 + $0x61] sm:$0xff]
        %v3903 = vld [vmem:[%s2992 + $0x71] sm:$0xff]
        %v3904 = vpack.c.bf16 %v3897, %v3896
        %v3905 = vpack.c.bf16 %v3899, %v3898
        %v3906 = vpack.c.bf16 %v3901, %v3900
        %v3907 = vpack.c.bf16 %v3903, %v3902
        %s3908 = scalar_lea.vmem %s3, 256
        %v3909 = vld [vmem:[%s3908] sm:$0xf]
        %v3910 = vld [vmem:[%s3908 + $0x4] sm:$0xf]
        %v3911 = vld [vmem:[%s3908 + $0x8] sm:$0xf]
        %v3912 = vld [vmem:[%s3908 + $0xc] sm:$0xf]
        %v3913 = vld [vmem:[%s3908 + $0x10] sm:$0xf]
        %v3914 = vld [vmem:[%s3908 + $0x14] sm:$0xf]
        %v3915 = vld [vmem:[%s3908 + $0x18] sm:$0xf]
        %v3916 = vld [vmem:[%s3908 + $0x1c] sm:$0xf]
        %v3917 = vld [vmem:[%s3908 + $0x20] sm:$0xf]
        %v3918 = vld [vmem:[%s3908 + $0x24] sm:$0xf]
        %v3919 = vld [vmem:[%s3908 + $0x28] sm:$0xf]
        %v3920 = vld [vmem:[%s3908 + $0x2c] sm:$0xf]
        %v3921 = vld [vmem:[%s3908 + $0x30] sm:$0xf]
        %v3922 = vld [vmem:[%s3908 + $0x34] sm:$0xf]
        %v3923 = vld [vmem:[%s3908 + $0x38] sm:$0xf]
        %v3924 = vld [vmem:[%s3908 + $0x3c] sm:$0xf]
        %v3941 = vunpack.c.l.b16 %v3909
        %v3942 = vunpack.c.l.b16 %v3910
        %v3943 = vunpack.c.l.b16 %v3911
        %v3944 = vunpack.c.l.b16 %v3912
        %v3945 = vunpack.c.l.b16 %v3913
        %v3946 = vunpack.c.l.b16 %v3914
        %v3947 = vunpack.c.l.b16 %v3915
        %v3948 = vunpack.c.l.b16 %v3916
        %v3949 = vunpack.c.l.b16 %v3917
        %v3950 = vunpack.c.l.b16 %v3918
        %v3951 = vunpack.c.l.b16 %v3919
        %v3952 = vunpack.c.l.b16 %v3920
        %v3953 = vunpack.c.l.b16 %v3921
        %v3954 = vunpack.c.l.b16 %v3922
        %v3955 = vunpack.c.l.b16 %v3923
        %v3956 = vunpack.c.l.b16 %v3924
        %v3957 = vpack.c.b16 %v3942, %v3941
        %v3958 = vpack.c.b16 %v3944, %v3943
        %v3959 = vpack.c.b16 %v3946, %v3945
        %v3960 = vpack.c.b16 %v3948, %v3947
        %v3961 = vpack.c.b16 %v3950, %v3949
        %v3962 = vpack.c.b16 %v3952, %v3951
        %v3963 = vpack.c.b16 %v3954, %v3953
        %v3964 = vpack.c.b16 %v3956, %v3955
        %3973 = vmatprep.subr.bf16.mxu0 0
        %3974 = vmatpush1.bf16.msra.mxu0 %v3957
        %3975 = vmatprep.subr.bf16.mxu0 0
        %3976 = vmatpush1.bf16.msra.mxu0 %v3958
        %3977 = vmatprep.subr.bf16.mxu0 0
        %3978 = vmatpush1.bf16.msra.mxu0 %v3959
        %3979 = vmatprep.subr.bf16.mxu0 0
        %3980 = vmatpush1.bf16.msra.mxu0 %v3960
        %3981 = vmatprep.subr.bf16.mxu0 0
        %3982 = vmatpush1.bf16.msra.mxu0 %v3961
        %3983 = vmatprep.subr.bf16.mxu0 0
        %3984 = vmatpush1.bf16.msra.mxu0 %v3962
        %3985 = vmatprep.subr.bf16.mxu0 0
        %3986 = vmatpush1.bf16.msra.mxu0 %v3963
        %3987 = vmatprep.subr.bf16.mxu0 0
        %3988 = vmatpush1.bf16.msra.mxu0 %v3964
        %3989 = vmatprep.subr.bf16.mxu0 0
        %3990 = vmatpush1.bf16.msra.mxu0 0
        %3991 = vmatprep.subr.bf16.mxu0 0
        %3992 = vmatpush1.bf16.msra.mxu0 0
        %3993 = vmatprep.subr.bf16.mxu0 0
        %3994 = vmatpush1.bf16.msra.mxu0 0
        %3995 = vmatprep.subr.bf16.mxu0 0
        %3996 = vmatpush1.bf16.msra.mxu0 0
        %3997 = vmatprep.subr.bf16.mxu0 0
        %3998 = vmatpush1.bf16.msra.mxu0 0
        %3999 = vmatprep.subr.bf16.mxu0 0
        %4000 = vmatpush1.bf16.msra.mxu0 0
        %4001 = vmatprep.subr.bf16.mxu0 0
        %4002 = vmatpush1.bf16.msra.mxu0 0
        %4003 = vmatprep.subr.bf16.mxu0 0
        %4004 = vmatpush1.bf16.msra.mxu0 0
        %4005 = vmatprep.mubr.bf16.mxu0 0
        %4006 = vmatmul.mubr.bf16.gmra.mrb[0].mxu0 %v3904
        %v4007 = vpop.f32.mrb[0].mxu0
        %v4008 = vadd.f32 0.0, %v4007
        %v4009 = vpop.f32.mrb[0].mxu0
        %v4010 = vpop.f32.mrb[0].mxu0
        %v4011 = vadd.f32 0.0, %v4010
        %v4012 = vpop.f32.mrb[0].mxu0
        %4013 = vmatprep.mubr.bf16.mxu0 0
        %4014 = vmatmul.mubr.bf16.gmra.mrb[0].mxu0 %v3905
        %v4015 = vpop.f32.mrb[0].mxu0
        %v4016 = vadd.f32 0.0, %v4015
        %v4017 = vpop.f32.mrb[0].mxu0
        %v4018 = vpop.f32.mrb[0].mxu0
        %v4019 = vadd.f32 0.0, %v4018
        %v4020 = vpop.f32.mrb[0].mxu0
        %4021 = vmatprep.mubr.bf16.mxu0 0
        %4022 = vmatmul.mubr.bf16.gmra.mrb[0].mxu0 %v3906
        %v4023 = vpop.f32.mrb[0].mxu0
        %v4024 = vadd.f32 0.0, %v4023
        %v4025 = vpop.f32.mrb[0].mxu0
        %v4026 = vpop.f32.mrb[0].mxu0
        %v4027 = vadd.f32 0.0, %v4026
        %v4028 = vpop.f32.mrb[0].mxu0
        %4029 = vmatprep.mubr.bf16.mxu0 0
        %4030 = vmatmul.mubr.bf16.gmra.mrb[0].mxu0 %v3907
        %v4031 = vpop.f32.mrb[0].mxu0
        %v4032 = vadd.f32 0.0, %v4031
        %v4033 = vpop.f32.mrb[0].mxu0
        %v4034 = vpop.f32.mrb[0].mxu0
        %v4035 = vadd.f32 0.0, %v4034
        %v4036 = vpop.f32.mrb[0].mxu0
        %4037 = vdwg.mxu0
        %v4038 = vadd.f32 %v3888, %v4008
        %v4039 = vadd.f32 %v3889, %v4011
        %v4040 = vadd.f32 %v3890, %v4016
        %v4041 = vadd.f32 %v3891, %v4019
        %v4042 = vadd.f32 %v3892, %v4024
        %v4043 = vadd.f32 %v3893, %v4027
        %v4044 = vadd.f32 %v3894, %v4032
        %v4045 = vadd.f32 %v3895, %v4035
        %v4046 = vld [vmem:[%s2992 + $0x2] sm:$0xff]
        %v4047 = vld [vmem:[%s2992 + $0x12] sm:$0xff]
        %v4048 = vld [vmem:[%s2992 + $0x22] sm:$0xff]
        %v4049 = vld [vmem:[%s2992 + $0x32] sm:$0xff]
        %v4050 = vld [vmem:[%s2992 + $0x42] sm:$0xff]
        %v4051 = vld [vmem:[%s2992 + $0x52] sm:$0xff]
        %v4052 = vld [vmem:[%s2992 + $0x62] sm:$0xff]
        %v4053 = vld [vmem:[%s2992 + $0x72] sm:$0xff]
        %v4054 = vpack.c.bf16 %v4047, %v4046
        %v4055 = vpack.c.bf16 %v4049, %v4048
        %v4056 = vpack.c.bf16 %v4051, %v4050
        %v4057 = vpack.c.bf16 %v4053, %v4052
        %s4058 = scalar_lea.vmem %s3, 320
        %v4059 = vld [vmem:[%s4058] sm:$0xf]
        %v4060 = vld [vmem:[%s4058 + $0x4] sm:$0xf]
        %v4061 = vld [vmem:[%s4058 + $0x8] sm:$0xf]
        %v4062 = vld [vmem:[%s4058 + $0xc] sm:$0xf]
        %v4063 = vld [vmem:[%s4058 + $0x10] sm:$0xf]
        %v4064 = vld [vmem:[%s4058 + $0x14] sm:$0xf]
        %v4065 = vld [vmem:[%s4058 + $0x18] sm:$0xf]
        %v4066 = vld [vmem:[%s4058 + $0x1c] sm:$0xf]
        %v4067 = vld [vmem:[%s4058 + $0x20] sm:$0xf]
        %v4068 = vld [vmem:[%s4058 + $0x24] sm:$0xf]
        %v4069 = vld [vmem:[%s4058 + $0x28] sm:$0xf]
        %v4070 = vld [vmem:[%s4058 + $0x2c] sm:$0xf]
        %v4071 = vld [vmem:[%s4058 + $0x30] sm:$0xf]
        %v4072 = vld [vmem:[%s4058 + $0x34] sm:$0xf]
        %v4073 = vld [vmem:[%s4058 + $0x38] sm:$0xf]
        %v4074 = vld [vmem:[%s4058 + $0x3c] sm:$0xf]
        %v4091 = vunpack.c.l.b16 %v4059
        %v4092 = vunpack.c.l.b16 %v4060
        %v4093 = vunpack.c.l.b16 %v4061
        %v4094 = vunpack.c.l.b16 %v4062
        %v4095 = vunpack.c.l.b16 %v4063
        %v4096 = vunpack.c.l.b16 %v4064
        %v4097 = vunpack.c.l.b16 %v4065
        %v4098 = vunpack.c.l.b16 %v4066
        %v4099 = vunpack.c.l.b16 %v4067
        %v4100 = vunpack.c.l.b16 %v4068
        %v4101 = vunpack.c.l.b16 %v4069
        %v4102 = vunpack.c.l.b16 %v4070
        %v4103 = vunpack.c.l.b16 %v4071
        %v4104 = vunpack.c.l.b16 %v4072
        %v4105 = vunpack.c.l.b16 %v4073
        %v4106 = vunpack.c.l.b16 %v4074
        %v4107 = vpack.c.b16 %v4092, %v4091
        %v4108 = vpack.c.b16 %v4094, %v4093
        %v4109 = vpack.c.b16 %v4096, %v4095
        %v4110 = vpack.c.b16 %v4098, %v4097
        %v4111 = vpack.c.b16 %v4100, %v4099
        %v4112 = vpack.c.b16 %v4102, %v4101
        %v4113 = vpack.c.b16 %v4104, %v4103
        %v4114 = vpack.c.b16 %v4106, %v4105
        %4123 = vmatprep.subr.bf16.mxu0 0
        %4124 = vmatpush1.bf16.msra.mxu0 %v4107
        %4125 = vmatprep.subr.bf16.mxu0 0
        %4126 = vmatpush1.bf16.msra.mxu0 %v4108
        %4127 = vmatprep.subr.bf16.mxu0 0
        %4128 = vmatpush1.bf16.msra.mxu0 %v4109
        %4129 = vmatprep.subr.bf16.mxu0 0
        %4130 = vmatpush1.bf16.msra.mxu0 %v4110
        %4131 = vmatprep.subr.bf16.mxu0 0
        %4132 = vmatpush1.bf16.msra.mxu0 %v4111
        %4133 = vmatprep.subr.bf16.mxu0 0
        %4134 = vmatpush1.bf16.msra.mxu0 %v4112
        %4135 = vmatprep.subr.bf16.mxu0 0
        %4136 = vmatpush1.bf16.msra.mxu0 %v4113
        %4137 = vmatprep.subr.bf16.mxu0 0
        %4138 = vmatpush1.bf16.msra.mxu0 %v4114
        %4139 = vmatprep.subr.bf16.mxu0 0
        %4140 = vmatpush1.bf16.msra.mxu0 0
        %4141 = vmatprep.subr.bf16.mxu0 0
        %4142 = vmatpush1.bf16.msra.mxu0 0
        %4143 = vmatprep.subr.bf16.mxu0 0
        %4144 = vmatpush1.bf16.msra.mxu0 0
        %4145 = vmatprep.subr.bf16.mxu0 0
        %4146 = vmatpush1.bf16.msra.mxu0 0
        %4147 = vmatprep.subr.bf16.mxu0 0
        %4148 = vmatpush1.bf16.msra.mxu0 0
        %4149 = vmatprep.subr.bf16.mxu0 0
        %4150 = vmatpush1.bf16.msra.mxu0 0
        %4151 = vmatprep.subr.bf16.mxu0 0
        %4152 = vmatpush1.bf16.msra.mxu0 0
        %4153 = vmatprep.subr.bf16.mxu0 0
        %4154 = vmatpush1.bf16.msra.mxu0 0
        %4155 = vmatprep.mubr.bf16.mxu0 0
        %4156 = vmatmul.mubr.bf16.gmra.mrb[0].mxu0 %v4054
        %v4157 = vpop.f32.mrb[0].mxu0
        %v4158 = vadd.f32 0.0, %v4157
        %v4159 = vpop.f32.mrb[0].mxu0
        %v4160 = vpop.f32.mrb[0].mxu0
        %v4161 = vadd.f32 0.0, %v4160
        %v4162 = vpop.f32.mrb[0].mxu0
        %4163 = vmatprep.mubr.bf16.mxu0 0
        %4164 = vmatmul.mubr.bf16.gmra.mrb[0].mxu0 %v4055
        %v4165 = vpop.f32.mrb[0].mxu0
        %v4166 = vadd.f32 0.0, %v4165
        %v4167 = vpop.f32.mrb[0].mxu0
        %v4168 = vpop.f32.mrb[0].mxu0
        %v4169 = vadd.f32 0.0, %v4168
        %v4170 = vpop.f32.mrb[0].mxu0
        %4171 = vmatprep.mubr.bf16.mxu0 0
        %4172 = vmatmul.mubr.bf16.gmra.mrb[0].mxu0 %v4056
        %v4173 = vpop.f32.mrb[0].mxu0
        %v4174 = vadd.f32 0.0, %v4173
        %v4175 = vpop.f32.mrb[0].mxu0
        %v4176 = vpop.f32.mrb[0].mxu0
        %v4177 = vadd.f32 0.0, %v4176
        %v4178 = vpop.f32.mrb[0].mxu0
        %4179 = vmatprep.mubr.bf16.mxu0 0
        %4180 = vmatmul.mubr.bf16.gmra.mrb[0].mxu0 %v4057
        %v4181 = vpop.f32.mrb[0].mxu0
        %v4182 = vadd.f32 0.0, %v4181
        %v4183 = vpop.f32.mrb[0].mxu0
        %v4184 = vpop.f32.mrb[0].mxu0
        %v4185 = vadd.f32 0.0, %v4184
        %v4186 = vpop.f32.mrb[0].mxu0
        %4187 = vdwg.mxu0
        %v4188 = vadd.f32 %v4038, %v4158
        %v4189 = vadd.f32 %v4039, %v4161
        %v4190 = vadd.f32 %v4040, %v4166
        %v4191 = vadd.f32 %v4041, %v4169
        %v4192 = vadd.f32 %v4042, %v4174
        %v4193 = vadd.f32 %v4043, %v4177
        %v4194 = vadd.f32 %v4044, %v4182
        %v4195 = vadd.f32 %v4045, %v4185
        %s4196 = scalar_lea.vmem [#allocation3], 32
        %v4197 = vld [vmem:[%s4196] sm:$0xff]
        %v4198 = vld [vmem:[%s4196 + $0x10] sm:$0xff]
        %v4199 = vld [vmem:[%s4196 + $0x20] sm:$0xff]
        %v4200 = vld [vmem:[%s4196 + $0x30] sm:$0xff]
        %v4201 = vld [vmem:[%s4196 + $0x40] sm:$0xff]
        %v4202 = vld [vmem:[%s4196 + $0x50] sm:$0xff]
        %v4203 = vld [vmem:[%s4196 + $0x60] sm:$0xff]
        %v4204 = vld [vmem:[%s4196 + $0x70] sm:$0xff]
        %v4205 = vpack.c.bf16 %v4198, %v4197
        %v4206 = vpack.c.bf16 %v4200, %v4199
        %v4207 = vpack.c.bf16 %v4202, %v4201
        %v4208 = vpack.c.bf16 %v4204, %v4203
        %s4209 = scalar_lea.vmem %s3, 384
        %v4210 = vld [vmem:[%s4209] sm:$0xf]
        %v4211 = vld [vmem:[%s4209 + $0x4] sm:$0xf]
        %v4212 = vld [vmem:[%s4209 + $0x8] sm:$0xf]
        %v4213 = vld [vmem:[%s4209 + $0xc] sm:$0xf]
        %v4214 = vld [vmem:[%s4209 + $0x10] sm:$0xf]
        %v4215 = vld [vmem:[%s4209 + $0x14] sm:$0xf]
        %v4216 = vld [vmem:[%s4209 + $0x18] sm:$0xf]
        %v4217 = vld [vmem:[%s4209 + $0x1c] sm:$0xf]
        %v4218 = vld [vmem:[%s4209 + $0x20] sm:$0xf]
        %v4219 = vld [vmem:[%s4209 + $0x24] sm:$0xf]
        %v4220 = vld [vmem:[%s4209 + $0x28] sm:$0xf]
        %v4221 = vld [vmem:[%s4209 + $0x2c] sm:$0xf]
        %v4222 = vld [vmem:[%s4209 + $0x30] sm:$0xf]
        %v4223 = vld [vmem:[%s4209 + $0x34] sm:$0xf]
        %v4224 = vld [vmem:[%s4209 + $0x38] sm:$0xf]
        %v4225 = vld [vmem:[%s4209 + $0x3c] sm:$0xf]
        %v4242 = vunpack.c.l.b16 %v4210
        %v4243 = vunpack.c.l.b16 %v4211
        %v4244 = vunpack.c.l.b16 %v4212
        %v4245 = vunpack.c.l.b16 %v4213
        %v4246 = vunpack.c.l.b16 %v4214
        %v4247 = vunpack.c.l.b16 %v4215
        %v4248 = vunpack.c.l.b16 %v4216
        %v4249 = vunpack.c.l.b16 %v4217
        %v4250 = vunpack.c.l.b16 %v4218
        %v4251 = vunpack.c.l.b16 %v4219
        %v4252 = vunpack.c.l.b16 %v4220
        %v4253 = vunpack.c.l.b16 %v4221
        %v4254 = vunpack.c.l.b16 %v4222
        %v4255 = vunpack.c.l.b16 %v4223
        %v4256 = vunpack.c.l.b16 %v4224
        %v4257 = vunpack.c.l.b16 %v4225
        %v4258 = vpack.c.b16 %v4243, %v4242
        %v4259 = vpack.c.b16 %v4245, %v4244
        %v4260 = vpack.c.b16 %v4247, %v4246
        %v4261 = vpack.c.b16 %v4249, %v4248
        %v4262 = vpack.c.b16 %v4251, %v4250
        %v4263 = vpack.c.b16 %v4253, %v4252
        %v4264 = vpack.c.b16 %v4255, %v4254
        %v4265 = vpack.c.b16 %v4257, %v4256
        %4274 = vmatprep.subr.bf16.mxu0 0
        %4275 = vmatpush1.bf16.msra.mxu0 %v4258
        %4276 = vmatprep.subr.bf16.mxu0 0
        %4277 = vmatpush1.bf16.msra.mxu0 %v4259
        %4278 = vmatprep.subr.bf16.mxu0 0
        %4279 = vmatpush1.bf16.msra.mxu0 %v4260
        %4280 = vmatprep.subr.bf16.mxu0 0
        %4281 = vmatpush1.bf16.msra.mxu0 %v4261
        %4282 = vmatprep.subr.bf16.mxu0 0
        %4283 = vmatpush1.bf16.msra.mxu0 %v4262
        %4284 = vmatprep.subr.bf16.mxu0 0
        %4285 = vmatpush1.bf16.msra.mxu0 %v4263
        %4286 = vmatprep.subr.bf16.mxu0 0
        %4287 = vmatpush1.bf16.msra.mxu0 %v4264
        %4288 = vmatprep.subr.bf16.mxu0 0
        %4289 = vmatpush1.bf16.msra.mxu0 %v4265
        %4290 = vmatprep.subr.bf16.mxu0 0
        %4291 = vmatpush1.bf16.msra.mxu0 0
        %4292 = vmatprep.subr.bf16.mxu0 0
        %4293 = vmatpush1.bf16.msra.mxu0 0
        %4294 = vmatprep.subr.bf16.mxu0 0
        %4295 = vmatpush1.bf16.msra.mxu0 0
        %4296 = vmatprep.subr.bf16.mxu0 0
        %4297 = vmatpush1.bf16.msra.mxu0 0
        %4298 = vmatprep.subr.bf16.mxu0 0
        %4299 = vmatpush1.bf16.msra.mxu0 0
        %4300 = vmatprep.subr.bf16.mxu0 0
        %4301 = vmatpush1.bf16.msra.mxu0 0
        %4302 = vmatprep.subr.bf16.mxu0 0
        %4303 = vmatpush1.bf16.msra.mxu0 0
        %4304 = vmatprep.subr.bf16.mxu0 0
        %4305 = vmatpush1.bf16.msra.mxu0 0
        %4306 = vmatprep.mubr.bf16.mxu0 0
        %4307 = vmatmul.mubr.bf16.gmra.mrb[0].mxu0 %v4205
        %v4308 = vpop.f32.mrb[0].mxu0
        %v4309 = vadd.f32 0.0, %v4308
        %v4310 = vpop.f32.mrb[0].mxu0
        %v4311 = vpop.f32.mrb[0].mxu0
        %v4312 = vadd.f32 0.0, %v4311
        %v4313 = vpop.f32.mrb[0].mxu0
        %4314 = vmatprep.mubr.bf16.mxu0 0
        %4315 = vmatmul.mubr.bf16.gmra.mrb[0].mxu0 %v4206
        %v4316 = vpop.f32.mrb[0].mxu0
        %v4317 = vadd.f32 0.0, %v4316
        %v4318 = vpop.f32.mrb[0].mxu0
        %v4319 = vpop.f32.mrb[0].mxu0
        %v4320 = vadd.f32 0.0, %v4319
        %v4321 = vpop.f32.mrb[0].mxu0
        %4322 = vmatprep.mubr.bf16.mxu0 0
        %4323 = vmatmul.mubr.bf16.gmra.mrb[0].mxu0 %v4207
        %v4324 = vpop.f32.mrb[0].mxu0
        %v4325 = vadd.f32 0.0, %v4324
        %v4326 = vpop.f32.mrb[0].mxu0
        %v4327 = vpop.f32.mrb[0].mxu0
        %v4328 = vadd.f32 0.0, %v4327
        %v4329 = vpop.f32.mrb[0].mxu0
        %4330 = vmatprep.mubr.bf16.mxu0 0
        %4331 = vmatmul.mubr.bf16.gmra.mrb[0].mxu0 %v4208
        %v4332 = vpop.f32.mrb[0].mxu0
        %v4333 = vadd.f32 0.0, %v4332
        %v4334 = vpop.f32.mrb[0].mxu0
        %v4335 = vpop.f32.mrb[0].mxu0
        %v4336 = vadd.f32 0.0, %v4335
        %v4337 = vpop.f32.mrb[0].mxu0
        %4338 = vdwg.mxu0
        %v4339 = vadd.f32 %v4188, %v4309
        %v4340 = vadd.f32 %v4189, %v4312
        %v4341 = vadd.f32 %v4190, %v4317
        %v4342 = vadd.f32 %v4191, %v4320
        %v4343 = vadd.f32 %v4192, %v4325
        %v4344 = vadd.f32 %v4193, %v4328
        %v4345 = vadd.f32 %v4194, %v4333
        %v4346 = vadd.f32 %v4195, %v4336
        %v4347 = vld [vmem:[%s4196 + $0x1] sm:$0xff]
        %v4348 = vld [vmem:[%s4196 + $0x11] sm:$0xff]
        %v4349 = vld [vmem:[%s4196 + $0x21] sm:$0xff]
        %v4350 = vld [vmem:[%s4196 + $0x31] sm:$0xff]
        %v4351 = vld [vmem:[%s4196 + $0x41] sm:$0xff]
        %v4352 = vld [vmem:[%s4196 + $0x51] sm:$0xff]
        %v4353 = vld [vmem:[%s4196 + $0x61] sm:$0xff]
        %v4354 = vld [vmem:[%s4196 + $0x71] sm:$0xff]
        %v4355 = vpack.c.bf16 %v4348, %v4347
        %v4356 = vpack.c.bf16 %v4350, %v4349
        %v4357 = vpack.c.bf16 %v4352, %v4351
        %v4358 = vpack.c.bf16 %v4354, %v4353
        %s4359 = scalar_lea.vmem %s3, 448
        %v4360 = vld [vmem:[%s4359] sm:$0xf]
        %v4361 = vld [vmem:[%s4359 + $0x4] sm:$0xf]
        %v4362 = vld [vmem:[%s4359 + $0x8] sm:$0xf]
        %v4363 = vld [vmem:[%s4359 + $0xc] sm:$0xf]
        %v4364 = vld [vmem:[%s4359 + $0x10] sm:$0xf]
        %v4365 = vld [vmem:[%s4359 + $0x14] sm:$0xf]
        %v4366 = vld [vmem:[%s4359 + $0x18] sm:$0xf]
        %v4367 = vld [vmem:[%s4359 + $0x1c] sm:$0xf]
        %v4368 = vld [vmem:[%s4359 + $0x20] sm:$0xf]
        %v4369 = vld [vmem:[%s4359 + $0x24] sm:$0xf]
        %v4370 = vld [vmem:[%s4359 + $0x28] sm:$0xf]
        %v4371 = vld [vmem:[%s4359 + $0x2c] sm:$0xf]
        %v4372 = vld [vmem:[%s4359 + $0x30] sm:$0xf]
        %v4373 = vld [vmem:[%s4359 + $0x34] sm:$0xf]
        %v4374 = vld [vmem:[%s4359 + $0x38] sm:$0xf]
        %v4375 = vld [vmem:[%s4359 + $0x3c] sm:$0xf]
        %v4392 = vunpack.c.l.b16 %v4360
        %v4393 = vunpack.c.l.b16 %v4361
        %v4394 = vunpack.c.l.b16 %v4362
        %v4395 = vunpack.c.l.b16 %v4363
        %v4396 = vunpack.c.l.b16 %v4364
        %v4397 = vunpack.c.l.b16 %v4365
        %v4398 = vunpack.c.l.b16 %v4366
        %v4399 = vunpack.c.l.b16 %v4367
        %v4400 = vunpack.c.l.b16 %v4368
        %v4401 = vunpack.c.l.b16 %v4369
        %v4402 = vunpack.c.l.b16 %v4370
        %v4403 = vunpack.c.l.b16 %v4371
        %v4404 = vunpack.c.l.b16 %v4372
        %v4405 = vunpack.c.l.b16 %v4373
        %v4406 = vunpack.c.l.b16 %v4374
        %v4407 = vunpack.c.l.b16 %v4375
        %v4408 = vpack.c.b16 %v4393, %v4392
        %v4409 = vpack.c.b16 %v4395, %v4394
        %v4410 = vpack.c.b16 %v4397, %v4396
        %v4411 = vpack.c.b16 %v4399, %v4398
        %v4412 = vpack.c.b16 %v4401, %v4400
        %v4413 = vpack.c.b16 %v4403, %v4402
        %v4414 = vpack.c.b16 %v4405, %v4404
        %v4415 = vpack.c.b16 %v4407, %v4406
        %4424 = vmatprep.subr.bf16.mxu0 0
        %4425 = vmatpush1.bf16.msra.mxu0 %v4408
        %4426 = vmatprep.subr.bf16.mxu0 0
        %4427 = vmatpush1.bf16.msra.mxu0 %v4409
        %4428 = vmatprep.subr.bf16.mxu0 0
        %4429 = vmatpush1.bf16.msra.mxu0 %v4410
        %4430 = vmatprep.subr.bf16.mxu0 0
        %4431 = vmatpush1.bf16.msra.mxu0 %v4411
        %4432 = vmatprep.subr.bf16.mxu0 0
        %4433 = vmatpush1.bf16.msra.mxu0 %v4412
        %4434 = vmatprep.subr.bf16.mxu0 0
        %4435 = vmatpush1.bf16.msra.mxu0 %v4413
        %4436 = vmatprep.subr.bf16.mxu0 0
        %4437 = vmatpush1.bf16.msra.mxu0 %v4414
        %4438 = vmatprep.subr.bf16.mxu0 0
        %4439 = vmatpush1.bf16.msra.mxu0 %v4415
        %4440 = vmatprep.subr.bf16.mxu0 0
        %4441 = vmatpush1.bf16.msra.mxu0 0
        %4442 = vmatprep.subr.bf16.mxu0 0
        %4443 = vmatpush1.bf16.msra.mxu0 0
        %4444 = vmatprep.subr.bf16.mxu0 0
        %4445 = vmatpush1.bf16.msra.mxu0 0
        %4446 = vmatprep.subr.bf16.mxu0 0
        %4447 = vmatpush1.bf16.msra.mxu0 0
        %4448 = vmatprep.subr.bf16.mxu0 0
        %4449 = vmatpush1.bf16.msra.mxu0 0
        %4450 = vmatprep.subr.bf16.mxu0 0
        %4451 = vmatpush1.bf16.msra.mxu0 0
        %4452 = vmatprep.subr.bf16.mxu0 0
        %4453 = vmatpush1.bf16.msra.mxu0 0
        %4454 = vmatprep.subr.bf16.mxu0 0
        %4455 = vmatpush1.bf16.msra.mxu0 0
        %4456 = vmatprep.mubr.bf16.mxu0 0
        %4457 = vmatmul.mubr.bf16.gmra.mrb[0].mxu0 %v4355
        %v4458 = vpop.f32.mrb[0].mxu0
        %v4459 = vadd.f32 0.0, %v4458
        %v4460 = vpop.f32.mrb[0].mxu0
        %v4461 = vpop.f32.mrb[0].mxu0
        %v4462 = vadd.f32 0.0, %v4461
        %v4463 = vpop.f32.mrb[0].mxu0
        %4464 = vmatprep.mubr.bf16.mxu0 0
        %4465 = vmatmul.mubr.bf16.gmra.mrb[0].mxu0 %v4356
        %v4466 = vpop.f32.mrb[0].mxu0
        %v4467 = vadd.f32 0.0, %v4466
        %v4468 = vpop.f32.mrb[0].mxu0
        %v4469 = vpop.f32.mrb[0].mxu0
        %v4470 = vadd.f32 0.0, %v4469
        %v4471 = vpop.f32.mrb[0].mxu0
        %4472 = vmatprep.mubr.bf16.mxu0 0
        %4473 = vmatmul.mubr.bf16.gmra.mrb[0].mxu0 %v4357
        %v4474 = vpop.f32.mrb[0].mxu0
        %v4475 = vadd.f32 0.0, %v4474
        %v4476 = vpop.f32.mrb[0].mxu0
        %v4477 = vpop.f32.mrb[0].mxu0
        %v4478 = vadd.f32 0.0, %v4477
        %v4479 = vpop.f32.mrb[0].mxu0
        %4480 = vmatprep.mubr.bf16.mxu0 0
        %4481 = vmatmul.mubr.bf16.gmra.mrb[0].mxu0 %v4358
        %v4482 = vpop.f32.mrb[0].mxu0
        %v4483 = vadd.f32 0.0, %v4482
        %v4484 = vpop.f32.mrb[0].mxu0
        %v4485 = vpop.f32.mrb[0].mxu0
        %v4486 = vadd.f32 0.0, %v4485
        %v4487 = vpop.f32.mrb[0].mxu0
        %4488 = vdwg.mxu0
        %v4489 = vadd.f32 %v4339, %v4459
        %v4490 = vadd.f32 %v4340, %v4462
        %v4491 = vadd.f32 %v4341, %v4467
        %v4492 = vadd.f32 %v4342, %v4470
        %v4493 = vadd.f32 %v4343, %v4475
        %v4494 = vadd.f32 %v4344, %v4478
        %v4495 = vadd.f32 %v4345, %v4483
        %v4496 = vadd.f32 %v4346, %v4486
        %v4497 = vld [vmem:[%s4196 + $0x2] sm:$0xff]
        %v4498 = vld [vmem:[%s4196 + $0x12] sm:$0xff]
        %v4499 = vld [vmem:[%s4196 + $0x22] sm:$0xff]
        %v4500 = vld [vmem:[%s4196 + $0x32] sm:$0xff]
        %v4501 = vld [vmem:[%s4196 + $0x42] sm:$0xff]
        %v4502 = vld [vmem:[%s4196 + $0x52] sm:$0xff]
        %v4503 = vld [vmem:[%s4196 + $0x62] sm:$0xff]
        %v4504 = vld [vmem:[%s4196 + $0x72] sm:$0xff]
        %v4505 = vpack.c.bf16 %v4498, %v4497
        %v4506 = vpack.c.bf16 %v4500, %v4499
        %v4507 = vpack.c.bf16 %v4502, %v4501
        %v4508 = vpack.c.bf16 %v4504, %v4503
        %s4509 = scalar_lea.vmem %s3, 512
        %v4510 = vld [vmem:[%s4509] sm:$0xf]
        %v4511 = vld [vmem:[%s4509 + $0x4] sm:$0xf]
        %v4512 = vld [vmem:[%s4509 + $0x8] sm:$0xf]
        %v4513 = vld [vmem:[%s4509 + $0xc] sm:$0xf]
        %v4514 = vld [vmem:[%s4509 + $0x10] sm:$0xf]
        %v4515 = vld [vmem:[%s4509 + $0x14] sm:$0xf]
        %v4516 = vld [vmem:[%s4509 + $0x18] sm:$0xf]
        %v4517 = vld [vmem:[%s4509 + $0x1c] sm:$0xf]
        %v4518 = vld [vmem:[%s4509 + $0x20] sm:$0xf]
        %v4519 = vld [vmem:[%s4509 + $0x24] sm:$0xf]
        %v4520 = vld [vmem:[%s4509 + $0x28] sm:$0xf]
        %v4521 = vld [vmem:[%s4509 + $0x2c] sm:$0xf]
        %v4522 = vld [vmem:[%s4509 + $0x30] sm:$0xf]
        %v4523 = vld [vmem:[%s4509 + $0x34] sm:$0xf]
        %v4524 = vld [vmem:[%s4509 + $0x38] sm:$0xf]
        %v4525 = vld [vmem:[%s4509 + $0x3c] sm:$0xf]
        %v4542 = vunpack.c.l.b16 %v4510
        %v4543 = vunpack.c.l.b16 %v4511
        %v4544 = vunpack.c.l.b16 %v4512
        %v4545 = vunpack.c.l.b16 %v4513
        %v4546 = vunpack.c.l.b16 %v4514
        %v4547 = vunpack.c.l.b16 %v4515
        %v4548 = vunpack.c.l.b16 %v4516
        %v4549 = vunpack.c.l.b16 %v4517
        %v4550 = vunpack.c.l.b16 %v4518
        %v4551 = vunpack.c.l.b16 %v4519
        %v4552 = vunpack.c.l.b16 %v4520
        %v4553 = vunpack.c.l.b16 %v4521
        %v4554 = vunpack.c.l.b16 %v4522
        %v4555 = vunpack.c.l.b16 %v4523
        %v4556 = vunpack.c.l.b16 %v4524
        %v4557 = vunpack.c.l.b16 %v4525
        %v4558 = vpack.c.b16 %v4543, %v4542
        %v4559 = vpack.c.b16 %v4545, %v4544
        %v4560 = vpack.c.b16 %v4547, %v4546
        %v4561 = vpack.c.b16 %v4549, %v4548
        %v4562 = vpack.c.b16 %v4551, %v4550
        %v4563 = vpack.c.b16 %v4553, %v4552
        %v4564 = vpack.c.b16 %v4555, %v4554
        %v4565 = vpack.c.b16 %v4557, %v4556
        %4574 = vmatprep.subr.bf16.mxu0 0
        %4575 = vmatpush1.bf16.msra.mxu0 %v4558
        %4576 = vmatprep.subr.bf16.mxu0 0
        %4577 = vmatpush1.bf16.msra.mxu0 %v4559
        %4578 = vmatprep.subr.bf16.mxu0 0
        %4579 = vmatpush1.bf16.msra.mxu0 %v4560
        %4580 = vmatprep.subr.bf16.mxu0 0
        %4581 = vmatpush1.bf16.msra.mxu0 %v4561
        %4582 = vmatprep.subr.bf16.mxu0 0
        %4583 = vmatpush1.bf16.msra.mxu0 %v4562
        %4584 = vmatprep.subr.bf16.mxu0 0
        %4585 = vmatpush1.bf16.msra.mxu0 %v4563
        %4586 = vmatprep.subr.bf16.mxu0 0
        %4587 = vmatpush1.bf16.msra.mxu0 %v4564
        %4588 = vmatprep.subr.bf16.mxu0 0
        %4589 = vmatpush1.bf16.msra.mxu0 %v4565
        %4590 = vmatprep.subr.bf16.mxu0 0
        %4591 = vmatpush1.bf16.msra.mxu0 0
        %4592 = vmatprep.subr.bf16.mxu0 0
        %4593 = vmatpush1.bf16.msra.mxu0 0
        %4594 = vmatprep.subr.bf16.mxu0 0
        %4595 = vmatpush1.bf16.msra.mxu0 0
        %4596 = vmatprep.subr.bf16.mxu0 0
        %4597 = vmatpush1.bf16.msra.mxu0 0
        %4598 = vmatprep.subr.bf16.mxu0 0
        %4599 = vmatpush1.bf16.msra.mxu0 0
        %4600 = vmatprep.subr.bf16.mxu0 0
        %4601 = vmatpush1.bf16.msra.mxu0 0
        %4602 = vmatprep.subr.bf16.mxu0 0
        %4603 = vmatpush1.bf16.msra.mxu0 0
        %4604 = vmatprep.subr.bf16.mxu0 0
        %4605 = vmatpush1.bf16.msra.mxu0 0
        %4606 = vmatprep.mubr.bf16.mxu0 0
        %4607 = vmatmul.mubr.bf16.gmra.mrb[0].mxu0 %v4505
        %v4608 = vpop.f32.mrb[0].mxu0
        %v4609 = vadd.f32 0.0, %v4608
        %v4610 = vpop.f32.mrb[0].mxu0
        %v4611 = vpop.f32.mrb[0].mxu0
        %v4612 = vadd.f32 0.0, %v4611
        %v4613 = vpop.f32.mrb[0].mxu0
        %4614 = vmatprep.mubr.bf16.mxu0 0
        %4615 = vmatmul.mubr.bf16.gmra.mrb[0].mxu0 %v4506
        %v4616 = vpop.f32.mrb[0].mxu0
        %v4617 = vadd.f32 0.0, %v4616
        %v4618 = vpop.f32.mrb[0].mxu0
        %v4619 = vpop.f32.mrb[0].mxu0
        %v4620 = vadd.f32 0.0, %v4619
        %v4621 = vpop.f32.mrb[0].mxu0
        %4622 = vmatprep.mubr.bf16.mxu0 0
        %4623 = vmatmul.mubr.bf16.gmra.mrb[0].mxu0 %v4507
        %v4624 = vpop.f32.mrb[0].mxu0
        %v4625 = vadd.f32 0.0, %v4624
        %v4626 = vpop.f32.mrb[0].mxu0
        %v4627 = vpop.f32.mrb[0].mxu0
        %v4628 = vadd.f32 0.0, %v4627
        %v4629 = vpop.f32.mrb[0].mxu0
        %4630 = vmatprep.mubr.bf16.mxu0 0
        %4631 = vmatmul.mubr.bf16.gmra.mrb[0].mxu0 %v4508
        %v4632 = vpop.f32.mrb[0].mxu0
        %v4633 = vadd.f32 0.0, %v4632
        %v4634 = vpop.f32.mrb[0].mxu0
        %v4635 = vpop.f32.mrb[0].mxu0
        %v4636 = vadd.f32 0.0, %v4635
        %v4637 = vpop.f32.mrb[0].mxu0
        %4638 = vdwg.mxu0
        %v4639 = vadd.f32 %v4489, %v4609
        %v4640 = vadd.f32 %v4490, %v4612
        %v4641 = vadd.f32 %v4491, %v4617
        %v4642 = vadd.f32 %v4492, %v4620
        %v4643 = vadd.f32 %v4493, %v4625
        %v4644 = vadd.f32 %v4494, %v4628
        %v4645 = vadd.f32 %v4495, %v4633
        %v4646 = vadd.f32 %v4496, %v4636
        %v4647 = vlaneseq
        %v4648 = vshrl.u32 %v4647, 7
        %v4649 = vsub.s32 0, %v4648
        %v4650 = vrot.slane %v3312, %v4649
        %v4651 = vadd.f32 %v4639, %v4650
        %v4652 = vadd.f32 %v4640, %v4650
        %v4653 = vadd.f32 %v4641, %v4650
        %v4654 = vadd.f32 %v4642, %v4650
        %v4655 = vadd.f32 %v4643, %v4650
        %v4656 = vadd.f32 %v4644, %v4650
        %v4657 = vadd.f32 %v4645, %v4650
        %v4658 = vadd.f32 %v4646, %v4650
        %v4659 = vmax.f32 %v4651, 0.0
        %v4660 = vmax.f32 %v4652, 0.0
        %v4661 = vmax.f32 %v4653, 0.0
        %v4662 = vmax.f32 %v4654, 0.0
        %v4663 = vmax.f32 %v4655, 0.0
        %v4664 = vmax.f32 %v4656, 0.0
        %v4665 = vmax.f32 %v4657, 0.0
        %v4666 = vmax.f32 %v4658, 0.0
        %4667 = vst [vmem:[#allocation4] sm:$0xff] 0.0
        %4668 = vst [vmem:[#allocation4 + $0x8] sm:$0xff] 0.0
        %4669 = vst [vmem:[#allocation4 + $0x10] sm:$0x3] 0.0
        %s4670 = scalar_lea.vmem [#allocation4], 408
        %4671 = vst [vmem:[%s4670] sm:$0xff] 0.0
        %4672 = vst [vmem:[%s4670 + $0x8] sm:$0xff] 0.0
        %4673 = vst [vmem:[%s4670 + $0x10] sm:$0x3] 0.0
        %s4674 = scalar_lea.vmem [#allocation4], 24
        %4675 = vst [vmem:[%s4674] sm:$0x1] 0.0
        %4676 = vst [vmem:[%s4674 + $0x18] sm:$0x1] 0.0
        %4677 = vst [vmem:[%s4674 + $0x30] sm:$0x1] 0.0
        %4678 = vst [vmem:[%s4674 + $0x48] sm:$0x1] 0.0
        %4679 = vst [vmem:[%s4674 + $0x60] sm:$0x1] 0.0
        %4680 = vst [vmem:[%s4674 + $0x78] sm:$0x1] 0.0
        %4681 = vst [vmem:[%s4674 + $0x90] sm:$0x1] 0.0
        %4682 = vst [vmem:[%s4674 + $0xa8] sm:$0x1] 0.0
        %4683 = vst [vmem:[%s4674 + $0xc0] sm:$0x1] 0.0
        %4684 = vst [vmem:[%s4674 + $0xd8] sm:$0x1] 0.0
        %4685 = vst [vmem:[%s4674 + $0xf0] sm:$0x1] 0.0
        %4686 = vst [vmem:[%s4674 + $0x108] sm:$0x1] 0.0
        %4687 = vst [vmem:[%s4674 + $0x120] sm:$0x1] 0.0
        %4688 = vst [vmem:[%s4674 + $0x138] sm:$0x1] 0.0
        %4689 = vst [vmem:[%s4674 + $0x150] sm:$0x1] 0.0
        %4690 = vst [vmem:[%s4674 + $0x168] sm:$0x1] 0.0
        %4691 = vst [vmem:[%s4674 + $0x11] sm:$0x1] 0.0
        %4692 = vst [vmem:[%s4674 + $0x29] sm:$0x1] 0.0
        %4693 = vst [vmem:[%s4674 + $0x41] sm:$0x1] 0.0
        %4694 = vst [vmem:[%s4674 + $0x59] sm:$0x1] 0.0
        %4695 = vst [vmem:[%s4674 + $0x71] sm:$0x1] 0.0
        %4696 = vst [vmem:[%s4674 + $0x89] sm:$0x1] 0.0
        %4697 = vst [vmem:[%s4674 + $0xa1] sm:$0x1] 0.0
        %4698 = vst [vmem:[%s4674 + $0xb9] sm:$0x1] 0.0
        %4699 = vst [vmem:[%s4674 + $0xd1] sm:$0x1] 0.0
        %4700 = vst [vmem:[%s4674 + $0xe9] sm:$0x1] 0.0
        %4701 = vst [vmem:[%s4674 + $0x101] sm:$0x1] 0.0
        %4702 = vst [vmem:[%s4674 + $0x119] sm:$0x1] 0.0
        %4703 = vst [vmem:[%s4674 + $0x131] sm:$0x1] 0.0
        %4704 = vst [vmem:[%s4674 + $0x149] sm:$0x1] 0.0
        %4705 = vst [vmem:[%s4674 + $0x161] sm:$0x1] 0.0
        %4706 = vst [vmem:[%s4674 + $0x179] sm:$0x1] 0.0
        %v4708 = vcombine.high %v4659, %v4659
        %v4710 = vunpack.c.l.s4 1966171168
        %v4711 = vunpack.c.0.s8 %v4710
        %v4712 = vlaneseq
        %v4713 = vshrl.u32 %v4712, 7
        %v4714 = vsub.s32 %v4711, %v4713
        %v4715 = vrot.slane %v4659, %v4714
        %v4717 = vunpack.c.l.s4 1966171168
        %v4718 = vunpack.c.0.s8 %v4717
        %v4719 = vlaneseq
        %v4720 = vshrl.u32 %v4719, 7
        %v4721 = vsub.s32 %v4718, %v4720
        %v4722 = vrot.slane %v4708, %v4721
        %v4723 = vcombine.high %v4715, %v4715
        %v4724 = vcombine.high %v4722, %v4722
        %v4726 = vunpack.c.l.s4 1966171168
        %v4727 = vunpack.c.0.s8 %v4726
        %v4728 = vlaneseq
        %v4729 = vshrl.u32 %v4728, 7
        %v4730 = vsub.s32 %v4727, %v4729
        %v4731 = vrot.slane %v4715, %v4730
        %v4733 = vunpack.c.l.s4 1966171168
        %v4734 = vunpack.c.0.s8 %v4733
        %v4735 = vlaneseq
        %v4736 = vshrl.u32 %v4735, 7
        %v4737 = vsub.s32 %v4734, %v4736
        %v4738 = vrot.slane %v4722, %v4737
        %v4740 = vunpack.c.l.s4 1966171168
        %v4741 = vunpack.c.0.s8 %v4740
        %v4742 = vlaneseq
        %v4743 = vshrl.u32 %v4742, 7
        %v4744 = vsub.s32 %v4741, %v4743
        %v4745 = vrot.slane %v4723, %v4744
        %v4747 = vunpack.c.l.s4 1966171168
        %v4748 = vunpack.c.0.s8 %v4747
        %v4749 = vlaneseq
        %v4750 = vshrl.u32 %v4749, 7
        %v4751 = vsub.s32 %v4748, %v4750
        %v4752 = vrot.slane %v4724, %v4751
        %v4753 = vcombine.high %v4731, %v4731
        %v4754 = vcombine.high %v4738, %v4738
        %v4755 = vcombine.high %v4745, %v4745
        %v4756 = vcombine.high %v4752, %v4752
        %v4757 = vlaneseq
        %v4758 = vshrl.u32 %v4757, 7
        %v4759 = vsub.s32 0, %v4758
        %v4760 = vrot.slane %v4731, %v4759
        %v4761 = vlaneseq
        %v4762 = vshrl.u32 %v4761, 7
        %v4763 = vsub.s32 0, %v4762
        %v4764 = vrot.slane %v4745, %v4763
        %v4765 = vlaneseq
        %v4766 = vshrl.u32 %v4765, 7
        %v4767 = vsub.s32 0, %v4766
        %v4768 = vrot.slane %v4753, %v4767
        %v4769 = vlaneseq
        %v4770 = vshrl.u32 %v4769, 7
        %v4771 = vsub.s32 0, %v4770
        %v4772 = vrot.slane %v4755, %v4771
        %v4773 = vlaneseq
        %v4774 = vshrl.u32 %v4773, 7
        %v4775 = vsub.s32 0, %v4774
        %v4776 = vrot.slane %v4738, %v4775
        %v4777 = vlaneseq
        %v4778 = vshrl.u32 %v4777, 7
        %v4779 = vsub.s32 0, %v4778
        %v4780 = vrot.slane %v4752, %v4779
        %v4781 = vlaneseq
        %v4782 = vshrl.u32 %v4781, 7
        %v4783 = vsub.s32 0, %v4782
        %v4784 = vrot.slane %v4754, %v4783
        %v4785 = vlaneseq
        %v4786 = vshrl.u32 %v4785, 7
        %v4787 = vsub.s32 0, %v4786
        %v4788 = vrot.slane %v4756, %v4787
        %v4789 = vcombine.low %v4760, %v4764
        %v4790 = vcombine.low %v4768, %v4772
        %v4792 = vunpack.c.l.s4 1983009808
        %v4793 = vunpack.c.0.s8 %v4792
        %v4794 = vlaneseq
        %v4795 = vshrl.u32 %v4794, 7
        %v4796 = vsub.s32 %v4793, %v4795
        %v4797 = vrot.slane %v4789, %v4796
        %v4799 = vunpack.c.l.s4 1983009808
        %v4800 = vunpack.c.0.s8 %v4799
        %v4801 = vlaneseq
        %v4802 = vshrl.u32 %v4801, 7
        %v4803 = vsub.s32 %v4800, %v4802
        %v4804 = vrot.slane %v4790, %v4803
        %v4805 = vcombine.low %v4797, %v4804
        %v4806 = vcombine.low %v4776, %v4780
        %v4807 = vcombine.low %v4784, %v4788
        %v4809 = vunpack.c.l.s4 1983009808
        %v4810 = vunpack.c.0.s8 %v4809
        %v4811 = vlaneseq
        %v4812 = vshrl.u32 %v4811, 7
        %v4813 = vsub.s32 %v4810, %v4812
        %v4814 = vrot.slane %v4806, %v4813
        %v4816 = vunpack.c.l.s4 1983009808
        %v4817 = vunpack.c.0.s8 %v4816
        %v4818 = vlaneseq
        %v4819 = vshrl.u32 %v4818, 7
        %v4820 = vsub.s32 %v4817, %v4819
        %v4821 = vrot.slane %v4807, %v4820
        %v4822 = vcombine.low %v4814, %v4821
        %4825 = vst [vmem:[%s4674 + $0x1] sm:$0xff] %v4805
        %4826 = vst [vmem:[%s4674 + $0x9] sm:$0xff] %v4822
        %4827 = vst [vmem:[%s4674 + $0x19] sm:$0xff] %v4805
        %4828 = vst [vmem:[%s4674 + $0x21] sm:$0xff] %v4822
        %v4830 = vcombine.high %v4660, %v4660
        %v4832 = vunpack.c.l.s4 1966171168
        %v4833 = vunpack.c.0.s8 %v4832
        %v4834 = vlaneseq
        %v4835 = vshrl.u32 %v4834, 7
        %v4836 = vsub.s32 %v4833, %v4835
        %v4837 = vrot.slane %v4660, %v4836
        %v4839 = vunpack.c.l.s4 1966171168
        %v4840 = vunpack.c.0.s8 %v4839
        %v4841 = vlaneseq
        %v4842 = vshrl.u32 %v4841, 7
        %v4843 = vsub.s32 %v4840, %v4842
        %v4844 = vrot.slane %v4830, %v4843
        %v4845 = vcombine.high %v4837, %v4837
        %v4846 = vcombine.high %v4844, %v4844
        %v4848 = vunpack.c.l.s4 1966171168
        %v4849 = vunpack.c.0.s8 %v4848
        %v4850 = vlaneseq
        %v4851 = vshrl.u32 %v4850, 7
        %v4852 = vsub.s32 %v4849, %v4851
        %v4853 = vrot.slane %v4837, %v4852
        %v4855 = vunpack.c.l.s4 1966171168
        %v4856 = vunpack.c.0.s8 %v4855
        %v4857 = vlaneseq
        %v4858 = vshrl.u32 %v4857, 7
        %v4859 = vsub.s32 %v4856, %v4858
        %v4860 = vrot.slane %v4844, %v4859
        %v4862 = vunpack.c.l.s4 1966171168
        %v4863 = vunpack.c.0.s8 %v4862
        %v4864 = vlaneseq
        %v4865 = vshrl.u32 %v4864, 7
        %v4866 = vsub.s32 %v4863, %v4865
        %v4867 = vrot.slane %v4845, %v4866
        %v4869 = vunpack.c.l.s4 1966171168
        %v4870 = vunpack.c.0.s8 %v4869
        %v4871 = vlaneseq
        %v4872 = vshrl.u32 %v4871, 7
        %v4873 = vsub.s32 %v4870, %v4872
        %v4874 = vrot.slane %v4846, %v4873
        %v4875 = vcombine.high %v4853, %v4853
        %v4876 = vcombine.high %v4860, %v4860
        %v4877 = vcombine.high %v4867, %v4867
        %v4878 = vcombine.high %v4874, %v4874
        %v4879 = vlaneseq
        %v4880 = vshrl.u32 %v4879, 7
        %v4881 = vsub.s32 0, %v4880
        %v4882 = vrot.slane %v4853, %v4881
        %v4883 = vlaneseq
        %v4884 = vshrl.u32 %v4883, 7
        %v4885 = vsub.s32 0, %v4884
        %v4886 = vrot.slane %v4867, %v4885
        %v4887 = vlaneseq
        %v4888 = vshrl.u32 %v4887, 7
        %v4889 = vsub.s32 0, %v4888
        %v4890 = vrot.slane %v4875, %v4889
        %v4891 = vlaneseq
        %v4892 = vshrl.u32 %v4891, 7
        %v4893 = vsub.s32 0, %v4892
        %v4894 = vrot.slane %v4877, %v4893
        %v4895 = vlaneseq
        %v4896 = vshrl.u32 %v4895, 7
        %v4897 = vsub.s32 0, %v4896
        %v4898 = vrot.slane %v4860, %v4897
        %v4899 = vlaneseq
        %v4900 = vshrl.u32 %v4899, 7
        %v4901 = vsub.s32 0, %v4900
        %v4902 = vrot.slane %v4874, %v4901
        %v4903 = vlaneseq
        %v4904 = vshrl.u32 %v4903, 7
        %v4905 = vsub.s32 0, %v4904
        %v4906 = vrot.slane %v4876, %v4905
        %v4907 = vlaneseq
        %v4908 = vshrl.u32 %v4907, 7
        %v4909 = vsub.s32 0, %v4908
        %v4910 = vrot.slane %v4878, %v4909
        %v4911 = vcombine.low %v4882, %v4886
        %v4912 = vcombine.low %v4890, %v4894
        %v4914 = vunpack.c.l.s4 1983009808
        %v4915 = vunpack.c.0.s8 %v4914
        %v4916 = vlaneseq
        %v4917 = vshrl.u32 %v4916, 7
        %v4918 = vsub.s32 %v4915, %v4917
        %v4919 = vrot.slane %v4911, %v4918
        %v4921 = vunpack.c.l.s4 1983009808
        %v4922 = vunpack.c.0.s8 %v4921
        %v4923 = vlaneseq
        %v4924 = vshrl.u32 %v4923, 7
        %v4925 = vsub.s32 %v4922, %v4924
        %v4926 = vrot.slane %v4912, %v4925
        %v4927 = vcombine.low %v4919, %v4926
        %v4928 = vcombine.low %v4898, %v4902
        %v4929 = vcombine.low %v4906, %v4910
        %v4931 = vunpack.c.l.s4 1983009808
        %v4932 = vunpack.c.0.s8 %v4931
        %v4933 = vlaneseq
        %v4934 = vshrl.u32 %v4933, 7
        %v4935 = vsub.s32 %v4932, %v4934
        %v4936 = vrot.slane %v4928, %v4935
        %v4938 = vunpack.c.l.s4 1983009808
        %v4939 = vunpack.c.0.s8 %v4938
        %v4940 = vlaneseq
        %v4941 = vshrl.u32 %v4940, 7
        %v4942 = vsub.s32 %v4939, %v4941
        %v4943 = vrot.slane %v4929, %v4942
        %v4944 = vcombine.low %v4936, %v4943
        %s4947 = scalar_lea.vmem [#allocation4], 72
        %4948 = vst [vmem:[%s4947 + $0x1] sm:$0xff] %v4927
        %4949 = vst [vmem:[%s4947 + $0x9] sm:$0xff] %v4944
        %4950 = vst [vmem:[%s4947 + $0x19] sm:$0xff] %v4927
        %4951 = vst [vmem:[%s4947 + $0x21] sm:$0xff] %v4944
        %v4953 = vcombine.high %v4661, %v4661
        %v4955 = vunpack.c.l.s4 1966171168
        %v4956 = vunpack.c.0.s8 %v4955
        %v4957 = vlaneseq
        %v4958 = vshrl.u32 %v4957, 7
        %v4959 = vsub.s32 %v4956, %v4958
        %v4960 = vrot.slane %v4661, %v4959
        %v4962 = vunpack.c.l.s4 1966171168
        %v4963 = vunpack.c.0.s8 %v4962
        %v4964 = vlaneseq
        %v4965 = vshrl.u32 %v4964, 7
        %v4966 = vsub.s32 %v4963, %v4965
        %v4967 = vrot.slane %v4953, %v4966
        %v4968 = vcombine.high %v4960, %v4960
        %v4969 = vcombine.high %v4967, %v4967
        %v4971 = vunpack.c.l.s4 1966171168
        %v4972 = vunpack.c.0.s8 %v4971
        %v4973 = vlaneseq
        %v4974 = vshrl.u32 %v4973, 7
        %v4975 = vsub.s32 %v4972, %v4974
        %v4976 = vrot.slane %v4960, %v4975
        %v4978 = vunpack.c.l.s4 1966171168
        %v4979 = vunpack.c.0.s8 %v4978
        %v4980 = vlaneseq
        %v4981 = vshrl.u32 %v4980, 7
        %v4982 = vsub.s32 %v4979, %v4981
        %v4983 = vrot.slane %v4967, %v4982
        %v4985 = vunpack.c.l.s4 1966171168
        %v4986 = vunpack.c.0.s8 %v4985
        %v4987 = vlaneseq
        %v4988 = vshrl.u32 %v4987, 7
        %v4989 = vsub.s32 %v4986, %v4988
        %v4990 = vrot.slane %v4968, %v4989
        %v4992 = vunpack.c.l.s4 1966171168
        %v4993 = vunpack.c.0.s8 %v4992
        %v4994 = vlaneseq
        %v4995 = vshrl.u32 %v4994, 7
        %v4996 = vsub.s32 %v4993, %v4995
        %v4997 = vrot.slane %v4969, %v4996
        %v4998 = vcombine.high %v4976, %v4976
        %v4999 = vcombine.high %v4983, %v4983
        %v5000 = vcombine.high %v4990, %v4990
        %v5001 = vcombine.high %v4997, %v4997
        %v5002 = vlaneseq
        %v5003 = vshrl.u32 %v5002, 7
        %v5004 = vsub.s32 0, %v5003
        %v5005 = vrot.slane %v4976, %v5004
        %v5006 = vlaneseq
        %v5007 = vshrl.u32 %v5006, 7
        %v5008 = vsub.s32 0, %v5007
        %v5009 = vrot.slane %v4990, %v5008
        %v5010 = vlaneseq
        %v5011 = vshrl.u32 %v5010, 7
        %v5012 = vsub.s32 0, %v5011
        %v5013 = vrot.slane %v4998, %v5012
        %v5014 = vlaneseq
        %v5015 = vshrl.u32 %v5014, 7
        %v5016 = vsub.s32 0, %v5015
        %v5017 = vrot.slane %v5000, %v5016
        %v5018 = vlaneseq
        %v5019 = vshrl.u32 %v5018, 7
        %v5020 = vsub.s32 0, %v5019
        %v5021 = vrot.slane %v4983, %v5020
        %v5022 = vlaneseq
        %v5023 = vshrl.u32 %v5022, 7
        %v5024 = vsub.s32 0, %v5023
        %v5025 = vrot.slane %v4997, %v5024
        %v5026 = vlaneseq
        %v5027 = vshrl.u32 %v5026, 7
        %v5028 = vsub.s32 0, %v5027
        %v5029 = vrot.slane %v4999, %v5028
        %v5030 = vlaneseq
        %v5031 = vshrl.u32 %v5030, 7
        %v5032 = vsub.s32 0, %v5031
        %v5033 = vrot.slane %v5001, %v5032
        %v5034 = vcombine.low %v5005, %v5009
        %v5035 = vcombine.low %v5013, %v5017
        %v5037 = vunpack.c.l.s4 1983009808
        %v5038 = vunpack.c.0.s8 %v5037
        %v5039 = vlaneseq
        %v5040 = vshrl.u32 %v5039, 7
        %v5041 = vsub.s32 %v5038, %v5040
        %v5042 = vrot.slane %v5034, %v5041
        %v5044 = vunpack.c.l.s4 1983009808
        %v5045 = vunpack.c.0.s8 %v5044
        %v5046 = vlaneseq
        %v5047 = vshrl.u32 %v5046, 7
        %v5048 = vsub.s32 %v5045, %v5047
        %v5049 = vrot.slane %v5035, %v5048
        %v5050 = vcombine.low %v5042, %v5049
        %v5051 = vcombine.low %v5021, %v5025
        %v5052 = vcombine.low %v5029, %v5033
        %v5054 = vunpack.c.l.s4 1983009808
        %v5055 = vunpack.c.0.s8 %v5054
        %v5056 = vlaneseq
        %v5057 = vshrl.u32 %v5056, 7
        %v5058 = vsub.s32 %v5055, %v5057
        %v5059 = vrot.slane %v5051, %v5058
        %v5061 = vunpack.c.l.s4 1983009808
        %v5062 = vunpack.c.0.s8 %v5061
        %v5063 = vlaneseq
        %v5064 = vshrl.u32 %v5063, 7
        %v5065 = vsub.s32 %v5062, %v5064
        %v5066 = vrot.slane %v5052, %v5065
        %v5067 = vcombine.low %v5059, %v5066
        %s5070 = scalar_lea.vmem [#allocation4], 120
        %5071 = vst [vmem:[%s5070 + $0x1] sm:$0xff] %v5050
        %5072 = vst [vmem:[%s5070 + $0x9] sm:$0xff] %v5067
        %5073 = vst [vmem:[%s5070 + $0x19] sm:$0xff] %v5050
        %5074 = vst [vmem:[%s5070 + $0x21] sm:$0xff] %v5067
        %v5076 = vcombine.high %v4662, %v4662
        %v5078 = vunpack.c.l.s4 1966171168
        %v5079 = vunpack.c.0.s8 %v5078
        %v5080 = vlaneseq
        %v5081 = vshrl.u32 %v5080, 7
        %v5082 = vsub.s32 %v5079, %v5081
        %v5083 = vrot.slane %v4662, %v5082
        %v5085 = vunpack.c.l.s4 1966171168
        %v5086 = vunpack.c.0.s8 %v5085
        %v5087 = vlaneseq
        %v5088 = vshrl.u32 %v5087, 7
        %v5089 = vsub.s32 %v5086, %v5088
        %v5090 = vrot.slane %v5076, %v5089
        %v5091 = vcombine.high %v5083, %v5083
        %v5092 = vcombine.high %v5090, %v5090
        %v5094 = vunpack.c.l.s4 1966171168
        %v5095 = vunpack.c.0.s8 %v5094
        %v5096 = vlaneseq
        %v5097 = vshrl.u32 %v5096, 7
        %v5098 = vsub.s32 %v5095, %v5097
        %v5099 = vrot.slane %v5083, %v5098
        %v5101 = vunpack.c.l.s4 1966171168
        %v5102 = vunpack.c.0.s8 %v5101
        %v5103 = vlaneseq
        %v5104 = vshrl.u32 %v5103, 7
        %v5105 = vsub.s32 %v5102, %v5104
        %v5106 = vrot.slane %v5090, %v5105
        %v5108 = vunpack.c.l.s4 1966171168
        %v5109 = vunpack.c.0.s8 %v5108
        %v5110 = vlaneseq
        %v5111 = vshrl.u32 %v5110, 7
        %v5112 = vsub.s32 %v5109, %v5111
        %v5113 = vrot.slane %v5091, %v5112
        %v5115 = vunpack.c.l.s4 1966171168
        %v5116 = vunpack.c.0.s8 %v5115
        %v5117 = vlaneseq
        %v5118 = vshrl.u32 %v5117, 7
        %v5119 = vsub.s32 %v5116, %v5118
        %v5120 = vrot.slane %v5092, %v5119
        %v5121 = vcombine.high %v5099, %v5099
        %v5122 = vcombine.high %v5106, %v5106
        %v5123 = vcombine.high %v5113, %v5113
        %v5124 = vcombine.high %v5120, %v5120
        %v5125 = vlaneseq
        %v5126 = vshrl.u32 %v5125, 7
        %v5127 = vsub.s32 0, %v5126
        %v5128 = vrot.slane %v5099, %v5127
        %v5129 = vlaneseq
        %v5130 = vshrl.u32 %v5129, 7
        %v5131 = vsub.s32 0, %v5130
        %v5132 = vrot.slane %v5113, %v5131
        %v5133 = vlaneseq
        %v5134 = vshrl.u32 %v5133, 7
        %v5135 = vsub.s32 0, %v5134
        %v5136 = vrot.slane %v5121, %v5135
        %v5137 = vlaneseq
        %v5138 = vshrl.u32 %v5137, 7
        %v5139 = vsub.s32 0, %v5138
        %v5140 = vrot.slane %v5123, %v5139
        %v5141 = vlaneseq
        %v5142 = vshrl.u32 %v5141, 7
        %v5143 = vsub.s32 0, %v5142
        %v5144 = vrot.slane %v5106, %v5143
        %v5145 = vlaneseq
        %v5146 = vshrl.u32 %v5145, 7
        %v5147 = vsub.s32 0, %v5146
        %v5148 = vrot.slane %v5120, %v5147
        %v5149 = vlaneseq
        %v5150 = vshrl.u32 %v5149, 7
        %v5151 = vsub.s32 0, %v5150
        %v5152 = vrot.slane %v5122, %v5151
        %v5153 = vlaneseq
        %v5154 = vshrl.u32 %v5153, 7
        %v5155 = vsub.s32 0, %v5154
        %v5156 = vrot.slane %v5124, %v5155
        %v5157 = vcombine.low %v5128, %v5132
        %v5158 = vcombine.low %v5136, %v5140
        %v5160 = vunpack.c.l.s4 1983009808
        %v5161 = vunpack.c.0.s8 %v5160
        %v5162 = vlaneseq
        %v5163 = vshrl.u32 %v5162, 7
        %v5164 = vsub.s32 %v5161, %v5163
        %v5165 = vrot.slane %v5157, %v5164
        %v5167 = vunpack.c.l.s4 1983009808
        %v5168 = vunpack.c.0.s8 %v5167
        %v5169 = vlaneseq
        %v5170 = vshrl.u32 %v5169, 7
        %v5171 = vsub.s32 %v5168, %v5170
        %v5172 = vrot.slane %v5158, %v5171
        %v5173 = vcombine.low %v5165, %v5172
        %v5174 = vcombine.low %v5144, %v5148
        %v5175 = vcombine.low %v5152, %v5156
        %v5177 = vunpack.c.l.s4 1983009808
        %v5178 = vunpack.c.0.s8 %v5177
        %v5179 = vlaneseq
        %v5180 = vshrl.u32 %v5179, 7
        %v5181 = vsub.s32 %v5178, %v5180
        %v5182 = vrot.slane %v5174, %v5181
        %v5184 = vunpack.c.l.s4 1983009808
        %v5185 = vunpack.c.0.s8 %v5184
        %v5186 = vlaneseq
        %v5187 = vshrl.u32 %v5186, 7
        %v5188 = vsub.s32 %v5185, %v5187
        %v5189 = vrot.slane %v5175, %v5188
        %v5190 = vcombine.low %v5182, %v5189
        %s5193 = scalar_lea.vmem [#allocation4], 168
        %5194 = vst [vmem:[%s5193 + $0x1] sm:$0xff] %v5173
        %5195 = vst [vmem:[%s5193 + $0x9] sm:$0xff] %v5190
        %5196 = vst [vmem:[%s5193 + $0x19] sm:$0xff] %v5173
        %5197 = vst [vmem:[%s5193 + $0x21] sm:$0xff] %v5190
        %v5199 = vcombine.high %v4663, %v4663
        %v5201 = vunpack.c.l.s4 1966171168
        %v5202 = vunpack.c.0.s8 %v5201
        %v5203 = vlaneseq
        %v5204 = vshrl.u32 %v5203, 7
        %v5205 = vsub.s32 %v5202, %v5204
        %v5206 = vrot.slane %v4663, %v5205
        %v5208 = vunpack.c.l.s4 1966171168
        %v5209 = vunpack.c.0.s8 %v5208
        %v5210 = vlaneseq
        %v5211 = vshrl.u32 %v5210, 7
        %v5212 = vsub.s32 %v5209, %v5211
        %v5213 = vrot.slane %v5199, %v5212
        %v5214 = vcombine.high %v5206, %v5206
        %v5215 = vcombine.high %v5213, %v5213
        %v5217 = vunpack.c.l.s4 1966171168
        %v5218 = vunpack.c.0.s8 %v5217
        %v5219 = vlaneseq
        %v5220 = vshrl.u32 %v5219, 7
        %v5221 = vsub.s32 %v5218, %v5220
        %v5222 = vrot.slane %v5206, %v5221
        %v5224 = vunpack.c.l.s4 1966171168
        %v5225 = vunpack.c.0.s8 %v5224
        %v5226 = vlaneseq
        %v5227 = vshrl.u32 %v5226, 7
        %v5228 = vsub.s32 %v5225, %v5227
        %v5229 = vrot.slane %v5213, %v5228
        %v5231 = vunpack.c.l.s4 1966171168
        %v5232 = vunpack.c.0.s8 %v5231
        %v5233 = vlaneseq
        %v5234 = vshrl.u32 %v5233, 7
        %v5235 = vsub.s32 %v5232, %v5234
        %v5236 = vrot.slane %v5214, %v5235
        %v5238 = vunpack.c.l.s4 1966171168
        %v5239 = vunpack.c.0.s8 %v5238
        %v5240 = vlaneseq
        %v5241 = vshrl.u32 %v5240, 7
        %v5242 = vsub.s32 %v5239, %v5241
        %v5243 = vrot.slane %v5215, %v5242
        %v5244 = vcombine.high %v5222, %v5222
        %v5245 = vcombine.high %v5229, %v5229
        %v5246 = vcombine.high %v5236, %v5236
        %v5247 = vcombine.high %v5243, %v5243
        %v5248 = vlaneseq
        %v5249 = vshrl.u32 %v5248, 7
        %v5250 = vsub.s32 0, %v5249
        %v5251 = vrot.slane %v5222, %v5250
        %v5252 = vlaneseq
        %v5253 = vshrl.u32 %v5252, 7
        %v5254 = vsub.s32 0, %v5253
        %v5255 = vrot.slane %v5236, %v5254
        %v5256 = vlaneseq
        %v5257 = vshrl.u32 %v5256, 7
        %v5258 = vsub.s32 0, %v5257
        %v5259 = vrot.slane %v5244, %v5258
        %v5260 = vlaneseq
        %v5261 = vshrl.u32 %v5260, 7
        %v5262 = vsub.s32 0, %v5261
        %v5263 = vrot.slane %v5246, %v5262
        %v5264 = vlaneseq
        %v5265 = vshrl.u32 %v5264, 7
        %v5266 = vsub.s32 0, %v5265
        %v5267 = vrot.slane %v5229, %v5266
        %v5268 = vlaneseq
        %v5269 = vshrl.u32 %v5268, 7
        %v5270 = vsub.s32 0, %v5269
        %v5271 = vrot.slane %v5243, %v5270
        %v5272 = vlaneseq
        %v5273 = vshrl.u32 %v5272, 7
        %v5274 = vsub.s32 0, %v5273
        %v5275 = vrot.slane %v5245, %v5274
        %v5276 = vlaneseq
        %v5277 = vshrl.u32 %v5276, 7
        %v5278 = vsub.s32 0, %v5277
        %v5279 = vrot.slane %v5247, %v5278
        %v5280 = vcombine.low %v5251, %v5255
        %v5281 = vcombine.low %v5259, %v5263
        %v5283 = vunpack.c.l.s4 1983009808
        %v5284 = vunpack.c.0.s8 %v5283
        %v5285 = vlaneseq
        %v5286 = vshrl.u32 %v5285, 7
        %v5287 = vsub.s32 %v5284, %v5286
        %v5288 = vrot.slane %v5280, %v5287
        %v5290 = vunpack.c.l.s4 1983009808
        %v5291 = vunpack.c.0.s8 %v5290
        %v5292 = vlaneseq
        %v5293 = vshrl.u32 %v5292, 7
        %v5294 = vsub.s32 %v5291, %v5293
        %v5295 = vrot.slane %v5281, %v5294
        %v5296 = vcombine.low %v5288, %v5295
        %v5297 = vcombine.low %v5267, %v5271
        %v5298 = vcombine.low %v5275, %v5279
        %v5300 = vunpack.c.l.s4 1983009808
        %v5301 = vunpack.c.0.s8 %v5300
        %v5302 = vlaneseq
        %v5303 = vshrl.u32 %v5302, 7
        %v5304 = vsub.s32 %v5301, %v5303
        %v5305 = vrot.slane %v5297, %v5304
        %v5307 = vunpack.c.l.s4 1983009808
        %v5308 = vunpack.c.0.s8 %v5307
        %v5309 = vlaneseq
        %v5310 = vshrl.u32 %v5309, 7
        %v5311 = vsub.s32 %v5308, %v5310
        %v5312 = vrot.slane %v5298, %v5311
        %v5313 = vcombine.low %v5305, %v5312
        %s5316 = scalar_lea.vmem [#allocation4], 216
        %5317 = vst [vmem:[%s5316 + $0x1] sm:$0xff] %v5296
        %5318 = vst [vmem:[%s5316 + $0x9] sm:$0xff] %v5313
        %5319 = vst [vmem:[%s5316 + $0x19] sm:$0xff] %v5296
        %5320 = vst [vmem:[%s5316 + $0x21] sm:$0xff] %v5313
        %v5322 = vcombine.high %v4664, %v4664
        %v5324 = vunpack.c.l.s4 1966171168
        %v5325 = vunpack.c.0.s8 %v5324
        %v5326 = vlaneseq
        %v5327 = vshrl.u32 %v5326, 7
        %v5328 = vsub.s32 %v5325, %v5327
        %v5329 = vrot.slane %v4664, %v5328
        %v5331 = vunpack.c.l.s4 1966171168
        %v5332 = vunpack.c.0.s8 %v5331
        %v5333 = vlaneseq
        %v5334 = vshrl.u32 %v5333, 7
        %v5335 = vsub.s32 %v5332, %v5334
        %v5336 = vrot.slane %v5322, %v5335
        %v5337 = vcombine.high %v5329, %v5329
        %v5338 = vcombine.high %v5336, %v5336
        %v5340 = vunpack.c.l.s4 1966171168
        %v5341 = vunpack.c.0.s8 %v5340
        %v5342 = vlaneseq
        %v5343 = vshrl.u32 %v5342, 7
        %v5344 = vsub.s32 %v5341, %v5343
        %v5345 = vrot.slane %v5329, %v5344
        %v5347 = vunpack.c.l.s4 1966171168
        %v5348 = vunpack.c.0.s8 %v5347
        %v5349 = vlaneseq
        %v5350 = vshrl.u32 %v5349, 7
        %v5351 = vsub.s32 %v5348, %v5350
        %v5352 = vrot.slane %v5336, %v5351
        %v5354 = vunpack.c.l.s4 1966171168
        %v5355 = vunpack.c.0.s8 %v5354
        %v5356 = vlaneseq
        %v5357 = vshrl.u32 %v5356, 7
        %v5358 = vsub.s32 %v5355, %v5357
        %v5359 = vrot.slane %v5337, %v5358
        %v5361 = vunpack.c.l.s4 1966171168
        %v5362 = vunpack.c.0.s8 %v5361
        %v5363 = vlaneseq
        %v5364 = vshrl.u32 %v5363, 7
        %v5365 = vsub.s32 %v5362, %v5364
        %v5366 = vrot.slane %v5338, %v5365
        %v5367 = vcombine.high %v5345, %v5345
        %v5368 = vcombine.high %v5352, %v5352
        %v5369 = vcombine.high %v5359, %v5359
        %v5370 = vcombine.high %v5366, %v5366
        %v5371 = vlaneseq
        %v5372 = vshrl.u32 %v5371, 7
        %v5373 = vsub.s32 0, %v5372
        %v5374 = vrot.slane %v5345, %v5373
        %v5375 = vlaneseq
        %v5376 = vshrl.u32 %v5375, 7
        %v5377 = vsub.s32 0, %v5376
        %v5378 = vrot.slane %v5359, %v5377
        %v5379 = vlaneseq
        %v5380 = vshrl.u32 %v5379, 7
        %v5381 = vsub.s32 0, %v5380
        %v5382 = vrot.slane %v5367, %v5381
        %v5383 = vlaneseq
        %v5384 = vshrl.u32 %v5383, 7
        %v5385 = vsub.s32 0, %v5384
        %v5386 = vrot.slane %v5369, %v5385
        %v5387 = vlaneseq
        %v5388 = vshrl.u32 %v5387, 7
        %v5389 = vsub.s32 0, %v5388
        %v5390 = vrot.slane %v5352, %v5389
        %v5391 = vlaneseq
        %v5392 = vshrl.u32 %v5391, 7
        %v5393 = vsub.s32 0, %v5392
        %v5394 = vrot.slane %v5366, %v5393
        %v5395 = vlaneseq
        %v5396 = vshrl.u32 %v5395, 7
        %v5397 = vsub.s32 0, %v5396
        %v5398 = vrot.slane %v5368, %v5397
        %v5399 = vlaneseq
        %v5400 = vshrl.u32 %v5399, 7
        %v5401 = vsub.s32 0, %v5400
        %v5402 = vrot.slane %v5370, %v5401
        %v5403 = vcombine.low %v5374, %v5378
        %v5404 = vcombine.low %v5382, %v5386
        %v5406 = vunpack.c.l.s4 1983009808
        %v5407 = vunpack.c.0.s8 %v5406
        %v5408 = vlaneseq
        %v5409 = vshrl.u32 %v5408, 7
        %v5410 = vsub.s32 %v5407, %v5409
        %v5411 = vrot.slane %v5403, %v5410
        %v5413 = vunpack.c.l.s4 1983009808
        %v5414 = vunpack.c.0.s8 %v5413
        %v5415 = vlaneseq
        %v5416 = vshrl.u32 %v5415, 7
        %v5417 = vsub.s32 %v5414, %v5416
        %v5418 = vrot.slane %v5404, %v5417
        %v5419 = vcombine.low %v5411, %v5418
        %v5420 = vcombine.low %v5390, %v5394
        %v5421 = vcombine.low %v5398, %v5402
        %v5423 = vunpack.c.l.s4 1983009808
        %v5424 = vunpack.c.0.s8 %v5423
        %v5425 = vlaneseq
        %v5426 = vshrl.u32 %v5425, 7
        %v5427 = vsub.s32 %v5424, %v5426
        %v5428 = vrot.slane %v5420, %v5427
        %v5430 = vunpack.c.l.s4 1983009808
        %v5431 = vunpack.c.0.s8 %v5430
        %v5432 = vlaneseq
        %v5433 = vshrl.u32 %v5432, 7
        %v5434 = vsub.s32 %v5431, %v5433
        %v5435 = vrot.slane %v5421, %v5434
        %v5436 = vcombine.low %v5428, %v5435
        %s5439 = scalar_lea.vmem [#allocation4], 264
        %5440 = vst [vmem:[%s5439 + $0x1] sm:$0xff] %v5419
        %5441 = vst [vmem:[%s5439 + $0x9] sm:$0xff] %v5436
        %5442 = vst [vmem:[%s5439 + $0x19] sm:$0xff] %v5419
        %5443 = vst [vmem:[%s5439 + $0x21] sm:$0xff] %v5436
        %v5445 = vcombine.high %v4665, %v4665
        %v5447 = vunpack.c.l.s4 1966171168
        %v5448 = vunpack.c.0.s8 %v5447
        %v5449 = vlaneseq
        %v5450 = vshrl.u32 %v5449, 7
        %v5451 = vsub.s32 %v5448, %v5450
        %v5452 = vrot.slane %v4665, %v5451
        %v5454 = vunpack.c.l.s4 1966171168
        %v5455 = vunpack.c.0.s8 %v5454
        %v5456 = vlaneseq
        %v5457 = vshrl.u32 %v5456, 7
        %v5458 = vsub.s32 %v5455, %v5457
        %v5459 = vrot.slane %v5445, %v5458
        %v5460 = vcombine.high %v5452, %v5452
        %v5461 = vcombine.high %v5459, %v5459
        %v5463 = vunpack.c.l.s4 1966171168
        %v5464 = vunpack.c.0.s8 %v5463
        %v5465 = vlaneseq
        %v5466 = vshrl.u32 %v5465, 7
        %v5467 = vsub.s32 %v5464, %v5466
        %v5468 = vrot.slane %v5452, %v5467
        %v5470 = vunpack.c.l.s4 1966171168
        %v5471 = vunpack.c.0.s8 %v5470
        %v5472 = vlaneseq
        %v5473 = vshrl.u32 %v5472, 7
        %v5474 = vsub.s32 %v5471, %v5473
        %v5475 = vrot.slane %v5459, %v5474
        %v5477 = vunpack.c.l.s4 1966171168
        %v5478 = vunpack.c.0.s8 %v5477
        %v5479 = vlaneseq
        %v5480 = vshrl.u32 %v5479, 7
        %v5481 = vsub.s32 %v5478, %v5480
        %v5482 = vrot.slane %v5460, %v5481
        %v5484 = vunpack.c.l.s4 1966171168
        %v5485 = vunpack.c.0.s8 %v5484
        %v5486 = vlaneseq
        %v5487 = vshrl.u32 %v5486, 7
        %v5488 = vsub.s32 %v5485, %v5487
        %v5489 = vrot.slane %v5461, %v5488
        %v5490 = vcombine.high %v5468, %v5468
        %v5491 = vcombine.high %v5475, %v5475
        %v5492 = vcombine.high %v5482, %v5482
        %v5493 = vcombine.high %v5489, %v5489
        %v5494 = vlaneseq
        %v5495 = vshrl.u32 %v5494, 7
        %v5496 = vsub.s32 0, %v5495
        %v5497 = vrot.slane %v5468, %v5496
        %v5498 = vlaneseq
        %v5499 = vshrl.u32 %v5498, 7
        %v5500 = vsub.s32 0, %v5499
        %v5501 = vrot.slane %v5482, %v5500
        %v5502 = vlaneseq
        %v5503 = vshrl.u32 %v5502, 7
        %v5504 = vsub.s32 0, %v5503
        %v5505 = vrot.slane %v5490, %v5504
        %v5506 = vlaneseq
        %v5507 = vshrl.u32 %v5506, 7
        %v5508 = vsub.s32 0, %v5507
        %v5509 = vrot.slane %v5492, %v5508
        %v5510 = vlaneseq
        %v5511 = vshrl.u32 %v5510, 7
        %v5512 = vsub.s32 0, %v5511
        %v5513 = vrot.slane %v5475, %v5512
        %v5514 = vlaneseq
        %v5515 = vshrl.u32 %v5514, 7
        %v5516 = vsub.s32 0, %v5515
        %v5517 = vrot.slane %v5489, %v5516
        %v5518 = vlaneseq
        %v5519 = vshrl.u32 %v5518, 7
        %v5520 = vsub.s32 0, %v5519
        %v5521 = vrot.slane %v5491, %v5520
        %v5522 = vlaneseq
        %v5523 = vshrl.u32 %v5522, 7
        %v5524 = vsub.s32 0, %v5523
        %v5525 = vrot.slane %v5493, %v5524
        %v5526 = vcombine.low %v5497, %v5501
        %v5527 = vcombine.low %v5505, %v5509
        %v5529 = vunpack.c.l.s4 1983009808
        %v5530 = vunpack.c.0.s8 %v5529
        %v5531 = vlaneseq
        %v5532 = vshrl.u32 %v5531, 7
        %v5533 = vsub.s32 %v5530, %v5532
        %v5534 = vrot.slane %v5526, %v5533
        %v5536 = vunpack.c.l.s4 1983009808
        %v5537 = vunpack.c.0.s8 %v5536
        %v5538 = vlaneseq
        %v5539 = vshrl.u32 %v5538, 7
        %v5540 = vsub.s32 %v5537, %v5539
        %v5541 = vrot.slane %v5527, %v5540
        %v5542 = vcombine.low %v5534, %v5541
        %v5543 = vcombine.low %v5513, %v5517
        %v5544 = vcombine.low %v5521, %v5525
        %v5546 = vunpack.c.l.s4 1983009808
        %v5547 = vunpack.c.0.s8 %v5546
        %v5548 = vlaneseq
        %v5549 = vshrl.u32 %v5548, 7
        %v5550 = vsub.s32 %v5547, %v5549
        %v5551 = vrot.slane %v5543, %v5550
        %v5553 = vunpack.c.l.s4 1983009808
        %v5554 = vunpack.c.0.s8 %v5553
        %v5555 = vlaneseq
        %v5556 = vshrl.u32 %v5555, 7
        %v5557 = vsub.s32 %v5554, %v5556
        %v5558 = vrot.slane %v5544, %v5557
        %v5559 = vcombine.low %v5551, %v5558
        %s5562 = scalar_lea.vmem [#allocation4], 312
        %5563 = vst [vmem:[%s5562 + $0x1] sm:$0xff] %v5542
        %5564 = vst [vmem:[%s5562 + $0x9] sm:$0xff] %v5559
        %5565 = vst [vmem:[%s5562 + $0x19] sm:$0xff] %v5542
        %5566 = vst [vmem:[%s5562 + $0x21] sm:$0xff] %v5559
        %v5568 = vcombine.high %v4666, %v4666
        %v5570 = vunpack.c.l.s4 1966171168
        %v5571 = vunpack.c.0.s8 %v5570
        %v5572 = vlaneseq
        %v5573 = vshrl.u32 %v5572, 7
        %v5574 = vsub.s32 %v5571, %v5573
        %v5575 = vrot.slane %v4666, %v5574
        %v5577 = vunpack.c.l.s4 1966171168
        %v5578 = vunpack.c.0.s8 %v5577
        %v5579 = vlaneseq
        %v5580 = vshrl.u32 %v5579, 7
        %v5581 = vsub.s32 %v5578, %v5580
        %v5582 = vrot.slane %v5568, %v5581
        %v5583 = vcombine.high %v5575, %v5575
        %v5584 = vcombine.high %v5582, %v5582
        %v5586 = vunpack.c.l.s4 1966171168
        %v5587 = vunpack.c.0.s8 %v5586
        %v5588 = vlaneseq
        %v5589 = vshrl.u32 %v5588, 7
        %v5590 = vsub.s32 %v5587, %v5589
        %v5591 = vrot.slane %v5575, %v5590
        %v5593 = vunpack.c.l.s4 1966171168
        %v5594 = vunpack.c.0.s8 %v5593
        %v5595 = vlaneseq
        %v5596 = vshrl.u32 %v5595, 7
        %v5597 = vsub.s32 %v5594, %v5596
        %v5598 = vrot.slane %v5582, %v5597
        %v5600 = vunpack.c.l.s4 1966171168
        %v5601 = vunpack.c.0.s8 %v5600
        %v5602 = vlaneseq
        %v5603 = vshrl.u32 %v5602, 7
        %v5604 = vsub.s32 %v5601, %v5603
        %v5605 = vrot.slane %v5583, %v5604
        %v5607 = vunpack.c.l.s4 1966171168
        %v5608 = vunpack.c.0.s8 %v5607
        %v5609 = vlaneseq
        %v5610 = vshrl.u32 %v5609, 7
        %v5611 = vsub.s32 %v5608, %v5610
        %v5612 = vrot.slane %v5584, %v5611
        %v5613 = vcombine.high %v5591, %v5591
        %v5614 = vcombine.high %v5598, %v5598
        %v5615 = vcombine.high %v5605, %v5605
        %v5616 = vcombine.high %v5612, %v5612
        %v5617 = vlaneseq
        %v5618 = vshrl.u32 %v5617, 7
        %v5619 = vsub.s32 0, %v5618
        %v5620 = vrot.slane %v5591, %v5619
        %v5621 = vlaneseq
        %v5622 = vshrl.u32 %v5621, 7
        %v5623 = vsub.s32 0, %v5622
        %v5624 = vrot.slane %v5605, %v5623
        %v5625 = vlaneseq
        %v5626 = vshrl.u32 %v5625, 7
        %v5627 = vsub.s32 0, %v5626
        %v5628 = vrot.slane %v5613, %v5627
        %v5629 = vlaneseq
        %v5630 = vshrl.u32 %v5629, 7
        %v5631 = vsub.s32 0, %v5630
        %v5632 = vrot.slane %v5615, %v5631
        %v5633 = vlaneseq
        %v5634 = vshrl.u32 %v5633, 7
        %v5635 = vsub.s32 0, %v5634
        %v5636 = vrot.slane %v5598, %v5635
        %v5637 = vlaneseq
        %v5638 = vshrl.u32 %v5637, 7
        %v5639 = vsub.s32 0, %v5638
        %v5640 = vrot.slane %v5612, %v5639
        %v5641 = vlaneseq
        %v5642 = vshrl.u32 %v5641, 7
        %v5643 = vsub.s32 0, %v5642
        %v5644 = vrot.slane %v5614, %v5643
        %v5645 = vlaneseq
        %v5646 = vshrl.u32 %v5645, 7
        %v5647 = vsub.s32 0, %v5646
        %v5648 = vrot.slane %v5616, %v5647
        %v5649 = vcombine.low %v5620, %v5624
        %v5650 = vcombine.low %v5628, %v5632
        %v5652 = vunpack.c.l.s4 1983009808
        %v5653 = vunpack.c.0.s8 %v5652
        %v5654 = vlaneseq
        %v5655 = vshrl.u32 %v5654, 7
        %v5656 = vsub.s32 %v5653, %v5655
        %v5657 = vrot.slane %v5649, %v5656
        %v5659 = vunpack.c.l.s4 1983009808
        %v5660 = vunpack.c.0.s8 %v5659
        %v5661 = vlaneseq
        %v5662 = vshrl.u32 %v5661, 7
        %v5663 = vsub.s32 %v5660, %v5662
        %v5664 = vrot.slane %v5650, %v5663
        %v5665 = vcombine.low %v5657, %v5664
        %v5666 = vcombine.low %v5636, %v5640
        %v5667 = vcombine.low %v5644, %v5648
        %v5669 = vunpack.c.l.s4 1983009808
        %v5670 = vunpack.c.0.s8 %v5669
        %v5671 = vlaneseq
        %v5672 = vshrl.u32 %v5671, 7
        %v5673 = vsub.s32 %v5670, %v5672
        %v5674 = vrot.slane %v5666, %v5673
        %v5676 = vunpack.c.l.s4 1983009808
        %v5677 = vunpack.c.0.s8 %v5676
        %v5678 = vlaneseq
        %v5679 = vshrl.u32 %v5678, 7
        %v5680 = vsub.s32 %v5677, %v5679
        %v5681 = vrot.slane %v5667, %v5680
        %v5682 = vcombine.low %v5674, %v5681
        %s5685 = scalar_lea.vmem [#allocation4], 360
        %5686 = vst [vmem:[%s5685 + $0x1] sm:$0xff] %v5665
        %5687 = vst [vmem:[%s5685 + $0x9] sm:$0xff] %v5682
        %5688 = vst [vmem:[%s5685 + $0x19] sm:$0xff] %v5665
        %5689 = vst [vmem:[%s5685 + $0x21] sm:$0xff] %v5682
        %v5690 = vld [vmem:[#allocation4] sm:$0xff]
        %v5691 = vld [vmem:[#allocation4 + $0x8] sm:$0xff]
        %v5692 = vld [vmem:[#allocation4 + $0x18] sm:$0xff]
        %v5693 = vld [vmem:[#allocation4 + $0x20] sm:$0xff]
        %v5694 = vld [vmem:[#allocation4 + $0x30] sm:$0xff]
        %v5695 = vld [vmem:[#allocation4 + $0x38] sm:$0xff]
        %v5696 = vld [vmem:[#allocation4 + $0x48] sm:$0xff]
        %v5697 = vld [vmem:[#allocation4 + $0x50] sm:$0xff]
        %v5698 = vld [vmem:[#allocation4 + $0x60] sm:$0xff]
        %v5699 = vld [vmem:[#allocation4 + $0x68] sm:$0xff]
        %v5700 = vld [vmem:[#allocation4 + $0x78] sm:$0xff]
        %v5701 = vld [vmem:[#allocation4 + $0x80] sm:$0xff]
        %v5702 = vld [vmem:[#allocation4 + $0x90] sm:$0xff]
        %v5703 = vld [vmem:[#allocation4 + $0x98] sm:$0xff]
        %v5704 = vld [vmem:[#allocation4 + $0xa8] sm:$0xff]
        %v5705 = vld [vmem:[#allocation4 + $0xb0] sm:$0xff]
        %v5706 = vld [vmem:[#allocation4 + $0xc0] sm:$0xff]
        %v5707 = vld [vmem:[#allocation4 + $0xc8] sm:$0xff]
        %v5708 = vld [vmem:[#allocation4 + $0xd8] sm:$0xff]
        %v5709 = vld [vmem:[#allocation4 + $0xe0] sm:$0xff]
        %v5710 = vld [vmem:[#allocation4 + $0xf0] sm:$0xff]
        %v5711 = vld [vmem:[#allocation4 + $0xf8] sm:$0xff]
        %v5712 = vld [vmem:[#allocation4 + $0x108] sm:$0xff]
        %v5713 = vld [vmem:[#allocation4 + $0x110] sm:$0xff]
        %v5714 = vld [vmem:[#allocation4 + $0x120] sm:$0xff]
        %v5715 = vld [vmem:[#allocation4 + $0x128] sm:$0xff]
        %v5716 = vld [vmem:[#allocation4 + $0x138] sm:$0xff]
        %v5717 = vld [vmem:[#allocation4 + $0x140] sm:$0xff]
        %v5718 = vld [vmem:[#allocation4 + $0x150] sm:$0xff]
        %v5719 = vld [vmem:[#allocation4 + $0x158] sm:$0xff]
        %v5720 = vld [vmem:[#allocation4 + $0x168] sm:$0xff]
        %v5721 = vld [vmem:[#allocation4 + $0x170] sm:$0xff]
        %v5722 = vld [vmem:[%s4] sm:$0x1]
        %v5724 = vlaneseq
        %v5725 = vshrl.u32 %v5724, 7
        %v5726 = vsub.s32 0, %v5725
        %v5727 = vrot.slane %v5722, %v5726
        %v5729 = vmul.f32 %v5690, %v5727
        %v5730 = vmul.f32 %v5691, %v5727
        %v5731 = vmul.f32 %v5692, %v5727
        %v5732 = vmul.f32 %v5693, %v5727
        %v5733 = vmul.f32 %v5694, %v5727
        %v5734 = vmul.f32 %v5695, %v5727
        %v5735 = vmul.f32 %v5696, %v5727
        %v5736 = vmul.f32 %v5697, %v5727
        %v5737 = vmul.f32 %v5698, %v5727
        %v5738 = vmul.f32 %v5699, %v5727
        %v5739 = vmul.f32 %v5700, %v5727
        %v5740 = vmul.f32 %v5701, %v5727
        %v5741 = vmul.f32 %v5702, %v5727
        %v5742 = vmul.f32 %v5703, %v5727
        %v5743 = vmul.f32 %v5704, %v5727
        %v5744 = vmul.f32 %v5705, %v5727
        %v5745 = vmul.f32 %v5706, %v5727
        %v5746 = vmul.f32 %v5707, %v5727
        %v5747 = vmul.f32 %v5708, %v5727
        %v5748 = vmul.f32 %v5709, %v5727
        %v5749 = vmul.f32 %v5710, %v5727
        %v5750 = vmul.f32 %v5711, %v5727
        %v5751 = vmul.f32 %v5712, %v5727
        %v5752 = vmul.f32 %v5713, %v5727
        %v5753 = vmul.f32 %v5714, %v5727
        %v5754 = vmul.f32 %v5715, %v5727
        %v5755 = vmul.f32 %v5716, %v5727
        %v5756 = vmul.f32 %v5717, %v5727
        %v5757 = vmul.f32 %v5718, %v5727
        %v5758 = vmul.f32 %v5719, %v5727
        %v5759 = vmul.f32 %v5720, %v5727
        %v5760 = vmul.f32 %v5721, %v5727
        %5761 = vadd.xlane.f32.xlu0 %v5729
        %v5762 = vpop.xlane.xlu0 %5761
        %5763 = vadd.xlane.f32.xlu0 %v5730
        %v5764 = vpop.xlane.xlu0 %5763
        %5765 = vadd.xlane.f32.xlu0 %v5731
        %v5766 = vpop.xlane.xlu0 %5765
        %5767 = vadd.xlane.f32.xlu0 %v5732
        %v5768 = vpop.xlane.xlu0 %5767
        %5769 = vadd.xlane.f32.xlu0 %v5733
        %v5770 = vpop.xlane.xlu0 %5769
        %5771 = vadd.xlane.f32.xlu0 %v5734
        %v5772 = vpop.xlane.xlu0 %5771
        %5773 = vadd.xlane.f32.xlu0 %v5735
        %v5774 = vpop.xlane.xlu0 %5773
        %5775 = vadd.xlane.f32.xlu0 %v5736
        %v5776 = vpop.xlane.xlu0 %5775
        %5777 = vadd.xlane.f32.xlu0 %v5737
        %v5778 = vpop.xlane.xlu0 %5777
        %5779 = vadd.xlane.f32.xlu0 %v5738
        %v5780 = vpop.xlane.xlu0 %5779
        %5781 = vadd.xlane.f32.xlu0 %v5739
        %v5782 = vpop.xlane.xlu0 %5781
        %5783 = vadd.xlane.f32.xlu0 %v5740
        %v5784 = vpop.xlane.xlu0 %5783
        %5785 = vadd.xlane.f32.xlu0 %v5741
        %v5786 = vpop.xlane.xlu0 %5785
        %5787 = vadd.xlane.f32.xlu0 %v5742
        %v5788 = vpop.xlane.xlu0 %5787
        %5789 = vadd.xlane.f32.xlu0 %v5743
        %v5790 = vpop.xlane.xlu0 %5789
        %5791 = vadd.xlane.f32.xlu0 %v5744
        %v5792 = vpop.xlane.xlu0 %5791
        %5793 = vadd.xlane.f32.xlu0 %v5745
        %v5794 = vpop.xlane.xlu0 %5793
        %5795 = vadd.xlane.f32.xlu0 %v5746
        %v5796 = vpop.xlane.xlu0 %5795
        %5797 = vadd.xlane.f32.xlu0 %v5747
        %v5798 = vpop.xlane.xlu0 %5797
        %5799 = vadd.xlane.f32.xlu0 %v5748
        %v5800 = vpop.xlane.xlu0 %5799
        %5801 = vadd.xlane.f32.xlu0 %v5749
        %v5802 = vpop.xlane.xlu0 %5801
        %5803 = vadd.xlane.f32.xlu0 %v5750
        %v5804 = vpop.xlane.xlu0 %5803
        %5805 = vadd.xlane.f32.xlu0 %v5751
        %v5806 = vpop.xlane.xlu0 %5805
        %5807 = vadd.xlane.f32.xlu0 %v5752
        %v5808 = vpop.xlane.xlu0 %5807
        %5809 = vadd.xlane.f32.xlu0 %v5753
        %v5810 = vpop.xlane.xlu0 %5809
        %5811 = vadd.xlane.f32.xlu0 %v5754
        %v5812 = vpop.xlane.xlu0 %5811
        %5813 = vadd.xlane.f32.xlu0 %v5755
        %v5814 = vpop.xlane.xlu0 %5813
        %5815 = vadd.xlane.f32.xlu0 %v5756
        %v5816 = vpop.xlane.xlu0 %5815
        %5817 = vadd.xlane.f32.xlu0 %v5757
        %v5818 = vpop.xlane.xlu0 %5817
        %5819 = vadd.xlane.f32.xlu0 %v5758
        %v5820 = vpop.xlane.xlu0 %5819
        %5821 = vadd.xlane.f32.xlu0 %v5759
        %v5822 = vpop.xlane.xlu0 %5821
        %5823 = vadd.xlane.f32.xlu0 %v5760
        %v5824 = vpop.xlane.xlu0 %5823
        %v5825 = vadd.f32 %v5762, 0.0
        %v5826 = vadd.f32 %v5764, 0.0
        %v5827 = vadd.f32 %v5766, 0.0
        %v5828 = vadd.f32 %v5768, 0.0
        %v5829 = vadd.f32 %v5770, 0.0
        %v5830 = vadd.f32 %v5772, 0.0
        %v5831 = vadd.f32 %v5774, 0.0
        %v5832 = vadd.f32 %v5776, 0.0
        %v5833 = vadd.f32 %v5778, 0.0
        %v5834 = vadd.f32 %v5780, 0.0
        %v5835 = vadd.f32 %v5782, 0.0
        %v5836 = vadd.f32 %v5784, 0.0
        %v5837 = vadd.f32 %v5786, 0.0
        %v5838 = vadd.f32 %v5788, 0.0
        %v5839 = vadd.f32 %v5790, 0.0
        %v5840 = vadd.f32 %v5792, 0.0
        %v5841 = vadd.f32 %v5794, 0.0
        %v5842 = vadd.f32 %v5796, 0.0
        %v5843 = vadd.f32 %v5798, 0.0
        %v5844 = vadd.f32 %v5800, 0.0
        %v5845 = vadd.f32 %v5802, 0.0
        %v5846 = vadd.f32 %v5804, 0.0
        %v5847 = vadd.f32 %v5806, 0.0
        %v5848 = vadd.f32 %v5808, 0.0
        %v5849 = vadd.f32 %v5810, 0.0
        %v5850 = vadd.f32 %v5812, 0.0
        %v5851 = vadd.f32 %v5814, 0.0
        %v5852 = vadd.f32 %v5816, 0.0
        %v5853 = vadd.f32 %v5818, 0.0
        %v5854 = vadd.f32 %v5820, 0.0
        %v5855 = vadd.f32 %v5822, 0.0
        %v5856 = vadd.f32 %v5824, 0.0
        %v5857 = vld [vmem:[#allocation4 + $0x1] sm:$0xff]
        %v5858 = vld [vmem:[#allocation4 + $0x9] sm:$0xff]
        %v5859 = vld [vmem:[#allocation4 + $0x19] sm:$0xff]
        %v5860 = vld [vmem:[#allocation4 + $0x21] sm:$0xff]
        %v5861 = vld [vmem:[#allocation4 + $0x31] sm:$0xff]
        %v5862 = vld [vmem:[#allocation4 + $0x39] sm:$0xff]
        %v5863 = vld [vmem:[#allocation4 + $0x49] sm:$0xff]
        %v5864 = vld [vmem:[#allocation4 + $0x51] sm:$0xff]
        %v5865 = vld [vmem:[#allocation4 + $0x61] sm:$0xff]
        %v5866 = vld [vmem:[#allocation4 + $0x69] sm:$0xff]
        %v5867 = vld [vmem:[#allocation4 + $0x79] sm:$0xff]
        %v5868 = vld [vmem:[#allocation4 + $0x81] sm:$0xff]
        %v5869 = vld [vmem:[#allocation4 + $0x91] sm:$0xff]
        %v5870 = vld [vmem:[#allocation4 + $0x99] sm:$0xff]
        %v5871 = vld [vmem:[#allocation4 + $0xa9] sm:$0xff]
        %v5872 = vld [vmem:[#allocation4 + $0xb1] sm:$0xff]
        %v5873 = vld [vmem:[#allocation4 + $0xc1] sm:$0xff]
        %v5874 = vld [vmem:[#allocation4 + $0xc9] sm:$0xff]
        %v5875 = vld [vmem:[#allocation4 + $0xd9] sm:$0xff]
        %v5876 = vld [vmem:[#allocation4 + $0xe1] sm:$0xff]
        %v5877 = vld [vmem:[#allocation4 + $0xf1] sm:$0xff]
        %v5878 = vld [vmem:[#allocation4 + $0xf9] sm:$0xff]
        %v5879 = vld [vmem:[#allocation4 + $0x109] sm:$0xff]
        %v5880 = vld [vmem:[#allocation4 + $0x111] sm:$0xff]
        %v5881 = vld [vmem:[#allocation4 + $0x121] sm:$0xff]
        %v5882 = vld [vmem:[#allocation4 + $0x129] sm:$0xff]
        %v5883 = vld [vmem:[#allocation4 + $0x139] sm:$0xff]
        %v5884 = vld [vmem:[#allocation4 + $0x141] sm:$0xff]
        %v5885 = vld [vmem:[#allocation4 + $0x151] sm:$0xff]
        %v5886 = vld [vmem:[#allocation4 + $0x159] sm:$0xff]
        %v5887 = vld [vmem:[#allocation4 + $0x169] sm:$0xff]
        %v5888 = vld [vmem:[#allocation4 + $0x171] sm:$0xff]
        %s5889 = scalar_lea.vmem %s4, 1
        %v5890 = vld [vmem:[%s5889] sm:$0x1]
        %v5892 = vlaneseq
        %v5893 = vshrl.u32 %v5892, 7
        %v5894 = vsub.s32 0, %v5893
        %v5895 = vrot.slane %v5890, %v5894
        %v5897 = vmul.f32 %v5857, %v5895
        %v5898 = vmul.f32 %v5858, %v5895
        %v5899 = vmul.f32 %v5859, %v5895
        %v5900 = vmul.f32 %v5860, %v5895
        %v5901 = vmul.f32 %v5861, %v5895
        %v5902 = vmul.f32 %v5862, %v5895
        %v5903 = vmul.f32 %v5863, %v5895
        %v5904 = vmul.f32 %v5864, %v5895
        %v5905 = vmul.f32 %v5865, %v5895
        %v5906 = vmul.f32 %v5866, %v5895
        %v5907 = vmul.f32 %v5867, %v5895
        %v5908 = vmul.f32 %v5868, %v5895
        %v5909 = vmul.f32 %v5869, %v5895
        %v5910 = vmul.f32 %v5870, %v5895
        %v5911 = vmul.f32 %v5871, %v5895
        %v5912 = vmul.f32 %v5872, %v5895
        %v5913 = vmul.f32 %v5873, %v5895
        %v5914 = vmul.f32 %v5874, %v5895
        %v5915 = vmul.f32 %v5875, %v5895
        %v5916 = vmul.f32 %v5876, %v5895
        %v5917 = vmul.f32 %v5877, %v5895
        %v5918 = vmul.f32 %v5878, %v5895
        %v5919 = vmul.f32 %v5879, %v5895
        %v5920 = vmul.f32 %v5880, %v5895
        %v5921 = vmul.f32 %v5881, %v5895
        %v5922 = vmul.f32 %v5882, %v5895
        %v5923 = vmul.f32 %v5883, %v5895
        %v5924 = vmul.f32 %v5884, %v5895
        %v5925 = vmul.f32 %v5885, %v5895
        %v5926 = vmul.f32 %v5886, %v5895
        %v5927 = vmul.f32 %v5887, %v5895
        %v5928 = vmul.f32 %v5888, %v5895
        %5929 = vadd.xlane.f32.xlu0 %v5897
        %v5930 = vpop.xlane.xlu0 %5929
        %5931 = vadd.xlane.f32.xlu0 %v5898
        %v5932 = vpop.xlane.xlu0 %5931
        %5933 = vadd.xlane.f32.xlu0 %v5899
        %v5934 = vpop.xlane.xlu0 %5933
        %5935 = vadd.xlane.f32.xlu0 %v5900
        %v5936 = vpop.xlane.xlu0 %5935
        %5937 = vadd.xlane.f32.xlu0 %v5901
        %v5938 = vpop.xlane.xlu0 %5937
        %5939 = vadd.xlane.f32.xlu0 %v5902
        %v5940 = vpop.xlane.xlu0 %5939
        %5941 = vadd.xlane.f32.xlu0 %v5903
        %v5942 = vpop.xlane.xlu0 %5941
        %5943 = vadd.xlane.f32.xlu0 %v5904
        %v5944 = vpop.xlane.xlu0 %5943
        %5945 = vadd.xlane.f32.xlu0 %v5905
        %v5946 = vpop.xlane.xlu0 %5945
        %5947 = vadd.xlane.f32.xlu0 %v5906
        %v5948 = vpop.xlane.xlu0 %5947
        %5949 = vadd.xlane.f32.xlu0 %v5907
        %v5950 = vpop.xlane.xlu0 %5949
        %5951 = vadd.xlane.f32.xlu0 %v5908
        %v5952 = vpop.xlane.xlu0 %5951
        %5953 = vadd.xlane.f32.xlu0 %v5909
        %v5954 = vpop.xlane.xlu0 %5953
        %5955 = vadd.xlane.f32.xlu0 %v5910
        %v5956 = vpop.xlane.xlu0 %5955
        %5957 = vadd.xlane.f32.xlu0 %v5911
        %v5958 = vpop.xlane.xlu0 %5957
        %5959 = vadd.xlane.f32.xlu0 %v5912
        %v5960 = vpop.xlane.xlu0 %5959
        %5961 = vadd.xlane.f32.xlu0 %v5913
        %v5962 = vpop.xlane.xlu0 %5961
        %5963 = vadd.xlane.f32.xlu0 %v5914
        %v5964 = vpop.xlane.xlu0 %5963
        %5965 = vadd.xlane.f32.xlu0 %v5915
        %v5966 = vpop.xlane.xlu0 %5965
        %5967 = vadd.xlane.f32.xlu0 %v5916
        %v5968 = vpop.xlane.xlu0 %5967
        %5969 = vadd.xlane.f32.xlu0 %v5917
        %v5970 = vpop.xlane.xlu0 %5969
        %5971 = vadd.xlane.f32.xlu0 %v5918
        %v5972 = vpop.xlane.xlu0 %5971
        %5973 = vadd.xlane.f32.xlu0 %v5919
        %v5974 = vpop.xlane.xlu0 %5973
        %5975 = vadd.xlane.f32.xlu0 %v5920
        %v5976 = vpop.xlane.xlu0 %5975
        %5977 = vadd.xlane.f32.xlu0 %v5921
        %v5978 = vpop.xlane.xlu0 %5977
        %5979 = vadd.xlane.f32.xlu0 %v5922
        %v5980 = vpop.xlane.xlu0 %5979
        %5981 = vadd.xlane.f32.xlu0 %v5923
        %v5982 = vpop.xlane.xlu0 %5981
        %5983 = vadd.xlane.f32.xlu0 %v5924
        %v5984 = vpop.xlane.xlu0 %5983
        %5985 = vadd.xlane.f32.xlu0 %v5925
        %v5986 = vpop.xlane.xlu0 %5985
        %5987 = vadd.xlane.f32.xlu0 %v5926
        %v5988 = vpop.xlane.xlu0 %5987
        %5989 = vadd.xlane.f32.xlu0 %v5927
        %v5990 = vpop.xlane.xlu0 %5989
        %5991 = vadd.xlane.f32.xlu0 %v5928
        %v5992 = vpop.xlane.xlu0 %5991
        %v5993 = vadd.f32 %v5825, %v5930
        %v5994 = vadd.f32 %v5826, %v5932
        %v5995 = vadd.f32 %v5827, %v5934
        %v5996 = vadd.f32 %v5828, %v5936
        %v5997 = vadd.f32 %v5829, %v5938
        %v5998 = vadd.f32 %v5830, %v5940
        %v5999 = vadd.f32 %v5831, %v5942
        %v6000 = vadd.f32 %v5832, %v5944
        %v6001 = vadd.f32 %v5833, %v5946
        %v6002 = vadd.f32 %v5834, %v5948
        %v6003 = vadd.f32 %v5835, %v5950
        %v6004 = vadd.f32 %v5836, %v5952
        %v6005 = vadd.f32 %v5837, %v5954
        %v6006 = vadd.f32 %v5838, %v5956
        %v6007 = vadd.f32 %v5839, %v5958
        %v6008 = vadd.f32 %v5840, %v5960
        %v6009 = vadd.f32 %v5841, %v5962
        %v6010 = vadd.f32 %v5842, %v5964
        %v6011 = vadd.f32 %v5843, %v5966
        %v6012 = vadd.f32 %v5844, %v5968
        %v6013 = vadd.f32 %v5845, %v5970
        %v6014 = vadd.f32 %v5846, %v5972
        %v6015 = vadd.f32 %v5847, %v5974
        %v6016 = vadd.f32 %v5848, %v5976
        %v6017 = vadd.f32 %v5849, %v5978
        %v6018 = vadd.f32 %v5850, %v5980
        %v6019 = vadd.f32 %v5851, %v5982
        %v6020 = vadd.f32 %v5852, %v5984
        %v6021 = vadd.f32 %v5853, %v5986
        %v6022 = vadd.f32 %v5854, %v5988
        %v6023 = vadd.f32 %v5855, %v5990
        %v6024 = vadd.f32 %v5856, %v5992
        %v6025 = vld [vmem:[#allocation4 + $0x2] sm:$0xff]
        %v6026 = vld [vmem:[#allocation4 + $0xa] sm:$0xff]
        %v6027 = vld [vmem:[#allocation4 + $0x1a] sm:$0xff]
        %v6028 = vld [vmem:[#allocation4 + $0x22] sm:$0xff]
        %v6029 = vld [vmem:[#allocation4 + $0x32] sm:$0xff]
        %v6030 = vld [vmem:[#allocation4 + $0x3a] sm:$0xff]
        %v6031 = vld [vmem:[#allocation4 + $0x4a] sm:$0xff]
        %v6032 = vld [vmem:[#allocation4 + $0x52] sm:$0xff]
        %v6033 = vld [vmem:[#allocation4 + $0x62] sm:$0xff]
        %v6034 = vld [vmem:[#allocation4 + $0x6a] sm:$0xff]
        %v6035 = vld [vmem:[#allocation4 + $0x7a] sm:$0xff]
        %v6036 = vld [vmem:[#allocation4 + $0x82] sm:$0xff]
        %v6037 = vld [vmem:[#allocation4 + $0x92] sm:$0xff]
        %v6038 = vld [vmem:[#allocation4 + $0x9a] sm:$0xff]
        %v6039 = vld [vmem:[#allocation4 + $0xaa] sm:$0xff]
        %v6040 = vld [vmem:[#allocation4 + $0xb2] sm:$0xff]
        %v6041 = vld [vmem:[#allocation4 + $0xc2] sm:$0xff]
        %v6042 = vld [vmem:[#allocation4 + $0xca] sm:$0xff]
        %v6043 = vld [vmem:[#allocation4 + $0xda] sm:$0xff]
        %v6044 = vld [vmem:[#allocation4 + $0xe2] sm:$0xff]
        %v6045 = vld [vmem:[#allocation4 + $0xf2] sm:$0xff]
        %v6046 = vld [vmem:[#allocation4 + $0xfa] sm:$0xff]
        %v6047 = vld [vmem:[#allocation4 + $0x10a] sm:$0xff]
        %v6048 = vld [vmem:[#allocation4 + $0x112] sm:$0xff]
        %v6049 = vld [vmem:[#allocation4 + $0x122] sm:$0xff]
        %v6050 = vld [vmem:[#allocation4 + $0x12a] sm:$0xff]
        %v6051 = vld [vmem:[#allocation4 + $0x13a] sm:$0xff]
        %v6052 = vld [vmem:[#allocation4 + $0x142] sm:$0xff]
        %v6053 = vld [vmem:[#allocation4 + $0x152] sm:$0xff]
        %v6054 = vld [vmem:[#allocation4 + $0x15a] sm:$0xff]
        %v6055 = vld [vmem:[#allocation4 + $0x16a] sm:$0xff]
        %v6056 = vld [vmem:[#allocation4 + $0x172] sm:$0xff]
        %s6057 = scalar_lea.vmem %s4, 2
        %v6058 = vld [vmem:[%s6057] sm:$0x1]
        %v6060 = vlaneseq
        %v6061 = vshrl.u32 %v6060, 7
        %v6062 = vsub.s32 0, %v6061
        %v6063 = vrot.slane %v6058, %v6062
        %v6065 = vmul.f32 %v6025, %v6063
        %v6066 = vmul.f32 %v6026, %v6063
        %v6067 = vmul.f32 %v6027, %v6063
        %v6068 = vmul.f32 %v6028, %v6063
        %v6069 = vmul.f32 %v6029, %v6063
        %v6070 = vmul.f32 %v6030, %v6063
        %v6071 = vmul.f32 %v6031, %v6063
        %v6072 = vmul.f32 %v6032, %v6063
        %v6073 = vmul.f32 %v6033, %v6063
        %v6074 = vmul.f32 %v6034, %v6063
        %v6075 = vmul.f32 %v6035, %v6063
        %v6076 = vmul.f32 %v6036, %v6063
        %v6077 = vmul.f32 %v6037, %v6063
        %v6078 = vmul.f32 %v6038, %v6063
        %v6079 = vmul.f32 %v6039, %v6063
        %v6080 = vmul.f32 %v6040, %v6063
        %v6081 = vmul.f32 %v6041, %v6063
        %v6082 = vmul.f32 %v6042, %v6063
        %v6083 = vmul.f32 %v6043, %v6063
        %v6084 = vmul.f32 %v6044, %v6063
        %v6085 = vmul.f32 %v6045, %v6063
        %v6086 = vmul.f32 %v6046, %v6063
        %v6087 = vmul.f32 %v6047, %v6063
        %v6088 = vmul.f32 %v6048, %v6063
        %v6089 = vmul.f32 %v6049, %v6063
        %v6090 = vmul.f32 %v6050, %v6063
        %v6091 = vmul.f32 %v6051, %v6063
        %v6092 = vmul.f32 %v6052, %v6063
        %v6093 = vmul.f32 %v6053, %v6063
        %v6094 = vmul.f32 %v6054, %v6063
        %v6095 = vmul.f32 %v6055, %v6063
        %v6096 = vmul.f32 %v6056, %v6063
        %6097 = vadd.xlane.f32.xlu0 %v6065
        %v6098 = vpop.xlane.xlu0 %6097
        %6099 = vadd.xlane.f32.xlu0 %v6066
        %v6100 = vpop.xlane.xlu0 %6099
        %6101 = vadd.xlane.f32.xlu0 %v6067
        %v6102 = vpop.xlane.xlu0 %6101
        %6103 = vadd.xlane.f32.xlu0 %v6068
        %v6104 = vpop.xlane.xlu0 %6103
        %6105 = vadd.xlane.f32.xlu0 %v6069
        %v6106 = vpop.xlane.xlu0 %6105
        %6107 = vadd.xlane.f32.xlu0 %v6070
        %v6108 = vpop.xlane.xlu0 %6107
        %6109 = vadd.xlane.f32.xlu0 %v6071
        %v6110 = vpop.xlane.xlu0 %6109
        %6111 = vadd.xlane.f32.xlu0 %v6072
        %v6112 = vpop.xlane.xlu0 %6111
        %6113 = vadd.xlane.f32.xlu0 %v6073
        %v6114 = vpop.xlane.xlu0 %6113
        %6115 = vadd.xlane.f32.xlu0 %v6074
        %v6116 = vpop.xlane.xlu0 %6115
        %6117 = vadd.xlane.f32.xlu0 %v6075
        %v6118 = vpop.xlane.xlu0 %6117
        %6119 = vadd.xlane.f32.xlu0 %v6076
        %v6120 = vpop.xlane.xlu0 %6119
        %6121 = vadd.xlane.f32.xlu0 %v6077
        %v6122 = vpop.xlane.xlu0 %6121
        %6123 = vadd.xlane.f32.xlu0 %v6078
        %v6124 = vpop.xlane.xlu0 %6123
        %6125 = vadd.xlane.f32.xlu0 %v6079
        %v6126 = vpop.xlane.xlu0 %6125
        %6127 = vadd.xlane.f32.xlu0 %v6080
        %v6128 = vpop.xlane.xlu0 %6127
        %6129 = vadd.xlane.f32.xlu0 %v6081
        %v6130 = vpop.xlane.xlu0 %6129
        %6131 = vadd.xlane.f32.xlu0 %v6082
        %v6132 = vpop.xlane.xlu0 %6131
        %6133 = vadd.xlane.f32.xlu0 %v6083
        %v6134 = vpop.xlane.xlu0 %6133
        %6135 = vadd.xlane.f32.xlu0 %v6084
        %v6136 = vpop.xlane.xlu0 %6135
        %6137 = vadd.xlane.f32.xlu0 %v6085
        %v6138 = vpop.xlane.xlu0 %6137
        %6139 = vadd.xlane.f32.xlu0 %v6086
        %v6140 = vpop.xlane.xlu0 %6139
        %6141 = vadd.xlane.f32.xlu0 %v6087
        %v6142 = vpop.xlane.xlu0 %6141
        %6143 = vadd.xlane.f32.xlu0 %v6088
        %v6144 = vpop.xlane.xlu0 %6143
        %6145 = vadd.xlane.f32.xlu0 %v6089
        %v6146 = vpop.xlane.xlu0 %6145
        %6147 = vadd.xlane.f32.xlu0 %v6090
        %v6148 = vpop.xlane.xlu0 %6147
        %6149 = vadd.xlane.f32.xlu0 %v6091
        %v6150 = vpop.xlane.xlu0 %6149
        %6151 = vadd.xlane.f32.xlu0 %v6092
        %v6152 = vpop.xlane.xlu0 %6151
        %6153 = vadd.xlane.f32.xlu0 %v6093
        %v6154 = vpop.xlane.xlu0 %6153
        %6155 = vadd.xlane.f32.xlu0 %v6094
        %v6156 = vpop.xlane.xlu0 %6155
        %6157 = vadd.xlane.f32.xlu0 %v6095
        %v6158 = vpop.xlane.xlu0 %6157
        %6159 = vadd.xlane.f32.xlu0 %v6096
        %v6160 = vpop.xlane.xlu0 %6159
        %v6161 = vadd.f32 %v5993, %v6098
        %v6162 = vadd.f32 %v5994, %v6100
        %v6163 = vadd.f32 %v5995, %v6102
        %v6164 = vadd.f32 %v5996, %v6104
        %v6165 = vadd.f32 %v5997, %v6106
        %v6166 = vadd.f32 %v5998, %v6108
        %v6167 = vadd.f32 %v5999, %v6110
        %v6168 = vadd.f32 %v6000, %v6112
        %v6169 = vadd.f32 %v6001, %v6114
        %v6170 = vadd.f32 %v6002, %v6116
        %v6171 = vadd.f32 %v6003, %v6118
        %v6172 = vadd.f32 %v6004, %v6120
        %v6173 = vadd.f32 %v6005, %v6122
        %v6174 = vadd.f32 %v6006, %v6124
        %v6175 = vadd.f32 %v6007, %v6126
        %v6176 = vadd.f32 %v6008, %v6128
        %v6177 = vadd.f32 %v6009, %v6130
        %v6178 = vadd.f32 %v6010, %v6132
        %v6179 = vadd.f32 %v6011, %v6134
        %v6180 = vadd.f32 %v6012, %v6136
        %v6181 = vadd.f32 %v6013, %v6138
        %v6182 = vadd.f32 %v6014, %v6140
        %v6183 = vadd.f32 %v6015, %v6142
        %v6184 = vadd.f32 %v6016, %v6144
        %v6185 = vadd.f32 %v6017, %v6146
        %v6186 = vadd.f32 %v6018, %v6148
        %v6187 = vadd.f32 %v6019, %v6150
        %v6188 = vadd.f32 %v6020, %v6152
        %v6189 = vadd.f32 %v6021, %v6154
        %v6190 = vadd.f32 %v6022, %v6156
        %v6191 = vadd.f32 %v6023, %v6158
        %v6192 = vadd.f32 %v6024, %v6160
        %v6193 = vld [vmem:[%s4674] sm:$0xff]
        %v6194 = vld [vmem:[%s4674 + $0x8] sm:$0xff]
        %v6195 = vld [vmem:[%s4674 + $0x18] sm:$0xff]
        %v6196 = vld [vmem:[%s4674 + $0x20] sm:$0xff]
        %v6197 = vld [vmem:[%s4674 + $0x30] sm:$0xff]
        %v6198 = vld [vmem:[%s4674 + $0x38] sm:$0xff]
        %v6199 = vld [vmem:[%s4674 + $0x48] sm:$0xff]
        %v6200 = vld [vmem:[%s4674 + $0x50] sm:$0xff]
        %v6201 = vld [vmem:[%s4674 + $0x60] sm:$0xff]
        %v6202 = vld [vmem:[%s4674 + $0x68] sm:$0xff]
        %v6203 = vld [vmem:[%s4674 + $0x78] sm:$0xff]
        %v6204 = vld [vmem:[%s4674 + $0x80] sm:$0xff]
        %v6205 = vld [vmem:[%s4674 + $0x90] sm:$0xff]
        %v6206 = vld [vmem:[%s4674 + $0x98] sm:$0xff]
        %v6207 = vld [vmem:[%s4674 + $0xa8] sm:$0xff]
        %v6208 = vld [vmem:[%s4674 + $0xb0] sm:$0xff]
        %v6209 = vld [vmem:[%s4674 + $0xc0] sm:$0xff]
        %v6210 = vld [vmem:[%s4674 + $0xc8] sm:$0xff]
        %v6211 = vld [vmem:[%s4674 + $0xd8] sm:$0xff]
        %v6212 = vld [vmem:[%s4674 + $0xe0] sm:$0xff]
        %v6213 = vld [vmem:[%s4674 + $0xf0] sm:$0xff]
        %v6214 = vld [vmem:[%s4674 + $0xf8] sm:$0xff]
        %v6215 = vld [vmem:[%s4674 + $0x108] sm:$0xff]
        %v6216 = vld [vmem:[%s4674 + $0x110] sm:$0xff]
        %v6217 = vld [vmem:[%s4674 + $0x120] sm:$0xff]
        %v6218 = vld [vmem:[%s4674 + $0x128] sm:$0xff]
        %v6219 = vld [vmem:[%s4674 + $0x138] sm:$0xff]
        %v6220 = vld [vmem:[%s4674 + $0x140] sm:$0xff]
        %v6221 = vld [vmem:[%s4674 + $0x150] sm:$0xff]
        %v6222 = vld [vmem:[%s4674 + $0x158] sm:$0xff]
        %v6223 = vld [vmem:[%s4674 + $0x168] sm:$0xff]
        %v6224 = vld [vmem:[%s4674 + $0x170] sm:$0xff]
        %s6225 = scalar_lea.vmem %s4, 3
        %v6226 = vld [vmem:[%s6225] sm:$0x1]
        %v6228 = vlaneseq
        %v6229 = vshrl.u32 %v6228, 7
        %v6230 = vsub.s32 0, %v6229
        %v6231 = vrot.slane %v6226, %v6230
        %v6233 = vmul.f32 %v6193, %v6231
        %v6234 = vmul.f32 %v6194, %v6231
        %v6235 = vmul.f32 %v6195, %v6231
        %v6236 = vmul.f32 %v6196, %v6231
        %v6237 = vmul.f32 %v6197, %v6231
        %v6238 = vmul.f32 %v6198, %v6231
        %v6239 = vmul.f32 %v6199, %v6231
        %v6240 = vmul.f32 %v6200, %v6231
        %v6241 = vmul.f32 %v6201, %v6231
        %v6242 = vmul.f32 %v6202, %v6231
        %v6243 = vmul.f32 %v6203, %v6231
        %v6244 = vmul.f32 %v6204, %v6231
        %v6245 = vmul.f32 %v6205, %v6231
        %v6246 = vmul.f32 %v6206, %v6231
        %v6247 = vmul.f32 %v6207, %v6231
        %v6248 = vmul.f32 %v6208, %v6231
        %v6249 = vmul.f32 %v6209, %v6231
        %v6250 = vmul.f32 %v6210, %v6231
        %v6251 = vmul.f32 %v6211, %v6231
        %v6252 = vmul.f32 %v6212, %v6231
        %v6253 = vmul.f32 %v6213, %v6231
        %v6254 = vmul.f32 %v6214, %v6231
        %v6255 = vmul.f32 %v6215, %v6231
        %v6256 = vmul.f32 %v6216, %v6231
        %v6257 = vmul.f32 %v6217, %v6231
        %v6258 = vmul.f32 %v6218, %v6231
        %v6259 = vmul.f32 %v6219, %v6231
        %v6260 = vmul.f32 %v6220, %v6231
        %v6261 = vmul.f32 %v6221, %v6231
        %v6262 = vmul.f32 %v6222, %v6231
        %v6263 = vmul.f32 %v6223, %v6231
        %v6264 = vmul.f32 %v6224, %v6231
        %6265 = vadd.xlane.f32.xlu0 %v6233
        %v6266 = vpop.xlane.xlu0 %6265
        %6267 = vadd.xlane.f32.xlu0 %v6234
        %v6268 = vpop.xlane.xlu0 %6267
        %6269 = vadd.xlane.f32.xlu0 %v6235
        %v6270 = vpop.xlane.xlu0 %6269
        %6271 = vadd.xlane.f32.xlu0 %v6236
        %v6272 = vpop.xlane.xlu0 %6271
        %6273 = vadd.xlane.f32.xlu0 %v6237
        %v6274 = vpop.xlane.xlu0 %6273
        %6275 = vadd.xlane.f32.xlu0 %v6238
        %v6276 = vpop.xlane.xlu0 %6275
        %6277 = vadd.xlane.f32.xlu0 %v6239
        %v6278 = vpop.xlane.xlu0 %6277
        %6279 = vadd.xlane.f32.xlu0 %v6240
        %v6280 = vpop.xlane.xlu0 %6279
        %6281 = vadd.xlane.f32.xlu0 %v6241
        %v6282 = vpop.xlane.xlu0 %6281
        %6283 = vadd.xlane.f32.xlu0 %v6242
        %v6284 = vpop.xlane.xlu0 %6283
        %6285 = vadd.xlane.f32.xlu0 %v6243
        %v6286 = vpop.xlane.xlu0 %6285
        %6287 = vadd.xlane.f32.xlu0 %v6244
        %v6288 = vpop.xlane.xlu0 %6287
        %6289 = vadd.xlane.f32.xlu0 %v6245
        %v6290 = vpop.xlane.xlu0 %6289
        %6291 = vadd.xlane.f32.xlu0 %v6246
        %v6292 = vpop.xlane.xlu0 %6291
        %6293 = vadd.xlane.f32.xlu0 %v6247
        %v6294 = vpop.xlane.xlu0 %6293
        %6295 = vadd.xlane.f32.xlu0 %v6248
        %v6296 = vpop.xlane.xlu0 %6295
        %6297 = vadd.xlane.f32.xlu0 %v6249
        %v6298 = vpop.xlane.xlu0 %6297
        %6299 = vadd.xlane.f32.xlu0 %v6250
        %v6300 = vpop.xlane.xlu0 %6299
        %6301 = vadd.xlane.f32.xlu0 %v6251
        %v6302 = vpop.xlane.xlu0 %6301
        %6303 = vadd.xlane.f32.xlu0 %v6252
        %v6304 = vpop.xlane.xlu0 %6303
        %6305 = vadd.xlane.f32.xlu0 %v6253
        %v6306 = vpop.xlane.xlu0 %6305
        %6307 = vadd.xlane.f32.xlu0 %v6254
        %v6308 = vpop.xlane.xlu0 %6307
        %6309 = vadd.xlane.f32.xlu0 %v6255
        %v6310 = vpop.xlane.xlu0 %6309
        %6311 = vadd.xlane.f32.xlu0 %v6256
        %v6312 = vpop.xlane.xlu0 %6311
        %6313 = vadd.xlane.f32.xlu0 %v6257
        %v6314 = vpop.xlane.xlu0 %6313
        %6315 = vadd.xlane.f32.xlu0 %v6258
        %v6316 = vpop.xlane.xlu0 %6315
        %6317 = vadd.xlane.f32.xlu0 %v6259
        %v6318 = vpop.xlane.xlu0 %6317
        %6319 = vadd.xlane.f32.xlu0 %v6260
        %v6320 = vpop.xlane.xlu0 %6319
        %6321 = vadd.xlane.f32.xlu0 %v6261
        %v6322 = vpop.xlane.xlu0 %6321
        %6323 = vadd.xlane.f32.xlu0 %v6262
        %v6324 = vpop.xlane.xlu0 %6323
        %6325 = vadd.xlane.f32.xlu0 %v6263
        %v6326 = vpop.xlane.xlu0 %6325
        %6327 = vadd.xlane.f32.xlu0 %v6264
        %v6328 = vpop.xlane.xlu0 %6327
        %v6329 = vadd.f32 %v6161, %v6266
        %v6330 = vadd.f32 %v6162, %v6268
        %v6331 = vadd.f32 %v6163, %v6270
        %v6332 = vadd.f32 %v6164, %v6272
        %v6333 = vadd.f32 %v6165, %v6274
        %v6334 = vadd.f32 %v6166, %v6276
        %v6335 = vadd.f32 %v6167, %v6278
        %v6336 = vadd.f32 %v6168, %v6280
        %v6337 = vadd.f32 %v6169, %v6282
        %v6338 = vadd.f32 %v6170, %v6284
        %v6339 = vadd.f32 %v6171, %v6286
        %v6340 = vadd.f32 %v6172, %v6288
        %v6341 = vadd.f32 %v6173, %v6290
        %v6342 = vadd.f32 %v6174, %v6292
        %v6343 = vadd.f32 %v6175, %v6294
        %v6344 = vadd.f32 %v6176, %v6296
        %v6345 = vadd.f32 %v6177, %v6298
        %v6346 = vadd.f32 %v6178, %v6300
        %v6347 = vadd.f32 %v6179, %v6302
        %v6348 = vadd.f32 %v6180, %v6304
        %v6349 = vadd.f32 %v6181, %v6306
        %v6350 = vadd.f32 %v6182, %v6308
        %v6351 = vadd.f32 %v6183, %v6310
        %v6352 = vadd.f32 %v6184, %v6312
        %v6353 = vadd.f32 %v6185, %v6314
        %v6354 = vadd.f32 %v6186, %v6316
        %v6355 = vadd.f32 %v6187, %v6318
        %v6356 = vadd.f32 %v6188, %v6320
        %v6357 = vadd.f32 %v6189, %v6322
        %v6358 = vadd.f32 %v6190, %v6324
        %v6359 = vadd.f32 %v6191, %v6326
        %v6360 = vadd.f32 %v6192, %v6328
        %v6361 = vld [vmem:[%s4674 + $0x1] sm:$0xff]
        %v6362 = vld [vmem:[%s4674 + $0x9] sm:$0xff]
        %v6363 = vld [vmem:[%s4674 + $0x19] sm:$0xff]
        %v6364 = vld [vmem:[%s4674 + $0x21] sm:$0xff]
        %v6365 = vld [vmem:[%s4674 + $0x31] sm:$0xff]
        %v6366 = vld [vmem:[%s4674 + $0x39] sm:$0xff]
        %v6367 = vld [vmem:[%s4674 + $0x49] sm:$0xff]
        %v6368 = vld [vmem:[%s4674 + $0x51] sm:$0xff]
        %v6369 = vld [vmem:[%s4674 + $0x61] sm:$0xff]
        %v6370 = vld [vmem:[%s4674 + $0x69] sm:$0xff]
        %v6371 = vld [vmem:[%s4674 + $0x79] sm:$0xff]
        %v6372 = vld [vmem:[%s4674 + $0x81] sm:$0xff]
        %v6373 = vld [vmem:[%s4674 + $0x91] sm:$0xff]
        %v6374 = vld [vmem:[%s4674 + $0x99] sm:$0xff]
        %v6375 = vld [vmem:[%s4674 + $0xa9] sm:$0xff]
        %v6376 = vld [vmem:[%s4674 + $0xb1] sm:$0xff]
        %v6377 = vld [vmem:[%s4674 + $0xc1] sm:$0xff]
        %v6378 = vld [vmem:[%s4674 + $0xc9] sm:$0xff]
        %v6379 = vld [vmem:[%s4674 + $0xd9] sm:$0xff]
        %v6380 = vld [vmem:[%s4674 + $0xe1] sm:$0xff]
        %v6381 = vld [vmem:[%s4674 + $0xf1] sm:$0xff]
        %v6382 = vld [vmem:[%s4674 + $0xf9] sm:$0xff]
        %v6383 = vld [vmem:[%s4674 + $0x109] sm:$0xff]
        %v6384 = vld [vmem:[%s4674 + $0x111] sm:$0xff]
        %v6385 = vld [vmem:[%s4674 + $0x121] sm:$0xff]
        %v6386 = vld [vmem:[%s4674 + $0x129] sm:$0xff]
        %v6387 = vld [vmem:[%s4674 + $0x139] sm:$0xff]
        %v6388 = vld [vmem:[%s4674 + $0x141] sm:$0xff]
        %v6389 = vld [vmem:[%s4674 + $0x151] sm:$0xff]
        %v6390 = vld [vmem:[%s4674 + $0x159] sm:$0xff]
        %v6391 = vld [vmem:[%s4674 + $0x169] sm:$0xff]
        %v6392 = vld [vmem:[%s4674 + $0x171] sm:$0xff]
        %s6393 = scalar_lea.vmem %s4, 4
        %v6394 = vld [vmem:[%s6393] sm:$0x1]
        %v6396 = vlaneseq
        %v6397 = vshrl.u32 %v6396, 7
        %v6398 = vsub.s32 0, %v6397
        %v6399 = vrot.slane %v6394, %v6398
        %v6401 = vmul.f32 %v6361, %v6399
        %v6402 = vmul.f32 %v6362, %v6399
        %v6403 = vmul.f32 %v6363, %v6399
        %v6404 = vmul.f32 %v6364, %v6399
        %v6405 = vmul.f32 %v6365, %v6399
        %v6406 = vmul.f32 %v6366, %v6399
        %v6407 = vmul.f32 %v6367, %v6399
        %v6408 = vmul.f32 %v6368, %v6399
        %v6409 = vmul.f32 %v6369, %v6399
        %v6410 = vmul.f32 %v6370, %v6399
        %v6411 = vmul.f32 %v6371, %v6399
        %v6412 = vmul.f32 %v6372, %v6399
        %v6413 = vmul.f32 %v6373, %v6399
        %v6414 = vmul.f32 %v6374, %v6399
        %v6415 = vmul.f32 %v6375, %v6399
        %v6416 = vmul.f32 %v6376, %v6399
        %v6417 = vmul.f32 %v6377, %v6399
        %v6418 = vmul.f32 %v6378, %v6399
        %v6419 = vmul.f32 %v6379, %v6399
        %v6420 = vmul.f32 %v6380, %v6399
        %v6421 = vmul.f32 %v6381, %v6399
        %v6422 = vmul.f32 %v6382, %v6399
        %v6423 = vmul.f32 %v6383, %v6399
        %v6424 = vmul.f32 %v6384, %v6399
        %v6425 = vmul.f32 %v6385, %v6399
        %v6426 = vmul.f32 %v6386, %v6399
        %v6427 = vmul.f32 %v6387, %v6399
        %v6428 = vmul.f32 %v6388, %v6399
        %v6429 = vmul.f32 %v6389, %v6399
        %v6430 = vmul.f32 %v6390, %v6399
        %v6431 = vmul.f32 %v6391, %v6399
        %v6432 = vmul.f32 %v6392, %v6399
        %6433 = vadd.xlane.f32.xlu0 %v6401
        %v6434 = vpop.xlane.xlu0 %6433
        %6435 = vadd.xlane.f32.xlu0 %v6402
        %v6436 = vpop.xlane.xlu0 %6435
        %6437 = vadd.xlane.f32.xlu0 %v6403
        %v6438 = vpop.xlane.xlu0 %6437
        %6439 = vadd.xlane.f32.xlu0 %v6404
        %v6440 = vpop.xlane.xlu0 %6439
        %6441 = vadd.xlane.f32.xlu0 %v6405
        %v6442 = vpop.xlane.xlu0 %6441
        %6443 = vadd.xlane.f32.xlu0 %v6406
        %v6444 = vpop.xlane.xlu0 %6443
        %6445 = vadd.xlane.f32.xlu0 %v6407
        %v6446 = vpop.xlane.xlu0 %6445
        %6447 = vadd.xlane.f32.xlu0 %v6408
        %v6448 = vpop.xlane.xlu0 %6447
        %6449 = vadd.xlane.f32.xlu0 %v6409
        %v6450 = vpop.xlane.xlu0 %6449
        %6451 = vadd.xlane.f32.xlu0 %v6410
        %v6452 = vpop.xlane.xlu0 %6451
        %6453 = vadd.xlane.f32.xlu0 %v6411
        %v6454 = vpop.xlane.xlu0 %6453
        %6455 = vadd.xlane.f32.xlu0 %v6412
        %v6456 = vpop.xlane.xlu0 %6455
        %6457 = vadd.xlane.f32.xlu0 %v6413
        %v6458 = vpop.xlane.xlu0 %6457
        %6459 = vadd.xlane.f32.xlu0 %v6414
        %v6460 = vpop.xlane.xlu0 %6459
        %6461 = vadd.xlane.f32.xlu0 %v6415
        %v6462 = vpop.xlane.xlu0 %6461
        %6463 = vadd.xlane.f32.xlu0 %v6416
        %v6464 = vpop.xlane.xlu0 %6463
        %6465 = vadd.xlane.f32.xlu0 %v6417
        %v6466 = vpop.xlane.xlu0 %6465
        %6467 = vadd.xlane.f32.xlu0 %v6418
        %v6468 = vpop.xlane.xlu0 %6467
        %6469 = vadd.xlane.f32.xlu0 %v6419
        %v6470 = vpop.xlane.xlu0 %6469
        %6471 = vadd.xlane.f32.xlu0 %v6420
        %v6472 = vpop.xlane.xlu0 %6471
        %6473 = vadd.xlane.f32.xlu0 %v6421
        %v6474 = vpop.xlane.xlu0 %6473
        %6475 = vadd.xlane.f32.xlu0 %v6422
        %v6476 = vpop.xlane.xlu0 %6475
        %6477 = vadd.xlane.f32.xlu0 %v6423
        %v6478 = vpop.xlane.xlu0 %6477
        %6479 = vadd.xlane.f32.xlu0 %v6424
        %v6480 = vpop.xlane.xlu0 %6479
        %6481 = vadd.xlane.f32.xlu0 %v6425
        %v6482 = vpop.xlane.xlu0 %6481
        %6483 = vadd.xlane.f32.xlu0 %v6426
        %v6484 = vpop.xlane.xlu0 %6483
        %6485 = vadd.xlane.f32.xlu0 %v6427
        %v6486 = vpop.xlane.xlu0 %6485
        %6487 = vadd.xlane.f32.xlu0 %v6428
        %v6488 = vpop.xlane.xlu0 %6487
        %6489 = vadd.xlane.f32.xlu0 %v6429
        %v6490 = vpop.xlane.xlu0 %6489
        %6491 = vadd.xlane.f32.xlu0 %v6430
        %v6492 = vpop.xlane.xlu0 %6491
        %6493 = vadd.xlane.f32.xlu0 %v6431
        %v6494 = vpop.xlane.xlu0 %6493
        %6495 = vadd.xlane.f32.xlu0 %v6432
        %v6496 = vpop.xlane.xlu0 %6495
        %v6497 = vadd.f32 %v6329, %v6434
        %v6498 = vadd.f32 %v6330, %v6436
        %v6499 = vadd.f32 %v6331, %v6438
        %v6500 = vadd.f32 %v6332, %v6440
        %v6501 = vadd.f32 %v6333, %v6442
        %v6502 = vadd.f32 %v6334, %v6444
        %v6503 = vadd.f32 %v6335, %v6446
        %v6504 = vadd.f32 %v6336, %v6448
        %v6505 = vadd.f32 %v6337, %v6450
        %v6506 = vadd.f32 %v6338, %v6452
        %v6507 = vadd.f32 %v6339, %v6454
        %v6508 = vadd.f32 %v6340, %v6456
        %v6509 = vadd.f32 %v6341, %v6458
        %v6510 = vadd.f32 %v6342, %v6460
        %v6511 = vadd.f32 %v6343, %v6462
        %v6512 = vadd.f32 %v6344, %v6464
        %v6513 = vadd.f32 %v6345, %v6466
        %v6514 = vadd.f32 %v6346, %v6468
        %v6515 = vadd.f32 %v6347, %v6470
        %v6516 = vadd.f32 %v6348, %v6472
        %v6517 = vadd.f32 %v6349, %v6474
        %v6518 = vadd.f32 %v6350, %v6476
        %v6519 = vadd.f32 %v6351, %v6478
        %v6520 = vadd.f32 %v6352, %v6480
        %v6521 = vadd.f32 %v6353, %v6482
        %v6522 = vadd.f32 %v6354, %v6484
        %v6523 = vadd.f32 %v6355, %v6486
        %v6524 = vadd.f32 %v6356, %v6488
        %v6525 = vadd.f32 %v6357, %v6490
        %v6526 = vadd.f32 %v6358, %v6492
        %v6527 = vadd.f32 %v6359, %v6494
        %v6528 = vadd.f32 %v6360, %v6496
        %v6529 = vld [vmem:[%s4674 + $0x2] sm:$0xff]
        %v6530 = vld [vmem:[%s4674 + $0xa] sm:$0xff]
        %v6531 = vld [vmem:[%s4674 + $0x1a] sm:$0xff]
        %v6532 = vld [vmem:[%s4674 + $0x22] sm:$0xff]
        %v6533 = vld [vmem:[%s4674 + $0x32] sm:$0xff]
        %v6534 = vld [vmem:[%s4674 + $0x3a] sm:$0xff]
        %v6535 = vld [vmem:[%s4674 + $0x4a] sm:$0xff]
        %v6536 = vld [vmem:[%s4674 + $0x52] sm:$0xff]
        %v6537 = vld [vmem:[%s4674 + $0x62] sm:$0xff]
        %v6538 = vld [vmem:[%s4674 + $0x6a] sm:$0xff]
        %v6539 = vld [vmem:[%s4674 + $0x7a] sm:$0xff]
        %v6540 = vld [vmem:[%s4674 + $0x82] sm:$0xff]
        %v6541 = vld [vmem:[%s4674 + $0x92] sm:$0xff]
        %v6542 = vld [vmem:[%s4674 + $0x9a] sm:$0xff]
        %v6543 = vld [vmem:[%s4674 + $0xaa] sm:$0xff]
        %v6544 = vld [vmem:[%s4674 + $0xb2] sm:$0xff]
        %v6545 = vld [vmem:[%s4674 + $0xc2] sm:$0xff]
        %v6546 = vld [vmem:[%s4674 + $0xca] sm:$0xff]
        %v6547 = vld [vmem:[%s4674 + $0xda] sm:$0xff]
        %v6548 = vld [vmem:[%s4674 + $0xe2] sm:$0xff]
        %v6549 = vld [vmem:[%s4674 + $0xf2] sm:$0xff]
        %v6550 = vld [vmem:[%s4674 + $0xfa] sm:$0xff]
        %v6551 = vld [vmem:[%s4674 + $0x10a] sm:$0xff]
        %v6552 = vld [vmem:[%s4674 + $0x112] sm:$0xff]
        %v6553 = vld [vmem:[%s4674 + $0x122] sm:$0xff]
        %v6554 = vld [vmem:[%s4674 + $0x12a] sm:$0xff]
        %v6555 = vld [vmem:[%s4674 + $0x13a] sm:$0xff]
        %v6556 = vld [vmem:[%s4674 + $0x142] sm:$0xff]
        %v6557 = vld [vmem:[%s4674 + $0x152] sm:$0xff]
        %v6558 = vld [vmem:[%s4674 + $0x15a] sm:$0xff]
        %v6559 = vld [vmem:[%s4674 + $0x16a] sm:$0xff]
        %v6560 = vld [vmem:[%s4674 + $0x172] sm:$0xff]
        %s6561 = scalar_lea.vmem %s4, 5
        %v6562 = vld [vmem:[%s6561] sm:$0x1]
        %v6564 = vlaneseq
        %v6565 = vshrl.u32 %v6564, 7
        %v6566 = vsub.s32 0, %v6565
        %v6567 = vrot.slane %v6562, %v6566
        %v6569 = vmul.f32 %v6529, %v6567
        %v6570 = vmul.f32 %v6530, %v6567
        %v6571 = vmul.f32 %v6531, %v6567
        %v6572 = vmul.f32 %v6532, %v6567
        %v6573 = vmul.f32 %v6533, %v6567
        %v6574 = vmul.f32 %v6534, %v6567
        %v6575 = vmul.f32 %v6535, %v6567
        %v6576 = vmul.f32 %v6536, %v6567
        %v6577 = vmul.f32 %v6537, %v6567
        %v6578 = vmul.f32 %v6538, %v6567
        %v6579 = vmul.f32 %v6539, %v6567
        %v6580 = vmul.f32 %v6540, %v6567
        %v6581 = vmul.f32 %v6541, %v6567
        %v6582 = vmul.f32 %v6542, %v6567
        %v6583 = vmul.f32 %v6543, %v6567
        %v6584 = vmul.f32 %v6544, %v6567
        %v6585 = vmul.f32 %v6545, %v6567
        %v6586 = vmul.f32 %v6546, %v6567
        %v6587 = vmul.f32 %v6547, %v6567
        %v6588 = vmul.f32 %v6548, %v6567
        %v6589 = vmul.f32 %v6549, %v6567
        %v6590 = vmul.f32 %v6550, %v6567
        %v6591 = vmul.f32 %v6551, %v6567
        %v6592 = vmul.f32 %v6552, %v6567
        %v6593 = vmul.f32 %v6553, %v6567
        %v6594 = vmul.f32 %v6554, %v6567
        %v6595 = vmul.f32 %v6555, %v6567
        %v6596 = vmul.f32 %v6556, %v6567
        %v6597 = vmul.f32 %v6557, %v6567
        %v6598 = vmul.f32 %v6558, %v6567
        %v6599 = vmul.f32 %v6559, %v6567
        %v6600 = vmul.f32 %v6560, %v6567
        %6601 = vadd.xlane.f32.xlu0 %v6569
        %v6602 = vpop.xlane.xlu0 %6601
        %6603 = vadd.xlane.f32.xlu0 %v6570
        %v6604 = vpop.xlane.xlu0 %6603
        %6605 = vadd.xlane.f32.xlu0 %v6571
        %v6606 = vpop.xlane.xlu0 %6605
        %6607 = vadd.xlane.f32.xlu0 %v6572
        %v6608 = vpop.xlane.xlu0 %6607
        %6609 = vadd.xlane.f32.xlu0 %v6573
        %v6610 = vpop.xlane.xlu0 %6609
        %6611 = vadd.xlane.f32.xlu0 %v6574
        %v6612 = vpop.xlane.xlu0 %6611
        %6613 = vadd.xlane.f32.xlu0 %v6575
        %v6614 = vpop.xlane.xlu0 %6613
        %6615 = vadd.xlane.f32.xlu0 %v6576
        %v6616 = vpop.xlane.xlu0 %6615
        %6617 = vadd.xlane.f32.xlu0 %v6577
        %v6618 = vpop.xlane.xlu0 %6617
        %6619 = vadd.xlane.f32.xlu0 %v6578
        %v6620 = vpop.xlane.xlu0 %6619
        %6621 = vadd.xlane.f32.xlu0 %v6579
        %v6622 = vpop.xlane.xlu0 %6621
        %6623 = vadd.xlane.f32.xlu0 %v6580
        %v6624 = vpop.xlane.xlu0 %6623
        %6625 = vadd.xlane.f32.xlu0 %v6581
        %v6626 = vpop.xlane.xlu0 %6625
        %6627 = vadd.xlane.f32.xlu0 %v6582
        %v6628 = vpop.xlane.xlu0 %6627
        %6629 = vadd.xlane.f32.xlu0 %v6583
        %v6630 = vpop.xlane.xlu0 %6629
        %6631 = vadd.xlane.f32.xlu0 %v6584
        %v6632 = vpop.xlane.xlu0 %6631
        %6633 = vadd.xlane.f32.xlu0 %v6585
        %v6634 = vpop.xlane.xlu0 %6633
        %6635 = vadd.xlane.f32.xlu0 %v6586
        %v6636 = vpop.xlane.xlu0 %6635
        %6637 = vadd.xlane.f32.xlu0 %v6587
        %v6638 = vpop.xlane.xlu0 %6637
        %6639 = vadd.xlane.f32.xlu0 %v6588
        %v6640 = vpop.xlane.xlu0 %6639
        %6641 = vadd.xlane.f32.xlu0 %v6589
        %v6642 = vpop.xlane.xlu0 %6641
        %6643 = vadd.xlane.f32.xlu0 %v6590
        %v6644 = vpop.xlane.xlu0 %6643
        %6645 = vadd.xlane.f32.xlu0 %v6591
        %v6646 = vpop.xlane.xlu0 %6645
        %6647 = vadd.xlane.f32.xlu0 %v6592
        %v6648 = vpop.xlane.xlu0 %6647
        %6649 = vadd.xlane.f32.xlu0 %v6593
        %v6650 = vpop.xlane.xlu0 %6649
        %6651 = vadd.xlane.f32.xlu0 %v6594
        %v6652 = vpop.xlane.xlu0 %6651
        %6653 = vadd.xlane.f32.xlu0 %v6595
        %v6654 = vpop.xlane.xlu0 %6653
        %6655 = vadd.xlane.f32.xlu0 %v6596
        %v6656 = vpop.xlane.xlu0 %6655
        %6657 = vadd.xlane.f32.xlu0 %v6597
        %v6658 = vpop.xlane.xlu0 %6657
        %6659 = vadd.xlane.f32.xlu0 %v6598
        %v6660 = vpop.xlane.xlu0 %6659
        %6661 = vadd.xlane.f32.xlu0 %v6599
        %v6662 = vpop.xlane.xlu0 %6661
        %6663 = vadd.xlane.f32.xlu0 %v6600
        %v6664 = vpop.xlane.xlu0 %6663
        %v6665 = vadd.f32 %v6497, %v6602
        %v6666 = vadd.f32 %v6498, %v6604
        %v6667 = vadd.f32 %v6499, %v6606
        %v6668 = vadd.f32 %v6500, %v6608
        %v6669 = vadd.f32 %v6501, %v6610
        %v6670 = vadd.f32 %v6502, %v6612
        %v6671 = vadd.f32 %v6503, %v6614
        %v6672 = vadd.f32 %v6504, %v6616
        %v6673 = vadd.f32 %v6505, %v6618
        %v6674 = vadd.f32 %v6506, %v6620
        %v6675 = vadd.f32 %v6507, %v6622
        %v6676 = vadd.f32 %v6508, %v6624
        %v6677 = vadd.f32 %v6509, %v6626
        %v6678 = vadd.f32 %v6510, %v6628
        %v6679 = vadd.f32 %v6511, %v6630
        %v6680 = vadd.f32 %v6512, %v6632
        %v6681 = vadd.f32 %v6513, %v6634
        %v6682 = vadd.f32 %v6514, %v6636
        %v6683 = vadd.f32 %v6515, %v6638
        %v6684 = vadd.f32 %v6516, %v6640
        %v6685 = vadd.f32 %v6517, %v6642
        %v6686 = vadd.f32 %v6518, %v6644
        %v6687 = vadd.f32 %v6519, %v6646
        %v6688 = vadd.f32 %v6520, %v6648
        %v6689 = vadd.f32 %v6521, %v6650
        %v6690 = vadd.f32 %v6522, %v6652
        %v6691 = vadd.f32 %v6523, %v6654
        %v6692 = vadd.f32 %v6524, %v6656
        %v6693 = vadd.f32 %v6525, %v6658
        %v6694 = vadd.f32 %v6526, %v6660
        %v6695 = vadd.f32 %v6527, %v6662
        %v6696 = vadd.f32 %v6528, %v6664
        %s6697 = scalar_lea.vmem [#allocation4], 48
        %v6698 = vld [vmem:[%s6697] sm:$0xff]
        %v6699 = vld [vmem:[%s6697 + $0x8] sm:$0xff]
        %v6700 = vld [vmem:[%s6697 + $0x18] sm:$0xff]
        %v6701 = vld [vmem:[%s6697 + $0x20] sm:$0xff]
        %v6702 = vld [vmem:[%s6697 + $0x30] sm:$0xff]
        %v6703 = vld [vmem:[%s6697 + $0x38] sm:$0xff]
        %v6704 = vld [vmem:[%s6697 + $0x48] sm:$0xff]
        %v6705 = vld [vmem:[%s6697 + $0x50] sm:$0xff]
        %v6706 = vld [vmem:[%s6697 + $0x60] sm:$0xff]
        %v6707 = vld [vmem:[%s6697 + $0x68] sm:$0xff]
        %v6708 = vld [vmem:[%s6697 + $0x78] sm:$0xff]
        %v6709 = vld [vmem:[%s6697 + $0x80] sm:$0xff]
        %v6710 = vld [vmem:[%s6697 + $0x90] sm:$0xff]
        %v6711 = vld [vmem:[%s6697 + $0x98] sm:$0xff]
        %v6712 = vld [vmem:[%s6697 + $0xa8] sm:$0xff]
        %v6713 = vld [vmem:[%s6697 + $0xb0] sm:$0xff]
        %v6714 = vld [vmem:[%s6697 + $0xc0] sm:$0xff]
        %v6715 = vld [vmem:[%s6697 + $0xc8] sm:$0xff]
        %v6716 = vld [vmem:[%s6697 + $0xd8] sm:$0xff]
        %v6717 = vld [vmem:[%s6697 + $0xe0] sm:$0xff]
        %v6718 = vld [vmem:[%s6697 + $0xf0] sm:$0xff]
        %v6719 = vld [vmem:[%s6697 + $0xf8] sm:$0xff]
        %v6720 = vld [vmem:[%s6697 + $0x108] sm:$0xff]
        %v6721 = vld [vmem:[%s6697 + $0x110] sm:$0xff]
        %v6722 = vld [vmem:[%s6697 + $0x120] sm:$0xff]
        %v6723 = vld [vmem:[%s6697 + $0x128] sm:$0xff]
        %v6724 = vld [vmem:[%s6697 + $0x138] sm:$0xff]
        %v6725 = vld [vmem:[%s6697 + $0x140] sm:$0xff]
        %v6726 = vld [vmem:[%s6697 + $0x150] sm:$0xff]
        %v6727 = vld [vmem:[%s6697 + $0x158] sm:$0xff]
        %v6728 = vld [vmem:[%s6697 + $0x168] sm:$0xff]
        %v6729 = vld [vmem:[%s6697 + $0x170] sm:$0xff]
        %s6730 = scalar_lea.vmem %s4, 6
        %v6731 = vld [vmem:[%s6730] sm:$0x1]
        %v6733 = vlaneseq
        %v6734 = vshrl.u32 %v6733, 7
        %v6735 = vsub.s32 0, %v6734
        %v6736 = vrot.slane %v6731, %v6735
        %v6738 = vmul.f32 %v6698, %v6736
        %v6739 = vmul.f32 %v6699, %v6736
        %v6740 = vmul.f32 %v6700, %v6736
        %v6741 = vmul.f32 %v6701, %v6736
        %v6742 = vmul.f32 %v6702, %v6736
        %v6743 = vmul.f32 %v6703, %v6736
        %v6744 = vmul.f32 %v6704, %v6736
        %v6745 = vmul.f32 %v6705, %v6736
        %v6746 = vmul.f32 %v6706, %v6736
        %v6747 = vmul.f32 %v6707, %v6736
        %v6748 = vmul.f32 %v6708, %v6736
        %v6749 = vmul.f32 %v6709, %v6736
        %v6750 = vmul.f32 %v6710, %v6736
        %v6751 = vmul.f32 %v6711, %v6736
        %v6752 = vmul.f32 %v6712, %v6736
        %v6753 = vmul.f32 %v6713, %v6736
        %v6754 = vmul.f32 %v6714, %v6736
        %v6755 = vmul.f32 %v6715, %v6736
        %v6756 = vmul.f32 %v6716, %v6736
        %v6757 = vmul.f32 %v6717, %v6736
        %v6758 = vmul.f32 %v6718, %v6736
        %v6759 = vmul.f32 %v6719, %v6736
        %v6760 = vmul.f32 %v6720, %v6736
        %v6761 = vmul.f32 %v6721, %v6736
        %v6762 = vmul.f32 %v6722, %v6736
        %v6763 = vmul.f32 %v6723, %v6736
        %v6764 = vmul.f32 %v6724, %v6736
        %v6765 = vmul.f32 %v6725, %v6736
        %v6766 = vmul.f32 %v6726, %v6736
        %v6767 = vmul.f32 %v6727, %v6736
        %v6768 = vmul.f32 %v6728, %v6736
        %v6769 = vmul.f32 %v6729, %v6736
        %6770 = vadd.xlane.f32.xlu0 %v6738
        %v6771 = vpop.xlane.xlu0 %6770
        %6772 = vadd.xlane.f32.xlu0 %v6739
        %v6773 = vpop.xlane.xlu0 %6772
        %6774 = vadd.xlane.f32.xlu0 %v6740
        %v6775 = vpop.xlane.xlu0 %6774
        %6776 = vadd.xlane.f32.xlu0 %v6741
        %v6777 = vpop.xlane.xlu0 %6776
        %6778 = vadd.xlane.f32.xlu0 %v6742
        %v6779 = vpop.xlane.xlu0 %6778
        %6780 = vadd.xlane.f32.xlu0 %v6743
        %v6781 = vpop.xlane.xlu0 %6780
        %6782 = vadd.xlane.f32.xlu0 %v6744
        %v6783 = vpop.xlane.xlu0 %6782
        %6784 = vadd.xlane.f32.xlu0 %v6745
        %v6785 = vpop.xlane.xlu0 %6784
        %6786 = vadd.xlane.f32.xlu0 %v6746
        %v6787 = vpop.xlane.xlu0 %6786
        %6788 = vadd.xlane.f32.xlu0 %v6747
        %v6789 = vpop.xlane.xlu0 %6788
        %6790 = vadd.xlane.f32.xlu0 %v6748
        %v6791 = vpop.xlane.xlu0 %6790
        %6792 = vadd.xlane.f32.xlu0 %v6749
        %v6793 = vpop.xlane.xlu0 %6792
        %6794 = vadd.xlane.f32.xlu0 %v6750
        %v6795 = vpop.xlane.xlu0 %6794
        %6796 = vadd.xlane.f32.xlu0 %v6751
        %v6797 = vpop.xlane.xlu0 %6796
        %6798 = vadd.xlane.f32.xlu0 %v6752
        %v6799 = vpop.xlane.xlu0 %6798
        %6800 = vadd.xlane.f32.xlu0 %v6753
        %v6801 = vpop.xlane.xlu0 %6800
        %6802 = vadd.xlane.f32.xlu0 %v6754
        %v6803 = vpop.xlane.xlu0 %6802
        %6804 = vadd.xlane.f32.xlu0 %v6755
        %v6805 = vpop.xlane.xlu0 %6804
        %6806 = vadd.xlane.f32.xlu0 %v6756
        %v6807 = vpop.xlane.xlu0 %6806
        %6808 = vadd.xlane.f32.xlu0 %v6757
        %v6809 = vpop.xlane.xlu0 %6808
        %6810 = vadd.xlane.f32.xlu0 %v6758
        %v6811 = vpop.xlane.xlu0 %6810
        %6812 = vadd.xlane.f32.xlu0 %v6759
        %v6813 = vpop.xlane.xlu0 %6812
        %6814 = vadd.xlane.f32.xlu0 %v6760
        %v6815 = vpop.xlane.xlu0 %6814
        %6816 = vadd.xlane.f32.xlu0 %v6761
        %v6817 = vpop.xlane.xlu0 %6816
        %6818 = vadd.xlane.f32.xlu0 %v6762
        %v6819 = vpop.xlane.xlu0 %6818
        %6820 = vadd.xlane.f32.xlu0 %v6763
        %v6821 = vpop.xlane.xlu0 %6820
        %6822 = vadd.xlane.f32.xlu0 %v6764
        %v6823 = vpop.xlane.xlu0 %6822
        %6824 = vadd.xlane.f32.xlu0 %v6765
        %v6825 = vpop.xlane.xlu0 %6824
        %6826 = vadd.xlane.f32.xlu0 %v6766
        %v6827 = vpop.xlane.xlu0 %6826
        %6828 = vadd.xlane.f32.xlu0 %v6767
        %v6829 = vpop.xlane.xlu0 %6828
        %6830 = vadd.xlane.f32.xlu0 %v6768
        %v6831 = vpop.xlane.xlu0 %6830
        %6832 = vadd.xlane.f32.xlu0 %v6769
        %v6833 = vpop.xlane.xlu0 %6832
        %v6834 = vadd.f32 %v6665, %v6771
        %v6835 = vadd.f32 %v6666, %v6773
        %v6836 = vadd.f32 %v6667, %v6775
        %v6837 = vadd.f32 %v6668, %v6777
        %v6838 = vadd.f32 %v6669, %v6779
        %v6839 = vadd.f32 %v6670, %v6781
        %v6840 = vadd.f32 %v6671, %v6783
        %v6841 = vadd.f32 %v6672, %v6785
        %v6842 = vadd.f32 %v6673, %v6787
        %v6843 = vadd.f32 %v6674, %v6789
        %v6844 = vadd.f32 %v6675, %v6791
        %v6845 = vadd.f32 %v6676, %v6793
        %v6846 = vadd.f32 %v6677, %v6795
        %v6847 = vadd.f32 %v6678, %v6797
        %v6848 = vadd.f32 %v6679, %v6799
        %v6849 = vadd.f32 %v6680, %v6801
        %v6850 = vadd.f32 %v6681, %v6803
        %v6851 = vadd.f32 %v6682, %v6805
        %v6852 = vadd.f32 %v6683, %v6807
        %v6853 = vadd.f32 %v6684, %v6809
        %v6854 = vadd.f32 %v6685, %v6811
        %v6855 = vadd.f32 %v6686, %v6813
        %v6856 = vadd.f32 %v6687, %v6815
        %v6857 = vadd.f32 %v6688, %v6817
        %v6858 = vadd.f32 %v6689, %v6819
        %v6859 = vadd.f32 %v6690, %v6821
        %v6860 = vadd.f32 %v6691, %v6823
        %v6861 = vadd.f32 %v6692, %v6825
        %v6862 = vadd.f32 %v6693, %v6827
        %v6863 = vadd.f32 %v6694, %v6829
        %v6864 = vadd.f32 %v6695, %v6831
        %v6865 = vadd.f32 %v6696, %v6833
        %v6866 = vld [vmem:[%s6697 + $0x1] sm:$0xff]
        %v6867 = vld [vmem:[%s6697 + $0x9] sm:$0xff]
        %v6868 = vld [vmem:[%s6697 + $0x19] sm:$0xff]
        %v6869 = vld [vmem:[%s6697 + $0x21] sm:$0xff]
        %v6870 = vld [vmem:[%s6697 + $0x31] sm:$0xff]
        %v6871 = vld [vmem:[%s6697 + $0x39] sm:$0xff]
        %v6872 = vld [vmem:[%s6697 + $0x49] sm:$0xff]
        %v6873 = vld [vmem:[%s6697 + $0x51] sm:$0xff]
        %v6874 = vld [vmem:[%s6697 + $0x61] sm:$0xff]
        %v6875 = vld [vmem:[%s6697 + $0x69] sm:$0xff]
        %v6876 = vld [vmem:[%s6697 + $0x79] sm:$0xff]
        %v6877 = vld [vmem:[%s6697 + $0x81] sm:$0xff]
        %v6878 = vld [vmem:[%s6697 + $0x91] sm:$0xff]
        %v6879 = vld [vmem:[%s6697 + $0x99] sm:$0xff]
        %v6880 = vld [vmem:[%s6697 + $0xa9] sm:$0xff]
        %v6881 = vld [vmem:[%s6697 + $0xb1] sm:$0xff]
        %v6882 = vld [vmem:[%s6697 + $0xc1] sm:$0xff]
        %v6883 = vld [vmem:[%s6697 + $0xc9] sm:$0xff]
        %v6884 = vld [vmem:[%s6697 + $0xd9] sm:$0xff]
        %v6885 = vld [vmem:[%s6697 + $0xe1] sm:$0xff]
        %v6886 = vld [vmem:[%s6697 + $0xf1] sm:$0xff]
        %v6887 = vld [vmem:[%s6697 + $0xf9] sm:$0xff]
        %v6888 = vld [vmem:[%s6697 + $0x109] sm:$0xff]
        %v6889 = vld [vmem:[%s6697 + $0x111] sm:$0xff]
        %v6890 = vld [vmem:[%s6697 + $0x121] sm:$0xff]
        %v6891 = vld [vmem:[%s6697 + $0x129] sm:$0xff]
        %v6892 = vld [vmem:[%s6697 + $0x139] sm:$0xff]
        %v6893 = vld [vmem:[%s6697 + $0x141] sm:$0xff]
        %v6894 = vld [vmem:[%s6697 + $0x151] sm:$0xff]
        %v6895 = vld [vmem:[%s6697 + $0x159] sm:$0xff]
        %v6896 = vld [vmem:[%s6697 + $0x169] sm:$0xff]
        %v6897 = vld [vmem:[%s6697 + $0x171] sm:$0xff]
        %s6898 = scalar_lea.vmem %s4, 7
        %v6899 = vld [vmem:[%s6898] sm:$0x1]
        %v6901 = vlaneseq
        %v6902 = vshrl.u32 %v6901, 7
        %v6903 = vsub.s32 0, %v6902
        %v6904 = vrot.slane %v6899, %v6903
        %v6906 = vmul.f32 %v6866, %v6904
        %v6907 = vmul.f32 %v6867, %v6904
        %v6908 = vmul.f32 %v6868, %v6904
        %v6909 = vmul.f32 %v6869, %v6904
        %v6910 = vmul.f32 %v6870, %v6904
        %v6911 = vmul.f32 %v6871, %v6904
        %v6912 = vmul.f32 %v6872, %v6904
        %v6913 = vmul.f32 %v6873, %v6904
        %v6914 = vmul.f32 %v6874, %v6904
        %v6915 = vmul.f32 %v6875, %v6904
        %v6916 = vmul.f32 %v6876, %v6904
        %v6917 = vmul.f32 %v6877, %v6904
        %v6918 = vmul.f32 %v6878, %v6904
        %v6919 = vmul.f32 %v6879, %v6904
        %v6920 = vmul.f32 %v6880, %v6904
        %v6921 = vmul.f32 %v6881, %v6904
        %v6922 = vmul.f32 %v6882, %v6904
        %v6923 = vmul.f32 %v6883, %v6904
        %v6924 = vmul.f32 %v6884, %v6904
        %v6925 = vmul.f32 %v6885, %v6904
        %v6926 = vmul.f32 %v6886, %v6904
        %v6927 = vmul.f32 %v6887, %v6904
        %v6928 = vmul.f32 %v6888, %v6904
        %v6929 = vmul.f32 %v6889, %v6904
        %v6930 = vmul.f32 %v6890, %v6904
        %v6931 = vmul.f32 %v6891, %v6904
        %v6932 = vmul.f32 %v6892, %v6904
        %v6933 = vmul.f32 %v6893, %v6904
        %v6934 = vmul.f32 %v6894, %v6904
        %v6935 = vmul.f32 %v6895, %v6904
        %v6936 = vmul.f32 %v6896, %v6904
        %v6937 = vmul.f32 %v6897, %v6904
        %6938 = vadd.xlane.f32.xlu0 %v6906
        %v6939 = vpop.xlane.xlu0 %6938
        %6940 = vadd.xlane.f32.xlu0 %v6907
        %v6941 = vpop.xlane.xlu0 %6940
        %6942 = vadd.xlane.f32.xlu0 %v6908
        %v6943 = vpop.xlane.xlu0 %6942
        %6944 = vadd.xlane.f32.xlu0 %v6909
        %v6945 = vpop.xlane.xlu0 %6944
        %6946 = vadd.xlane.f32.xlu0 %v6910
        %v6947 = vpop.xlane.xlu0 %6946
        %6948 = vadd.xlane.f32.xlu0 %v6911
        %v6949 = vpop.xlane.xlu0 %6948
        %6950 = vadd.xlane.f32.xlu0 %v6912
        %v6951 = vpop.xlane.xlu0 %6950
        %6952 = vadd.xlane.f32.xlu0 %v6913
        %v6953 = vpop.xlane.xlu0 %6952
        %6954 = vadd.xlane.f32.xlu0 %v6914
        %v6955 = vpop.xlane.xlu0 %6954
        %6956 = vadd.xlane.f32.xlu0 %v6915
        %v6957 = vpop.xlane.xlu0 %6956
        %6958 = vadd.xlane.f32.xlu0 %v6916
        %v6959 = vpop.xlane.xlu0 %6958
        %6960 = vadd.xlane.f32.xlu0 %v6917
        %v6961 = vpop.xlane.xlu0 %6960
        %6962 = vadd.xlane.f32.xlu0 %v6918
        %v6963 = vpop.xlane.xlu0 %6962
        %6964 = vadd.xlane.f32.xlu0 %v6919
        %v6965 = vpop.xlane.xlu0 %6964
        %6966 = vadd.xlane.f32.xlu0 %v6920
        %v6967 = vpop.xlane.xlu0 %6966
        %6968 = vadd.xlane.f32.xlu0 %v6921
        %v6969 = vpop.xlane.xlu0 %6968
        %6970 = vadd.xlane.f32.xlu0 %v6922
        %v6971 = vpop.xlane.xlu0 %6970
        %6972 = vadd.xlane.f32.xlu0 %v6923
        %v6973 = vpop.xlane.xlu0 %6972
        %6974 = vadd.xlane.f32.xlu0 %v6924
        %v6975 = vpop.xlane.xlu0 %6974
        %6976 = vadd.xlane.f32.xlu0 %v6925
        %v6977 = vpop.xlane.xlu0 %6976
        %6978 = vadd.xlane.f32.xlu0 %v6926
        %v6979 = vpop.xlane.xlu0 %6978
        %6980 = vadd.xlane.f32.xlu0 %v6927
        %v6981 = vpop.xlane.xlu0 %6980
        %6982 = vadd.xlane.f32.xlu0 %v6928
        %v6983 = vpop.xlane.xlu0 %6982
        %6984 = vadd.xlane.f32.xlu0 %v6929
        %v6985 = vpop.xlane.xlu0 %6984
        %6986 = vadd.xlane.f32.xlu0 %v6930
        %v6987 = vpop.xlane.xlu0 %6986
        %6988 = vadd.xlane.f32.xlu0 %v6931
        %v6989 = vpop.xlane.xlu0 %6988
        %6990 = vadd.xlane.f32.xlu0 %v6932
        %v6991 = vpop.xlane.xlu0 %6990
        %6992 = vadd.xlane.f32.xlu0 %v6933
        %v6993 = vpop.xlane.xlu0 %6992
        %6994 = vadd.xlane.f32.xlu0 %v6934
        %v6995 = vpop.xlane.xlu0 %6994
        %6996 = vadd.xlane.f32.xlu0 %v6935
        %v6997 = vpop.xlane.xlu0 %6996
        %6998 = vadd.xlane.f32.xlu0 %v6936
        %v6999 = vpop.xlane.xlu0 %6998
        %7000 = vadd.xlane.f32.xlu0 %v6937
        %v7001 = vpop.xlane.xlu0 %7000
        %v7002 = vadd.f32 %v6834, %v6939
        %v7003 = vadd.f32 %v6835, %v6941
        %v7004 = vadd.f32 %v6836, %v6943
        %v7005 = vadd.f32 %v6837, %v6945
        %v7006 = vadd.f32 %v6838, %v6947
        %v7007 = vadd.f32 %v6839, %v6949
        %v7008 = vadd.f32 %v6840, %v6951
        %v7009 = vadd.f32 %v6841, %v6953
        %v7010 = vadd.f32 %v6842, %v6955
        %v7011 = vadd.f32 %v6843, %v6957
        %v7012 = vadd.f32 %v6844, %v6959
        %v7013 = vadd.f32 %v6845, %v6961
        %v7014 = vadd.f32 %v6846, %v6963
        %v7015 = vadd.f32 %v6847, %v6965
        %v7016 = vadd.f32 %v6848, %v6967
        %v7017 = vadd.f32 %v6849, %v6969
        %v7018 = vadd.f32 %v6850, %v6971
        %v7019 = vadd.f32 %v6851, %v6973
        %v7020 = vadd.f32 %v6852, %v6975
        %v7021 = vadd.f32 %v6853, %v6977
        %v7022 = vadd.f32 %v6854, %v6979
        %v7023 = vadd.f32 %v6855, %v6981
        %v7024 = vadd.f32 %v6856, %v6983
        %v7025 = vadd.f32 %v6857, %v6985
        %v7026 = vadd.f32 %v6858, %v6987
        %v7027 = vadd.f32 %v6859, %v6989
        %v7028 = vadd.f32 %v6860, %v6991
        %v7029 = vadd.f32 %v6861, %v6993
        %v7030 = vadd.f32 %v6862, %v6995
        %v7031 = vadd.f32 %v6863, %v6997
        %v7032 = vadd.f32 %v6864, %v6999
        %v7033 = vadd.f32 %v6865, %v7001
        %v7034 = vld [vmem:[%s6697 + $0x2] sm:$0xff]
        %v7035 = vld [vmem:[%s6697 + $0xa] sm:$0xff]
        %v7036 = vld [vmem:[%s6697 + $0x1a] sm:$0xff]
        %v7037 = vld [vmem:[%s6697 + $0x22] sm:$0xff]
        %v7038 = vld [vmem:[%s6697 + $0x32] sm:$0xff]
        %v7039 = vld [vmem:[%s6697 + $0x3a] sm:$0xff]
        %v7040 = vld [vmem:[%s6697 + $0x4a] sm:$0xff]
        %v7041 = vld [vmem:[%s6697 + $0x52] sm:$0xff]
        %v7042 = vld [vmem:[%s6697 + $0x62] sm:$0xff]
        %v7043 = vld [vmem:[%s6697 + $0x6a] sm:$0xff]
        %v7044 = vld [vmem:[%s6697 + $0x7a] sm:$0xff]
        %v7045 = vld [vmem:[%s6697 + $0x82] sm:$0xff]
        %v7046 = vld [vmem:[%s6697 + $0x92] sm:$0xff]
        %v7047 = vld [vmem:[%s6697 + $0x9a] sm:$0xff]
        %v7048 = vld [vmem:[%s6697 + $0xaa] sm:$0xff]
        %v7049 = vld [vmem:[%s6697 + $0xb2] sm:$0xff]
        %v7050 = vld [vmem:[%s6697 + $0xc2] sm:$0xff]
        %v7051 = vld [vmem:[%s6697 + $0xca] sm:$0xff]
        %v7052 = vld [vmem:[%s6697 + $0xda] sm:$0xff]
        %v7053 = vld [vmem:[%s6697 + $0xe2] sm:$0xff]
        %v7054 = vld [vmem:[%s6697 + $0xf2] sm:$0xff]
        %v7055 = vld [vmem:[%s6697 + $0xfa] sm:$0xff]
        %v7056 = vld [vmem:[%s6697 + $0x10a] sm:$0xff]
        %v7057 = vld [vmem:[%s6697 + $0x112] sm:$0xff]
        %v7058 = vld [vmem:[%s6697 + $0x122] sm:$0xff]
        %v7059 = vld [vmem:[%s6697 + $0x12a] sm:$0xff]
        %v7060 = vld [vmem:[%s6697 + $0x13a] sm:$0xff]
        %v7061 = vld [vmem:[%s6697 + $0x142] sm:$0xff]
        %v7062 = vld [vmem:[%s6697 + $0x152] sm:$0xff]
        %v7063 = vld [vmem:[%s6697 + $0x15a] sm:$0xff]
        %v7064 = vld [vmem:[%s6697 + $0x16a] sm:$0xff]
        %v7065 = vld [vmem:[%s6697 + $0x172] sm:$0xff]
        %s7066 = scalar_lea.vmem %s4, 8
        %v7067 = vld [vmem:[%s7066] sm:$0x1]
        %v7069 = vlaneseq
        %v7070 = vshrl.u32 %v7069, 7
        %v7071 = vsub.s32 0, %v7070
        %v7072 = vrot.slane %v7067, %v7071
        %v7074 = vmul.f32 %v7034, %v7072
        %v7075 = vmul.f32 %v7035, %v7072
        %v7076 = vmul.f32 %v7036, %v7072
        %v7077 = vmul.f32 %v7037, %v7072
        %v7078 = vmul.f32 %v7038, %v7072
        %v7079 = vmul.f32 %v7039, %v7072
        %v7080 = vmul.f32 %v7040, %v7072
        %v7081 = vmul.f32 %v7041, %v7072
        %v7082 = vmul.f32 %v7042, %v7072
        %v7083 = vmul.f32 %v7043, %v7072
        %v7084 = vmul.f32 %v7044, %v7072
        %v7085 = vmul.f32 %v7045, %v7072
        %v7086 = vmul.f32 %v7046, %v7072
        %v7087 = vmul.f32 %v7047, %v7072
        %v7088 = vmul.f32 %v7048, %v7072
        %v7089 = vmul.f32 %v7049, %v7072
        %v7090 = vmul.f32 %v7050, %v7072
        %v7091 = vmul.f32 %v7051, %v7072
        %v7092 = vmul.f32 %v7052, %v7072
        %v7093 = vmul.f32 %v7053, %v7072
        %v7094 = vmul.f32 %v7054, %v7072
        %v7095 = vmul.f32 %v7055, %v7072
        %v7096 = vmul.f32 %v7056, %v7072
        %v7097 = vmul.f32 %v7057, %v7072
        %v7098 = vmul.f32 %v7058, %v7072
        %v7099 = vmul.f32 %v7059, %v7072
        %v7100 = vmul.f32 %v7060, %v7072
        %v7101 = vmul.f32 %v7061, %v7072
        %v7102 = vmul.f32 %v7062, %v7072
        %v7103 = vmul.f32 %v7063, %v7072
        %v7104 = vmul.f32 %v7064, %v7072
        %v7105 = vmul.f32 %v7065, %v7072
        %7106 = vadd.xlane.f32.xlu0 %v7074
        %v7107 = vpop.xlane.xlu0 %7106
        %7108 = vadd.xlane.f32.xlu0 %v7075
        %v7109 = vpop.xlane.xlu0 %7108
        %7110 = vadd.xlane.f32.xlu0 %v7076
        %v7111 = vpop.xlane.xlu0 %7110
        %7112 = vadd.xlane.f32.xlu0 %v7077
        %v7113 = vpop.xlane.xlu0 %7112
        %7114 = vadd.xlane.f32.xlu0 %v7078
        %v7115 = vpop.xlane.xlu0 %7114
        %7116 = vadd.xlane.f32.xlu0 %v7079
        %v7117 = vpop.xlane.xlu0 %7116
        %7118 = vadd.xlane.f32.xlu0 %v7080
        %v7119 = vpop.xlane.xlu0 %7118
        %7120 = vadd.xlane.f32.xlu0 %v7081
        %v7121 = vpop.xlane.xlu0 %7120
        %7122 = vadd.xlane.f32.xlu0 %v7082
        %v7123 = vpop.xlane.xlu0 %7122
        %7124 = vadd.xlane.f32.xlu0 %v7083
        %v7125 = vpop.xlane.xlu0 %7124
        %7126 = vadd.xlane.f32.xlu0 %v7084
        %v7127 = vpop.xlane.xlu0 %7126
        %7128 = vadd.xlane.f32.xlu0 %v7085
        %v7129 = vpop.xlane.xlu0 %7128
        %7130 = vadd.xlane.f32.xlu0 %v7086
        %v7131 = vpop.xlane.xlu0 %7130
        %7132 = vadd.xlane.f32.xlu0 %v7087
        %v7133 = vpop.xlane.xlu0 %7132
        %7134 = vadd.xlane.f32.xlu0 %v7088
        %v7135 = vpop.xlane.xlu0 %7134
        %7136 = vadd.xlane.f32.xlu0 %v7089
        %v7137 = vpop.xlane.xlu0 %7136
        %7138 = vadd.xlane.f32.xlu0 %v7090
        %v7139 = vpop.xlane.xlu0 %7138
        %7140 = vadd.xlane.f32.xlu0 %v7091
        %v7141 = vpop.xlane.xlu0 %7140
        %7142 = vadd.xlane.f32.xlu0 %v7092
        %v7143 = vpop.xlane.xlu0 %7142
        %7144 = vadd.xlane.f32.xlu0 %v7093
        %v7145 = vpop.xlane.xlu0 %7144
        %7146 = vadd.xlane.f32.xlu0 %v7094
        %v7147 = vpop.xlane.xlu0 %7146
        %7148 = vadd.xlane.f32.xlu0 %v7095
        %v7149 = vpop.xlane.xlu0 %7148
        %7150 = vadd.xlane.f32.xlu0 %v7096
        %v7151 = vpop.xlane.xlu0 %7150
        %7152 = vadd.xlane.f32.xlu0 %v7097
        %v7153 = vpop.xlane.xlu0 %7152
        %7154 = vadd.xlane.f32.xlu0 %v7098
        %v7155 = vpop.xlane.xlu0 %7154
        %7156 = vadd.xlane.f32.xlu0 %v7099
        %v7157 = vpop.xlane.xlu0 %7156
        %7158 = vadd.xlane.f32.xlu0 %v7100
        %v7159 = vpop.xlane.xlu0 %7158
        %7160 = vadd.xlane.f32.xlu0 %v7101
        %v7161 = vpop.xlane.xlu0 %7160
        %7162 = vadd.xlane.f32.xlu0 %v7102
        %v7163 = vpop.xlane.xlu0 %7162
        %7164 = vadd.xlane.f32.xlu0 %v7103
        %v7165 = vpop.xlane.xlu0 %7164
        %7166 = vadd.xlane.f32.xlu0 %v7104
        %v7167 = vpop.xlane.xlu0 %7166
        %7168 = vadd.xlane.f32.xlu0 %v7105
        %v7169 = vpop.xlane.xlu0 %7168
        %v7170 = vadd.f32 %v7002, %v7107
        %v7171 = vadd.f32 %v7003, %v7109
        %v7172 = vadd.f32 %v7004, %v7111
        %v7173 = vadd.f32 %v7005, %v7113
        %v7174 = vadd.f32 %v7006, %v7115
        %v7175 = vadd.f32 %v7007, %v7117
        %v7176 = vadd.f32 %v7008, %v7119
        %v7177 = vadd.f32 %v7009, %v7121
        %v7178 = vadd.f32 %v7010, %v7123
        %v7179 = vadd.f32 %v7011, %v7125
        %v7180 = vadd.f32 %v7012, %v7127
        %v7181 = vadd.f32 %v7013, %v7129
        %v7182 = vadd.f32 %v7014, %v7131
        %v7183 = vadd.f32 %v7015, %v7133
        %v7184 = vadd.f32 %v7016, %v7135
        %v7185 = vadd.f32 %v7017, %v7137
        %v7186 = vadd.f32 %v7018, %v7139
        %v7187 = vadd.f32 %v7019, %v7141
        %v7188 = vadd.f32 %v7020, %v7143
        %v7189 = vadd.f32 %v7021, %v7145
        %v7190 = vadd.f32 %v7022, %v7147
        %v7191 = vadd.f32 %v7023, %v7149
        %v7192 = vadd.f32 %v7024, %v7151
        %v7193 = vadd.f32 %v7025, %v7153
        %v7194 = vadd.f32 %v7026, %v7155
        %v7195 = vadd.f32 %v7027, %v7157
        %v7196 = vadd.f32 %v7028, %v7159
        %v7197 = vadd.f32 %v7029, %v7161
        %v7198 = vadd.f32 %v7030, %v7163
        %v7199 = vadd.f32 %v7031, %v7165
        %v7200 = vadd.f32 %v7032, %v7167
        %v7201 = vadd.f32 %v7033, %v7169
        %v7202 = vld [vmem:[%s5 + $0x3] sm:$0x1]
        %s7204 = vtos %v7202
        %v7205 = vstv %s7204
        %v7207 = vadd.f32 %v7170, %v7205
        %v7208 = vadd.f32 %v7171, %v7205
        %v7209 = vadd.f32 %v7172, %v7205
        %v7210 = vadd.f32 %v7173, %v7205
        %v7211 = vadd.f32 %v7174, %v7205
        %v7212 = vadd.f32 %v7175, %v7205
        %v7213 = vadd.f32 %v7176, %v7205
        %v7214 = vadd.f32 %v7177, %v7205
        %v7215 = vadd.f32 %v7178, %v7205
        %v7216 = vadd.f32 %v7179, %v7205
        %v7217 = vadd.f32 %v7180, %v7205
        %v7218 = vadd.f32 %v7181, %v7205
        %v7219 = vadd.f32 %v7182, %v7205
        %v7220 = vadd.f32 %v7183, %v7205
        %v7221 = vadd.f32 %v7184, %v7205
        %v7222 = vadd.f32 %v7185, %v7205
        %v7223 = vadd.f32 %v7186, %v7205
        %v7224 = vadd.f32 %v7187, %v7205
        %v7225 = vadd.f32 %v7188, %v7205
        %v7226 = vadd.f32 %v7189, %v7205
        %v7227 = vadd.f32 %v7190, %v7205
        %v7228 = vadd.f32 %v7191, %v7205
        %v7229 = vadd.f32 %v7192, %v7205
        %v7230 = vadd.f32 %v7193, %v7205
        %v7231 = vadd.f32 %v7194, %v7205
        %v7232 = vadd.f32 %v7195, %v7205
        %v7233 = vadd.f32 %v7196, %v7205
        %v7234 = vadd.f32 %v7197, %v7205
        %v7235 = vadd.f32 %v7198, %v7205
        %v7236 = vadd.f32 %v7199, %v7205
        %v7237 = vadd.f32 %v7200, %v7205
        %v7238 = vadd.f32 %v7201, %v7205
        %v7239 = vxor.u32 %v7207, 2147483648
        %v7240 = vxor.u32 %v7208, 2147483648
        %v7241 = vxor.u32 %v7209, 2147483648
        %v7242 = vxor.u32 %v7210, 2147483648
        %v7243 = vxor.u32 %v7211, 2147483648
        %v7244 = vxor.u32 %v7212, 2147483648
        %v7245 = vxor.u32 %v7213, 2147483648
        %v7246 = vxor.u32 %v7214, 2147483648
        %v7247 = vxor.u32 %v7215, 2147483648
        %v7248 = vxor.u32 %v7216, 2147483648
        %v7249 = vxor.u32 %v7217, 2147483648
        %v7250 = vxor.u32 %v7218, 2147483648
        %v7251 = vxor.u32 %v7219, 2147483648
        %v7252 = vxor.u32 %v7220, 2147483648
        %v7253 = vxor.u32 %v7221, 2147483648
        %v7254 = vxor.u32 %v7222, 2147483648
        %v7255 = vxor.u32 %v7223, 2147483648
        %v7256 = vxor.u32 %v7224, 2147483648
        %v7257 = vxor.u32 %v7225, 2147483648
        %v7258 = vxor.u32 %v7226, 2147483648
        %v7259 = vxor.u32 %v7227, 2147483648
        %v7260 = vxor.u32 %v7228, 2147483648
        %v7261 = vxor.u32 %v7229, 2147483648
        %v7262 = vxor.u32 %v7230, 2147483648
        %v7263 = vxor.u32 %v7231, 2147483648
        %v7264 = vxor.u32 %v7232, 2147483648
        %v7265 = vxor.u32 %v7233, 2147483648
        %v7266 = vxor.u32 %v7234, 2147483648
        %v7267 = vxor.u32 %v7235, 2147483648
        %v7268 = vxor.u32 %v7236, 2147483648
        %v7269 = vxor.u32 %v7237, 2147483648
        %v7270 = vxor.u32 %v7238, 2147483648
        %v7271 = vmul.f32 %v7239, 1.442695
        %v7272 = vpow.pop %v7271
        %v7273 = vmul.f32 %v7240, 1.442695
        %v7274 = vpow.pop %v7273
        %v7275 = vmul.f32 %v7241, 1.442695
        %v7276 = vpow.pop %v7275
        %v7277 = vmul.f32 %v7242, 1.442695
        %v7278 = vpow.pop %v7277
        %v7279 = vmul.f32 %v7243, 1.442695
        %v7280 = vpow.pop %v7279
        %v7281 = vmul.f32 %v7244, 1.442695
        %v7282 = vpow.pop %v7281
        %v7283 = vmul.f32 %v7245, 1.442695
        %v7284 = vpow.pop %v7283
        %v7285 = vmul.f32 %v7246, 1.442695
        %v7286 = vpow.pop %v7285
        %v7287 = vmul.f32 %v7247, 1.442695
        %v7288 = vpow.pop %v7287
        %v7289 = vmul.f32 %v7248, 1.442695
        %v7290 = vpow.pop %v7289
        %v7291 = vmul.f32 %v7249, 1.442695
        %v7292 = vpow.pop %v7291
        %v7293 = vmul.f32 %v7250, 1.442695
        %v7294 = vpow.pop %v7293
        %v7295 = vmul.f32 %v7251, 1.442695
        %v7296 = vpow.pop %v7295
        %v7297 = vmul.f32 %v7252, 1.442695
        %v7298 = vpow.pop %v7297
        %v7299 = vmul.f32 %v7253, 1.442695
        %v7300 = vpow.pop %v7299
        %v7301 = vmul.f32 %v7254, 1.442695
        %v7302 = vpow.pop %v7301
        %v7303 = vmul.f32 %v7255, 1.442695
        %v7304 = vpow.pop %v7303
        %v7305 = vmul.f32 %v7256, 1.442695
        %v7306 = vpow.pop %v7305
        %v7307 = vmul.f32 %v7257, 1.442695
        %v7308 = vpow.pop %v7307
        %v7309 = vmul.f32 %v7258, 1.442695
        %v7310 = vpow.pop %v7309
        %v7311 = vmul.f32 %v7259, 1.442695
        %v7312 = vpow.pop %v7311
        %v7313 = vmul.f32 %v7260, 1.442695
        %v7314 = vpow.pop %v7313
        %v7315 = vmul.f32 %v7261, 1.442695
        %v7316 = vpow.pop %v7315
        %v7317 = vmul.f32 %v7262, 1.442695
        %v7318 = vpow.pop %v7317
        %v7319 = vmul.f32 %v7263, 1.442695
        %v7320 = vpow.pop %v7319
        %v7321 = vmul.f32 %v7264, 1.442695
        %v7322 = vpow.pop %v7321
        %v7323 = vmul.f32 %v7265, 1.442695
        %v7324 = vpow.pop %v7323
        %v7325 = vmul.f32 %v7266, 1.442695
        %v7326 = vpow.pop %v7325
        %v7327 = vmul.f32 %v7267, 1.442695
        %v7328 = vpow.pop %v7327
        %v7329 = vmul.f32 %v7268, 1.442695
        %v7330 = vpow.pop %v7329
        %v7331 = vmul.f32 %v7269, 1.442695
        %v7332 = vpow.pop %v7331
        %v7333 = vmul.f32 %v7270, 1.442695
        %v7334 = vpow.pop %v7333
        %v7335 = vadd.f32 %v7272, 1.0
        %v7336 = vadd.f32 %v7274, 1.0
        %v7337 = vadd.f32 %v7276, 1.0
        %v7338 = vadd.f32 %v7278, 1.0
        %v7339 = vadd.f32 %v7280, 1.0
        %v7340 = vadd.f32 %v7282, 1.0
        %v7341 = vadd.f32 %v7284, 1.0
        %v7342 = vadd.f32 %v7286, 1.0
        %v7343 = vadd.f32 %v7288, 1.0
        %v7344 = vadd.f32 %v7290, 1.0
        %v7345 = vadd.f32 %v7292, 1.0
        %v7346 = vadd.f32 %v7294, 1.0
        %v7347 = vadd.f32 %v7296, 1.0
        %v7348 = vadd.f32 %v7298, 1.0
        %v7349 = vadd.f32 %v7300, 1.0
        %v7350 = vadd.f32 %v7302, 1.0
        %v7351 = vadd.f32 %v7304, 1.0
        %v7352 = vadd.f32 %v7306, 1.0
        %v7353 = vadd.f32 %v7308, 1.0
        %v7354 = vadd.f32 %v7310, 1.0
        %v7355 = vadd.f32 %v7312, 1.0
        %v7356 = vadd.f32 %v7314, 1.0
        %v7357 = vadd.f32 %v7316, 1.0
        %v7358 = vadd.f32 %v7318, 1.0
        %v7359 = vadd.f32 %v7320, 1.0
        %v7360 = vadd.f32 %v7322, 1.0
        %v7361 = vadd.f32 %v7324, 1.0
        %v7362 = vadd.f32 %v7326, 1.0
        %v7363 = vadd.f32 %v7328, 1.0
        %v7364 = vadd.f32 %v7330, 1.0
        %v7365 = vadd.f32 %v7332, 1.0
        %v7366 = vadd.f32 %v7334, 1.0
        %v7367 = vrcp.pop %v7335
        %v7368 = vmul.f32 1.0, %v7367
        %v7369 = vrcp.pop %v7336
        %v7370 = vmul.f32 1.0, %v7369
        %v7371 = vrcp.pop %v7337
        %v7372 = vmul.f32 1.0, %v7371
        %v7373 = vrcp.pop %v7338
        %v7374 = vmul.f32 1.0, %v7373
        %v7375 = vrcp.pop %v7339
        %v7376 = vmul.f32 1.0, %v7375
        %v7377 = vrcp.pop %v7340
        %v7378 = vmul.f32 1.0, %v7377
        %v7379 = vrcp.pop %v7341
        %v7380 = vmul.f32 1.0, %v7379
        %v7381 = vrcp.pop %v7342
        %v7382 = vmul.f32 1.0, %v7381
        %v7383 = vrcp.pop %v7343
        %v7384 = vmul.f32 1.0, %v7383
        %v7385 = vrcp.pop %v7344
        %v7386 = vmul.f32 1.0, %v7385
        %v7387 = vrcp.pop %v7345
        %v7388 = vmul.f32 1.0, %v7387
        %v7389 = vrcp.pop %v7346
        %v7390 = vmul.f32 1.0, %v7389
        %v7391 = vrcp.pop %v7347
        %v7392 = vmul.f32 1.0, %v7391
        %v7393 = vrcp.pop %v7348
        %v7394 = vmul.f32 1.0, %v7393
        %v7395 = vrcp.pop %v7349
        %v7396 = vmul.f32 1.0, %v7395
        %v7397 = vrcp.pop %v7350
        %v7398 = vmul.f32 1.0, %v7397
        %v7399 = vrcp.pop %v7351
        %v7400 = vmul.f32 1.0, %v7399
        %v7401 = vrcp.pop %v7352
        %v7402 = vmul.f32 1.0, %v7401
        %v7403 = vrcp.pop %v7353
        %v7404 = vmul.f32 1.0, %v7403
        %v7405 = vrcp.pop %v7354
        %v7406 = vmul.f32 1.0, %v7405
        %v7407 = vrcp.pop %v7355
        %v7408 = vmul.f32 1.0, %v7407
        %v7409 = vrcp.pop %v7356
        %v7410 = vmul.f32 1.0, %v7409
        %v7411 = vrcp.pop %v7357
        %v7412 = vmul.f32 1.0, %v7411
        %v7413 = vrcp.pop %v7358
        %v7414 = vmul.f32 1.0, %v7413
        %v7415 = vrcp.pop %v7359
        %v7416 = vmul.f32 1.0, %v7415
        %v7417 = vrcp.pop %v7360
        %v7418 = vmul.f32 1.0, %v7417
        %v7419 = vrcp.pop %v7361
        %v7420 = vmul.f32 1.0, %v7419
        %v7421 = vrcp.pop %v7362
        %v7422 = vmul.f32 1.0, %v7421
        %v7423 = vrcp.pop %v7363
        %v7424 = vmul.f32 1.0, %v7423
        %v7425 = vrcp.pop %v7364
        %v7426 = vmul.f32 1.0, %v7425
        %v7427 = vrcp.pop %v7365
        %v7428 = vmul.f32 1.0, %v7427
        %v7429 = vrcp.pop %v7366
        %v7430 = vmul.f32 1.0, %v7429
        %v7463 = vlaneseq
        %v7464 = vand.u32 %v7463, 127
        %v7465 = vlaneseq
        %v7466 = vshrl.u32 %v7465, 7
        %v7467 = vsub.s32 %v7464, %v7466
        %v7468 = vrot.slane %v7368, %v7467
        %v7469 = vadd.s32 %v7464, 4294967288
        %v7470 = vlaneseq
        %v7471 = vshrl.u32 %v7470, 7
        %v7472 = vsub.s32 %v7469, %v7471
        %v7473 = vrot.slane %v7370, %v7472
        %vm7474 = vcmask 130112
        %v7475 = vsel %vm7474, %v7473, %v7468
        %v7476 = vlaneseq
        %v7477 = vshrl.u32 %v7476, 7
        %v7478 = vsub.s32 %v7464, %v7477
        %v7479 = vrot.slane %v7372, %v7478
        %v7480 = vlaneseq
        %v7481 = vshrl.u32 %v7480, 7
        %v7482 = vsub.s32 %v7469, %v7481
        %v7483 = vrot.slane %v7374, %v7482
        %v7484 = vsel %vm7474, %v7483, %v7479
        %v7485 = vlaneseq
        %v7486 = vshrl.u32 %v7485, 7
        %v7487 = vsub.s32 %v7464, %v7486
        %v7488 = vrot.slane %v7376, %v7487
        %v7489 = vlaneseq
        %v7490 = vshrl.u32 %v7489, 7
        %v7491 = vsub.s32 %v7469, %v7490
        %v7492 = vrot.slane %v7378, %v7491
        %v7493 = vsel %vm7474, %v7492, %v7488
        %v7494 = vlaneseq
        %v7495 = vshrl.u32 %v7494, 7
        %v7496 = vsub.s32 %v7464, %v7495
        %v7497 = vrot.slane %v7380, %v7496
        %v7498 = vlaneseq
        %v7499 = vshrl.u32 %v7498, 7
        %v7500 = vsub.s32 %v7469, %v7499
        %v7501 = vrot.slane %v7382, %v7500
        %v7502 = vsel %vm7474, %v7501, %v7497
        %v7503 = vlaneseq
        %v7504 = vshrl.u32 %v7503, 7
        %v7505 = vsub.s32 %v7464, %v7504
        %v7506 = vrot.slane %v7384, %v7505
        %v7507 = vlaneseq
        %v7508 = vshrl.u32 %v7507, 7
        %v7509 = vsub.s32 %v7469, %v7508
        %v7510 = vrot.slane %v7386, %v7509
        %v7511 = vsel %vm7474, %v7510, %v7506
        %v7512 = vlaneseq
        %v7513 = vshrl.u32 %v7512, 7
        %v7514 = vsub.s32 %v7464, %v7513
        %v7515 = vrot.slane %v7388, %v7514
        %v7516 = vlaneseq
        %v7517 = vshrl.u32 %v7516, 7
        %v7518 = vsub.s32 %v7469, %v7517
        %v7519 = vrot.slane %v7390, %v7518
        %v7520 = vsel %vm7474, %v7519, %v7515
        %v7521 = vlaneseq
        %v7522 = vshrl.u32 %v7521, 7
        %v7523 = vsub.s32 %v7464, %v7522
        %v7524 = vrot.slane %v7392, %v7523
        %v7525 = vlaneseq
        %v7526 = vshrl.u32 %v7525, 7
        %v7527 = vsub.s32 %v7469, %v7526
        %v7528 = vrot.slane %v7394, %v7527
        %v7529 = vsel %vm7474, %v7528, %v7524
        %v7530 = vlaneseq
        %v7531 = vshrl.u32 %v7530, 7
        %v7532 = vsub.s32 %v7464, %v7531
        %v7533 = vrot.slane %v7396, %v7532
        %v7534 = vlaneseq
        %v7535 = vshrl.u32 %v7534, 7
        %v7536 = vsub.s32 %v7469, %v7535
        %v7537 = vrot.slane %v7398, %v7536
        %v7538 = vsel %vm7474, %v7537, %v7533
        %v7539 = vlaneseq
        %v7540 = vshrl.u32 %v7539, 7
        %v7541 = vsub.s32 %v7464, %v7540
        %v7542 = vrot.slane %v7400, %v7541
        %v7543 = vlaneseq
        %v7544 = vshrl.u32 %v7543, 7
        %v7545 = vsub.s32 %v7469, %v7544
        %v7546 = vrot.slane %v7402, %v7545
        %v7547 = vsel %vm7474, %v7546, %v7542
        %v7548 = vlaneseq
        %v7549 = vshrl.u32 %v7548, 7
        %v7550 = vsub.s32 %v7464, %v7549
        %v7551 = vrot.slane %v7404, %v7550
        %v7552 = vlaneseq
        %v7553 = vshrl.u32 %v7552, 7
        %v7554 = vsub.s32 %v7469, %v7553
        %v7555 = vrot.slane %v7406, %v7554
        %v7556 = vsel %vm7474, %v7555, %v7551
        %v7557 = vlaneseq
        %v7558 = vshrl.u32 %v7557, 7
        %v7559 = vsub.s32 %v7464, %v7558
        %v7560 = vrot.slane %v7408, %v7559
        %v7561 = vlaneseq
        %v7562 = vshrl.u32 %v7561, 7
        %v7563 = vsub.s32 %v7469, %v7562
        %v7564 = vrot.slane %v7410, %v7563
        %v7565 = vsel %vm7474, %v7564, %v7560
        %v7566 = vlaneseq
        %v7567 = vshrl.u32 %v7566, 7
        %v7568 = vsub.s32 %v7464, %v7567
        %v7569 = vrot.slane %v7412, %v7568
        %v7570 = vlaneseq
        %v7571 = vshrl.u32 %v7570, 7
        %v7572 = vsub.s32 %v7469, %v7571
        %v7573 = vrot.slane %v7414, %v7572
        %v7574 = vsel %vm7474, %v7573, %v7569
        %v7575 = vlaneseq
        %v7576 = vshrl.u32 %v7575, 7
        %v7577 = vsub.s32 %v7464, %v7576
        %v7578 = vrot.slane %v7416, %v7577
        %v7579 = vlaneseq
        %v7580 = vshrl.u32 %v7579, 7
        %v7581 = vsub.s32 %v7469, %v7580
        %v7582 = vrot.slane %v7418, %v7581
        %v7583 = vsel %vm7474, %v7582, %v7578
        %v7584 = vlaneseq
        %v7585 = vshrl.u32 %v7584, 7
        %v7586 = vsub.s32 %v7464, %v7585
        %v7587 = vrot.slane %v7420, %v7586
        %v7588 = vlaneseq
        %v7589 = vshrl.u32 %v7588, 7
        %v7590 = vsub.s32 %v7469, %v7589
        %v7591 = vrot.slane %v7422, %v7590
        %v7592 = vsel %vm7474, %v7591, %v7587
        %v7593 = vlaneseq
        %v7594 = vshrl.u32 %v7593, 7
        %v7595 = vsub.s32 %v7464, %v7594
        %v7596 = vrot.slane %v7424, %v7595
        %v7597 = vlaneseq
        %v7598 = vshrl.u32 %v7597, 7
        %v7599 = vsub.s32 %v7469, %v7598
        %v7600 = vrot.slane %v7426, %v7599
        %v7601 = vsel %vm7474, %v7600, %v7596
        %v7602 = vlaneseq
        %v7603 = vshrl.u32 %v7602, 7
        %v7604 = vsub.s32 %v7464, %v7603
        %v7605 = vrot.slane %v7428, %v7604
        %v7606 = vlaneseq
        %v7607 = vshrl.u32 %v7606, 7
        %v7608 = vsub.s32 %v7469, %v7607
        %v7609 = vrot.slane %v7430, %v7608
        %v7610 = vsel %vm7474, %v7609, %v7605
        %v7611 = vsel %vm777, %v7484, %v7475
        %v7612 = vsel %vm779, %v7493, %v7611
        %v7613 = vsel %vm781, %v7502, %v7612
        %v7614 = vsel %vm783, %v7511, %v7613
        %v7615 = vsel %vm785, %v7520, %v7614
        %v7616 = vsel %vm787, %v7529, %v7615
        %v7617 = vsel %vm789, %v7538, %v7616
        %v7618 = vsel %vm777, %v7556, %v7547
        %v7619 = vsel %vm779, %v7565, %v7618
        %v7620 = vsel %vm781, %v7574, %v7619
        %v7621 = vsel %vm783, %v7583, %v7620
        %v7622 = vsel %vm785, %v7592, %v7621
        %v7623 = vsel %vm787, %v7601, %v7622
        %v7624 = vsel %vm789, %v7610, %v7623
        %7627 = vst.msk [vmem:[%s244] sm:$0xff] %vm290, %v7617
        %7628 = vst.msk [vmem:[%s244 + $0x8] sm:$0xff] %vm290, %v7624
        %s7629 = sand.u32 %s159, 1
        %s7630 = scalar_lea.sflag [#allocation6], %s7629
        %s7631 = sand.u32 %s159, 1
        %s7632 = smul.addr %s7631, 16
        %s7633 = scalar_lea.vmem [#allocation5], %s7632
        // Predicated region
        $region45: #{conv_autoencoder_forward.1} parent=43 // pred_check
          %p7634 = pneg %p169
        $region46: #{conv_autoencoder_forward.1} parent=43 // pred_check_branch
          %7636 = sbr.rel (%p7634) target = $region48
        $region47: #{conv_autoencoder_forward.1} parent=43 // pred_region
          %s7638 = ssub.s32 256, 256
          %7639 = vsyncadd %s7630, %s7638
          %s7640 = smul.addr %s20, 2
          %s7641 = smul.addr %s7640, 128
          %s7642 = scalar_lea.hbm %s6, %s7641
          %s7643 = sshll.u32 %s7633, 4
          %s7644 = int_to_ptr.vmem [resolvable:$true] %s7643
          %7649 = dma.vmem_to_hbm [thread:$0]  %s7644, 256, %s7642, %s7630, 128, 128, 8
        $region48: #{conv_autoencoder_forward.1} parent=43 // pred_fallthru
          _
      $region44: #{conv_autoencoder_forward.1} parent=5 // pred_fallthru
        _
      %p7650 = scmp.le.s32.totalorder 2, %s15
      // Predicated region
      $region49: #{conv_autoencoder_forward.1} parent=5 // pred_check
        %p7651 = pneg %p7650
      $region50: #{conv_autoencoder_forward.1} parent=5 // pred_check_branch
        %7653 = sbr.rel (%p7651) target = $region52
      $region51: #{conv_autoencoder_forward.1} parent=5 // pred_region
        %s7654 = ssub.s32 %s15, 2
        // Predicated region
        $region53: #{conv_autoencoder_forward.1} parent=51 // pred_check
          %p7655 = pneg %p175
        $region54: #{conv_autoencoder_forward.1} parent=51 // pred_check_branch
          %7657 = sbr.rel (%p7655) target = $region56
        $region55: #{conv_autoencoder_forward.1} parent=51 // pred_region
          %s7658 = sand.u32 %s160, 1
          %s7659 = scalar_lea.sflag [#allocation6], %s7658
          %s7660 = sand.u32 %s160, 1
          %s7661 = smul.addr %s7660, 16
          %s7662 = scalar_lea.vmem [#allocation5], %s7661
          %7663 = dma.done %s7659, 256
        $region56: #{conv_autoencoder_forward.1} parent=51 // pred_fallthru
          _
      $region52: #{conv_autoencoder_forward.1} parent=5 // pred_fallthru
        _
    $region6: #{conv_autoencoder_forward.1} parent=1 // loop_footer
      %s19 = sadd.s32 1, %s15
    $region7: #{conv_autoencoder_forward.1} parent=1 // loop_footer_branch
      %14 = sbr.rel target = $region3
    $region8: #{conv_autoencoder_forward.1} parent=1 // loop_exit
      _
    %7664 = vsyncpa [#allocation6], 1
    %s7665 = scalar_lea.sflag [#allocation6], 1
    %7666 = vsyncpa %s7665, 1

</llo_original>
